<compile_context>
chip_gen: v7x
topology: tpu7x:2x2x1
jax: 0.10.0
libtpu: 0.0.40
codegen_flags: <defaults>
</compile_context>

<pallas_src>
import jax
import jax.numpy as jnp
from jax import lax
from jax.experimental import pallas as pl
from jax.experimental.pallas import tpu as pltpu


# --------------------------- fused forward kernel ---------------------------

def _fused_forward_kernel(x_ref, b1m_ref, b1c_ref, e24_ref, o24_ref,
                          ce1_ref, co1_ref, b2m_ref, b2c_ref,
                          e8_ref, o8_ref, ce2_ref, co2_ref,
                          wf1_ref, bf1_ref, wf2_ref, bf2_ref,
                          out_ref, p1_ref, p2_ref):
    f32 = jnp.float32

    # ---- conv1 + bias + ReLU: (28,28) -> (24, 480), col = co*24 + ow ------
    z1 = jnp.zeros((24, 480), f32)
    for kh in range(5):
        z1 = z1 + jnp.dot(x_ref[0, 0, kh:kh + 24, :], b1m_ref[kh],
                          preferred_element_type=f32)
    r1 = jnp.maximum(z1 + b1c_ref[...], 0.0)

    # ---- maxpool 2x2: (24,480) -> (12, 240), col = co*12 + ow' ------------
    rmax = jnp.maximum(jnp.dot(e24_ref[...], r1, preferred_element_type=f32),
                       jnp.dot(o24_ref[...], r1, preferred_element_type=f32))
    p1_ref[...] = jnp.maximum(
        jnp.dot(rmax, ce1_ref[...], preferred_element_type=f32),
        jnp.dot(rmax, co1_ref[...], preferred_element_type=f32))

    # ---- conv2 + bias + ReLU: (12,240) -> (8, 400), col = co*8 + ow -------
    z2 = jnp.zeros((8, 400), f32)
    for kh in range(5):
        z2 = z2 + jnp.dot(p1_ref[kh:kh + 8, :], b2m_ref[kh],
                          preferred_element_type=f32)
    r2 = jnp.maximum(z2 + b2c_ref[...], 0.0)

    # ---- maxpool 2x2: (8,400) -> (4, 200), col = co*4 + ow' ---------------
    rmax2 = jnp.maximum(jnp.dot(e8_ref[...], r2, preferred_element_type=f32),
                        jnp.dot(o8_ref[...], r2, preferred_element_type=f32))
    p2_ref[...] = jnp.maximum(
        jnp.dot(rmax2, ce2_ref[...], preferred_element_type=f32),
        jnp.dot(rmax2, co2_ref[...], preferred_element_type=f32))

    # ---- fc1 + ReLU (torch (C,H,W) flatten is folded into wf1) ------------
    h = bf1_ref[...]
    for hh in range(4):
        h = h + jnp.dot(p2_ref[hh:hh + 1, :], wf1_ref[hh],
                        preferred_element_type=f32)
    h = jnp.maximum(h, 0.0)

    # ---- fc2 ---------------------------------------------------------------
    y = jnp.dot(h, wf2_ref[...], preferred_element_type=f32) + bf2_ref[...]
    out_ref[...] = y[None].astype(out_ref.dtype)


_CONST_NAMES = ("B1", "b1c", "E24", "O24", "CE1", "CO1",
                "B2", "b2c", "E8", "O8", "CE2", "CO2",
                "WF1", "bfc1r", "WF2", "bfc2r")


def _full_spec(arr):
    nd = arr.ndim
    return pl.BlockSpec(arr.shape, lambda i, _nd=nd: (0,) * _nd)


@jax.jit
def forward(prepped, x_nchw):
    n = x_nchw.shape[0]
    consts = [prepped[k] for k in _CONST_NAMES]
    in_specs = [pl.BlockSpec((1, 1, 28, 28), lambda i: (i, 0, 0, 0))]
    in_specs += [_full_spec(c) for c in consts]
    out = pl.pallas_call(
        _fused_forward_kernel,
        out_shape=jax.ShapeDtypeStruct((n, 1, 10), jnp.float32),
        grid=(n,),
        in_specs=in_specs,
        out_specs=pl.BlockSpec((1, 1, 10), lambda i: (i, 0, 0)),
        scratch_shapes=[pltpu.VMEM((12, 240), jnp.float32),   # pool1 output
                        pltpu.VMEM((4, 200), jnp.float32)],   # pool2 output
        compiler_params=pltpu.CompilerParams(
            dimension_semantics=("parallel",)),
    )(x_nchw, *consts)
    return out.reshape(n, 10)


# ----------------------- one-time weight preparation ------------------------

def prepare_params(params):
    """Fold torch-layout weights into lane-dense, MXU-ready matrices.

    Runs once (outside the forward hot path): im2col gathers, pooling
    selection/compaction and the fc1 flatten permutation are all baked in.
    """
    f32 = jnp.float32
    w1 = params["w1"].astype(f32)      # (20, 1, 5, 5)
    w2 = params["w2"].astype(f32)      # (50, 20, 5, 5)
    wfc1 = params["wfc1"].astype(f32)  # (500, 800)
    wfc2 = params["wfc2"].astype(f32)  # (10, 500)

    # conv1: B1[kh, j, co*24 + ow] = w1[co, 0, kh, j - ow]  for 0 <= j-ow < 5
    w1s = w1[:, 0]                                           # (20, 5, 5)
    kh = jnp.arange(5)[:, None, None]
    j = jnp.arange(28)[None, :, None]
    col = jnp.arange(480)[None, None, :]
    co, ow = col // 24, col % 24
    kw = j - ow
    B1 = jnp.where((kw >= 0) & (kw < 5),
                   w1s[co, kh, jnp.clip(kw, 0, 4)], 0.0).astype(f32)

    # conv2: B2[kh, ci*12 + j, co*8 + w] = w2[co, ci, kh, j - w]
    kh = jnp.arange(5)[:, None, None]
    row = jnp.arange(240)[None, :, None]
    col = jnp.arange(400)[None, None, :]
    ci, jj = row // 12, row % 12
    co, w = col // 8, col % 8
    kw = jj - w
    B2 = jnp.where((kw >= 0) & (kw < 5),
                   w2[co, ci, kh, jnp.clip(kw, 0, 4)], 0.0).astype(f32)

    # fc1 with torch's (C, H, W) flatten folded in:
    # WF1[h, co*4 + w, n] = wfc1[n, co*16 + h*4 + w]
    hh = jnp.arange(4)[:, None, None]
    rc = jnp.arange(200)[None, :, None]
    nn = jnp.arange(500)[None, None, :]
    co, w = rc // 4, rc % 4
    WF1 = wfc1[nn, co * 16 + hh * 4 + w].astype(f32)

    def row_sel(nin, off):            # (nin//2, nin) 0/1 even/odd row picker
        r = jnp.arange(nin // 2)[:, None]
        c = jnp.arange(nin)[None, :]
        return (c == 2 * r + off).astype(f32)

    def col_sel(nchan, win, off):     # per-channel width pair-pick + compact
        r = jnp.arange(nchan * win)[:, None]
        c = jnp.arange(nchan * (win // 2))[None, :]
        same_chan = (r // win) == (c // (win // 2))
        match = (r % win) == 2 * (c % (win // 2)) + off
        return (same_chan & match).astype(f32)

    return {
        "B1": B1,
        "b1c": params["b1"].astype(f32)[jnp.arange(480) // 24][None, :],
        "E24": row_sel(24, 0), "O24": row_sel(24, 1),
        "CE1": col_sel(20, 24, 0), "CO1": col_sel(20, 24, 1),
        "B2": B2,
        "b2c": params["b2"].astype(f32)[jnp.arange(400) // 8][None, :],
        "E8": row_sel(8, 0), "O8": row_sel(8, 1),
        "CE2": col_sel(50, 8, 0), "CO2": col_sel(50, 8, 1),
        "WF1": WF1,
        "bfc1r": params["bfc1"].astype(f32)[None, :],
        "WF2": wfc2.T,
        "bfc2r": params["bfc2"].astype(f32)[None, :],
    }


# ------------------------------ params / reference --------------------------

def init_params(key):
    ks = jax.random.split(key, 8)
    s = 0.1
    return {
        "w1":   jax.random.normal(ks[0], (20, 1, 5, 5), jnp.float32) * s,
        "b1":   jax.random.normal(ks[1], (20,), jnp.float32) * s,
        "w2":   jax.random.normal(ks[2], (50, 20, 5, 5), jnp.float32) * s,
        "b2":   jax.random.normal(ks[3], (50,), jnp.float32) * s,
        "wfc1": jax.random.normal(ks[4], (500, 50 * 4 * 4), jnp.float32) * s,
        "bfc1": jax.random.normal(ks[5], (500,), jnp.float32) * s,
        "wfc2": jax.random.normal(ks[6], (10, 500), jnp.float32) * s,
        "bfc2": jax.random.normal(ks[7], (10,), jnp.float32) * s,
    }


def reference_forward(params, x):
    def conv(v, w, b):
        y = lax.conv_general_dilated(v, w, (1, 1), "VALID",
                                     dimension_numbers=("NCHW", "OIHW", "NCHW"))
        return y + b[None, :, None, None]

    def pool(v):
        return lax.reduce_window(v, -jnp.inf, lax.max,
                                 (1, 1, 2, 2), (1, 1, 2, 2), "VALID")

    with jax.default_matmul_precision("float32"):
        h = pool(jax.nn.relu(conv(x, params["w1"], params["b1"])))
        h = pool(jax.nn.relu(conv(h, params["w2"], params["b2"])))
        h = h.reshape(h.shape[0], -1)          # (C, H, W) order == torch view
        h = jax.nn.relu(h @ params["wfc1"].T + params["bfc1"])
        return h @ params["wfc2"].T + params["bfc2"]


# ----------------------------------- main ------------------------------------

if __name__ == "__main__":
    key = jax.random.PRNGKey(0)
    kp, kx = jax.random.split(key)
    params = init_params(kp)
    prepped = prepare_params(params)          # one-time weight folding
    # The 50*4*4 = 800 flatten implies a (N, 1, 28, 28) input
    # (28 -conv5-> 24 -pool-> 12 -conv5-> 8 -pool-> 4).
    x = jax.random.normal(kx, (2, 1, 28, 28), jnp.float32)

    y = forward(prepped, x)
    jax.block_until_ready(y)
    assert y.shape == (2, 10) and y.dtype == jnp.float32

    y_ref = reference_forward(params, x)
    assert jnp.max(jnp.abs(y - y_ref)) < 5e-2 * (1.0 + jnp.max(jnp.abs(y_ref)))
    print("KERNEL_OK")
</pallas_src>

<mosaic_0001>
module attributes {stable_mosaic.version = 11 : i64} {
  func.func @_fused_forward_kernel(%arg0: i32, %arg1: memref<1x1x28x28xf32, #tpu.memory_space<vmem>>, %arg2: memref<5x28x480xf32, #tpu.memory_space<vmem>>, %arg3: memref<1x480xf32, #tpu.memory_space<vmem>>, %arg4: memref<12x24xf32, #tpu.memory_space<vmem>>, %arg5: memref<12x24xf32, #tpu.memory_space<vmem>>, %arg6: memref<480x240xf32, #tpu.memory_space<vmem>>, %arg7: memref<480x240xf32, #tpu.memory_space<vmem>>, %arg8: memref<5x240x400xf32, #tpu.memory_space<vmem>>, %arg9: memref<1x400xf32, #tpu.memory_space<vmem>>, %arg10: memref<4x8xf32, #tpu.memory_space<vmem>>, %arg11: memref<4x8xf32, #tpu.memory_space<vmem>>, %arg12: memref<400x200xf32, #tpu.memory_space<vmem>>, %arg13: memref<400x200xf32, #tpu.memory_space<vmem>>, %arg14: memref<4x200x500xf32, #tpu.memory_space<vmem>>, %arg15: memref<1x500xf32, #tpu.memory_space<vmem>>, %arg16: memref<500x10xf32, #tpu.memory_space<vmem>>, %arg17: memref<1x10xf32, #tpu.memory_space<vmem>>, %arg18: memref<1x1x10xf32, #tpu.memory_space<vmem>>, %arg19: memref<12x240xf32, #tpu.memory_space<vmem>>, %arg20: memref<4x200xf32, #tpu.memory_space<vmem>>) attributes {dimension_semantics = [#tpu.dimension_semantics<parallel>], iteration_bounds = array<i64: 2>, scalar_prefetch = 0 : i64, scratch_operands = 2 : i64, tpu.core_type = #tpu.core_type<tc>, window_params = [{transform_indices = @transform_0, window_bounds = array<i64: 1, 1, 28, 28>}, {pipeline_mode = #tpu.pipeline_mode<synchronous>, transform_indices = @transform_1, window_bounds = array<i64: 5, 28, 480>}, {pipeline_mode = #tpu.pipeline_mode<synchronous>, transform_indices = @transform_2, window_bounds = array<i64: 1, 480>}, {pipeline_mode = #tpu.pipeline_mode<synchronous>, transform_indices = @transform_3, window_bounds = array<i64: 12, 24>}, {pipeline_mode = #tpu.pipeline_mode<synchronous>, transform_indices = @transform_4, window_bounds = array<i64: 12, 24>}, {pipeline_mode = #tpu.pipeline_mode<synchronous>, transform_indices = @transform_5, window_bounds = array<i64: 480, 240>}, {pipeline_mode = #tpu.pipeline_mode<synchronous>, transform_indices = @transform_6, window_bounds = array<i64: 480, 240>}, {pipeline_mode = #tpu.pipeline_mode<synchronous>, transform_indices = @transform_7, window_bounds = array<i64: 5, 240, 400>}, {pipeline_mode = #tpu.pipeline_mode<synchronous>, transform_indices = @transform_8, window_bounds = array<i64: 1, 400>}, {pipeline_mode = #tpu.pipeline_mode<synchronous>, transform_indices = @transform_9, window_bounds = array<i64: 4, 8>}, {pipeline_mode = #tpu.pipeline_mode<synchronous>, transform_indices = @transform_10, window_bounds = array<i64: 4, 8>}, {pipeline_mode = #tpu.pipeline_mode<synchronous>, transform_indices = @transform_11, window_bounds = array<i64: 400, 200>}, {pipeline_mode = #tpu.pipeline_mode<synchronous>, transform_indices = @transform_12, window_bounds = array<i64: 400, 200>}, {pipeline_mode = #tpu.pipeline_mode<synchronous>, transform_indices = @transform_13, window_bounds = array<i64: 4, 200, 500>}, {pipeline_mode = #tpu.pipeline_mode<synchronous>, transform_indices = @transform_14, window_bounds = array<i64: 1, 500>}, {pipeline_mode = #tpu.pipeline_mode<synchronous>, transform_indices = @transform_15, window_bounds = array<i64: 500, 10>}, {pipeline_mode = #tpu.pipeline_mode<synchronous>, transform_indices = @transform_16, window_bounds = array<i64: 1, 10>}, {transform_indices = @transform_17, window_bounds = array<i64: 1, 1, 10>}]} {
    %cst = arith.constant 0.000000e+00 : f32
    %0 = vector.broadcast %cst : f32 to vector<24x480xf32>
    %c0 = arith.constant 0 : index
    %c0_0 = arith.constant 0 : index
    %c0_1 = arith.constant 0 : index
    %c0_2 = arith.constant 0 : index
    %1 = vector.load %arg1[%c0, %c0_0, %c0_1, %c0_2] : memref<1x1x28x28xf32, #tpu.memory_space<vmem>>, vector<1x1x24x28xf32>
    %2 = vector.shape_cast %1 : vector<1x1x24x28xf32> to vector<24x28xf32>
    %c0_3 = arith.constant 0 : index
    %c0_4 = arith.constant 0 : index
    %c0_5 = arith.constant 0 : index
    %3 = vector.load %arg2[%c0_3, %c0_4, %c0_5] : memref<5x28x480xf32, #tpu.memory_space<vmem>>, vector<1x28x480xf32>
    %4 = vector.shape_cast %3 : vector<1x28x480xf32> to vector<28x480xf32>
    %cst_6 = arith.constant dense<0.000000e+00> : vector<24x480xf32>
    %5 = tpu.matmul %2, %4, %cst_6 {dimension_numbers = #tpu.dot_dimension_numbers<[1], [0], [0], [1], [0, 0, 1, 1], [], []>} : vector<24x28xf32>, vector<28x480xf32>, vector<24x480xf32> -> vector<24x480xf32>
    %6 = arith.addf %0, %5 : vector<24x480xf32>
    %c0_7 = arith.constant 0 : index
    %c0_8 = arith.constant 0 : index
    %c1 = arith.constant 1 : index
    %c0_9 = arith.constant 0 : index
    %7 = vector.load %arg1[%c0_7, %c0_8, %c1, %c0_9] : memref<1x1x28x28xf32, #tpu.memory_space<vmem>>, vector<1x1x24x28xf32>
    %8 = vector.shape_cast %7 : vector<1x1x24x28xf32> to vector<24x28xf32>
    %c1_10 = arith.constant 1 : index
    %c0_11 = arith.constant 0 : index
    %c0_12 = arith.constant 0 : index
    %9 = vector.load %arg2[%c1_10, %c0_11, %c0_12] : memref<5x28x480xf32, #tpu.memory_space<vmem>>, vector<1x28x480xf32>
    %10 = vector.shape_cast %9 : vector<1x28x480xf32> to vector<28x480xf32>
    %cst_13 = arith.constant dense<0.000000e+00> : vector<24x480xf32>
    %11 = tpu.matmul %8, %10, %cst_13 {dimension_numbers = #tpu.dot_dimension_numbers<[1], [0], [0], [1], [0, 0, 1, 1], [], []>} : vector<24x28xf32>, vector<28x480xf32>, vector<24x480xf32> -> vector<24x480xf32>
    %12 = arith.addf %6, %11 : vector<24x480xf32>
    %c0_14 = arith.constant 0 : index
    %c0_15 = arith.constant 0 : index
    %c2 = arith.constant 2 : index
    %c0_16 = arith.constant 0 : index
    %13 = vector.load %arg1[%c0_14, %c0_15, %c2, %c0_16] : memref<1x1x28x28xf32, #tpu.memory_space<vmem>>, vector<1x1x24x28xf32>
    %14 = vector.shape_cast %13 : vector<1x1x24x28xf32> to vector<24x28xf32>
    %c2_17 = arith.constant 2 : index
    %c0_18 = arith.constant 0 : index
    %c0_19 = arith.constant 0 : index
    %15 = vector.load %arg2[%c2_17, %c0_18, %c0_19] : memref<5x28x480xf32, #tpu.memory_space<vmem>>, vector<1x28x480xf32>
    %16 = vector.shape_cast %15 : vector<1x28x480xf32> to vector<28x480xf32>
    %cst_20 = arith.constant dense<0.000000e+00> : vector<24x480xf32>
    %17 = tpu.matmul %14, %16, %cst_20 {dimension_numbers = #tpu.dot_dimension_numbers<[1], [0], [0], [1], [0, 0, 1, 1], [], []>} : vector<24x28xf32>, vector<28x480xf32>, vector<24x480xf32> -> vector<24x480xf32>
    %18 = arith.addf %12, %17 : vector<24x480xf32>
    %c0_21 = arith.constant 0 : index
    %c0_22 = arith.constant 0 : index
    %c3 = arith.constant 3 : index
    %c0_23 = arith.constant 0 : index
    %19 = vector.load %arg1[%c0_21, %c0_22, %c3, %c0_23] : memref<1x1x28x28xf32, #tpu.memory_space<vmem>>, vector<1x1x24x28xf32>
    %20 = vector.shape_cast %19 : vector<1x1x24x28xf32> to vector<24x28xf32>
    %c3_24 = arith.constant 3 : index
    %c0_25 = arith.constant 0 : index
    %c0_26 = arith.constant 0 : index
    %21 = vector.load %arg2[%c3_24, %c0_25, %c0_26] : memref<5x28x480xf32, #tpu.memory_space<vmem>>, vector<1x28x480xf32>
    %22 = vector.shape_cast %21 : vector<1x28x480xf32> to vector<28x480xf32>
    %cst_27 = arith.constant dense<0.000000e+00> : vector<24x480xf32>
    %23 = tpu.matmul %20, %22, %cst_27 {dimension_numbers = #tpu.dot_dimension_numbers<[1], [0], [0], [1], [0, 0, 1, 1], [], []>} : vector<24x28xf32>, vector<28x480xf32>, vector<24x480xf32> -> vector<24x480xf32>
    %24 = arith.addf %18, %23 : vector<24x480xf32>
    %c0_28 = arith.constant 0 : index
    %c0_29 = arith.constant 0 : index
    %c4 = arith.constant 4 : index
    %c0_30 = arith.constant 0 : index
    %25 = vector.load %arg1[%c0_28, %c0_29, %c4, %c0_30] : memref<1x1x28x28xf32, #tpu.memory_space<vmem>>, vector<1x1x24x28xf32>
    %26 = vector.shape_cast %25 : vector<1x1x24x28xf32> to vector<24x28xf32>
    %c4_31 = arith.constant 4 : index
    %c0_32 = arith.constant 0 : index
    %c0_33 = arith.constant 0 : index
    %27 = vector.load %arg2[%c4_31, %c0_32, %c0_33] : memref<5x28x480xf32, #tpu.memory_space<vmem>>, vector<1x28x480xf32>
    %28 = vector.shape_cast %27 : vector<1x28x480xf32> to vector<28x480xf32>
    %cst_34 = arith.constant dense<0.000000e+00> : vector<24x480xf32>
    %29 = tpu.matmul %26, %28, %cst_34 {dimension_numbers = #tpu.dot_dimension_numbers<[1], [0], [0], [1], [0, 0, 1, 1], [], []>} : vector<24x28xf32>, vector<28x480xf32>, vector<24x480xf32> -> vector<24x480xf32>
    %30 = arith.addf %24, %29 : vector<24x480xf32>
    %c0_35 = arith.constant 0 : index
    %c0_36 = arith.constant 0 : index
    %31 = vector.load %arg3[%c0_35, %c0_36] : memref<1x480xf32, #tpu.memory_space<vmem>>, vector<1x480xf32>
    %32 = vector.broadcast %31 : vector<1x480xf32> to vector<24x480xf32>
    %33 = arith.addf %30, %32 : vector<24x480xf32>
    %cst_37 = arith.constant 0.000000e+00 : f32
    %34 = vector.broadcast %cst_37 : f32 to vector<24x480xf32>
    %35 = arith.maximumf %33, %34 : vector<24x480xf32>
    %c0_38 = arith.constant 0 : index
    %c0_39 = arith.constant 0 : index
    %36 = vector.load %arg4[%c0_38, %c0_39] : memref<12x24xf32, #tpu.memory_space<vmem>>, vector<12x24xf32>
    %cst_40 = arith.constant dense<0.000000e+00> : vector<12x480xf32>
    %37 = tpu.matmul %36, %35, %cst_40 {dimension_numbers = #tpu.dot_dimension_numbers<[1], [0], [0], [1], [0, 0, 1, 1], [], []>} : vector<12x24xf32>, vector<24x480xf32>, vector<12x480xf32> -> vector<12x480xf32>
    %c0_41 = arith.constant 0 : index
    %c0_42 = arith.constant 0 : index
    %38 = vector.load %arg5[%c0_41, %c0_42] : memref<12x24xf32, #tpu.memory_space<vmem>>, vector<12x24xf32>
    %cst_43 = arith.constant dense<0.000000e+00> : vector<12x480xf32>
    %39 = tpu.matmul %38, %35, %cst_43 {dimension_numbers = #tpu.dot_dimension_numbers<[1], [0], [0], [1], [0, 0, 1, 1], [], []>} : vector<12x24xf32>, vector<24x480xf32>, vector<12x480xf32> -> vector<12x480xf32>
    %40 = arith.maximumf %37, %39 : vector<12x480xf32>
    %c0_44 = arith.constant 0 : index
    %c0_45 = arith.constant 0 : index
    %41 = vector.load %arg6[%c0_44, %c0_45] : memref<480x240xf32, #tpu.memory_space<vmem>>, vector<480x240xf32>
    %cst_46 = arith.constant dense<0.000000e+00> : vector<12x240xf32>
    %42 = tpu.matmul %40, %41, %cst_46 {dimension_numbers = #tpu.dot_dimension_numbers<[1], [0], [0], [1], [0, 0, 1, 1], [], []>} : vector<12x480xf32>, vector<480x240xf32>, vector<12x240xf32> -> vector<12x240xf32>
    %c0_47 = arith.constant 0 : index
    %c0_48 = arith.constant 0 : index
    %43 = vector.load %arg7[%c0_47, %c0_48] : memref<480x240xf32, #tpu.memory_space<vmem>>, vector<480x240xf32>
    %cst_49 = arith.constant dense<0.000000e+00> : vector<12x240xf32>
    %44 = tpu.matmul %40, %43, %cst_49 {dimension_numbers = #tpu.dot_dimension_numbers<[1], [0], [0], [1], [0, 0, 1, 1], [], []>} : vector<12x480xf32>, vector<480x240xf32>, vector<12x240xf32> -> vector<12x240xf32>
    %45 = arith.maximumf %42, %44 : vector<12x240xf32>
    %c0_50 = arith.constant 0 : index
    %c0_51 = arith.constant 0 : index
    %46 = vector.load %arg19[%c0_50, %c0_51] : memref<12x240xf32, #tpu.memory_space<vmem>>, vector<12x240xf32>
    tpu.vector_store %arg19[%c0_50, %c0_51], %45 {strides = array<i32>} : memref<12x240xf32, #tpu.memory_space<vmem>>, vector<12x240xf32>,
    %cst_52 = arith.constant 0.000000e+00 : f32
    %47 = vector.broadcast %cst_52 : f32 to vector<8x400xf32>
    %c0_53 = arith.constant 0 : index
    %c0_54 = arith.constant 0 : index
    %48 = vector.load %arg19[%c0_53, %c0_54] : memref<12x240xf32, #tpu.memory_space<vmem>>, vector<8x240xf32>
    %c0_55 = arith.constant 0 : index
    %c0_56 = arith.constant 0 : index
    %c0_57 = arith.constant 0 : index
    %49 = vector.load %arg8[%c0_55, %c0_56, %c0_57] : memref<5x240x400xf32, #tpu.memory_space<vmem>>, vector<1x240x400xf32>
    %50 = vector.shape_cast %49 : vector<1x240x400xf32> to vector<240x400xf32>
    %cst_58 = arith.constant dense<0.000000e+00> : vector<8x400xf32>
    %51 = tpu.matmul %48, %50, %cst_58 {dimension_numbers = #tpu.dot_dimension_numbers<[1], [0], [0], [1], [0, 0, 1, 1], [], []>} : vector<8x240xf32>, vector<240x400xf32>, vector<8x400xf32> -> vector<8x400xf32>
    %52 = arith.addf %47, %51 : vector<8x400xf32>
    %c1_59 = arith.constant 1 : index
    %c0_60 = arith.constant 0 : index
    %53 = vector.load %arg19[%c1_59, %c0_60] : memref<12x240xf32, #tpu.memory_space<vmem>>, vector<8x240xf32>
    %c1_61 = arith.constant 1 : index
    %c0_62 = arith.constant 0 : index
    %c0_63 = arith.constant 0 : index
    %54 = vector.load %arg8[%c1_61, %c0_62, %c0_63] : memref<5x240x400xf32, #tpu.memory_space<vmem>>, vector<1x240x400xf32>
    %55 = vector.shape_cast %54 : vector<1x240x400xf32> to vector<240x400xf32>
    %cst_64 = arith.constant dense<0.000000e+00> : vector<8x400xf32>
    %56 = tpu.matmul %53, %55, %cst_64 {dimension_numbers = #tpu.dot_dimension_numbers<[1], [0], [0], [1], [0, 0, 1, 1], [], []>} : vector<8x240xf32>, vector<240x400xf32>, vector<8x400xf32> -> vector<8x400xf32>
    %57 = arith.addf %52, %56 : vector<8x400xf32>
    %c2_65 = arith.constant 2 : index
    %c0_66 = arith.constant 0 : index
    %58 = vector.load %arg19[%c2_65, %c0_66] : memref<12x240xf32, #tpu.memory_space<vmem>>, vector<8x240xf32>
    %c2_67 = arith.constant 2 : index
    %c0_68 = arith.constant 0 : index
    %c0_69 = arith.constant 0 : index
    %59 = vector.load %arg8[%c2_67, %c0_68, %c0_69] : memref<5x240x400xf32, #tpu.memory_space<vmem>>, vector<1x240x400xf32>
    %60 = vector.shape_cast %59 : vector<1x240x400xf32> to vector<240x400xf32>
    %cst_70 = arith.constant dense<0.000000e+00> : vector<8x400xf32>
    %61 = tpu.matmul %58, %60, %cst_70 {dimension_numbers = #tpu.dot_dimension_numbers<[1], [0], [0], [1], [0, 0, 1, 1], [], []>} : vector<8x240xf32>, vector<240x400xf32>, vector<8x400xf32> -> vector<8x400xf32>
    %62 = arith.addf %57, %61 : vector<8x400xf32>
    %c3_71 = arith.constant 3 : index
    %c0_72 = arith.constant 0 : index
    %63 = vector.load %arg19[%c3_71, %c0_72] : memref<12x240xf32, #tpu.memory_space<vmem>>, vector<8x240xf32>
    %c3_73 = arith.constant 3 : index
    %c0_74 = arith.constant 0 : index
    %c0_75 = arith.constant 0 : index
    %64 = vector.load %arg8[%c3_73, %c0_74, %c0_75] : memref<5x240x400xf32, #tpu.memory_space<vmem>>, vector<1x240x400xf32>
    %65 = vector.shape_cast %64 : vector<1x240x400xf32> to vector<240x400xf32>
    %cst_76 = arith.constant dense<0.000000e+00> : vector<8x400xf32>
    %66 = tpu.matmul %63, %65, %cst_76 {dimension_numbers = #tpu.dot_dimension_numbers<[1], [0], [0], [1], [0, 0, 1, 1], [], []>} : vector<8x240xf32>, vector<240x400xf32>, vector<8x400xf32> -> vector<8x400xf32>
    %67 = arith.addf %62, %66 : vector<8x400xf32>
    %c4_77 = arith.constant 4 : index
    %c0_78 = arith.constant 0 : index
    %68 = vector.load %arg19[%c4_77, %c0_78] : memref<12x240xf32, #tpu.memory_space<vmem>>, vector<8x240xf32>
    %c4_79 = arith.constant 4 : index
    %c0_80 = arith.constant 0 : index
    %c0_81 = arith.constant 0 : index
    %69 = vector.load %arg8[%c4_79, %c0_80, %c0_81] : memref<5x240x400xf32, #tpu.memory_space<vmem>>, vector<1x240x400xf32>
    %70 = vector.shape_cast %69 : vector<1x240x400xf32> to vector<240x400xf32>
    %cst_82 = arith.constant dense<0.000000e+00> : vector<8x400xf32>
    %71 = tpu.matmul %68, %70, %cst_82 {dimension_numbers = #tpu.dot_dimension_numbers<[1], [0], [0], [1], [0, 0, 1, 1], [], []>} : vector<8x240xf32>, vector<240x400xf32>, vector<8x400xf32> -> vector<8x400xf32>
    %72 = arith.addf %67, %71 : vector<8x400xf32>
    %c0_83 = arith.constant 0 : index
    %c0_84 = arith.constant 0 : index
    %73 = vector.load %arg9[%c0_83, %c0_84] : memref<1x400xf32, #tpu.memory_space<vmem>>, vector<1x400xf32>
    %74 = vector.broadcast %73 : vector<1x400xf32> to vector<8x400xf32>
    %75 = arith.addf %72, %74 : vector<8x400xf32>
    %cst_85 = arith.constant 0.000000e+00 : f32
    %76 = vector.broadcast %cst_85 : f32 to vector<8x400xf32>
    %77 = arith.maximumf %75, %76 : vector<8x400xf32>
    %c0_86 = arith.constant 0 : index
    %c0_87 = arith.constant 0 : index
    %78 = vector.load %arg10[%c0_86, %c0_87] : memref<4x8xf32, #tpu.memory_space<vmem>>, vector<4x8xf32>
    %cst_88 = arith.constant dense<0.000000e+00> : vector<4x400xf32>
    %79 = tpu.matmul %78, %77, %cst_88 {dimension_numbers = #tpu.dot_dimension_numbers<[1], [0], [0], [1], [0, 0, 1, 1], [], []>} : vector<4x8xf32>, vector<8x400xf32>, vector<4x400xf32> -> vector<4x400xf32>
    %c0_89 = arith.constant 0 : index
    %c0_90 = arith.constant 0 : index
    %80 = vector.load %arg11[%c0_89, %c0_90] : memref<4x8xf32, #tpu.memory_space<vmem>>, vector<4x8xf32>
    %cst_91 = arith.constant dense<0.000000e+00> : vector<4x400xf32>
    %81 = tpu.matmul %80, %77, %cst_91 {dimension_numbers = #tpu.dot_dimension_numbers<[1], [0], [0], [1], [0, 0, 1, 1], [], []>} : vector<4x8xf32>, vector<8x400xf32>, vector<4x400xf32> -> vector<4x400xf32>
    %82 = arith.maximumf %79, %81 : vector<4x400xf32>
    %c0_92 = arith.constant 0 : index
    %c0_93 = arith.constant 0 : index
    %83 = vector.load %arg12[%c0_92, %c0_93] : memref<400x200xf32, #tpu.memory_space<vmem>>, vector<400x200xf32>
    %cst_94 = arith.constant dense<0.000000e+00> : vector<4x200xf32>
    %84 = tpu.matmul %82, %83, %cst_94 {dimension_numbers = #tpu.dot_dimension_numbers<[1], [0], [0], [1], [0, 0, 1, 1], [], []>} : vector<4x400xf32>, vector<400x200xf32>, vector<4x200xf32> -> vector<4x200xf32>
    %c0_95 = arith.constant 0 : index
    %c0_96 = arith.constant 0 : index
    %85 = vector.load %arg13[%c0_95, %c0_96] : memref<400x200xf32, #tpu.memory_space<vmem>>, vector<400x200xf32>
    %cst_97 = arith.constant dense<0.000000e+00> : vector<4x200xf32>
    %86 = tpu.matmul %82, %85, %cst_97 {dimension_numbers = #tpu.dot_dimension_numbers<[1], [0], [0], [1], [0, 0, 1, 1], [], []>} : vector<4x400xf32>, vector<400x200xf32>, vector<4x200xf32> -> vector<4x200xf32>
    %87 = arith.maximumf %84, %86 : vector<4x200xf32>
    %c0_98 = arith.constant 0 : index
    %c0_99 = arith.constant 0 : index
    %88 = vector.load %arg20[%c0_98, %c0_99] : memref<4x200xf32, #tpu.memory_space<vmem>>, vector<4x200xf32>
    tpu.vector_store %arg20[%c0_98, %c0_99], %87 {strides = array<i32>} : memref<4x200xf32, #tpu.memory_space<vmem>>, vector<4x200xf32>,
    %c0_100 = arith.constant 0 : index
    %c0_101 = arith.constant 0 : index
    %89 = vector.load %arg15[%c0_100, %c0_101] : memref<1x500xf32, #tpu.memory_space<vmem>>, vector<1x500xf32>
    %c0_102 = arith.constant 0 : index
    %c0_103 = arith.constant 0 : index
    %90 = vector.load %arg20[%c0_102, %c0_103] : memref<4x200xf32, #tpu.memory_space<vmem>>, vector<1x200xf32>
    %c0_104 = arith.constant 0 : index
    %c0_105 = arith.constant 0 : index
    %c0_106 = arith.constant 0 : index
    %91 = vector.load %arg14[%c0_104, %c0_105, %c0_106] : memref<4x200x500xf32, #tpu.memory_space<vmem>>, vector<1x200x500xf32>
    %92 = vector.shape_cast %91 : vector<1x200x500xf32> to vector<200x500xf32>
    %cst_107 = arith.constant dense<0.000000e+00> : vector<1x500xf32>
    %93 = tpu.matmul %90, %92, %cst_107 {dimension_numbers = #tpu.dot_dimension_numbers<[1], [0], [0], [1], [0, 0, 1, 1], [], []>} : vector<1x200xf32>, vector<200x500xf32>, vector<1x500xf32> -> vector<1x500xf32>
    %94 = arith.addf %89, %93 : vector<1x500xf32>
    %c1_108 = arith.constant 1 : index
    %c0_109 = arith.constant 0 : index
    %95 = vector.load %arg20[%c1_108, %c0_109] : memref<4x200xf32, #tpu.memory_space<vmem>>, vector<1x200xf32>
    %c1_110 = arith.constant 1 : index
    %c0_111 = arith.constant 0 : index
    %c0_112 = arith.constant 0 : index
    %96 = vector.load %arg14[%c1_110, %c0_111, %c0_112] : memref<4x200x500xf32, #tpu.memory_space<vmem>>, vector<1x200x500xf32>
    %97 = vector.shape_cast %96 : vector<1x200x500xf32> to vector<200x500xf32>
    %cst_113 = arith.constant dense<0.000000e+00> : vector<1x500xf32>
    %98 = tpu.matmul %95, %97, %cst_113 {dimension_numbers = #tpu.dot_dimension_numbers<[1], [0], [0], [1], [0, 0, 1, 1], [], []>} : vector<1x200xf32>, vector<200x500xf32>, vector<1x500xf32> -> vector<1x500xf32>
    %99 = arith.addf %94, %98 : vector<1x500xf32>
    %c2_114 = arith.constant 2 : index
    %c0_115 = arith.constant 0 : index
    %100 = vector.load %arg20[%c2_114, %c0_115] : memref<4x200xf32, #tpu.memory_space<vmem>>, vector<1x200xf32>
    %c2_116 = arith.constant 2 : index
    %c0_117 = arith.constant 0 : index
    %c0_118 = arith.constant 0 : index
    %101 = vector.load %arg14[%c2_116, %c0_117, %c0_118] : memref<4x200x500xf32, #tpu.memory_space<vmem>>, vector<1x200x500xf32>
    %102 = vector.shape_cast %101 : vector<1x200x500xf32> to vector<200x500xf32>
    %cst_119 = arith.constant dense<0.000000e+00> : vector<1x500xf32>
    %103 = tpu.matmul %100, %102, %cst_119 {dimension_numbers = #tpu.dot_dimension_numbers<[1], [0], [0], [1], [0, 0, 1, 1], [], []>} : vector<1x200xf32>, vector<200x500xf32>, vector<1x500xf32> -> vector<1x500xf32>
    %104 = arith.addf %99, %103 : vector<1x500xf32>
    %c3_120 = arith.constant 3 : index
    %c0_121 = arith.constant 0 : index
    %105 = vector.load %arg20[%c3_120, %c0_121] : memref<4x200xf32, #tpu.memory_space<vmem>>, vector<1x200xf32>
    %c3_122 = arith.constant 3 : index
    %c0_123 = arith.constant 0 : index
    %c0_124 = arith.constant 0 : index
    %106 = vector.load %arg14[%c3_122, %c0_123, %c0_124] : memref<4x200x500xf32, #tpu.memory_space<vmem>>, vector<1x200x500xf32>
    %107 = vector.shape_cast %106 : vector<1x200x500xf32> to vector<200x500xf32>
    %cst_125 = arith.constant dense<0.000000e+00> : vector<1x500xf32>
    %108 = tpu.matmul %105, %107, %cst_125 {dimension_numbers = #tpu.dot_dimension_numbers<[1], [0], [0], [1], [0, 0, 1, 1], [], []>} : vector<1x200xf32>, vector<200x500xf32>, vector<1x500xf32> -> vector<1x500xf32>
    %109 = arith.addf %104, %108 : vector<1x500xf32>
    %cst_126 = arith.constant 0.000000e+00 : f32
    %110 = vector.broadcast %cst_126 : f32 to vector<1x500xf32>
    %111 = arith.maximumf %109, %110 : vector<1x500xf32>
    %c0_127 = arith.constant 0 : index
    %c0_128 = arith.constant 0 : index
    %112 = vector.load %arg16[%c0_127, %c0_128] : memref<500x10xf32, #tpu.memory_space<vmem>>, vector<500x10xf32>
    %cst_129 = arith.constant dense<0.000000e+00> : vector<1x10xf32>
    %113 = tpu.matmul %111, %112, %cst_129 {dimension_numbers = #tpu.dot_dimension_numbers<[1], [0], [0], [1], [0, 0, 1, 1], [], []>} : vector<1x500xf32>, vector<500x10xf32>, vector<1x10xf32> -> vector<1x10xf32>
    %c0_130 = arith.constant 0 : index
    %c0_131 = arith.constant 0 : index
    %114 = vector.load %arg17[%c0_130, %c0_131] : memref<1x10xf32, #tpu.memory_space<vmem>>, vector<1x10xf32>
    %115 = arith.addf %113, %114 : vector<1x10xf32>
    %116 = vector.shape_cast %115 : vector<1x10xf32> to vector<1x1x10xf32>
    %c0_132 = arith.constant 0 : index
    %c0_133 = arith.constant 0 : index
    %c0_134 = arith.constant 0 : index
    %117 = vector.load %arg18[%c0_132, %c0_133, %c0_134] : memref<1x1x10xf32, #tpu.memory_space<vmem>>, vector<1x1x10xf32>
    tpu.vector_store %arg18[%c0_132, %c0_133, %c0_134], %116 {strides = array<i32>} : memref<1x1x10xf32, #tpu.memory_space<vmem>>, vector<1x1x10xf32>,
    return
  }
  func.func @transform_0(%arg0: i32) -> (i32, i32, i32, i32) {
    %c0_i32 = arith.constant 0 : i32
    %c0_i32_0 = arith.constant 0 : i32
    %c0_i32_1 = arith.constant 0 : i32
    %c0_i32_2 = arith.constant 0 : i32
    return %arg0, %c0_i32, %c0_i32_0, %c0_i32_1 : i32, i32, i32, i32
  }
  func.func @transform_1(%arg0: i32) -> (i32, i32, i32) {
    %c0_i32 = arith.constant 0 : i32
    %c0_i32_0 = arith.constant 0 : i32
    %c0_i32_1 = arith.constant 0 : i32
    %c0_i32_2 = arith.constant 0 : i32
    return %c0_i32, %c0_i32_0, %c0_i32_1 : i32, i32, i32
  }
  func.func @transform_2(%arg0: i32) -> (i32, i32) {
    %c0_i32 = arith.constant 0 : i32
    %c0_i32_0 = arith.constant 0 : i32
    %c0_i32_1 = arith.constant 0 : i32
    return %c0_i32, %c0_i32_0 : i32, i32
  }
  func.func @transform_3(%arg0: i32) -> (i32, i32) {
    %c0_i32 = arith.constant 0 : i32
    %c0_i32_0 = arith.constant 0 : i32
    %c0_i32_1 = arith.constant 0 : i32
    return %c0_i32, %c0_i32_0 : i32, i32
  }
  func.func @transform_4(%arg0: i32) -> (i32, i32) {
    %c0_i32 = arith.constant 0 : i32
    %c0_i32_0 = arith.constant 0 : i32
    %c0_i32_1 = arith.constant 0 : i32
    return %c0_i32, %c0_i32_0 : i32, i32
  }
  func.func @transform_5(%arg0: i32) -> (i32, i32) {
    %c0_i32 = arith.constant 0 : i32
    %c0_i32_0 = arith.constant 0 : i32
    %c0_i32_1 = arith.constant 0 : i32
    return %c0_i32, %c0_i32_0 : i32, i32
  }
  func.func @transform_6(%arg0: i32) -> (i32, i32) {
    %c0_i32 = arith.constant 0 : i32
    %c0_i32_0 = arith.constant 0 : i32
    %c0_i32_1 = arith.constant 0 : i32
    return %c0_i32, %c0_i32_0 : i32, i32
  }
  func.func @transform_7(%arg0: i32) -> (i32, i32, i32) {
    %c0_i32 = arith.constant 0 : i32
    %c0_i32_0 = arith.constant 0 : i32
    %c0_i32_1 = arith.constant 0 : i32
    %c0_i32_2 = arith.constant 0 : i32
    return %c0_i32, %c0_i32_0, %c0_i32_1 : i32, i32, i32
  }
  func.func @transform_8(%arg0: i32) -> (i32, i32) {
    %c0_i32 = arith.constant 0 : i32
    %c0_i32_0 = arith.constant 0 : i32
    %c0_i32_1 = arith.constant 0 : i32
    return %c0_i32, %c0_i32_0 : i32, i32
  }
  func.func @transform_9(%arg0: i32) -> (i32, i32) {
    %c0_i32 = arith.constant 0 : i32
    %c0_i32_0 = arith.constant 0 : i32
    %c0_i32_1 = arith.constant 0 : i32
    return %c0_i32, %c0_i32_0 : i32, i32
  }
  func.func @transform_10(%arg0: i32) -> (i32, i32) {
    %c0_i32 = arith.constant 0 : i32
    %c0_i32_0 = arith.constant 0 : i32
    %c0_i32_1 = arith.constant 0 : i32
    return %c0_i32, %c0_i32_0 : i32, i32
  }
  func.func @transform_11(%arg0: i32) -> (i32, i32) {
    %c0_i32 = arith.constant 0 : i32
    %c0_i32_0 = arith.constant 0 : i32
    %c0_i32_1 = arith.constant 0 : i32
    return %c0_i32, %c0_i32_0 : i32, i32
  }
  func.func @transform_12(%arg0: i32) -> (i32, i32) {
    %c0_i32 = arith.constant 0 : i32
    %c0_i32_0 = arith.constant 0 : i32
    %c0_i32_1 = arith.constant 0 : i32
    return %c0_i32, %c0_i32_0 : i32, i32
  }
  func.func @transform_13(%arg0: i32) -> (i32, i32, i32) {
    %c0_i32 = arith.constant 0 : i32
    %c0_i32_0 = arith.constant 0 : i32
    %c0_i32_1 = arith.constant 0 : i32
    %c0_i32_2 = arith.constant 0 : i32
    return %c0_i32, %c0_i32_0, %c0_i32_1 : i32, i32, i32
  }
  func.func @transform_14(%arg0: i32) -> (i32, i32) {
    %c0_i32 = arith.constant 0 : i32
    %c0_i32_0 = arith.constant 0 : i32
    %c0_i32_1 = arith.constant 0 : i32
    return %c0_i32, %c0_i32_0 : i32, i32
  }
  func.func @transform_15(%arg0: i32) -> (i32, i32) {
    %c0_i32 = arith.constant 0 : i32
    %c0_i32_0 = arith.constant 0 : i32
    %c0_i32_1 = arith.constant 0 : i32
    return %c0_i32, %c0_i32_0 : i32, i32
  }
  func.func @transform_16(%arg0: i32) -> (i32, i32) {
    %c0_i32 = arith.constant 0 : i32
    %c0_i32_0 = arith.constant 0 : i32
    %c0_i32_1 = arith.constant 0 : i32
    return %c0_i32, %c0_i32_0 : i32, i32
  }
  func.func @transform_17(%arg0: i32) -> (i32, i32, i32) {
    %c0_i32 = arith.constant 0 : i32
    %c0_i32_0 = arith.constant 0 : i32
    %c0_i32_1 = arith.constant 0 : i32
    return %arg0, %c0_i32, %c0_i32_0 : i32, i32, i32
  }
}

</mosaic_0001>

<llo_original>
// kernel: forward.1
$region0: #{forward.1}
  #allocation0 [shape = 'u32[]', space=smem, size = 0x4, offset = 0x4, fixed_abs, tag = 'smem constant byte address 0x4 - core index']
  #allocation1 [shape = 'u32[144,128]{1,0:T(1,128)}', space=vmem, size = 0x12000, scoped, tag = 'internal scratch']
  #allocation2 [shape = 'f32[12,240]{1,0:T(8,128)}', space=vmem, size = 0x4000, scoped, tag = 'scratch operand']
  #allocation3 [shape = 'f32[4,200]{1,0:T(4,128)}', space=vmem, size = 0x1000, scoped, tag = 'scratch operand']
  %s0 = inlined_call_operand.vmem [shape: f32[2,1,28,28], index: 0, kind: input, shape index: {}]
  %s1 = inlined_call_operand.vmem [shape: f32[5,28,480], index: 1, kind: input, shape index: {}]
  %s2 = inlined_call_operand.vmem [shape: f32[1,480], index: 2, kind: input, shape index: {}]
  %s3 = inlined_call_operand.vmem [shape: f32[12,24], index: 3, kind: input, shape index: {}]
  %s4 = inlined_call_operand.vmem [shape: f32[12,24], index: 4, kind: input, shape index: {}]
  %s5 = inlined_call_operand.vmem [shape: f32[480,240], index: 5, kind: input, shape index: {}]
  %s6 = inlined_call_operand.vmem [shape: f32[480,240], index: 6, kind: input, shape index: {}]
  %s7 = inlined_call_operand.vmem [shape: f32[5,240,400], index: 7, kind: input, shape index: {}]
  %s8 = inlined_call_operand.vmem [shape: f32[1,400], index: 8, kind: input, shape index: {}]
  %s9 = inlined_call_operand.vmem [shape: f32[4,8], index: 9, kind: input, shape index: {}]
  %s10 = inlined_call_operand.vmem [shape: f32[4,8], index: 10, kind: input, shape index: {}]
  %s11 = inlined_call_operand.vmem [shape: f32[400,200], index: 11, kind: input, shape index: {}]
  %s12 = inlined_call_operand.vmem [shape: f32[400,200], index: 12, kind: input, shape index: {}]
  %s13 = inlined_call_operand.vmem [shape: f32[4,200,500], index: 13, kind: input, shape index: {}]
  %s14 = inlined_call_operand.vmem [shape: f32[1,500], index: 14, kind: input, shape index: {}]
  %s15 = inlined_call_operand.vmem [shape: f32[500,10], index: 15, kind: input, shape index: {}]
  %s16 = inlined_call_operand.vmem [shape: f32[1,10], index: 16, kind: input, shape index: {}]
  %s17 = inlined_call_operand.hbm [shape: f32[2,1,10], index: 17, kind: output, shape index: {}]
  %s18 = sld [smem:[#allocation0]]
  $region101: #{forward.1} parent=0
    _
  %s20 = ssub.s32 1, %s18
  %s21 = scalar_select 0, %s20, %s18
  $region1: #{forward.1} parent=0
    #allocation4 [shape = 'u8[1024]{0}', space=vmem, size = 0x400, scoped, tag = 'output window, operand 0']
    #allocation5 [shape = 's32[2]{0}', space=sflag, size = 0x8, scoped, tag = 'scoped memory for forward.1']
    %22 = vsyncpa [#allocation5], 0
    %s23 = scalar_lea.sflag [#allocation5], 1
    %24 = vsyncpa %s23, 0
    loop: start=0, step=1, limit=4
    $region2: #{forward.1} parent=1 // loop_pre_header
      _
    $region3: #{forward.1} parent=1 // loop_header
      %s26 = sphi 0, %s30
      %p27 = scmp.ge.s32.totalorder %s26, 4
      %s36 = sphi 0, %s38
      %s39 = sphi 0, %s36
      %s40 = sphi 0, %s39
      %s56 = sphi 0, %s40
      %s60 = sphi 0, %s60
      %s62 = sphi 0, %s60
      %s63 = sphi 0, %s62
      %s77 = sphi 0, %s63
      %s81 = sphi 0, %s81
      %s83 = sphi 0, %s81
      %s84 = sphi 0, %s83
      %s98 = sphi 0, %s84
      %s102 = sphi 0, %s102
      %s104 = sphi 0, %s102
      %s105 = sphi 0, %s104
      %s119 = sphi 0, %s105
      %s123 = sphi 0, %s123
      %s125 = sphi 0, %s123
      %s126 = sphi 0, %s125
      %s140 = sphi 0, %s126
      %s144 = sphi 0, %s144
      %s146 = sphi 0, %s144
      %s147 = sphi 0, %s146
      %s161 = sphi 0, %s147
      %s165 = sphi 0, %s165
      %s167 = sphi 0, %s165
      %s168 = sphi 0, %s167
      %s182 = sphi 0, %s168
      %s186 = sphi 0, %s186
      %s188 = sphi 0, %s186
      %s189 = sphi 0, %s188
      %s203 = sphi 0, %s189
      %s207 = sphi 0, %s207
      %s209 = sphi 0, %s207
      %s210 = sphi 0, %s209
      %s224 = sphi 0, %s210
      %s228 = sphi 0, %s228
      %s230 = sphi 0, %s228
      %s231 = sphi 0, %s230
      %s245 = sphi 0, %s231
      %s249 = sphi 0, %s249
      %s251 = sphi 0, %s249
      %s252 = sphi 0, %s251
      %s266 = sphi 0, %s252
      %s270 = sphi 0, %s270
      %s272 = sphi 0, %s270
      %s273 = sphi 0, %s272
      %s287 = sphi 0, %s273
      %s291 = sphi 0, %s291
      %s293 = sphi 0, %s291
      %s294 = sphi 0, %s293
      %s308 = sphi 0, %s294
      %s312 = sphi 0, %s312
      %s314 = sphi 0, %s312
      %s315 = sphi 0, %s314
      %s329 = sphi 0, %s315
      %s333 = sphi 0, %s333
      %s335 = sphi 0, %s333
      %s336 = sphi 0, %s335
      %s350 = sphi 0, %s336
      %s354 = sphi 0, %s354
      %s356 = sphi 0, %s354
      %s357 = sphi 0, %s356
      %s371 = sphi 0, %s357
      %s375 = sphi 0, %s375
      %s377 = sphi 0, %s375
      %s378 = sphi 0, %s377
      %s392 = sphi 0, %s378
      %s398 = sphi 0, %s400
      %s401 = sphi 0, %s398
      %s402 = sphi 0, %s401
      %s418 = sphi 0, %s402
    $region4: #{forward.1} parent=1 // loop_header_branch
      %29 = sbr.rel (%p27) target = $region8
    $region5: #{forward.1} parent=1 // loop_body
      %s31 = ssub.s32 %s26, 1
      %s32 = ssub.s32 %s26, 2
      %s33 = sadd.s32 %s26, 1
      %s34 = ssub.s32 %s26, %s33
      %p35 = scmp.eq.s32.totalorder %s34, 0
      %s37 = sadd.s32 %s36, 1
      %s38 = scalar_select %p35, %s36, %s37
      %p41 = pneg %p35
      %p42 = scmp.eq.s32.totalorder %s26, 1
      %p43 = por %p41, %p42
      %p44 = scmp.ne.s32.totalorder %s36, %s39
      %p45 = scmp.eq.s32.totalorder %s26, 0
      %p46 = por %p44, %p45
      %p47 = scmp.ne.s32.totalorder %s36, %s39
      %p48 = scmp.eq.s32.totalorder %s31, 1
      %p49 = por %p47, %p48
      %p50 = scmp.ne.s32.totalorder %s39, %s40
      %p51 = scmp.eq.s32.totalorder %s31, 0
      %p52 = por %p50, %p51
      %p53 = scmp.ne.s32.totalorder %s39, %s40
      %p54 = scmp.eq.s32.totalorder %s32, 1
      %p55 = por %p53, %p54
      %p57 = scmp.ne.s32.totalorder %s40, %s56
      %p58 = scmp.eq.s32.totalorder %s32, 0
      %p59 = por %p57, %p58
      %s61 = sadd.s32 %s60, 1
      %p64 = scmp.eq.s32.totalorder %s26, 1
      %p65 = scmp.ne.s32.totalorder %s60, %s62
      %p66 = scmp.eq.s32.totalorder %s26, 0
      %p67 = por %p65, %p66
      %p68 = scmp.ne.s32.totalorder %s60, %s62
      %p69 = scmp.eq.s32.totalorder %s31, 1
      %p70 = por %p68, %p69
      %p71 = scmp.ne.s32.totalorder %s62, %s63
      %p72 = scmp.eq.s32.totalorder %s31, 0
      %p73 = por %p71, %p72
      %p74 = scmp.ne.s32.totalorder %s62, %s63
      %p75 = scmp.eq.s32.totalorder %s32, 1
      %p76 = por %p74, %p75
      %p78 = scmp.ne.s32.totalorder %s63, %s77
      %p79 = scmp.eq.s32.totalorder %s32, 0
      %p80 = por %p78, %p79
      %s82 = sadd.s32 %s81, 1
      %p85 = scmp.eq.s32.totalorder %s26, 1
      %p86 = scmp.ne.s32.totalorder %s81, %s83
      %p87 = scmp.eq.s32.totalorder %s26, 0
      %p88 = por %p86, %p87
      %p89 = scmp.ne.s32.totalorder %s81, %s83
      %p90 = scmp.eq.s32.totalorder %s31, 1
      %p91 = por %p89, %p90
      %p92 = scmp.ne.s32.totalorder %s83, %s84
      %p93 = scmp.eq.s32.totalorder %s31, 0
      %p94 = por %p92, %p93
      %p95 = scmp.ne.s32.totalorder %s83, %s84
      %p96 = scmp.eq.s32.totalorder %s32, 1
      %p97 = por %p95, %p96
      %p99 = scmp.ne.s32.totalorder %s84, %s98
      %p100 = scmp.eq.s32.totalorder %s32, 0
      %p101 = por %p99, %p100
      %s103 = sadd.s32 %s102, 1
      %p106 = scmp.eq.s32.totalorder %s26, 1
      %p107 = scmp.ne.s32.totalorder %s102, %s104
      %p108 = scmp.eq.s32.totalorder %s26, 0
      %p109 = por %p107, %p108
      %p110 = scmp.ne.s32.totalorder %s102, %s104
      %p111 = scmp.eq.s32.totalorder %s31, 1
      %p112 = por %p110, %p111
      %p113 = scmp.ne.s32.totalorder %s104, %s105
      %p114 = scmp.eq.s32.totalorder %s31, 0
      %p115 = por %p113, %p114
      %p116 = scmp.ne.s32.totalorder %s104, %s105
      %p117 = scmp.eq.s32.totalorder %s32, 1
      %p118 = por %p116, %p117
      %p120 = scmp.ne.s32.totalorder %s105, %s119
      %p121 = scmp.eq.s32.totalorder %s32, 0
      %p122 = por %p120, %p121
      %s124 = sadd.s32 %s123, 1
      %p127 = scmp.eq.s32.totalorder %s26, 1
      %p128 = scmp.ne.s32.totalorder %s123, %s125
      %p129 = scmp.eq.s32.totalorder %s26, 0
      %p130 = por %p128, %p129
      %p131 = scmp.ne.s32.totalorder %s123, %s125
      %p132 = scmp.eq.s32.totalorder %s31, 1
      %p133 = por %p131, %p132
      %p134 = scmp.ne.s32.totalorder %s125, %s126
      %p135 = scmp.eq.s32.totalorder %s31, 0
      %p136 = por %p134, %p135
      %p137 = scmp.ne.s32.totalorder %s125, %s126
      %p138 = scmp.eq.s32.totalorder %s32, 1
      %p139 = por %p137, %p138
      %p141 = scmp.ne.s32.totalorder %s126, %s140
      %p142 = scmp.eq.s32.totalorder %s32, 0
      %p143 = por %p141, %p142
      %s145 = sadd.s32 %s144, 1
      %p148 = scmp.eq.s32.totalorder %s26, 1
      %p149 = scmp.ne.s32.totalorder %s144, %s146
      %p150 = scmp.eq.s32.totalorder %s26, 0
      %p151 = por %p149, %p150
      %p152 = scmp.ne.s32.totalorder %s144, %s146
      %p153 = scmp.eq.s32.totalorder %s31, 1
      %p154 = por %p152, %p153
      %p155 = scmp.ne.s32.totalorder %s146, %s147
      %p156 = scmp.eq.s32.totalorder %s31, 0
      %p157 = por %p155, %p156
      %p158 = scmp.ne.s32.totalorder %s146, %s147
      %p159 = scmp.eq.s32.totalorder %s32, 1
      %p160 = por %p158, %p159
      %p162 = scmp.ne.s32.totalorder %s147, %s161
      %p163 = scmp.eq.s32.totalorder %s32, 0
      %p164 = por %p162, %p163
      %s166 = sadd.s32 %s165, 1
      %p169 = scmp.eq.s32.totalorder %s26, 1
      %p170 = scmp.ne.s32.totalorder %s165, %s167
      %p171 = scmp.eq.s32.totalorder %s26, 0
      %p172 = por %p170, %p171
      %p173 = scmp.ne.s32.totalorder %s165, %s167
      %p174 = scmp.eq.s32.totalorder %s31, 1
      %p175 = por %p173, %p174
      %p176 = scmp.ne.s32.totalorder %s167, %s168
      %p177 = scmp.eq.s32.totalorder %s31, 0
      %p178 = por %p176, %p177
      %p179 = scmp.ne.s32.totalorder %s167, %s168
      %p180 = scmp.eq.s32.totalorder %s32, 1
      %p181 = por %p179, %p180
      %p183 = scmp.ne.s32.totalorder %s168, %s182
      %p184 = scmp.eq.s32.totalorder %s32, 0
      %p185 = por %p183, %p184
      %s187 = sadd.s32 %s186, 1
      %p190 = scmp.eq.s32.totalorder %s26, 1
      %p191 = scmp.ne.s32.totalorder %s186, %s188
      %p192 = scmp.eq.s32.totalorder %s26, 0
      %p193 = por %p191, %p192
      %p194 = scmp.ne.s32.totalorder %s186, %s188
      %p195 = scmp.eq.s32.totalorder %s31, 1
      %p196 = por %p194, %p195
      %p197 = scmp.ne.s32.totalorder %s188, %s189
      %p198 = scmp.eq.s32.totalorder %s31, 0
      %p199 = por %p197, %p198
      %p200 = scmp.ne.s32.totalorder %s188, %s189
      %p201 = scmp.eq.s32.totalorder %s32, 1
      %p202 = por %p200, %p201
      %p204 = scmp.ne.s32.totalorder %s189, %s203
      %p205 = scmp.eq.s32.totalorder %s32, 0
      %p206 = por %p204, %p205
      %s208 = sadd.s32 %s207, 1
      %p211 = scmp.eq.s32.totalorder %s26, 1
      %p212 = scmp.ne.s32.totalorder %s207, %s209
      %p213 = scmp.eq.s32.totalorder %s26, 0
      %p214 = por %p212, %p213
      %p215 = scmp.ne.s32.totalorder %s207, %s209
      %p216 = scmp.eq.s32.totalorder %s31, 1
      %p217 = por %p215, %p216
      %p218 = scmp.ne.s32.totalorder %s209, %s210
      %p219 = scmp.eq.s32.totalorder %s31, 0
      %p220 = por %p218, %p219
      %p221 = scmp.ne.s32.totalorder %s209, %s210
      %p222 = scmp.eq.s32.totalorder %s32, 1
      %p223 = por %p221, %p222
      %p225 = scmp.ne.s32.totalorder %s210, %s224
      %p226 = scmp.eq.s32.totalorder %s32, 0
      %p227 = por %p225, %p226
      %s229 = sadd.s32 %s228, 1
      %p232 = scmp.eq.s32.totalorder %s26, 1
      %p233 = scmp.ne.s32.totalorder %s228, %s230
      %p234 = scmp.eq.s32.totalorder %s26, 0
      %p235 = por %p233, %p234
      %p236 = scmp.ne.s32.totalorder %s228, %s230
      %p237 = scmp.eq.s32.totalorder %s31, 1
      %p238 = por %p236, %p237
      %p239 = scmp.ne.s32.totalorder %s230, %s231
      %p240 = scmp.eq.s32.totalorder %s31, 0
      %p241 = por %p239, %p240
      %p242 = scmp.ne.s32.totalorder %s230, %s231
      %p243 = scmp.eq.s32.totalorder %s32, 1
      %p244 = por %p242, %p243
      %p246 = scmp.ne.s32.totalorder %s231, %s245
      %p247 = scmp.eq.s32.totalorder %s32, 0
      %p248 = por %p246, %p247
      %s250 = sadd.s32 %s249, 1
      %p253 = scmp.eq.s32.totalorder %s26, 1
      %p254 = scmp.ne.s32.totalorder %s249, %s251
      %p255 = scmp.eq.s32.totalorder %s26, 0
      %p256 = por %p254, %p255
      %p257 = scmp.ne.s32.totalorder %s249, %s251
      %p258 = scmp.eq.s32.totalorder %s31, 1
      %p259 = por %p257, %p258
      %p260 = scmp.ne.s32.totalorder %s251, %s252
      %p261 = scmp.eq.s32.totalorder %s31, 0
      %p262 = por %p260, %p261
      %p263 = scmp.ne.s32.totalorder %s251, %s252
      %p264 = scmp.eq.s32.totalorder %s32, 1
      %p265 = por %p263, %p264
      %p267 = scmp.ne.s32.totalorder %s252, %s266
      %p268 = scmp.eq.s32.totalorder %s32, 0
      %p269 = por %p267, %p268
      %s271 = sadd.s32 %s270, 1
      %p274 = scmp.eq.s32.totalorder %s26, 1
      %p275 = scmp.ne.s32.totalorder %s270, %s272
      %p276 = scmp.eq.s32.totalorder %s26, 0
      %p277 = por %p275, %p276
      %p278 = scmp.ne.s32.totalorder %s270, %s272
      %p279 = scmp.eq.s32.totalorder %s31, 1
      %p280 = por %p278, %p279
      %p281 = scmp.ne.s32.totalorder %s272, %s273
      %p282 = scmp.eq.s32.totalorder %s31, 0
      %p283 = por %p281, %p282
      %p284 = scmp.ne.s32.totalorder %s272, %s273
      %p285 = scmp.eq.s32.totalorder %s32, 1
      %p286 = por %p284, %p285
      %p288 = scmp.ne.s32.totalorder %s273, %s287
      %p289 = scmp.eq.s32.totalorder %s32, 0
      %p290 = por %p288, %p289
      %s292 = sadd.s32 %s291, 1
      %p295 = scmp.eq.s32.totalorder %s26, 1
      %p296 = scmp.ne.s32.totalorder %s291, %s293
      %p297 = scmp.eq.s32.totalorder %s26, 0
      %p298 = por %p296, %p297
      %p299 = scmp.ne.s32.totalorder %s291, %s293
      %p300 = scmp.eq.s32.totalorder %s31, 1
      %p301 = por %p299, %p300
      %p302 = scmp.ne.s32.totalorder %s293, %s294
      %p303 = scmp.eq.s32.totalorder %s31, 0
      %p304 = por %p302, %p303
      %p305 = scmp.ne.s32.totalorder %s293, %s294
      %p306 = scmp.eq.s32.totalorder %s32, 1
      %p307 = por %p305, %p306
      %p309 = scmp.ne.s32.totalorder %s294, %s308
      %p310 = scmp.eq.s32.totalorder %s32, 0
      %p311 = por %p309, %p310
      %s313 = sadd.s32 %s312, 1
      %p316 = scmp.eq.s32.totalorder %s26, 1
      %p317 = scmp.ne.s32.totalorder %s312, %s314
      %p318 = scmp.eq.s32.totalorder %s26, 0
      %p319 = por %p317, %p318
      %p320 = scmp.ne.s32.totalorder %s312, %s314
      %p321 = scmp.eq.s32.totalorder %s31, 1
      %p322 = por %p320, %p321
      %p323 = scmp.ne.s32.totalorder %s314, %s315
      %p324 = scmp.eq.s32.totalorder %s31, 0
      %p325 = por %p323, %p324
      %p326 = scmp.ne.s32.totalorder %s314, %s315
      %p327 = scmp.eq.s32.totalorder %s32, 1
      %p328 = por %p326, %p327
      %p330 = scmp.ne.s32.totalorder %s315, %s329
      %p331 = scmp.eq.s32.totalorder %s32, 0
      %p332 = por %p330, %p331
      %s334 = sadd.s32 %s333, 1
      %p337 = scmp.eq.s32.totalorder %s26, 1
      %p338 = scmp.ne.s32.totalorder %s333, %s335
      %p339 = scmp.eq.s32.totalorder %s26, 0
      %p340 = por %p338, %p339
      %p341 = scmp.ne.s32.totalorder %s333, %s335
      %p342 = scmp.eq.s32.totalorder %s31, 1
      %p343 = por %p341, %p342
      %p344 = scmp.ne.s32.totalorder %s335, %s336
      %p345 = scmp.eq.s32.totalorder %s31, 0
      %p346 = por %p344, %p345
      %p347 = scmp.ne.s32.totalorder %s335, %s336
      %p348 = scmp.eq.s32.totalorder %s32, 1
      %p349 = por %p347, %p348
      %p351 = scmp.ne.s32.totalorder %s336, %s350
      %p352 = scmp.eq.s32.totalorder %s32, 0
      %p353 = por %p351, %p352
      %s355 = sadd.s32 %s354, 1
      %p358 = scmp.eq.s32.totalorder %s26, 1
      %p359 = scmp.ne.s32.totalorder %s354, %s356
      %p360 = scmp.eq.s32.totalorder %s26, 0
      %p361 = por %p359, %p360
      %p362 = scmp.ne.s32.totalorder %s354, %s356
      %p363 = scmp.eq.s32.totalorder %s31, 1
      %p364 = por %p362, %p363
      %p365 = scmp.ne.s32.totalorder %s356, %s357
      %p366 = scmp.eq.s32.totalorder %s31, 0
      %p367 = por %p365, %p366
      %p368 = scmp.ne.s32.totalorder %s356, %s357
      %p369 = scmp.eq.s32.totalorder %s32, 1
      %p370 = por %p368, %p369
      %p372 = scmp.ne.s32.totalorder %s357, %s371
      %p373 = scmp.eq.s32.totalorder %s32, 0
      %p374 = por %p372, %p373
      %s376 = sadd.s32 %s375, 1
      %p379 = scmp.eq.s32.totalorder %s26, 1
      %p380 = scmp.ne.s32.totalorder %s375, %s377
      %p381 = scmp.eq.s32.totalorder %s26, 0
      %p382 = por %p380, %p381
      %p383 = scmp.ne.s32.totalorder %s375, %s377
      %p384 = scmp.eq.s32.totalorder %s31, 1
      %p385 = por %p383, %p384
      %p386 = scmp.ne.s32.totalorder %s377, %s378
      %p387 = scmp.eq.s32.totalorder %s31, 0
      %p388 = por %p386, %p387
      %p389 = scmp.ne.s32.totalorder %s377, %s378
      %p390 = scmp.eq.s32.totalorder %s32, 1
      %p391 = por %p389, %p390
      %p393 = scmp.ne.s32.totalorder %s378, %s392
      %p394 = scmp.eq.s32.totalorder %s32, 0
      %p395 = por %p393, %p394
      %s396 = ssub.s32 %s26, %s33
      %p397 = scmp.eq.s32.totalorder %s396, 0
      %s399 = sadd.s32 %s398, 1
      %s400 = scalar_select %p397, %s398, %s399
      %p403 = pneg %p397
      %p404 = scmp.eq.s32.totalorder %s26, 1
      %p405 = por %p403, %p404
      %p406 = scmp.ne.s32.totalorder %s398, %s401
      %p407 = scmp.eq.s32.totalorder %s26, 0
      %p408 = por %p406, %p407
      %p409 = scmp.ne.s32.totalorder %s398, %s401
      %p410 = scmp.eq.s32.totalorder %s31, 1
      %p411 = por %p409, %p410
      %p412 = scmp.ne.s32.totalorder %s401, %s402
      %p413 = scmp.eq.s32.totalorder %s31, 0
      %p414 = por %p412, %p413
      %p415 = scmp.ne.s32.totalorder %s401, %s402
      %p416 = scmp.eq.s32.totalorder %s32, 1
      %p417 = por %p415, %p416
      %p419 = scmp.ne.s32.totalorder %s402, %s418
      %p420 = scmp.eq.s32.totalorder %s32, 0
      %p421 = por %p419, %p420
      %p422 = scmp.le.s32.totalorder 1, %s26
      %p423 = scmp.lt.s32.totalorder %s26, 3
      %p424 = pnand %p422, %p423
      %p425 = pneg %p424
      // Predicated region
      $region9: #{forward.1} parent=5 // pred_check
        _
      $region10: #{forward.1} parent=5 // pred_check_branch
        %427 = sbr.rel (%p424) target = $region12
      $region11: #{forward.1} parent=5 // pred_region
        %s428 = ssub.s32 %s26, 1
        // Predicated region
        $region13: #{forward.1} parent=11 // pred_check
          %p429 = pneg %p73
        $region14: #{forward.1} parent=11 // pred_check_branch
          %431 = sbr.rel (%p429) target = $region16
        $region15: #{forward.1} parent=11 // pred_region
          _
        $region16: #{forward.1} parent=11 // pred_fallthru
          _
        // Predicated region
        $region17: #{forward.1} parent=11 // pred_check
          %p432 = pneg %p94
        $region18: #{forward.1} parent=11 // pred_check_branch
          %434 = sbr.rel (%p432) target = $region20
        $region19: #{forward.1} parent=11 // pred_region
          _
        $region20: #{forward.1} parent=11 // pred_fallthru
          _
        // Predicated region
        $region21: #{forward.1} parent=11 // pred_check
          %p435 = pneg %p115
        $region22: #{forward.1} parent=11 // pred_check_branch
          %437 = sbr.rel (%p435) target = $region24
        $region23: #{forward.1} parent=11 // pred_region
          _
        $region24: #{forward.1} parent=11 // pred_fallthru
          _
        // Predicated region
        $region25: #{forward.1} parent=11 // pred_check
          %p438 = pneg %p136
        $region26: #{forward.1} parent=11 // pred_check_branch
          %440 = sbr.rel (%p438) target = $region28
        $region27: #{forward.1} parent=11 // pred_region
          _
        $region28: #{forward.1} parent=11 // pred_fallthru
          _
        // Predicated region
        $region29: #{forward.1} parent=11 // pred_check
          %p441 = pneg %p157
        $region30: #{forward.1} parent=11 // pred_check_branch
          %443 = sbr.rel (%p441) target = $region32
        $region31: #{forward.1} parent=11 // pred_region
          _
        $region32: #{forward.1} parent=11 // pred_fallthru
          _
        // Predicated region
        $region33: #{forward.1} parent=11 // pred_check
          %p444 = pneg %p178
        $region34: #{forward.1} parent=11 // pred_check_branch
          %446 = sbr.rel (%p444) target = $region36
        $region35: #{forward.1} parent=11 // pred_region
          _
        $region36: #{forward.1} parent=11 // pred_fallthru
          _
        // Predicated region
        $region37: #{forward.1} parent=11 // pred_check
          %p447 = pneg %p199
        $region38: #{forward.1} parent=11 // pred_check_branch
          %449 = sbr.rel (%p447) target = $region40
        $region39: #{forward.1} parent=11 // pred_region
          _
        $region40: #{forward.1} parent=11 // pred_fallthru
          _
        // Predicated region
        $region41: #{forward.1} parent=11 // pred_check
          %p450 = pneg %p220
        $region42: #{forward.1} parent=11 // pred_check_branch
          %452 = sbr.rel (%p450) target = $region44
        $region43: #{forward.1} parent=11 // pred_region
          _
        $region44: #{forward.1} parent=11 // pred_fallthru
          _
        // Predicated region
        $region45: #{forward.1} parent=11 // pred_check
          %p453 = pneg %p241
        $region46: #{forward.1} parent=11 // pred_check_branch
          %455 = sbr.rel (%p453) target = $region48
        $region47: #{forward.1} parent=11 // pred_region
          _
        $region48: #{forward.1} parent=11 // pred_fallthru
          _
        // Predicated region
        $region49: #{forward.1} parent=11 // pred_check
          %p456 = pneg %p262
        $region50: #{forward.1} parent=11 // pred_check_branch
          %458 = sbr.rel (%p456) target = $region52
        $region51: #{forward.1} parent=11 // pred_region
          _
        $region52: #{forward.1} parent=11 // pred_fallthru
          _
        // Predicated region
        $region53: #{forward.1} parent=11 // pred_check
          %p459 = pneg %p283
        $region54: #{forward.1} parent=11 // pred_check_branch
          %461 = sbr.rel (%p459) target = $region56
        $region55: #{forward.1} parent=11 // pred_region
          _
        $region56: #{forward.1} parent=11 // pred_fallthru
          _
        // Predicated region
        $region57: #{forward.1} parent=11 // pred_check
          %p462 = pneg %p304
        $region58: #{forward.1} parent=11 // pred_check_branch
          %464 = sbr.rel (%p462) target = $region60
        $region59: #{forward.1} parent=11 // pred_region
          _
        $region60: #{forward.1} parent=11 // pred_fallthru
          _
        // Predicated region
        $region61: #{forward.1} parent=11 // pred_check
          %p465 = pneg %p325
        $region62: #{forward.1} parent=11 // pred_check_branch
          %467 = sbr.rel (%p465) target = $region64
        $region63: #{forward.1} parent=11 // pred_region
          _
        $region64: #{forward.1} parent=11 // pred_fallthru
          _
        // Predicated region
        $region65: #{forward.1} parent=11 // pred_check
          %p468 = pneg %p346
        $region66: #{forward.1} parent=11 // pred_check_branch
          %470 = sbr.rel (%p468) target = $region68
        $region67: #{forward.1} parent=11 // pred_region
          _
        $region68: #{forward.1} parent=11 // pred_fallthru
          _
        // Predicated region
        $region69: #{forward.1} parent=11 // pred_check
          %p471 = pneg %p367
        $region70: #{forward.1} parent=11 // pred_check_branch
          %473 = sbr.rel (%p471) target = $region72
        $region71: #{forward.1} parent=11 // pred_region
          _
        $region72: #{forward.1} parent=11 // pred_fallthru
          _
        // Predicated region
        $region73: #{forward.1} parent=11 // pred_check
          %p474 = pneg %p388
        $region74: #{forward.1} parent=11 // pred_check_branch
          %476 = sbr.rel (%p474) target = $region76
        $region75: #{forward.1} parent=11 // pred_region
          _
        $region76: #{forward.1} parent=11 // pred_fallthru
          _
      $region12: #{forward.1} parent=5 // pred_fallthru
        _
      %p477 = scmp.lt.s32.totalorder %s26, 2
      // Predicated region
      $region77: #{forward.1} parent=5 // pred_check
        %p478 = pneg %p477
      $region78: #{forward.1} parent=5 // pred_check_branch
        %480 = sbr.rel (%p478) target = $region80
      $region79: #{forward.1} parent=5 // pred_region
        // Predicated region
        $region81: #{forward.1} parent=79 // pred_check
          %p481 = pneg %p46
        $region82: #{forward.1} parent=79 // pred_check_branch
          %483 = sbr.rel (%p481) target = $region84
        $region83: #{forward.1} parent=79 // pred_region
          %p484 = scmp.lt.s32.totalorder %s26, 1
          %s485 = scalar_select %p484, %s26, 1
          %s486 = smul.addr %s485, 4
          %s487 = smul.addr %s486, 8
          %s488 = scalar_lea.vmem %s0, %s487
        $region84: #{forward.1} parent=79 // pred_fallthru
          _
      $region80: #{forward.1} parent=5 // pred_fallthru
        _
      %p489 = scmp.le.s32.totalorder 1, %s26
      %p490 = scmp.lt.s32.totalorder %s26, 3
      %p491 = pnand %p489, %p490
      %p492 = pneg %p491
      // Predicated region
      $region85: #{forward.1} parent=5 // pred_check
        _
      $region86: #{forward.1} parent=5 // pred_check_branch
        %494 = sbr.rel (%p491) target = $region88
      $region87: #{forward.1} parent=5 // pred_region
        %s495 = ssub.s32 %s26, 1
        %p496 = scmp.lt.s32.totalorder %s31, 1
        %s497 = scalar_select %p496, %s31, 1
        %s498 = smul.addr %s497, 4
        %s499 = smul.addr %s498, 8
        %s500 = scalar_lea.vmem %s0, %s499
        %p501 = pneg %p52
        %p502 = pneg %p49
        %p503 = pneg %p73
        %p504 = pneg %p70
        %p505 = pneg %p94
        %p506 = pneg %p91
        %p507 = pneg %p115
        %p508 = pneg %p112
        %p509 = pneg %p136
        %p510 = pneg %p133
        %p511 = pneg %p157
        %p512 = pneg %p154
        %p513 = pneg %p178
        %p514 = pneg %p175
        %p515 = pneg %p199
        %p516 = pneg %p196
        %p517 = pneg %p220
        %p518 = pneg %p217
        %p519 = pneg %p241
        %p520 = pneg %p238
        %p521 = pneg %p262
        %p522 = pneg %p259
        %p523 = pneg %p283
        %p524 = pneg %p280
        %p525 = pneg %p304
        %p526 = pneg %p301
        %p527 = pneg %p325
        %p528 = pneg %p322
        %p529 = pneg %p346
        %p530 = pneg %p343
        %p531 = pneg %p367
        %p532 = pneg %p364
        %p533 = pneg %p388
        %p534 = pneg %p385
        %p535 = pneg %p414
        %p536 = pneg %p411
        %s537 = sand.u32 %s401, 1
        %s538 = scalar_lea.sflag [#allocation5], %s537
        %s539 = sand.u32 %s401, 1
        %s540 = scalar_lea.vmem [#allocation4], %s539
        %p541 = scmp.lt.s32.totalorder %s31, 1
        %s542 = scalar_select %p541, %s31, 1
        %s543 = smul.addr %s542, 4
        %s544 = smul.addr %s543, 8
        %s545 = scalar_lea.vmem %s0, %s544
        %v546 = vld [vmem:[%s545] sm:$0xff]
        %v547 = vld [vmem:[%s545 + $0x8] sm:$0xff]
        %v548 = vld [vmem:[%s545 + $0x10] sm:$0xff]
        %v549 = vld [vmem:[%s1] sm:$0xff]
        %v550 = vld [vmem:[%s1 + $0x8] sm:$0xff]
        %v551 = vld [vmem:[%s1 + $0x10] sm:$0xff]
        %v552 = vld [vmem:[%s1 + $0x18] sm:$0xff]
        %v553 = vld [vmem:[%s1 + $0x20] sm:$0xff]
        %v554 = vld [vmem:[%s1 + $0x28] sm:$0xff]
        %v555 = vld [vmem:[%s1 + $0x30] sm:$0xff]
        %v556 = vld [vmem:[%s1 + $0x38] sm:$0xff]
        %v557 = vld [vmem:[%s1 + $0x40] sm:$0xff]
        %v558 = vld [vmem:[%s1 + $0x48] sm:$0xff]
        %v559 = vld [vmem:[%s1 + $0x50] sm:$0xff]
        %v560 = vld [vmem:[%s1 + $0x58] sm:$0xff]
        %v561 = vld [vmem:[%s1 + $0x60] sm:$0xf]
        %v562 = vld [vmem:[%s1 + $0x68] sm:$0xf]
        %v563 = vld [vmem:[%s1 + $0x70] sm:$0xf]
        %v564 = vld [vmem:[%s1 + $0x78] sm:$0xf]
        %v565 = vld [vmem:[%s545 + $0x1] sm:$0xff]
        %v566 = vld [vmem:[%s545 + $0x9] sm:$0xff]
        %v567 = vld [vmem:[%s545 + $0x11] sm:$0xff]
        %s568 = scalar_lea.vmem %s1, 128
        %v569 = vld [vmem:[%s568] sm:$0xff]
        %v570 = vld [vmem:[%s568 + $0x8] sm:$0xff]
        %v571 = vld [vmem:[%s568 + $0x10] sm:$0xff]
        %v572 = vld [vmem:[%s568 + $0x18] sm:$0xff]
        %v573 = vld [vmem:[%s568 + $0x20] sm:$0xff]
        %v574 = vld [vmem:[%s568 + $0x28] sm:$0xff]
        %v575 = vld [vmem:[%s568 + $0x30] sm:$0xff]
        %v576 = vld [vmem:[%s568 + $0x38] sm:$0xff]
        %v577 = vld [vmem:[%s568 + $0x40] sm:$0xff]
        %v578 = vld [vmem:[%s568 + $0x48] sm:$0xff]
        %v579 = vld [vmem:[%s568 + $0x50] sm:$0xff]
        %v580 = vld [vmem:[%s568 + $0x58] sm:$0xff]
        %v581 = vld [vmem:[%s568 + $0x60] sm:$0xf]
        %v582 = vld [vmem:[%s568 + $0x68] sm:$0xf]
        %v583 = vld [vmem:[%s568 + $0x70] sm:$0xf]
        %v584 = vld [vmem:[%s568 + $0x78] sm:$0xf]
        %vm585 = vcmask 228352
        %v587 = vsel %vm585, %v565, 0
        %v590 = vsel %vm585, %v566, 0
        %v593 = vsel %vm585, %v567, 0
        %vm595 = vcmask 1043456
        %v597 = vsel %vm595, %v581, 0
        %v600 = vsel %vm595, %v582, 0
        %v603 = vsel %vm595, %v583, 0
        %v606 = vsel %vm595, %v584, 0
        %608 = vmatprep.subr.mxu0 %v570
        %609 = vmatpush1.msra.mxu0 %v569
        %610 = vmatprep.subr.mxu0 %v574
        %611 = vmatpush1.msra.mxu0 %v573
        %612 = vmatprep.subr.mxu0 %v578
        %613 = vmatpush1.msra.mxu0 %v577
        %614 = vmatprep.subr.mxu0 %v600
        %615 = vmatpush1.msra.mxu0 %v597
        %616 = vmatprep.subr.mxu0 0.0
        %617 = vmatpush1.msra.mxu0 0.0
        %618 = vmatprep.subr.mxu0 0.0
        %619 = vmatpush1.msra.mxu0 0.0
        %620 = vmatprep.subr.mxu0 0.0
        %621 = vmatpush1.msra.mxu0 0.0
        %622 = vmatprep.subr.mxu0 0.0
        %623 = vmatpush1.msra.mxu0 0.0
        %624 = vmatprep.subr.mxu0 0.0
        %625 = vmatpush1.msra.mxu0 0.0
        %626 = vmatprep.subr.mxu0 0.0
        %627 = vmatpush1.msra.mxu0 0.0
        %628 = vmatprep.subr.mxu0 0.0
        %629 = vmatpush1.msra.mxu0 0.0
        %630 = vmatprep.subr.mxu0 0.0
        %631 = vmatpush1.msra.mxu0 0.0
        %632 = vmatprep.subr.mxu0 0.0
        %633 = vmatpush1.msra.mxu0 0.0
        %634 = vmatprep.subr.mxu0 0.0
        %635 = vmatpush1.msra.mxu0 0.0
        %636 = vmatprep.subr.mxu0 0.0
        %637 = vmatpush1.msra.mxu0 0.0
        %638 = vmatprep.subr.mxu0 0.0
        %639 = vmatpush1.msra.mxu0 0.0
        %640 = vmatprep.subr.mxu0 0.0
        %641 = vmatpush1.msra.mxu0 0.0
        %642 = vmatprep.subr.mxu0 0.0
        %643 = vmatpush1.msra.mxu0 0.0
        %644 = vmatprep.subr.mxu0 0.0
        %645 = vmatpush1.msra.mxu0 0.0
        %646 = vmatprep.subr.mxu0 0.0
        %647 = vmatpush1.msra.mxu0 0.0
        %648 = vmatprep.subr.mxu0 0.0
        %649 = vmatpush1.msra.mxu0 0.0
        %650 = vmatprep.subr.mxu0 0.0
        %651 = vmatpush1.msra.mxu0 0.0
        %652 = vmatprep.subr.mxu0 0.0
        %653 = vmatpush1.msra.mxu0 0.0
        %654 = vmatprep.subr.mxu0 0.0
        %655 = vmatpush1.msra.mxu0 0.0
        %656 = vmatprep.subr.mxu0 0.0
        %657 = vmatpush1.msra.mxu0 0.0
        %658 = vmatprep.subr.mxu0 0.0
        %659 = vmatpush1.msra.mxu0 0.0
        %660 = vmatprep.subr.mxu0 0.0
        %661 = vmatpush1.msra.mxu0 0.0
        %662 = vmatprep.subr.mxu0 0.0
        %663 = vmatpush1.msra.mxu0 0.0
        %664 = vmatprep.subr.mxu0 0.0
        %665 = vmatpush1.msra.mxu0 0.0
        %666 = vmatprep.subr.mxu0 0.0
        %667 = vmatpush1.msra.mxu0 0.0
        %668 = vmatprep.subr.mxu0 0.0
        %669 = vmatpush1.msra.mxu0 0.0
        %670 = vmatprep.subr.mxu0 0.0
        %671 = vmatpush1.msra.mxu0 0.0
        %672 = vmatprep.mubr.f32.mxu0 0.0
        %673 = vmatmul.mubr.f32.gmra.mrb[0].mxu0 %v587
        %v674 = vpop.f32.mrb[0].mxu0
        %v675 = vadd.f32 0.0, %v674
        %v676 = vpop.f32.mrb[0].mxu0
        %v677 = vadd.f32 0.0, %v676
        %678 = vmatprep.mubr.f32.mxu0 0.0
        %679 = vmatmul.mubr.f32.gmra.mrb[0].mxu0 %v590
        %v680 = vpop.f32.mrb[0].mxu0
        %v681 = vadd.f32 0.0, %v680
        %v682 = vpop.f32.mrb[0].mxu0
        %v683 = vadd.f32 0.0, %v682
        %684 = vmatprep.mubr.f32.mxu0 0.0
        %685 = vmatmul.mubr.f32.gmra.mrb[0].mxu0 %v593
        %v686 = vpop.f32.mrb[0].mxu0
        %v687 = vadd.f32 0.0, %v686
        %v688 = vpop.f32.mrb[0].mxu0
        %v689 = vadd.f32 0.0, %v688
        %690 = vdwg.mxu0
        %691 = vmatprep.subr.mxu0 %v572
        %692 = vmatpush1.msra.mxu0 %v571
        %693 = vmatprep.subr.mxu0 %v576
        %694 = vmatpush1.msra.mxu0 %v575
        %695 = vmatprep.subr.mxu0 %v580
        %696 = vmatpush1.msra.mxu0 %v579
        %697 = vmatprep.subr.mxu0 %v606
        %698 = vmatpush1.msra.mxu0 %v603
        %699 = vmatprep.subr.mxu0 0.0
        %700 = vmatpush1.msra.mxu0 0.0
        %701 = vmatprep.subr.mxu0 0.0
        %702 = vmatpush1.msra.mxu0 0.0
        %703 = vmatprep.subr.mxu0 0.0
        %704 = vmatpush1.msra.mxu0 0.0
        %705 = vmatprep.subr.mxu0 0.0
        %706 = vmatpush1.msra.mxu0 0.0
        %707 = vmatprep.subr.mxu0 0.0
        %708 = vmatpush1.msra.mxu0 0.0
        %709 = vmatprep.subr.mxu0 0.0
        %710 = vmatpush1.msra.mxu0 0.0
        %711 = vmatprep.subr.mxu0 0.0
        %712 = vmatpush1.msra.mxu0 0.0
        %713 = vmatprep.subr.mxu0 0.0
        %714 = vmatpush1.msra.mxu0 0.0
        %715 = vmatprep.subr.mxu0 0.0
        %716 = vmatpush1.msra.mxu0 0.0
        %717 = vmatprep.subr.mxu0 0.0
        %718 = vmatpush1.msra.mxu0 0.0
        %719 = vmatprep.subr.mxu0 0.0
        %720 = vmatpush1.msra.mxu0 0.0
        %721 = vmatprep.subr.mxu0 0.0
        %722 = vmatpush1.msra.mxu0 0.0
        %723 = vmatprep.subr.mxu0 0.0
        %724 = vmatpush1.msra.mxu0 0.0
        %725 = vmatprep.subr.mxu0 0.0
        %726 = vmatpush1.msra.mxu0 0.0
        %727 = vmatprep.subr.mxu0 0.0
        %728 = vmatpush1.msra.mxu0 0.0
        %729 = vmatprep.subr.mxu0 0.0
        %730 = vmatpush1.msra.mxu0 0.0
        %731 = vmatprep.subr.mxu0 0.0
        %732 = vmatpush1.msra.mxu0 0.0
        %733 = vmatprep.subr.mxu0 0.0
        %734 = vmatpush1.msra.mxu0 0.0
        %735 = vmatprep.subr.mxu0 0.0
        %736 = vmatpush1.msra.mxu0 0.0
        %737 = vmatprep.subr.mxu0 0.0
        %738 = vmatpush1.msra.mxu0 0.0
        %739 = vmatprep.subr.mxu0 0.0
        %740 = vmatpush1.msra.mxu0 0.0
        %741 = vmatprep.subr.mxu0 0.0
        %742 = vmatpush1.msra.mxu0 0.0
        %743 = vmatprep.subr.mxu0 0.0
        %744 = vmatpush1.msra.mxu0 0.0
        %745 = vmatprep.subr.mxu0 0.0
        %746 = vmatpush1.msra.mxu0 0.0
        %747 = vmatprep.subr.mxu0 0.0
        %748 = vmatpush1.msra.mxu0 0.0
        %749 = vmatprep.subr.mxu0 0.0
        %750 = vmatpush1.msra.mxu0 0.0
        %751 = vmatprep.subr.mxu0 0.0
        %752 = vmatpush1.msra.mxu0 0.0
        %753 = vmatprep.subr.mxu0 0.0
        %754 = vmatpush1.msra.mxu0 0.0
        %755 = vmatprep.mubr.f32.mxu0 0.0
        %756 = vmatmul.mubr.f32.gmra.mrb[0].mxu0 %v587
        %v757 = vpop.f32.mrb[0].mxu0
        %v758 = vadd.f32 0.0, %v757
        %v759 = vpop.f32.mrb[0].mxu0
        %v760 = vadd.f32 0.0, %v759
        %761 = vmatprep.mubr.f32.mxu0 0.0
        %762 = vmatmul.mubr.f32.gmra.mrb[0].mxu0 %v590
        %v763 = vpop.f32.mrb[0].mxu0
        %v764 = vadd.f32 0.0, %v763
        %v765 = vpop.f32.mrb[0].mxu0
        %v766 = vadd.f32 0.0, %v765
        %767 = vmatprep.mubr.f32.mxu0 0.0
        %768 = vmatmul.mubr.f32.gmra.mrb[0].mxu0 %v593
        %v769 = vpop.f32.mrb[0].mxu0
        %v770 = vadd.f32 0.0, %v769
        %v771 = vpop.f32.mrb[0].mxu0
        %v772 = vadd.f32 0.0, %v771
        %773 = vdwg.mxu0
        %v775 = vsel %vm585, %v546, 0
        %v778 = vsel %vm585, %v547, 0
        %v781 = vsel %vm585, %v548, 0
        %v784 = vsel %vm595, %v561, 0
        %v787 = vsel %vm595, %v562, 0
        %v790 = vsel %vm595, %v563, 0
        %v793 = vsel %vm595, %v564, 0
        %795 = vmatprep.subr.mxu0 %v550
        %796 = vmatpush1.msra.mxu0 %v549
        %797 = vmatprep.subr.mxu0 %v554
        %798 = vmatpush1.msra.mxu0 %v553
        %799 = vmatprep.subr.mxu0 %v558
        %800 = vmatpush1.msra.mxu0 %v557
        %801 = vmatprep.subr.mxu0 %v787
        %802 = vmatpush1.msra.mxu0 %v784
        %803 = vmatprep.subr.mxu0 0.0
        %804 = vmatpush1.msra.mxu0 0.0
        %805 = vmatprep.subr.mxu0 0.0
        %806 = vmatpush1.msra.mxu0 0.0
        %807 = vmatprep.subr.mxu0 0.0
        %808 = vmatpush1.msra.mxu0 0.0
        %809 = vmatprep.subr.mxu0 0.0
        %810 = vmatpush1.msra.mxu0 0.0
        %811 = vmatprep.subr.mxu0 0.0
        %812 = vmatpush1.msra.mxu0 0.0
        %813 = vmatprep.subr.mxu0 0.0
        %814 = vmatpush1.msra.mxu0 0.0
        %815 = vmatprep.subr.mxu0 0.0
        %816 = vmatpush1.msra.mxu0 0.0
        %817 = vmatprep.subr.mxu0 0.0
        %818 = vmatpush1.msra.mxu0 0.0
        %819 = vmatprep.subr.mxu0 0.0
        %820 = vmatpush1.msra.mxu0 0.0
        %821 = vmatprep.subr.mxu0 0.0
        %822 = vmatpush1.msra.mxu0 0.0
        %823 = vmatprep.subr.mxu0 0.0
        %824 = vmatpush1.msra.mxu0 0.0
        %825 = vmatprep.subr.mxu0 0.0
        %826 = vmatpush1.msra.mxu0 0.0
        %827 = vmatprep.subr.mxu0 0.0
        %828 = vmatpush1.msra.mxu0 0.0
        %829 = vmatprep.subr.mxu0 0.0
        %830 = vmatpush1.msra.mxu0 0.0
        %831 = vmatprep.subr.mxu0 0.0
        %832 = vmatpush1.msra.mxu0 0.0
        %833 = vmatprep.subr.mxu0 0.0
        %834 = vmatpush1.msra.mxu0 0.0
        %835 = vmatprep.subr.mxu0 0.0
        %836 = vmatpush1.msra.mxu0 0.0
        %837 = vmatprep.subr.mxu0 0.0
        %838 = vmatpush1.msra.mxu0 0.0
        %839 = vmatprep.subr.mxu0 0.0
        %840 = vmatpush1.msra.mxu0 0.0
        %841 = vmatprep.subr.mxu0 0.0
        %842 = vmatpush1.msra.mxu0 0.0
        %843 = vmatprep.subr.mxu0 0.0
        %844 = vmatpush1.msra.mxu0 0.0
        %845 = vmatprep.subr.mxu0 0.0
        %846 = vmatpush1.msra.mxu0 0.0
        %847 = vmatprep.subr.mxu0 0.0
        %848 = vmatpush1.msra.mxu0 0.0
        %849 = vmatprep.subr.mxu0 0.0
        %850 = vmatpush1.msra.mxu0 0.0
        %851 = vmatprep.subr.mxu0 0.0
        %852 = vmatpush1.msra.mxu0 0.0
        %853 = vmatprep.subr.mxu0 0.0
        %854 = vmatpush1.msra.mxu0 0.0
        %855 = vmatprep.subr.mxu0 0.0
        %856 = vmatpush1.msra.mxu0 0.0
        %857 = vmatprep.subr.mxu0 0.0
        %858 = vmatpush1.msra.mxu0 0.0
        %859 = vmatprep.mubr.f32.mxu0 0.0
        %860 = vmatmul.mubr.f32.gmra.mrb[0].mxu0 %v775
        %v861 = vpop.f32.mrb[0].mxu0
        %v862 = vadd.f32 %v675, %v861
        %v863 = vpop.f32.mrb[0].mxu0
        %v864 = vadd.f32 %v677, %v863
        %865 = vmatprep.mubr.f32.mxu0 0.0
        %866 = vmatmul.mubr.f32.gmra.mrb[0].mxu0 %v778
        %v867 = vpop.f32.mrb[0].mxu0
        %v868 = vadd.f32 %v681, %v867
        %v869 = vpop.f32.mrb[0].mxu0
        %v870 = vadd.f32 %v683, %v869
        %871 = vmatprep.mubr.f32.mxu0 0.0
        %872 = vmatmul.mubr.f32.gmra.mrb[0].mxu0 %v781
        %v873 = vpop.f32.mrb[0].mxu0
        %v874 = vadd.f32 %v687, %v873
        %v875 = vpop.f32.mrb[0].mxu0
        %v876 = vadd.f32 %v689, %v875
        %877 = vdwg.mxu0
        %878 = vmatprep.subr.mxu0 %v552
        %879 = vmatpush1.msra.mxu0 %v551
        %880 = vmatprep.subr.mxu0 %v556
        %881 = vmatpush1.msra.mxu0 %v555
        %882 = vmatprep.subr.mxu0 %v560
        %883 = vmatpush1.msra.mxu0 %v559
        %884 = vmatprep.subr.mxu0 %v793
        %885 = vmatpush1.msra.mxu0 %v790
        %886 = vmatprep.subr.mxu0 0.0
        %887 = vmatpush1.msra.mxu0 0.0
        %888 = vmatprep.subr.mxu0 0.0
        %889 = vmatpush1.msra.mxu0 0.0
        %890 = vmatprep.subr.mxu0 0.0
        %891 = vmatpush1.msra.mxu0 0.0
        %892 = vmatprep.subr.mxu0 0.0
        %893 = vmatpush1.msra.mxu0 0.0
        %894 = vmatprep.subr.mxu0 0.0
        %895 = vmatpush1.msra.mxu0 0.0
        %896 = vmatprep.subr.mxu0 0.0
        %897 = vmatpush1.msra.mxu0 0.0
        %898 = vmatprep.subr.mxu0 0.0
        %899 = vmatpush1.msra.mxu0 0.0
        %900 = vmatprep.subr.mxu0 0.0
        %901 = vmatpush1.msra.mxu0 0.0
        %902 = vmatprep.subr.mxu0 0.0
        %903 = vmatpush1.msra.mxu0 0.0
        %904 = vmatprep.subr.mxu0 0.0
        %905 = vmatpush1.msra.mxu0 0.0
        %906 = vmatprep.subr.mxu0 0.0
        %907 = vmatpush1.msra.mxu0 0.0
        %908 = vmatprep.subr.mxu0 0.0
        %909 = vmatpush1.msra.mxu0 0.0
        %910 = vmatprep.subr.mxu0 0.0
        %911 = vmatpush1.msra.mxu0 0.0
        %912 = vmatprep.subr.mxu0 0.0
        %913 = vmatpush1.msra.mxu0 0.0
        %914 = vmatprep.subr.mxu0 0.0
        %915 = vmatpush1.msra.mxu0 0.0
        %916 = vmatprep.subr.mxu0 0.0
        %917 = vmatpush1.msra.mxu0 0.0
        %918 = vmatprep.subr.mxu0 0.0
        %919 = vmatpush1.msra.mxu0 0.0
        %920 = vmatprep.subr.mxu0 0.0
        %921 = vmatpush1.msra.mxu0 0.0
        %922 = vmatprep.subr.mxu0 0.0
        %923 = vmatpush1.msra.mxu0 0.0
        %924 = vmatprep.subr.mxu0 0.0
        %925 = vmatpush1.msra.mxu0 0.0
        %926 = vmatprep.subr.mxu0 0.0
        %927 = vmatpush1.msra.mxu0 0.0
        %928 = vmatprep.subr.mxu0 0.0
        %929 = vmatpush1.msra.mxu0 0.0
        %930 = vmatprep.subr.mxu0 0.0
        %931 = vmatpush1.msra.mxu0 0.0
        %932 = vmatprep.subr.mxu0 0.0
        %933 = vmatpush1.msra.mxu0 0.0
        %934 = vmatprep.subr.mxu0 0.0
        %935 = vmatpush1.msra.mxu0 0.0
        %936 = vmatprep.subr.mxu0 0.0
        %937 = vmatpush1.msra.mxu0 0.0
        %938 = vmatprep.subr.mxu0 0.0
        %939 = vmatpush1.msra.mxu0 0.0
        %940 = vmatprep.subr.mxu0 0.0
        %941 = vmatpush1.msra.mxu0 0.0
        %942 = vmatprep.mubr.f32.mxu0 0.0
        %943 = vmatmul.mubr.f32.gmra.mrb[0].mxu0 %v775
        %v944 = vpop.f32.mrb[0].mxu0
        %v945 = vadd.f32 %v758, %v944
        %v946 = vpop.f32.mrb[0].mxu0
        %v947 = vadd.f32 %v760, %v946
        %948 = vmatprep.mubr.f32.mxu0 0.0
        %949 = vmatmul.mubr.f32.gmra.mrb[0].mxu0 %v778
        %v950 = vpop.f32.mrb[0].mxu0
        %v951 = vadd.f32 %v764, %v950
        %v952 = vpop.f32.mrb[0].mxu0
        %v953 = vadd.f32 %v766, %v952
        %954 = vmatprep.mubr.f32.mxu0 0.0
        %955 = vmatmul.mubr.f32.gmra.mrb[0].mxu0 %v781
        %v956 = vpop.f32.mrb[0].mxu0
        %v957 = vadd.f32 %v770, %v956
        %v958 = vpop.f32.mrb[0].mxu0
        %v959 = vadd.f32 %v772, %v958
        %960 = vdwg.mxu0
        %v961 = vld [vmem:[%s545 + $0x2] sm:$0xff]
        %v962 = vld [vmem:[%s545 + $0xa] sm:$0xff]
        %v963 = vld [vmem:[%s545 + $0x12] sm:$0xff]
        %s964 = scalar_lea.vmem %s1, 256
        %v965 = vld [vmem:[%s964] sm:$0xff]
        %v966 = vld [vmem:[%s964 + $0x8] sm:$0xff]
        %v967 = vld [vmem:[%s964 + $0x10] sm:$0xff]
        %v968 = vld [vmem:[%s964 + $0x18] sm:$0xff]
        %v969 = vld [vmem:[%s964 + $0x20] sm:$0xff]
        %v970 = vld [vmem:[%s964 + $0x28] sm:$0xff]
        %v971 = vld [vmem:[%s964 + $0x30] sm:$0xff]
        %v972 = vld [vmem:[%s964 + $0x38] sm:$0xff]
        %v973 = vld [vmem:[%s964 + $0x40] sm:$0xff]
        %v974 = vld [vmem:[%s964 + $0x48] sm:$0xff]
        %v975 = vld [vmem:[%s964 + $0x50] sm:$0xff]
        %v976 = vld [vmem:[%s964 + $0x58] sm:$0xff]
        %v977 = vld [vmem:[%s964 + $0x60] sm:$0xf]
        %v978 = vld [vmem:[%s964 + $0x68] sm:$0xf]
        %v979 = vld [vmem:[%s964 + $0x70] sm:$0xf]
        %v980 = vld [vmem:[%s964 + $0x78] sm:$0xf]
        %v982 = vsel %vm585, %v961, 0
        %v985 = vsel %vm585, %v962, 0
        %v988 = vsel %vm585, %v963, 0
        %v991 = vsel %vm595, %v977, 0
        %v994 = vsel %vm595, %v978, 0
        %v997 = vsel %vm595, %v979, 0
        %v1000 = vsel %vm595, %v980, 0
        %1002 = vmatprep.subr.mxu0 %v966
        %1003 = vmatpush1.msra.mxu0 %v965
        %1004 = vmatprep.subr.mxu0 %v970
        %1005 = vmatpush1.msra.mxu0 %v969
        %1006 = vmatprep.subr.mxu0 %v974
        %1007 = vmatpush1.msra.mxu0 %v973
        %1008 = vmatprep.subr.mxu0 %v994
        %1009 = vmatpush1.msra.mxu0 %v991
        %1010 = vmatprep.subr.mxu0 0.0
        %1011 = vmatpush1.msra.mxu0 0.0
        %1012 = vmatprep.subr.mxu0 0.0
        %1013 = vmatpush1.msra.mxu0 0.0
        %1014 = vmatprep.subr.mxu0 0.0
        %1015 = vmatpush1.msra.mxu0 0.0
        %1016 = vmatprep.subr.mxu0 0.0
        %1017 = vmatpush1.msra.mxu0 0.0
        %1018 = vmatprep.subr.mxu0 0.0
        %1019 = vmatpush1.msra.mxu0 0.0
        %1020 = vmatprep.subr.mxu0 0.0
        %1021 = vmatpush1.msra.mxu0 0.0
        %1022 = vmatprep.subr.mxu0 0.0
        %1023 = vmatpush1.msra.mxu0 0.0
        %1024 = vmatprep.subr.mxu0 0.0
        %1025 = vmatpush1.msra.mxu0 0.0
        %1026 = vmatprep.subr.mxu0 0.0
        %1027 = vmatpush1.msra.mxu0 0.0
        %1028 = vmatprep.subr.mxu0 0.0
        %1029 = vmatpush1.msra.mxu0 0.0
        %1030 = vmatprep.subr.mxu0 0.0
        %1031 = vmatpush1.msra.mxu0 0.0
        %1032 = vmatprep.subr.mxu0 0.0
        %1033 = vmatpush1.msra.mxu0 0.0
        %1034 = vmatprep.subr.mxu0 0.0
        %1035 = vmatpush1.msra.mxu0 0.0
        %1036 = vmatprep.subr.mxu0 0.0
        %1037 = vmatpush1.msra.mxu0 0.0
        %1038 = vmatprep.subr.mxu0 0.0
        %1039 = vmatpush1.msra.mxu0 0.0
        %1040 = vmatprep.subr.mxu0 0.0
        %1041 = vmatpush1.msra.mxu0 0.0
        %1042 = vmatprep.subr.mxu0 0.0
        %1043 = vmatpush1.msra.mxu0 0.0
        %1044 = vmatprep.subr.mxu0 0.0
        %1045 = vmatpush1.msra.mxu0 0.0
        %1046 = vmatprep.subr.mxu0 0.0
        %1047 = vmatpush1.msra.mxu0 0.0
        %1048 = vmatprep.subr.mxu0 0.0
        %1049 = vmatpush1.msra.mxu0 0.0
        %1050 = vmatprep.subr.mxu0 0.0
        %1051 = vmatpush1.msra.mxu0 0.0
        %1052 = vmatprep.subr.mxu0 0.0
        %1053 = vmatpush1.msra.mxu0 0.0
        %1054 = vmatprep.subr.mxu0 0.0
        %1055 = vmatpush1.msra.mxu0 0.0
        %1056 = vmatprep.subr.mxu0 0.0
        %1057 = vmatpush1.msra.mxu0 0.0
        %1058 = vmatprep.subr.mxu0 0.0
        %1059 = vmatpush1.msra.mxu0 0.0
        %1060 = vmatprep.subr.mxu0 0.0
        %1061 = vmatpush1.msra.mxu0 0.0
        %1062 = vmatprep.subr.mxu0 0.0
        %1063 = vmatpush1.msra.mxu0 0.0
        %1064 = vmatprep.subr.mxu0 0.0
        %1065 = vmatpush1.msra.mxu0 0.0
        %1066 = vmatprep.mubr.f32.mxu0 0.0
        %1067 = vmatmul.mubr.f32.gmra.mrb[0].mxu0 %v982
        %v1068 = vpop.f32.mrb[0].mxu0
        %v1069 = vadd.f32 0.0, %v1068
        %v1070 = vpop.f32.mrb[0].mxu0
        %v1071 = vadd.f32 0.0, %v1070
        %1072 = vmatprep.mubr.f32.mxu0 0.0
        %1073 = vmatmul.mubr.f32.gmra.mrb[0].mxu0 %v985
        %v1074 = vpop.f32.mrb[0].mxu0
        %v1075 = vadd.f32 0.0, %v1074
        %v1076 = vpop.f32.mrb[0].mxu0
        %v1077 = vadd.f32 0.0, %v1076
        %1078 = vmatprep.mubr.f32.mxu0 0.0
        %1079 = vmatmul.mubr.f32.gmra.mrb[0].mxu0 %v988
        %v1080 = vpop.f32.mrb[0].mxu0
        %v1081 = vadd.f32 0.0, %v1080
        %v1082 = vpop.f32.mrb[0].mxu0
        %v1083 = vadd.f32 0.0, %v1082
        %1084 = vdwg.mxu0
        %1085 = vmatprep.subr.mxu0 %v968
        %1086 = vmatpush1.msra.mxu0 %v967
        %1087 = vmatprep.subr.mxu0 %v972
        %1088 = vmatpush1.msra.mxu0 %v971
        %1089 = vmatprep.subr.mxu0 %v976
        %1090 = vmatpush1.msra.mxu0 %v975
        %1091 = vmatprep.subr.mxu0 %v1000
        %1092 = vmatpush1.msra.mxu0 %v997
        %1093 = vmatprep.subr.mxu0 0.0
        %1094 = vmatpush1.msra.mxu0 0.0
        %1095 = vmatprep.subr.mxu0 0.0
        %1096 = vmatpush1.msra.mxu0 0.0
        %1097 = vmatprep.subr.mxu0 0.0
        %1098 = vmatpush1.msra.mxu0 0.0
        %1099 = vmatprep.subr.mxu0 0.0
        %1100 = vmatpush1.msra.mxu0 0.0
        %1101 = vmatprep.subr.mxu0 0.0
        %1102 = vmatpush1.msra.mxu0 0.0
        %1103 = vmatprep.subr.mxu0 0.0
        %1104 = vmatpush1.msra.mxu0 0.0
        %1105 = vmatprep.subr.mxu0 0.0
        %1106 = vmatpush1.msra.mxu0 0.0
        %1107 = vmatprep.subr.mxu0 0.0
        %1108 = vmatpush1.msra.mxu0 0.0
        %1109 = vmatprep.subr.mxu0 0.0
        %1110 = vmatpush1.msra.mxu0 0.0
        %1111 = vmatprep.subr.mxu0 0.0
        %1112 = vmatpush1.msra.mxu0 0.0
        %1113 = vmatprep.subr.mxu0 0.0
        %1114 = vmatpush1.msra.mxu0 0.0
        %1115 = vmatprep.subr.mxu0 0.0
        %1116 = vmatpush1.msra.mxu0 0.0
        %1117 = vmatprep.subr.mxu0 0.0
        %1118 = vmatpush1.msra.mxu0 0.0
        %1119 = vmatprep.subr.mxu0 0.0
        %1120 = vmatpush1.msra.mxu0 0.0
        %1121 = vmatprep.subr.mxu0 0.0
        %1122 = vmatpush1.msra.mxu0 0.0
        %1123 = vmatprep.subr.mxu0 0.0
        %1124 = vmatpush1.msra.mxu0 0.0
        %1125 = vmatprep.subr.mxu0 0.0
        %1126 = vmatpush1.msra.mxu0 0.0
        %1127 = vmatprep.subr.mxu0 0.0
        %1128 = vmatpush1.msra.mxu0 0.0
        %1129 = vmatprep.subr.mxu0 0.0
        %1130 = vmatpush1.msra.mxu0 0.0
        %1131 = vmatprep.subr.mxu0 0.0
        %1132 = vmatpush1.msra.mxu0 0.0
        %1133 = vmatprep.subr.mxu0 0.0
        %1134 = vmatpush1.msra.mxu0 0.0
        %1135 = vmatprep.subr.mxu0 0.0
        %1136 = vmatpush1.msra.mxu0 0.0
        %1137 = vmatprep.subr.mxu0 0.0
        %1138 = vmatpush1.msra.mxu0 0.0
        %1139 = vmatprep.subr.mxu0 0.0
        %1140 = vmatpush1.msra.mxu0 0.0
        %1141 = vmatprep.subr.mxu0 0.0
        %1142 = vmatpush1.msra.mxu0 0.0
        %1143 = vmatprep.subr.mxu0 0.0
        %1144 = vmatpush1.msra.mxu0 0.0
        %1145 = vmatprep.subr.mxu0 0.0
        %1146 = vmatpush1.msra.mxu0 0.0
        %1147 = vmatprep.subr.mxu0 0.0
        %1148 = vmatpush1.msra.mxu0 0.0
        %1149 = vmatprep.mubr.f32.mxu0 0.0
        %1150 = vmatmul.mubr.f32.gmra.mrb[0].mxu0 %v982
        %v1151 = vpop.f32.mrb[0].mxu0
        %v1152 = vadd.f32 0.0, %v1151
        %v1153 = vpop.f32.mrb[0].mxu0
        %v1154 = vadd.f32 0.0, %v1153
        %1155 = vmatprep.mubr.f32.mxu0 0.0
        %1156 = vmatmul.mubr.f32.gmra.mrb[0].mxu0 %v985
        %v1157 = vpop.f32.mrb[0].mxu0
        %v1158 = vadd.f32 0.0, %v1157
        %v1159 = vpop.f32.mrb[0].mxu0
        %v1160 = vadd.f32 0.0, %v1159
        %1161 = vmatprep.mubr.f32.mxu0 0.0
        %1162 = vmatmul.mubr.f32.gmra.mrb[0].mxu0 %v988
        %v1163 = vpop.f32.mrb[0].mxu0
        %v1164 = vadd.f32 0.0, %v1163
        %v1165 = vpop.f32.mrb[0].mxu0
        %v1166 = vadd.f32 0.0, %v1165
        %1167 = vdwg.mxu0
        %v1168 = vadd.f32 %v862, %v1069
        %v1169 = vadd.f32 %v864, %v1071
        %v1170 = vadd.f32 %v945, %v1152
        %v1171 = vadd.f32 %v947, %v1154
        %v1172 = vadd.f32 %v868, %v1075
        %v1173 = vadd.f32 %v870, %v1077
        %v1174 = vadd.f32 %v951, %v1158
        %v1175 = vadd.f32 %v953, %v1160
        %v1176 = vadd.f32 %v874, %v1081
        %v1177 = vadd.f32 %v876, %v1083
        %v1178 = vadd.f32 %v957, %v1164
        %v1179 = vadd.f32 %v959, %v1166
        %v1180 = vld [vmem:[%s545 + $0x3] sm:$0xff]
        %v1181 = vld [vmem:[%s545 + $0xb] sm:$0xff]
        %v1182 = vld [vmem:[%s545 + $0x13] sm:$0xff]
        %s1183 = scalar_lea.vmem %s1, 384
        %v1184 = vld [vmem:[%s1183] sm:$0xff]
        %v1185 = vld [vmem:[%s1183 + $0x8] sm:$0xff]
        %v1186 = vld [vmem:[%s1183 + $0x10] sm:$0xff]
        %v1187 = vld [vmem:[%s1183 + $0x18] sm:$0xff]
        %v1188 = vld [vmem:[%s1183 + $0x20] sm:$0xff]
        %v1189 = vld [vmem:[%s1183 + $0x28] sm:$0xff]
        %v1190 = vld [vmem:[%s1183 + $0x30] sm:$0xff]
        %v1191 = vld [vmem:[%s1183 + $0x38] sm:$0xff]
        %v1192 = vld [vmem:[%s1183 + $0x40] sm:$0xff]
        %v1193 = vld [vmem:[%s1183 + $0x48] sm:$0xff]
        %v1194 = vld [vmem:[%s1183 + $0x50] sm:$0xff]
        %v1195 = vld [vmem:[%s1183 + $0x58] sm:$0xff]
        %v1196 = vld [vmem:[%s1183 + $0x60] sm:$0xf]
        %v1197 = vld [vmem:[%s1183 + $0x68] sm:$0xf]
        %v1198 = vld [vmem:[%s1183 + $0x70] sm:$0xf]
        %v1199 = vld [vmem:[%s1183 + $0x78] sm:$0xf]
        %v1201 = vsel %vm585, %v1180, 0
        %v1204 = vsel %vm585, %v1181, 0
        %v1207 = vsel %vm585, %v1182, 0
        %v1210 = vsel %vm595, %v1196, 0
        %v1213 = vsel %vm595, %v1197, 0
        %v1216 = vsel %vm595, %v1198, 0
        %v1219 = vsel %vm595, %v1199, 0
        %1221 = vmatprep.subr.mxu0 %v1185
        %1222 = vmatpush1.msra.mxu0 %v1184
        %1223 = vmatprep.subr.mxu0 %v1189
        %1224 = vmatpush1.msra.mxu0 %v1188
        %1225 = vmatprep.subr.mxu0 %v1193
        %1226 = vmatpush1.msra.mxu0 %v1192
        %1227 = vmatprep.subr.mxu0 %v1213
        %1228 = vmatpush1.msra.mxu0 %v1210
        %1229 = vmatprep.subr.mxu0 0.0
        %1230 = vmatpush1.msra.mxu0 0.0
        %1231 = vmatprep.subr.mxu0 0.0
        %1232 = vmatpush1.msra.mxu0 0.0
        %1233 = vmatprep.subr.mxu0 0.0
        %1234 = vmatpush1.msra.mxu0 0.0
        %1235 = vmatprep.subr.mxu0 0.0
        %1236 = vmatpush1.msra.mxu0 0.0
        %1237 = vmatprep.subr.mxu0 0.0
        %1238 = vmatpush1.msra.mxu0 0.0
        %1239 = vmatprep.subr.mxu0 0.0
        %1240 = vmatpush1.msra.mxu0 0.0
        %1241 = vmatprep.subr.mxu0 0.0
        %1242 = vmatpush1.msra.mxu0 0.0
        %1243 = vmatprep.subr.mxu0 0.0
        %1244 = vmatpush1.msra.mxu0 0.0
        %1245 = vmatprep.subr.mxu0 0.0
        %1246 = vmatpush1.msra.mxu0 0.0
        %1247 = vmatprep.subr.mxu0 0.0
        %1248 = vmatpush1.msra.mxu0 0.0
        %1249 = vmatprep.subr.mxu0 0.0
        %1250 = vmatpush1.msra.mxu0 0.0
        %1251 = vmatprep.subr.mxu0 0.0
        %1252 = vmatpush1.msra.mxu0 0.0
        %1253 = vmatprep.subr.mxu0 0.0
        %1254 = vmatpush1.msra.mxu0 0.0
        %1255 = vmatprep.subr.mxu0 0.0
        %1256 = vmatpush1.msra.mxu0 0.0
        %1257 = vmatprep.subr.mxu0 0.0
        %1258 = vmatpush1.msra.mxu0 0.0
        %1259 = vmatprep.subr.mxu0 0.0
        %1260 = vmatpush1.msra.mxu0 0.0
        %1261 = vmatprep.subr.mxu0 0.0
        %1262 = vmatpush1.msra.mxu0 0.0
        %1263 = vmatprep.subr.mxu0 0.0
        %1264 = vmatpush1.msra.mxu0 0.0
        %1265 = vmatprep.subr.mxu0 0.0
        %1266 = vmatpush1.msra.mxu0 0.0
        %1267 = vmatprep.subr.mxu0 0.0
        %1268 = vmatpush1.msra.mxu0 0.0
        %1269 = vmatprep.subr.mxu0 0.0
        %1270 = vmatpush1.msra.mxu0 0.0
        %1271 = vmatprep.subr.mxu0 0.0
        %1272 = vmatpush1.msra.mxu0 0.0
        %1273 = vmatprep.subr.mxu0 0.0
        %1274 = vmatpush1.msra.mxu0 0.0
        %1275 = vmatprep.subr.mxu0 0.0
        %1276 = vmatpush1.msra.mxu0 0.0
        %1277 = vmatprep.subr.mxu0 0.0
        %1278 = vmatpush1.msra.mxu0 0.0
        %1279 = vmatprep.subr.mxu0 0.0
        %1280 = vmatpush1.msra.mxu0 0.0
        %1281 = vmatprep.subr.mxu0 0.0
        %1282 = vmatpush1.msra.mxu0 0.0
        %1283 = vmatprep.subr.mxu0 0.0
        %1284 = vmatpush1.msra.mxu0 0.0
        %1285 = vmatprep.mubr.f32.mxu0 0.0
        %1286 = vmatmul.mubr.f32.gmra.mrb[0].mxu0 %v1201
        %v1287 = vpop.f32.mrb[0].mxu0
        %v1288 = vadd.f32 0.0, %v1287
        %v1289 = vpop.f32.mrb[0].mxu0
        %v1290 = vadd.f32 0.0, %v1289
        %1291 = vmatprep.mubr.f32.mxu0 0.0
        %1292 = vmatmul.mubr.f32.gmra.mrb[0].mxu0 %v1204
        %v1293 = vpop.f32.mrb[0].mxu0
        %v1294 = vadd.f32 0.0, %v1293
        %v1295 = vpop.f32.mrb[0].mxu0
        %v1296 = vadd.f32 0.0, %v1295
        %1297 = vmatprep.mubr.f32.mxu0 0.0
        %1298 = vmatmul.mubr.f32.gmra.mrb[0].mxu0 %v1207
        %v1299 = vpop.f32.mrb[0].mxu0
        %v1300 = vadd.f32 0.0, %v1299
        %v1301 = vpop.f32.mrb[0].mxu0
        %v1302 = vadd.f32 0.0, %v1301
        %1303 = vdwg.mxu0
        %1304 = vmatprep.subr.mxu0 %v1187
        %1305 = vmatpush1.msra.mxu0 %v1186
        %1306 = vmatprep.subr.mxu0 %v1191
        %1307 = vmatpush1.msra.mxu0 %v1190
        %1308 = vmatprep.subr.mxu0 %v1195
        %1309 = vmatpush1.msra.mxu0 %v1194
        %1310 = vmatprep.subr.mxu0 %v1219
        %1311 = vmatpush1.msra.mxu0 %v1216
        %1312 = vmatprep.subr.mxu0 0.0
        %1313 = vmatpush1.msra.mxu0 0.0
        %1314 = vmatprep.subr.mxu0 0.0
        %1315 = vmatpush1.msra.mxu0 0.0
        %1316 = vmatprep.subr.mxu0 0.0
        %1317 = vmatpush1.msra.mxu0 0.0
        %1318 = vmatprep.subr.mxu0 0.0
        %1319 = vmatpush1.msra.mxu0 0.0
        %1320 = vmatprep.subr.mxu0 0.0
        %1321 = vmatpush1.msra.mxu0 0.0
        %1322 = vmatprep.subr.mxu0 0.0
        %1323 = vmatpush1.msra.mxu0 0.0
        %1324 = vmatprep.subr.mxu0 0.0
        %1325 = vmatpush1.msra.mxu0 0.0
        %1326 = vmatprep.subr.mxu0 0.0
        %1327 = vmatpush1.msra.mxu0 0.0
        %1328 = vmatprep.subr.mxu0 0.0
        %1329 = vmatpush1.msra.mxu0 0.0
        %1330 = vmatprep.subr.mxu0 0.0
        %1331 = vmatpush1.msra.mxu0 0.0
        %1332 = vmatprep.subr.mxu0 0.0
        %1333 = vmatpush1.msra.mxu0 0.0
        %1334 = vmatprep.subr.mxu0 0.0
        %1335 = vmatpush1.msra.mxu0 0.0
        %1336 = vmatprep.subr.mxu0 0.0
        %1337 = vmatpush1.msra.mxu0 0.0
        %1338 = vmatprep.subr.mxu0 0.0
        %1339 = vmatpush1.msra.mxu0 0.0
        %1340 = vmatprep.subr.mxu0 0.0
        %1341 = vmatpush1.msra.mxu0 0.0
        %1342 = vmatprep.subr.mxu0 0.0
        %1343 = vmatpush1.msra.mxu0 0.0
        %1344 = vmatprep.subr.mxu0 0.0
        %1345 = vmatpush1.msra.mxu0 0.0
        %1346 = vmatprep.subr.mxu0 0.0
        %1347 = vmatpush1.msra.mxu0 0.0
        %1348 = vmatprep.subr.mxu0 0.0
        %1349 = vmatpush1.msra.mxu0 0.0
        %1350 = vmatprep.subr.mxu0 0.0
        %1351 = vmatpush1.msra.mxu0 0.0
        %1352 = vmatprep.subr.mxu0 0.0
        %1353 = vmatpush1.msra.mxu0 0.0
        %1354 = vmatprep.subr.mxu0 0.0
        %1355 = vmatpush1.msra.mxu0 0.0
        %1356 = vmatprep.subr.mxu0 0.0
        %1357 = vmatpush1.msra.mxu0 0.0
        %1358 = vmatprep.subr.mxu0 0.0
        %1359 = vmatpush1.msra.mxu0 0.0
        %1360 = vmatprep.subr.mxu0 0.0
        %1361 = vmatpush1.msra.mxu0 0.0
        %1362 = vmatprep.subr.mxu0 0.0
        %1363 = vmatpush1.msra.mxu0 0.0
        %1364 = vmatprep.subr.mxu0 0.0
        %1365 = vmatpush1.msra.mxu0 0.0
        %1366 = vmatprep.subr.mxu0 0.0
        %1367 = vmatpush1.msra.mxu0 0.0
        %1368 = vmatprep.mubr.f32.mxu0 0.0
        %1369 = vmatmul.mubr.f32.gmra.mrb[0].mxu0 %v1201
        %v1370 = vpop.f32.mrb[0].mxu0
        %v1371 = vadd.f32 0.0, %v1370
        %v1372 = vpop.f32.mrb[0].mxu0
        %v1373 = vadd.f32 0.0, %v1372
        %1374 = vmatprep.mubr.f32.mxu0 0.0
        %1375 = vmatmul.mubr.f32.gmra.mrb[0].mxu0 %v1204
        %v1376 = vpop.f32.mrb[0].mxu0
        %v1377 = vadd.f32 0.0, %v1376
        %v1378 = vpop.f32.mrb[0].mxu0
        %v1379 = vadd.f32 0.0, %v1378
        %1380 = vmatprep.mubr.f32.mxu0 0.0
        %1381 = vmatmul.mubr.f32.gmra.mrb[0].mxu0 %v1207
        %v1382 = vpop.f32.mrb[0].mxu0
        %v1383 = vadd.f32 0.0, %v1382
        %v1384 = vpop.f32.mrb[0].mxu0
        %v1385 = vadd.f32 0.0, %v1384
        %1386 = vdwg.mxu0
        %v1387 = vadd.f32 %v1168, %v1288
        %v1388 = vadd.f32 %v1169, %v1290
        %v1389 = vadd.f32 %v1170, %v1371
        %v1390 = vadd.f32 %v1171, %v1373
        %v1391 = vadd.f32 %v1172, %v1294
        %v1392 = vadd.f32 %v1173, %v1296
        %v1393 = vadd.f32 %v1174, %v1377
        %v1394 = vadd.f32 %v1175, %v1379
        %v1395 = vadd.f32 %v1176, %v1300
        %v1396 = vadd.f32 %v1177, %v1302
        %v1397 = vadd.f32 %v1178, %v1383
        %v1398 = vadd.f32 %v1179, %v1385
        %v1399 = vld [vmem:[%s545 + $0x4] sm:$0xff]
        %v1400 = vld [vmem:[%s545 + $0xc] sm:$0xff]
        %v1401 = vld [vmem:[%s545 + $0x14] sm:$0xff]
        %s1402 = scalar_lea.vmem %s1, 512
        %v1403 = vld [vmem:[%s1402] sm:$0xff]
        %v1404 = vld [vmem:[%s1402 + $0x8] sm:$0xff]
        %v1405 = vld [vmem:[%s1402 + $0x10] sm:$0xff]
        %v1406 = vld [vmem:[%s1402 + $0x18] sm:$0xff]
        %v1407 = vld [vmem:[%s1402 + $0x20] sm:$0xff]
        %v1408 = vld [vmem:[%s1402 + $0x28] sm:$0xff]
        %v1409 = vld [vmem:[%s1402 + $0x30] sm:$0xff]
        %v1410 = vld [vmem:[%s1402 + $0x38] sm:$0xff]
        %v1411 = vld [vmem:[%s1402 + $0x40] sm:$0xff]
        %v1412 = vld [vmem:[%s1402 + $0x48] sm:$0xff]
        %v1413 = vld [vmem:[%s1402 + $0x50] sm:$0xff]
        %v1414 = vld [vmem:[%s1402 + $0x58] sm:$0xff]
        %v1415 = vld [vmem:[%s1402 + $0x60] sm:$0xf]
        %v1416 = vld [vmem:[%s1402 + $0x68] sm:$0xf]
        %v1417 = vld [vmem:[%s1402 + $0x70] sm:$0xf]
        %v1418 = vld [vmem:[%s1402 + $0x78] sm:$0xf]
        %v1420 = vsel %vm585, %v1399, 0
        %v1423 = vsel %vm585, %v1400, 0
        %v1426 = vsel %vm585, %v1401, 0
        %v1429 = vsel %vm595, %v1415, 0
        %v1432 = vsel %vm595, %v1416, 0
        %v1435 = vsel %vm595, %v1417, 0
        %v1438 = vsel %vm595, %v1418, 0
        %1440 = vmatprep.subr.mxu0 %v1404
        %1441 = vmatpush1.msra.mxu0 %v1403
        %1442 = vmatprep.subr.mxu0 %v1408
        %1443 = vmatpush1.msra.mxu0 %v1407
        %1444 = vmatprep.subr.mxu0 %v1412
        %1445 = vmatpush1.msra.mxu0 %v1411
        %1446 = vmatprep.subr.mxu0 %v1432
        %1447 = vmatpush1.msra.mxu0 %v1429
        %1448 = vmatprep.subr.mxu0 0.0
        %1449 = vmatpush1.msra.mxu0 0.0
        %1450 = vmatprep.subr.mxu0 0.0
        %1451 = vmatpush1.msra.mxu0 0.0
        %1452 = vmatprep.subr.mxu0 0.0
        %1453 = vmatpush1.msra.mxu0 0.0
        %1454 = vmatprep.subr.mxu0 0.0
        %1455 = vmatpush1.msra.mxu0 0.0
        %1456 = vmatprep.subr.mxu0 0.0
        %1457 = vmatpush1.msra.mxu0 0.0
        %1458 = vmatprep.subr.mxu0 0.0
        %1459 = vmatpush1.msra.mxu0 0.0
        %1460 = vmatprep.subr.mxu0 0.0
        %1461 = vmatpush1.msra.mxu0 0.0
        %1462 = vmatprep.subr.mxu0 0.0
        %1463 = vmatpush1.msra.mxu0 0.0
        %1464 = vmatprep.subr.mxu0 0.0
        %1465 = vmatpush1.msra.mxu0 0.0
        %1466 = vmatprep.subr.mxu0 0.0
        %1467 = vmatpush1.msra.mxu0 0.0
        %1468 = vmatprep.subr.mxu0 0.0
        %1469 = vmatpush1.msra.mxu0 0.0
        %1470 = vmatprep.subr.mxu0 0.0
        %1471 = vmatpush1.msra.mxu0 0.0
        %1472 = vmatprep.subr.mxu0 0.0
        %1473 = vmatpush1.msra.mxu0 0.0
        %1474 = vmatprep.subr.mxu0 0.0
        %1475 = vmatpush1.msra.mxu0 0.0
        %1476 = vmatprep.subr.mxu0 0.0
        %1477 = vmatpush1.msra.mxu0 0.0
        %1478 = vmatprep.subr.mxu0 0.0
        %1479 = vmatpush1.msra.mxu0 0.0
        %1480 = vmatprep.subr.mxu0 0.0
        %1481 = vmatpush1.msra.mxu0 0.0
        %1482 = vmatprep.subr.mxu0 0.0
        %1483 = vmatpush1.msra.mxu0 0.0
        %1484 = vmatprep.subr.mxu0 0.0
        %1485 = vmatpush1.msra.mxu0 0.0
        %1486 = vmatprep.subr.mxu0 0.0
        %1487 = vmatpush1.msra.mxu0 0.0
        %1488 = vmatprep.subr.mxu0 0.0
        %1489 = vmatpush1.msra.mxu0 0.0
        %1490 = vmatprep.subr.mxu0 0.0
        %1491 = vmatpush1.msra.mxu0 0.0
        %1492 = vmatprep.subr.mxu0 0.0
        %1493 = vmatpush1.msra.mxu0 0.0
        %1494 = vmatprep.subr.mxu0 0.0
        %1495 = vmatpush1.msra.mxu0 0.0
        %1496 = vmatprep.subr.mxu0 0.0
        %1497 = vmatpush1.msra.mxu0 0.0
        %1498 = vmatprep.subr.mxu0 0.0
        %1499 = vmatpush1.msra.mxu0 0.0
        %1500 = vmatprep.subr.mxu0 0.0
        %1501 = vmatpush1.msra.mxu0 0.0
        %1502 = vmatprep.subr.mxu0 0.0
        %1503 = vmatpush1.msra.mxu0 0.0
        %1504 = vmatprep.mubr.f32.mxu0 0.0
        %1505 = vmatmul.mubr.f32.gmra.mrb[0].mxu0 %v1420
        %v1506 = vpop.f32.mrb[0].mxu0
        %v1507 = vadd.f32 0.0, %v1506
        %v1508 = vpop.f32.mrb[0].mxu0
        %v1509 = vadd.f32 0.0, %v1508
        %1510 = vmatprep.mubr.f32.mxu0 0.0
        %1511 = vmatmul.mubr.f32.gmra.mrb[0].mxu0 %v1423
        %v1512 = vpop.f32.mrb[0].mxu0
        %v1513 = vadd.f32 0.0, %v1512
        %v1514 = vpop.f32.mrb[0].mxu0
        %v1515 = vadd.f32 0.0, %v1514
        %1516 = vmatprep.mubr.f32.mxu0 0.0
        %1517 = vmatmul.mubr.f32.gmra.mrb[0].mxu0 %v1426
        %v1518 = vpop.f32.mrb[0].mxu0
        %v1519 = vadd.f32 0.0, %v1518
        %v1520 = vpop.f32.mrb[0].mxu0
        %v1521 = vadd.f32 0.0, %v1520
        %1522 = vdwg.mxu0
        %1523 = vmatprep.subr.mxu0 %v1406
        %1524 = vmatpush1.msra.mxu0 %v1405
        %1525 = vmatprep.subr.mxu0 %v1410
        %1526 = vmatpush1.msra.mxu0 %v1409
        %1527 = vmatprep.subr.mxu0 %v1414
        %1528 = vmatpush1.msra.mxu0 %v1413
        %1529 = vmatprep.subr.mxu0 %v1438
        %1530 = vmatpush1.msra.mxu0 %v1435
        %1531 = vmatprep.subr.mxu0 0.0
        %1532 = vmatpush1.msra.mxu0 0.0
        %1533 = vmatprep.subr.mxu0 0.0
        %1534 = vmatpush1.msra.mxu0 0.0
        %1535 = vmatprep.subr.mxu0 0.0
        %1536 = vmatpush1.msra.mxu0 0.0
        %1537 = vmatprep.subr.mxu0 0.0
        %1538 = vmatpush1.msra.mxu0 0.0
        %1539 = vmatprep.subr.mxu0 0.0
        %1540 = vmatpush1.msra.mxu0 0.0
        %1541 = vmatprep.subr.mxu0 0.0
        %1542 = vmatpush1.msra.mxu0 0.0
        %1543 = vmatprep.subr.mxu0 0.0
        %1544 = vmatpush1.msra.mxu0 0.0
        %1545 = vmatprep.subr.mxu0 0.0
        %1546 = vmatpush1.msra.mxu0 0.0
        %1547 = vmatprep.subr.mxu0 0.0
        %1548 = vmatpush1.msra.mxu0 0.0
        %1549 = vmatprep.subr.mxu0 0.0
        %1550 = vmatpush1.msra.mxu0 0.0
        %1551 = vmatprep.subr.mxu0 0.0
        %1552 = vmatpush1.msra.mxu0 0.0
        %1553 = vmatprep.subr.mxu0 0.0
        %1554 = vmatpush1.msra.mxu0 0.0
        %1555 = vmatprep.subr.mxu0 0.0
        %1556 = vmatpush1.msra.mxu0 0.0
        %1557 = vmatprep.subr.mxu0 0.0
        %1558 = vmatpush1.msra.mxu0 0.0
        %1559 = vmatprep.subr.mxu0 0.0
        %1560 = vmatpush1.msra.mxu0 0.0
        %1561 = vmatprep.subr.mxu0 0.0
        %1562 = vmatpush1.msra.mxu0 0.0
        %1563 = vmatprep.subr.mxu0 0.0
        %1564 = vmatpush1.msra.mxu0 0.0
        %1565 = vmatprep.subr.mxu0 0.0
        %1566 = vmatpush1.msra.mxu0 0.0
        %1567 = vmatprep.subr.mxu0 0.0
        %1568 = vmatpush1.msra.mxu0 0.0
        %1569 = vmatprep.subr.mxu0 0.0
        %1570 = vmatpush1.msra.mxu0 0.0
        %1571 = vmatprep.subr.mxu0 0.0
        %1572 = vmatpush1.msra.mxu0 0.0
        %1573 = vmatprep.subr.mxu0 0.0
        %1574 = vmatpush1.msra.mxu0 0.0
        %1575 = vmatprep.subr.mxu0 0.0
        %1576 = vmatpush1.msra.mxu0 0.0
        %1577 = vmatprep.subr.mxu0 0.0
        %1578 = vmatpush1.msra.mxu0 0.0
        %1579 = vmatprep.subr.mxu0 0.0
        %1580 = vmatpush1.msra.mxu0 0.0
        %1581 = vmatprep.subr.mxu0 0.0
        %1582 = vmatpush1.msra.mxu0 0.0
        %1583 = vmatprep.subr.mxu0 0.0
        %1584 = vmatpush1.msra.mxu0 0.0
        %1585 = vmatprep.subr.mxu0 0.0
        %1586 = vmatpush1.msra.mxu0 0.0
        %1587 = vmatprep.mubr.f32.mxu0 0.0
        %1588 = vmatmul.mubr.f32.gmra.mrb[0].mxu0 %v1420
        %v1589 = vpop.f32.mrb[0].mxu0
        %v1590 = vadd.f32 0.0, %v1589
        %v1591 = vpop.f32.mrb[0].mxu0
        %v1592 = vadd.f32 0.0, %v1591
        %1593 = vmatprep.mubr.f32.mxu0 0.0
        %1594 = vmatmul.mubr.f32.gmra.mrb[0].mxu0 %v1423
        %v1595 = vpop.f32.mrb[0].mxu0
        %v1596 = vadd.f32 0.0, %v1595
        %v1597 = vpop.f32.mrb[0].mxu0
        %v1598 = vadd.f32 0.0, %v1597
        %1599 = vmatprep.mubr.f32.mxu0 0.0
        %1600 = vmatmul.mubr.f32.gmra.mrb[0].mxu0 %v1426
        %v1601 = vpop.f32.mrb[0].mxu0
        %v1602 = vadd.f32 0.0, %v1601
        %v1603 = vpop.f32.mrb[0].mxu0
        %v1604 = vadd.f32 0.0, %v1603
        %1605 = vdwg.mxu0
        %v1606 = vadd.f32 %v1387, %v1507
        %v1607 = vadd.f32 %v1388, %v1509
        %v1608 = vadd.f32 %v1389, %v1590
        %v1609 = vadd.f32 %v1390, %v1592
        %v1610 = vadd.f32 %v1391, %v1513
        %v1611 = vadd.f32 %v1392, %v1515
        %v1612 = vadd.f32 %v1393, %v1596
        %v1613 = vadd.f32 %v1394, %v1598
        %v1614 = vadd.f32 %v1395, %v1519
        %v1615 = vadd.f32 %v1396, %v1521
        %v1616 = vadd.f32 %v1397, %v1602
        %v1617 = vadd.f32 %v1398, %v1604
        %v1618 = vld [vmem:[%s2] sm:$0xf]
        %v1620 = vlaneseq
        %v1621 = vshrl.u32 %v1620, 7
        %v1622 = vsub.s32 0, %v1621
        %v1623 = vrot.slane %v1618, %v1622
        %v1624 = vlaneseq
        %v1625 = vshrl.u32 %v1624, 7
        %v1626 = vsub.s32 1, %v1625
        %v1627 = vrot.slane %v1618, %v1626
        %v1628 = vlaneseq
        %v1629 = vshrl.u32 %v1628, 7
        %v1630 = vsub.s32 2, %v1629
        %v1631 = vrot.slane %v1618, %v1630
        %v1632 = vlaneseq
        %v1633 = vshrl.u32 %v1632, 7
        %v1634 = vsub.s32 3, %v1633
        %v1635 = vrot.slane %v1618, %v1634
        %v1640 = vadd.f32 %v1606, %v1623
        %v1641 = vadd.f32 %v1607, %v1627
        %v1642 = vadd.f32 %v1608, %v1631
        %v1643 = vadd.f32 %v1609, %v1635
        %v1644 = vadd.f32 %v1610, %v1623
        %v1645 = vadd.f32 %v1611, %v1627
        %v1646 = vadd.f32 %v1612, %v1631
        %v1647 = vadd.f32 %v1613, %v1635
        %v1648 = vadd.f32 %v1614, %v1623
        %v1649 = vadd.f32 %v1615, %v1627
        %v1650 = vadd.f32 %v1616, %v1631
        %v1651 = vadd.f32 %v1617, %v1635
        %v1652 = vmax.f32 %v1640, 0.0
        %v1653 = vmax.f32 %v1641, 0.0
        %v1654 = vmax.f32 %v1642, 0.0
        %v1655 = vmax.f32 %v1643, 0.0
        %v1656 = vmax.f32 %v1644, 0.0
        %v1657 = vmax.f32 %v1645, 0.0
        %v1658 = vmax.f32 %v1646, 0.0
        %v1659 = vmax.f32 %v1647, 0.0
        %v1660 = vmax.f32 %v1648, 0.0
        %v1661 = vmax.f32 %v1649, 0.0
        %v1662 = vmax.f32 %v1650, 0.0
        %v1663 = vmax.f32 %v1651, 0.0
        %v1664 = vld [vmem:[%s3] sm:$0xff]
        %v1665 = vld [vmem:[%s3 + $0x8] sm:$0xf]
        %vm1666 = vcmask 195584
        %v1668 = vsel %vm1666, %v1664, 0
        %v1671 = vsel %vm1666, %v1665, 0
        %1673 = vmatprep.subr.mxu0 %v1653
        %1674 = vmatpush1.msra.mxu0 %v1652
        %1675 = vmatprep.subr.mxu0 %v1657
        %1676 = vmatpush1.msra.mxu0 %v1656
        %1677 = vmatprep.subr.mxu0 %v1661
        %1678 = vmatpush1.msra.mxu0 %v1660
        %1679 = vmatprep.subr.mxu0 0.0
        %1680 = vmatpush1.msra.mxu0 0.0
        %1681 = vmatprep.subr.mxu0 0.0
        %1682 = vmatpush1.msra.mxu0 0.0
        %1683 = vmatprep.subr.mxu0 0.0
        %1684 = vmatpush1.msra.mxu0 0.0
        %1685 = vmatprep.subr.mxu0 0.0
        %1686 = vmatpush1.msra.mxu0 0.0
        %1687 = vmatprep.subr.mxu0 0.0
        %1688 = vmatpush1.msra.mxu0 0.0
        %1689 = vmatprep.subr.mxu0 0.0
        %1690 = vmatpush1.msra.mxu0 0.0
        %1691 = vmatprep.subr.mxu0 0.0
        %1692 = vmatpush1.msra.mxu0 0.0
        %1693 = vmatprep.subr.mxu0 0.0
        %1694 = vmatpush1.msra.mxu0 0.0
        %1695 = vmatprep.subr.mxu0 0.0
        %1696 = vmatpush1.msra.mxu0 0.0
        %1697 = vmatprep.subr.mxu0 0.0
        %1698 = vmatpush1.msra.mxu0 0.0
        %1699 = vmatprep.subr.mxu0 0.0
        %1700 = vmatpush1.msra.mxu0 0.0
        %1701 = vmatprep.subr.mxu0 0.0
        %1702 = vmatpush1.msra.mxu0 0.0
        %1703 = vmatprep.subr.mxu0 0.0
        %1704 = vmatpush1.msra.mxu0 0.0
        %1705 = vmatprep.subr.mxu0 0.0
        %1706 = vmatpush1.msra.mxu0 0.0
        %1707 = vmatprep.subr.mxu0 0.0
        %1708 = vmatpush1.msra.mxu0 0.0
        %1709 = vmatprep.subr.mxu0 0.0
        %1710 = vmatpush1.msra.mxu0 0.0
        %1711 = vmatprep.subr.mxu0 0.0
        %1712 = vmatpush1.msra.mxu0 0.0
        %1713 = vmatprep.subr.mxu0 0.0
        %1714 = vmatpush1.msra.mxu0 0.0
        %1715 = vmatprep.subr.mxu0 0.0
        %1716 = vmatpush1.msra.mxu0 0.0
        %1717 = vmatprep.subr.mxu0 0.0
        %1718 = vmatpush1.msra.mxu0 0.0
        %1719 = vmatprep.subr.mxu0 0.0
        %1720 = vmatpush1.msra.mxu0 0.0
        %1721 = vmatprep.subr.mxu0 0.0
        %1722 = vmatpush1.msra.mxu0 0.0
        %1723 = vmatprep.subr.mxu0 0.0
        %1724 = vmatpush1.msra.mxu0 0.0
        %1725 = vmatprep.subr.mxu0 0.0
        %1726 = vmatpush1.msra.mxu0 0.0
        %1727 = vmatprep.subr.mxu0 0.0
        %1728 = vmatpush1.msra.mxu0 0.0
        %1729 = vmatprep.subr.mxu0 0.0
        %1730 = vmatpush1.msra.mxu0 0.0
        %1731 = vmatprep.subr.mxu0 0.0
        %1732 = vmatpush1.msra.mxu0 0.0
        %1733 = vmatprep.subr.mxu0 0.0
        %1734 = vmatpush1.msra.mxu0 0.0
        %1735 = vmatprep.subr.mxu0 0.0
        %1736 = vmatpush1.msra.mxu0 0.0
        %1737 = vmatprep.mubr.f32.mxu0 0.0
        %1738 = vmatmul.mubr.f32.gmra.mrb[0].mxu0 %v1668
        %v1739 = vpop.f32.mrb[0].mxu0
        %v1740 = vadd.f32 0.0, %v1739
        %v1741 = vpop.f32.mrb[0].mxu0
        %v1742 = vadd.f32 0.0, %v1741
        %1743 = vmatprep.mubr.f32.mxu0 0.0
        %1744 = vmatmul.mubr.f32.gmra.mrb[0].mxu0 %v1671
        %v1745 = vpop.f32.mrb[0].mxu0
        %v1746 = vadd.f32 0.0, %v1745
        %v1747 = vpop.f32.mrb[0].mxu0
        %v1748 = vadd.f32 0.0, %v1747
        %1749 = vdwg.mxu0
        %1750 = vmatprep.subr.mxu0 %v1655
        %1751 = vmatpush1.msra.mxu0 %v1654
        %1752 = vmatprep.subr.mxu0 %v1659
        %1753 = vmatpush1.msra.mxu0 %v1658
        %1754 = vmatprep.subr.mxu0 %v1663
        %1755 = vmatpush1.msra.mxu0 %v1662
        %1756 = vmatprep.subr.mxu0 0.0
        %1757 = vmatpush1.msra.mxu0 0.0
        %1758 = vmatprep.subr.mxu0 0.0
        %1759 = vmatpush1.msra.mxu0 0.0
        %1760 = vmatprep.subr.mxu0 0.0
        %1761 = vmatpush1.msra.mxu0 0.0
        %1762 = vmatprep.subr.mxu0 0.0
        %1763 = vmatpush1.msra.mxu0 0.0
        %1764 = vmatprep.subr.mxu0 0.0
        %1765 = vmatpush1.msra.mxu0 0.0
        %1766 = vmatprep.subr.mxu0 0.0
        %1767 = vmatpush1.msra.mxu0 0.0
        %1768 = vmatprep.subr.mxu0 0.0
        %1769 = vmatpush1.msra.mxu0 0.0
        %1770 = vmatprep.subr.mxu0 0.0
        %1771 = vmatpush1.msra.mxu0 0.0
        %1772 = vmatprep.subr.mxu0 0.0
        %1773 = vmatpush1.msra.mxu0 0.0
        %1774 = vmatprep.subr.mxu0 0.0
        %1775 = vmatpush1.msra.mxu0 0.0
        %1776 = vmatprep.subr.mxu0 0.0
        %1777 = vmatpush1.msra.mxu0 0.0
        %1778 = vmatprep.subr.mxu0 0.0
        %1779 = vmatpush1.msra.mxu0 0.0
        %1780 = vmatprep.subr.mxu0 0.0
        %1781 = vmatpush1.msra.mxu0 0.0
        %1782 = vmatprep.subr.mxu0 0.0
        %1783 = vmatpush1.msra.mxu0 0.0
        %1784 = vmatprep.subr.mxu0 0.0
        %1785 = vmatpush1.msra.mxu0 0.0
        %1786 = vmatprep.subr.mxu0 0.0
        %1787 = vmatpush1.msra.mxu0 0.0
        %1788 = vmatprep.subr.mxu0 0.0
        %1789 = vmatpush1.msra.mxu0 0.0
        %1790 = vmatprep.subr.mxu0 0.0
        %1791 = vmatpush1.msra.mxu0 0.0
        %1792 = vmatprep.subr.mxu0 0.0
        %1793 = vmatpush1.msra.mxu0 0.0
        %1794 = vmatprep.subr.mxu0 0.0
        %1795 = vmatpush1.msra.mxu0 0.0
        %1796 = vmatprep.subr.mxu0 0.0
        %1797 = vmatpush1.msra.mxu0 0.0
        %1798 = vmatprep.subr.mxu0 0.0
        %1799 = vmatpush1.msra.mxu0 0.0
        %1800 = vmatprep.subr.mxu0 0.0
        %1801 = vmatpush1.msra.mxu0 0.0
        %1802 = vmatprep.subr.mxu0 0.0
        %1803 = vmatpush1.msra.mxu0 0.0
        %1804 = vmatprep.subr.mxu0 0.0
        %1805 = vmatpush1.msra.mxu0 0.0
        %1806 = vmatprep.subr.mxu0 0.0
        %1807 = vmatpush1.msra.mxu0 0.0
        %1808 = vmatprep.subr.mxu0 0.0
        %1809 = vmatpush1.msra.mxu0 0.0
        %1810 = vmatprep.subr.mxu0 0.0
        %1811 = vmatpush1.msra.mxu0 0.0
        %1812 = vmatprep.subr.mxu0 0.0
        %1813 = vmatpush1.msra.mxu0 0.0
        %1814 = vmatprep.mubr.f32.mxu0 0.0
        %1815 = vmatmul.mubr.f32.gmra.mrb[0].mxu0 %v1668
        %v1816 = vpop.f32.mrb[0].mxu0
        %v1817 = vadd.f32 0.0, %v1816
        %v1818 = vpop.f32.mrb[0].mxu0
        %v1819 = vadd.f32 0.0, %v1818
        %1820 = vmatprep.mubr.f32.mxu0 0.0
        %1821 = vmatmul.mubr.f32.gmra.mrb[0].mxu0 %v1671
        %v1822 = vpop.f32.mrb[0].mxu0
        %v1823 = vadd.f32 0.0, %v1822
        %v1824 = vpop.f32.mrb[0].mxu0
        %v1825 = vadd.f32 0.0, %v1824
        %1826 = vdwg.mxu0
        %v1827 = vld [vmem:[%s4] sm:$0xff]
        %v1828 = vld [vmem:[%s4 + $0x8] sm:$0xf]
        %v1830 = vsel %vm1666, %v1827, 0
        %v1833 = vsel %vm1666, %v1828, 0
        %1835 = vmatprep.subr.mxu0 %v1653
        %1836 = vmatpush1.msra.mxu0 %v1652
        %1837 = vmatprep.subr.mxu0 %v1657
        %1838 = vmatpush1.msra.mxu0 %v1656
        %1839 = vmatprep.subr.mxu0 %v1661
        %1840 = vmatpush1.msra.mxu0 %v1660
        %1841 = vmatprep.subr.mxu0 0.0
        %1842 = vmatpush1.msra.mxu0 0.0
        %1843 = vmatprep.subr.mxu0 0.0
        %1844 = vmatpush1.msra.mxu0 0.0
        %1845 = vmatprep.subr.mxu0 0.0
        %1846 = vmatpush1.msra.mxu0 0.0
        %1847 = vmatprep.subr.mxu0 0.0
        %1848 = vmatpush1.msra.mxu0 0.0
        %1849 = vmatprep.subr.mxu0 0.0
        %1850 = vmatpush1.msra.mxu0 0.0
        %1851 = vmatprep.subr.mxu0 0.0
        %1852 = vmatpush1.msra.mxu0 0.0
        %1853 = vmatprep.subr.mxu0 0.0
        %1854 = vmatpush1.msra.mxu0 0.0
        %1855 = vmatprep.subr.mxu0 0.0
        %1856 = vmatpush1.msra.mxu0 0.0
        %1857 = vmatprep.subr.mxu0 0.0
        %1858 = vmatpush1.msra.mxu0 0.0
        %1859 = vmatprep.subr.mxu0 0.0
        %1860 = vmatpush1.msra.mxu0 0.0
        %1861 = vmatprep.subr.mxu0 0.0
        %1862 = vmatpush1.msra.mxu0 0.0
        %1863 = vmatprep.subr.mxu0 0.0
        %1864 = vmatpush1.msra.mxu0 0.0
        %1865 = vmatprep.subr.mxu0 0.0
        %1866 = vmatpush1.msra.mxu0 0.0
        %1867 = vmatprep.subr.mxu0 0.0
        %1868 = vmatpush1.msra.mxu0 0.0
        %1869 = vmatprep.subr.mxu0 0.0
        %1870 = vmatpush1.msra.mxu0 0.0
        %1871 = vmatprep.subr.mxu0 0.0
        %1872 = vmatpush1.msra.mxu0 0.0
        %1873 = vmatprep.subr.mxu0 0.0
        %1874 = vmatpush1.msra.mxu0 0.0
        %1875 = vmatprep.subr.mxu0 0.0
        %1876 = vmatpush1.msra.mxu0 0.0
        %1877 = vmatprep.subr.mxu0 0.0
        %1878 = vmatpush1.msra.mxu0 0.0
        %1879 = vmatprep.subr.mxu0 0.0
        %1880 = vmatpush1.msra.mxu0 0.0
        %1881 = vmatprep.subr.mxu0 0.0
        %1882 = vmatpush1.msra.mxu0 0.0
        %1883 = vmatprep.subr.mxu0 0.0
        %1884 = vmatpush1.msra.mxu0 0.0
        %1885 = vmatprep.subr.mxu0 0.0
        %1886 = vmatpush1.msra.mxu0 0.0
        %1887 = vmatprep.subr.mxu0 0.0
        %1888 = vmatpush1.msra.mxu0 0.0
        %1889 = vmatprep.subr.mxu0 0.0
        %1890 = vmatpush1.msra.mxu0 0.0
        %1891 = vmatprep.subr.mxu0 0.0
        %1892 = vmatpush1.msra.mxu0 0.0
        %1893 = vmatprep.subr.mxu0 0.0
        %1894 = vmatpush1.msra.mxu0 0.0
        %1895 = vmatprep.subr.mxu0 0.0
        %1896 = vmatpush1.msra.mxu0 0.0
        %1897 = vmatprep.subr.mxu0 0.0
        %1898 = vmatpush1.msra.mxu0 0.0
        %1899 = vmatprep.mubr.f32.mxu0 0.0
        %1900 = vmatmul.mubr.f32.gmra.mrb[0].mxu0 %v1830
        %v1901 = vpop.f32.mrb[0].mxu0
        %v1902 = vadd.f32 0.0, %v1901
        %v1903 = vpop.f32.mrb[0].mxu0
        %v1904 = vadd.f32 0.0, %v1903
        %1905 = vmatprep.mubr.f32.mxu0 0.0
        %1906 = vmatmul.mubr.f32.gmra.mrb[0].mxu0 %v1833
        %v1907 = vpop.f32.mrb[0].mxu0
        %v1908 = vadd.f32 0.0, %v1907
        %v1909 = vpop.f32.mrb[0].mxu0
        %v1910 = vadd.f32 0.0, %v1909
        %1911 = vdwg.mxu0
        %1912 = vmatprep.subr.mxu0 %v1655
        %1913 = vmatpush1.msra.mxu0 %v1654
        %1914 = vmatprep.subr.mxu0 %v1659
        %1915 = vmatpush1.msra.mxu0 %v1658
        %1916 = vmatprep.subr.mxu0 %v1663
        %1917 = vmatpush1.msra.mxu0 %v1662
        %1918 = vmatprep.subr.mxu0 0.0
        %1919 = vmatpush1.msra.mxu0 0.0
        %1920 = vmatprep.subr.mxu0 0.0
        %1921 = vmatpush1.msra.mxu0 0.0
        %1922 = vmatprep.subr.mxu0 0.0
        %1923 = vmatpush1.msra.mxu0 0.0
        %1924 = vmatprep.subr.mxu0 0.0
        %1925 = vmatpush1.msra.mxu0 0.0
        %1926 = vmatprep.subr.mxu0 0.0
        %1927 = vmatpush1.msra.mxu0 0.0
        %1928 = vmatprep.subr.mxu0 0.0
        %1929 = vmatpush1.msra.mxu0 0.0
        %1930 = vmatprep.subr.mxu0 0.0
        %1931 = vmatpush1.msra.mxu0 0.0
        %1932 = vmatprep.subr.mxu0 0.0
        %1933 = vmatpush1.msra.mxu0 0.0
        %1934 = vmatprep.subr.mxu0 0.0
        %1935 = vmatpush1.msra.mxu0 0.0
        %1936 = vmatprep.subr.mxu0 0.0
        %1937 = vmatpush1.msra.mxu0 0.0
        %1938 = vmatprep.subr.mxu0 0.0
        %1939 = vmatpush1.msra.mxu0 0.0
        %1940 = vmatprep.subr.mxu0 0.0
        %1941 = vmatpush1.msra.mxu0 0.0
        %1942 = vmatprep.subr.mxu0 0.0
        %1943 = vmatpush1.msra.mxu0 0.0
        %1944 = vmatprep.subr.mxu0 0.0
        %1945 = vmatpush1.msra.mxu0 0.0
        %1946 = vmatprep.subr.mxu0 0.0
        %1947 = vmatpush1.msra.mxu0 0.0
        %1948 = vmatprep.subr.mxu0 0.0
        %1949 = vmatpush1.msra.mxu0 0.0
        %1950 = vmatprep.subr.mxu0 0.0
        %1951 = vmatpush1.msra.mxu0 0.0
        %1952 = vmatprep.subr.mxu0 0.0
        %1953 = vmatpush1.msra.mxu0 0.0
        %1954 = vmatprep.subr.mxu0 0.0
        %1955 = vmatpush1.msra.mxu0 0.0
        %1956 = vmatprep.subr.mxu0 0.0
        %1957 = vmatpush1.msra.mxu0 0.0
        %1958 = vmatprep.subr.mxu0 0.0
        %1959 = vmatpush1.msra.mxu0 0.0
        %1960 = vmatprep.subr.mxu0 0.0
        %1961 = vmatpush1.msra.mxu0 0.0
        %1962 = vmatprep.subr.mxu0 0.0
        %1963 = vmatpush1.msra.mxu0 0.0
        %1964 = vmatprep.subr.mxu0 0.0
        %1965 = vmatpush1.msra.mxu0 0.0
        %1966 = vmatprep.subr.mxu0 0.0
        %1967 = vmatpush1.msra.mxu0 0.0
        %1968 = vmatprep.subr.mxu0 0.0
        %1969 = vmatpush1.msra.mxu0 0.0
        %1970 = vmatprep.subr.mxu0 0.0
        %1971 = vmatpush1.msra.mxu0 0.0
        %1972 = vmatprep.subr.mxu0 0.0
        %1973 = vmatpush1.msra.mxu0 0.0
        %1974 = vmatprep.subr.mxu0 0.0
        %1975 = vmatpush1.msra.mxu0 0.0
        %1976 = vmatprep.mubr.f32.mxu0 0.0
        %1977 = vmatmul.mubr.f32.gmra.mrb[0].mxu0 %v1830
        %v1978 = vpop.f32.mrb[0].mxu0
        %v1979 = vadd.f32 0.0, %v1978
        %v1980 = vpop.f32.mrb[0].mxu0
        %v1981 = vadd.f32 0.0, %v1980
        %1982 = vmatprep.mubr.f32.mxu0 0.0
        %1983 = vmatmul.mubr.f32.gmra.mrb[0].mxu0 %v1833
        %v1984 = vpop.f32.mrb[0].mxu0
        %v1985 = vadd.f32 0.0, %v1984
        %v1986 = vpop.f32.mrb[0].mxu0
        %v1987 = vadd.f32 0.0, %v1986
        %1988 = vdwg.mxu0
        %v1989 = vmax.f32 %v1740, %v1902
        %v1990 = vmax.f32 %v1742, %v1904
        %v1991 = vmax.f32 %v1817, %v1979
        %v1992 = vmax.f32 %v1819, %v1981
        %v1993 = vmax.f32 %v1746, %v1908
        %v1994 = vmax.f32 %v1748, %v1910
        %v1995 = vmax.f32 %v1823, %v1985
        %v1996 = vmax.f32 %v1825, %v1987
        %v1997 = vld [vmem:[%s5] sm:$0xff]
        %v1998 = vld [vmem:[%s5 + $0x8] sm:$0xff]
        %v1999 = vld [vmem:[%s5 + $0x10] sm:$0xff]
        %v2000 = vld [vmem:[%s5 + $0x18] sm:$0xff]
        %v2001 = vld [vmem:[%s5 + $0x20] sm:$0xff]
        %v2002 = vld [vmem:[%s5 + $0x28] sm:$0xff]
        %v2003 = vld [vmem:[%s5 + $0x30] sm:$0xff]
        %v2004 = vld [vmem:[%s5 + $0x38] sm:$0xff]
        %v2005 = vld [vmem:[%s5 + $0x40] sm:$0xff]
        %v2006 = vld [vmem:[%s5 + $0x48] sm:$0xff]
        %v2007 = vld [vmem:[%s5 + $0x50] sm:$0xff]
        %v2008 = vld [vmem:[%s5 + $0x58] sm:$0xff]
        %v2009 = vld [vmem:[%s5 + $0x60] sm:$0xff]
        %v2010 = vld [vmem:[%s5 + $0x68] sm:$0xff]
        %v2011 = vld [vmem:[%s5 + $0x70] sm:$0xff]
        %v2012 = vld [vmem:[%s5 + $0x78] sm:$0xff]
        %v2013 = vld [vmem:[%s5 + $0x80] sm:$0xff]
        %v2014 = vld [vmem:[%s5 + $0x88] sm:$0xff]
        %v2015 = vld [vmem:[%s5 + $0x90] sm:$0xff]
        %v2016 = vld [vmem:[%s5 + $0x98] sm:$0xff]
        %v2017 = vld [vmem:[%s5 + $0xa0] sm:$0xff]
        %v2018 = vld [vmem:[%s5 + $0xa8] sm:$0xff]
        %v2019 = vld [vmem:[%s5 + $0xb0] sm:$0xff]
        %v2020 = vld [vmem:[%s5 + $0xb8] sm:$0xff]
        %v2021 = vld [vmem:[%s5 + $0xc0] sm:$0xff]
        %v2022 = vld [vmem:[%s5 + $0xc8] sm:$0xff]
        %v2023 = vld [vmem:[%s5 + $0xd0] sm:$0xff]
        %v2024 = vld [vmem:[%s5 + $0xd8] sm:$0xff]
        %v2025 = vld [vmem:[%s5 + $0xe0] sm:$0xff]
        %v2026 = vld [vmem:[%s5 + $0xe8] sm:$0xff]
        %v2027 = vld [vmem:[%s5 + $0xf0] sm:$0xff]
        %v2028 = vld [vmem:[%s5 + $0xf8] sm:$0xff]
        %v2029 = vld [vmem:[%s5 + $0x100] sm:$0xff]
        %v2030 = vld [vmem:[%s5 + $0x108] sm:$0xff]
        %v2031 = vld [vmem:[%s5 + $0x110] sm:$0xff]
        %v2032 = vld [vmem:[%s5 + $0x118] sm:$0xff]
        %v2033 = vld [vmem:[%s5 + $0x120] sm:$0xff]
        %v2034 = vld [vmem:[%s5 + $0x128] sm:$0xff]
        %v2035 = vld [vmem:[%s5 + $0x130] sm:$0xff]
        %v2036 = vld [vmem:[%s5 + $0x138] sm:$0xff]
        %v2037 = vld [vmem:[%s5 + $0x140] sm:$0xff]
        %v2038 = vld [vmem:[%s5 + $0x148] sm:$0xff]
        %v2039 = vld [vmem:[%s5 + $0x150] sm:$0xff]
        %v2040 = vld [vmem:[%s5 + $0x158] sm:$0xff]
        %v2041 = vld [vmem:[%s5 + $0x160] sm:$0xff]
        %v2042 = vld [vmem:[%s5 + $0x168] sm:$0xff]
        %v2043 = vld [vmem:[%s5 + $0x170] sm:$0xff]
        %v2044 = vld [vmem:[%s5 + $0x178] sm:$0xff]
        %v2045 = vld [vmem:[%s5 + $0x180] sm:$0xff]
        %v2046 = vld [vmem:[%s5 + $0x188] sm:$0xff]
        %v2047 = vld [vmem:[%s5 + $0x190] sm:$0xff]
        %v2048 = vld [vmem:[%s5 + $0x198] sm:$0xff]
        %v2049 = vld [vmem:[%s5 + $0x1a0] sm:$0xff]
        %v2050 = vld [vmem:[%s5 + $0x1a8] sm:$0xff]
        %v2051 = vld [vmem:[%s5 + $0x1b0] sm:$0xff]
        %v2052 = vld [vmem:[%s5 + $0x1b8] sm:$0xff]
        %v2053 = vld [vmem:[%s5 + $0x1c0] sm:$0xff]
        %v2054 = vld [vmem:[%s5 + $0x1c8] sm:$0xff]
        %v2055 = vld [vmem:[%s5 + $0x1d0] sm:$0xff]
        %v2056 = vld [vmem:[%s5 + $0x1d8] sm:$0xff]
        %v2057 = vld [vmem:[%s5 + $0x1e0] sm:$0xff]
        %v2058 = vld [vmem:[%s5 + $0x1e8] sm:$0xff]
        %v2059 = vld [vmem:[%s5 + $0x1f0] sm:$0xff]
        %v2060 = vld [vmem:[%s5 + $0x1f8] sm:$0xff]
        %v2061 = vld [vmem:[%s5 + $0x200] sm:$0xff]
        %v2062 = vld [vmem:[%s5 + $0x208] sm:$0xff]
        %v2063 = vld [vmem:[%s5 + $0x210] sm:$0xff]
        %v2064 = vld [vmem:[%s5 + $0x218] sm:$0xff]
        %v2065 = vld [vmem:[%s5 + $0x220] sm:$0xff]
        %v2066 = vld [vmem:[%s5 + $0x228] sm:$0xff]
        %v2067 = vld [vmem:[%s5 + $0x230] sm:$0xff]
        %v2068 = vld [vmem:[%s5 + $0x238] sm:$0xff]
        %v2069 = vld [vmem:[%s5 + $0x240] sm:$0xff]
        %v2070 = vld [vmem:[%s5 + $0x248] sm:$0xff]
        %v2071 = vld [vmem:[%s5 + $0x250] sm:$0xff]
        %v2072 = vld [vmem:[%s5 + $0x258] sm:$0xff]
        %v2073 = vld [vmem:[%s5 + $0x260] sm:$0xff]
        %v2074 = vld [vmem:[%s5 + $0x268] sm:$0xff]
        %v2075 = vld [vmem:[%s5 + $0x270] sm:$0xff]
        %v2076 = vld [vmem:[%s5 + $0x278] sm:$0xff]
        %v2077 = vld [vmem:[%s5 + $0x280] sm:$0xff]
        %v2078 = vld [vmem:[%s5 + $0x288] sm:$0xff]
        %v2079 = vld [vmem:[%s5 + $0x290] sm:$0xff]
        %v2080 = vld [vmem:[%s5 + $0x298] sm:$0xff]
        %v2081 = vld [vmem:[%s5 + $0x2a0] sm:$0xff]
        %v2082 = vld [vmem:[%s5 + $0x2a8] sm:$0xff]
        %v2083 = vld [vmem:[%s5 + $0x2b0] sm:$0xff]
        %v2084 = vld [vmem:[%s5 + $0x2b8] sm:$0xff]
        %v2085 = vld [vmem:[%s5 + $0x2c0] sm:$0xff]
        %v2086 = vld [vmem:[%s5 + $0x2c8] sm:$0xff]
        %v2087 = vld [vmem:[%s5 + $0x2d0] sm:$0xff]
        %v2088 = vld [vmem:[%s5 + $0x2d8] sm:$0xff]
        %v2089 = vld [vmem:[%s5 + $0x2e0] sm:$0xff]
        %v2090 = vld [vmem:[%s5 + $0x2e8] sm:$0xff]
        %v2091 = vld [vmem:[%s5 + $0x2f0] sm:$0xff]
        %v2092 = vld [vmem:[%s5 + $0x2f8] sm:$0xff]
        %v2093 = vld [vmem:[%s5 + $0x300] sm:$0xff]
        %v2094 = vld [vmem:[%s5 + $0x308] sm:$0xff]
        %v2095 = vld [vmem:[%s5 + $0x310] sm:$0xff]
        %v2096 = vld [vmem:[%s5 + $0x318] sm:$0xff]
        %v2097 = vld [vmem:[%s5 + $0x320] sm:$0xff]
        %v2098 = vld [vmem:[%s5 + $0x328] sm:$0xff]
        %v2099 = vld [vmem:[%s5 + $0x330] sm:$0xff]
        %v2100 = vld [vmem:[%s5 + $0x338] sm:$0xff]
        %v2101 = vld [vmem:[%s5 + $0x340] sm:$0xff]
        %v2102 = vld [vmem:[%s5 + $0x348] sm:$0xff]
        %v2103 = vld [vmem:[%s5 + $0x350] sm:$0xff]
        %v2104 = vld [vmem:[%s5 + $0x358] sm:$0xff]
        %v2105 = vld [vmem:[%s5 + $0x360] sm:$0xff]
        %v2106 = vld [vmem:[%s5 + $0x368] sm:$0xff]
        %v2107 = vld [vmem:[%s5 + $0x370] sm:$0xff]
        %v2108 = vld [vmem:[%s5 + $0x378] sm:$0xff]
        %v2109 = vld [vmem:[%s5 + $0x380] sm:$0xff]
        %v2110 = vld [vmem:[%s5 + $0x388] sm:$0xff]
        %v2111 = vld [vmem:[%s5 + $0x390] sm:$0xff]
        %v2112 = vld [vmem:[%s5 + $0x398] sm:$0xff]
        %v2113 = vld [vmem:[%s5 + $0x3a0] sm:$0xff]
        %v2114 = vld [vmem:[%s5 + $0x3a8] sm:$0xff]
        %v2115 = vld [vmem:[%s5 + $0x3b0] sm:$0xff]
        %v2116 = vld [vmem:[%s5 + $0x3b8] sm:$0xff]
        %vm2117 = vcmask 785408
        %v2119 = vsel %vm2117, %v1992, 0
        %v2122 = vsel %vm2117, %v1996, 0
        %2124 = vmatprep.subr.mxu0 %v1998
        %2125 = vmatpush1.msra.mxu0 %v1997
        %2126 = vmatprep.subr.mxu0 %v2000
        %2127 = vmatpush1.msra.mxu0 %v1999
        %2128 = vmatprep.subr.mxu0 %v2002
        %2129 = vmatpush1.msra.mxu0 %v2001
        %2130 = vmatprep.subr.mxu0 %v2004
        %2131 = vmatpush1.msra.mxu0 %v2003
        %2132 = vmatprep.subr.mxu0 %v2006
        %2133 = vmatpush1.msra.mxu0 %v2005
        %2134 = vmatprep.subr.mxu0 %v2008
        %2135 = vmatpush1.msra.mxu0 %v2007
        %2136 = vmatprep.subr.mxu0 %v2010
        %2137 = vmatpush1.msra.mxu0 %v2009
        %2138 = vmatprep.subr.mxu0 %v2012
        %2139 = vmatpush1.msra.mxu0 %v2011
        %2140 = vmatprep.subr.mxu0 %v2014
        %2141 = vmatpush1.msra.mxu0 %v2013
        %2142 = vmatprep.subr.mxu0 %v2016
        %2143 = vmatpush1.msra.mxu0 %v2015
        %2144 = vmatprep.subr.mxu0 %v2018
        %2145 = vmatpush1.msra.mxu0 %v2017
        %2146 = vmatprep.subr.mxu0 %v2020
        %2147 = vmatpush1.msra.mxu0 %v2019
        %2148 = vmatprep.subr.mxu0 %v2022
        %2149 = vmatpush1.msra.mxu0 %v2021
        %2150 = vmatprep.subr.mxu0 %v2024
        %2151 = vmatpush1.msra.mxu0 %v2023
        %2152 = vmatprep.subr.mxu0 %v2026
        %2153 = vmatpush1.msra.mxu0 %v2025
        %2154 = vmatprep.subr.mxu0 %v2028
        %2155 = vmatpush1.msra.mxu0 %v2027
        %2156 = vmatprep.subr.mxu0 %v2030
        %2157 = vmatpush1.msra.mxu0 %v2029
        %2158 = vmatprep.subr.mxu0 %v2032
        %2159 = vmatpush1.msra.mxu0 %v2031
        %2160 = vmatprep.subr.mxu0 %v2034
        %2161 = vmatpush1.msra.mxu0 %v2033
        %2162 = vmatprep.subr.mxu0 %v2036
        %2163 = vmatpush1.msra.mxu0 %v2035
        %2164 = vmatprep.subr.mxu0 %v2038
        %2165 = vmatpush1.msra.mxu0 %v2037
        %2166 = vmatprep.subr.mxu0 %v2040
        %2167 = vmatpush1.msra.mxu0 %v2039
        %2168 = vmatprep.subr.mxu0 %v2042
        %2169 = vmatpush1.msra.mxu0 %v2041
        %2170 = vmatprep.subr.mxu0 %v2044
        %2171 = vmatpush1.msra.mxu0 %v2043
        %2172 = vmatprep.subr.mxu0 %v2046
        %2173 = vmatpush1.msra.mxu0 %v2045
        %2174 = vmatprep.subr.mxu0 %v2048
        %2175 = vmatpush1.msra.mxu0 %v2047
        %2176 = vmatprep.subr.mxu0 %v2050
        %2177 = vmatpush1.msra.mxu0 %v2049
        %2178 = vmatprep.subr.mxu0 %v2052
        %2179 = vmatpush1.msra.mxu0 %v2051
        %2180 = vmatprep.subr.mxu0 %v2054
        %2181 = vmatpush1.msra.mxu0 %v2053
        %2182 = vmatprep.subr.mxu0 %v2056
        %2183 = vmatpush1.msra.mxu0 %v2055
        %2184 = vmatprep.subr.mxu0 %v2058
        %2185 = vmatpush1.msra.mxu0 %v2057
        %2186 = vmatprep.subr.mxu0 %v2060
        %2187 = vmatpush1.msra.mxu0 %v2059
        %2188 = vmatprep.mubr.f32.mxu0 %v1990
        %2189 = vmatmul.mubr.f32.gmra.mrb[0].mxu0 %v1989
        %v2190 = vpop.f32.mrb[0].mxu0
        %v2191 = vadd.f32 0.0, %v2190
        %v2192 = vpop.f32.mrb[0].mxu0
        %v2193 = vadd.f32 0.0, %v2192
        %2194 = vmatprep.mubr.f32.mxu0 %v1994
        %2195 = vmatmul.mubr.f32.gmra.mrb[0].mxu0 %v1993
        %v2196 = vpop.f32.mrb[0].mxu0
        %v2197 = vadd.f32 0.0, %v2196
        %v2198 = vpop.f32.mrb[0].mxu0
        %v2199 = vadd.f32 0.0, %v2198
        %2200 = vdwg.mxu0
        %2201 = vmatprep.subr.mxu0 %v2062
        %2202 = vmatpush1.msra.mxu0 %v2061
        %2203 = vmatprep.subr.mxu0 %v2064
        %2204 = vmatpush1.msra.mxu0 %v2063
        %2205 = vmatprep.subr.mxu0 %v2066
        %2206 = vmatpush1.msra.mxu0 %v2065
        %2207 = vmatprep.subr.mxu0 %v2068
        %2208 = vmatpush1.msra.mxu0 %v2067
        %2209 = vmatprep.subr.mxu0 %v2070
        %2210 = vmatpush1.msra.mxu0 %v2069
        %2211 = vmatprep.subr.mxu0 %v2072
        %2212 = vmatpush1.msra.mxu0 %v2071
        %2213 = vmatprep.subr.mxu0 %v2074
        %2214 = vmatpush1.msra.mxu0 %v2073
        %2215 = vmatprep.subr.mxu0 %v2076
        %2216 = vmatpush1.msra.mxu0 %v2075
        %2217 = vmatprep.subr.mxu0 %v2078
        %2218 = vmatpush1.msra.mxu0 %v2077
        %2219 = vmatprep.subr.mxu0 %v2080
        %2220 = vmatpush1.msra.mxu0 %v2079
        %2221 = vmatprep.subr.mxu0 %v2082
        %2222 = vmatpush1.msra.mxu0 %v2081
        %2223 = vmatprep.subr.mxu0 %v2084
        %2224 = vmatpush1.msra.mxu0 %v2083
        %2225 = vmatprep.subr.mxu0 %v2086
        %2226 = vmatpush1.msra.mxu0 %v2085
        %2227 = vmatprep.subr.mxu0 %v2088
        %2228 = vmatpush1.msra.mxu0 %v2087
        %2229 = vmatprep.subr.mxu0 %v2090
        %2230 = vmatpush1.msra.mxu0 %v2089
        %2231 = vmatprep.subr.mxu0 %v2092
        %2232 = vmatpush1.msra.mxu0 %v2091
        %2233 = vmatprep.subr.mxu0 %v2094
        %2234 = vmatpush1.msra.mxu0 %v2093
        %2235 = vmatprep.subr.mxu0 %v2096
        %2236 = vmatpush1.msra.mxu0 %v2095
        %2237 = vmatprep.subr.mxu0 %v2098
        %2238 = vmatpush1.msra.mxu0 %v2097
        %2239 = vmatprep.subr.mxu0 %v2100
        %2240 = vmatpush1.msra.mxu0 %v2099
        %2241 = vmatprep.subr.mxu0 %v2102
        %2242 = vmatpush1.msra.mxu0 %v2101
        %2243 = vmatprep.subr.mxu0 %v2104
        %2244 = vmatpush1.msra.mxu0 %v2103
        %2245 = vmatprep.subr.mxu0 %v2106
        %2246 = vmatpush1.msra.mxu0 %v2105
        %2247 = vmatprep.subr.mxu0 %v2108
        %2248 = vmatpush1.msra.mxu0 %v2107
        %2249 = vmatprep.subr.mxu0 %v2110
        %2250 = vmatpush1.msra.mxu0 %v2109
        %2251 = vmatprep.subr.mxu0 %v2112
        %2252 = vmatpush1.msra.mxu0 %v2111
        %2253 = vmatprep.subr.mxu0 %v2114
        %2254 = vmatpush1.msra.mxu0 %v2113
        %2255 = vmatprep.subr.mxu0 %v2116
        %2256 = vmatpush1.msra.mxu0 %v2115
        %2257 = vmatprep.subr.mxu0 0.0
        %2258 = vmatpush1.msra.mxu0 0.0
        %2259 = vmatprep.subr.mxu0 0.0
        %2260 = vmatpush1.msra.mxu0 0.0
        %2261 = vmatprep.subr.mxu0 0.0
        %2262 = vmatpush1.msra.mxu0 0.0
        %2263 = vmatprep.subr.mxu0 0.0
        %2264 = vmatpush1.msra.mxu0 0.0
        %2265 = vmatprep.mubr.f32.mxu0 %v2119
        %2266 = vmatmul.mubr.f32.gmra.mrb[0].mxu0 %v1991
        %v2267 = vpop.f32.mrb[0].mxu0
        %v2268 = vadd.f32 %v2191, %v2267
        %v2269 = vpop.f32.mrb[0].mxu0
        %v2270 = vadd.f32 %v2193, %v2269
        %2271 = vmatprep.mubr.f32.mxu0 %v2122
        %2272 = vmatmul.mubr.f32.gmra.mrb[0].mxu0 %v1995
        %v2273 = vpop.f32.mrb[0].mxu0
        %v2274 = vadd.f32 %v2197, %v2273
        %v2275 = vpop.f32.mrb[0].mxu0
        %v2276 = vadd.f32 %v2199, %v2275
        %2277 = vdwg.mxu0
        %v2278 = vld [vmem:[%s6] sm:$0xff]
        %v2279 = vld [vmem:[%s6 + $0x8] sm:$0xff]
        %v2280 = vld [vmem:[%s6 + $0x10] sm:$0xff]
        %v2281 = vld [vmem:[%s6 + $0x18] sm:$0xff]
        %v2282 = vld [vmem:[%s6 + $0x20] sm:$0xff]
        %v2283 = vld [vmem:[%s6 + $0x28] sm:$0xff]
        %v2284 = vld [vmem:[%s6 + $0x30] sm:$0xff]
        %v2285 = vld [vmem:[%s6 + $0x38] sm:$0xff]
        %v2286 = vld [vmem:[%s6 + $0x40] sm:$0xff]
        %v2287 = vld [vmem:[%s6 + $0x48] sm:$0xff]
        %v2288 = vld [vmem:[%s6 + $0x50] sm:$0xff]
        %v2289 = vld [vmem:[%s6 + $0x58] sm:$0xff]
        %v2290 = vld [vmem:[%s6 + $0x60] sm:$0xff]
        %v2291 = vld [vmem:[%s6 + $0x68] sm:$0xff]
        %v2292 = vld [vmem:[%s6 + $0x70] sm:$0xff]
        %v2293 = vld [vmem:[%s6 + $0x78] sm:$0xff]
        %v2294 = vld [vmem:[%s6 + $0x80] sm:$0xff]
        %v2295 = vld [vmem:[%s6 + $0x88] sm:$0xff]
        %v2296 = vld [vmem:[%s6 + $0x90] sm:$0xff]
        %v2297 = vld [vmem:[%s6 + $0x98] sm:$0xff]
        %v2298 = vld [vmem:[%s6 + $0xa0] sm:$0xff]
        %v2299 = vld [vmem:[%s6 + $0xa8] sm:$0xff]
        %v2300 = vld [vmem:[%s6 + $0xb0] sm:$0xff]
        %v2301 = vld [vmem:[%s6 + $0xb8] sm:$0xff]
        %v2302 = vld [vmem:[%s6 + $0xc0] sm:$0xff]
        %v2303 = vld [vmem:[%s6 + $0xc8] sm:$0xff]
        %v2304 = vld [vmem:[%s6 + $0xd0] sm:$0xff]
        %v2305 = vld [vmem:[%s6 + $0xd8] sm:$0xff]
        %v2306 = vld [vmem:[%s6 + $0xe0] sm:$0xff]
        %v2307 = vld [vmem:[%s6 + $0xe8] sm:$0xff]
        %v2308 = vld [vmem:[%s6 + $0xf0] sm:$0xff]
        %v2309 = vld [vmem:[%s6 + $0xf8] sm:$0xff]
        %v2310 = vld [vmem:[%s6 + $0x100] sm:$0xff]
        %v2311 = vld [vmem:[%s6 + $0x108] sm:$0xff]
        %v2312 = vld [vmem:[%s6 + $0x110] sm:$0xff]
        %v2313 = vld [vmem:[%s6 + $0x118] sm:$0xff]
        %v2314 = vld [vmem:[%s6 + $0x120] sm:$0xff]
        %v2315 = vld [vmem:[%s6 + $0x128] sm:$0xff]
        %v2316 = vld [vmem:[%s6 + $0x130] sm:$0xff]
        %v2317 = vld [vmem:[%s6 + $0x138] sm:$0xff]
        %v2318 = vld [vmem:[%s6 + $0x140] sm:$0xff]
        %v2319 = vld [vmem:[%s6 + $0x148] sm:$0xff]
        %v2320 = vld [vmem:[%s6 + $0x150] sm:$0xff]
        %v2321 = vld [vmem:[%s6 + $0x158] sm:$0xff]
        %v2322 = vld [vmem:[%s6 + $0x160] sm:$0xff]
        %v2323 = vld [vmem:[%s6 + $0x168] sm:$0xff]
        %v2324 = vld [vmem:[%s6 + $0x170] sm:$0xff]
        %v2325 = vld [vmem:[%s6 + $0x178] sm:$0xff]
        %v2326 = vld [vmem:[%s6 + $0x180] sm:$0xff]
        %v2327 = vld [vmem:[%s6 + $0x188] sm:$0xff]
        %v2328 = vld [vmem:[%s6 + $0x190] sm:$0xff]
        %v2329 = vld [vmem:[%s6 + $0x198] sm:$0xff]
        %v2330 = vld [vmem:[%s6 + $0x1a0] sm:$0xff]
        %v2331 = vld [vmem:[%s6 + $0x1a8] sm:$0xff]
        %v2332 = vld [vmem:[%s6 + $0x1b0] sm:$0xff]
        %v2333 = vld [vmem:[%s6 + $0x1b8] sm:$0xff]
        %v2334 = vld [vmem:[%s6 + $0x1c0] sm:$0xff]
        %v2335 = vld [vmem:[%s6 + $0x1c8] sm:$0xff]
        %v2336 = vld [vmem:[%s6 + $0x1d0] sm:$0xff]
        %v2337 = vld [vmem:[%s6 + $0x1d8] sm:$0xff]
        %v2338 = vld [vmem:[%s6 + $0x1e0] sm:$0xff]
        %v2339 = vld [vmem:[%s6 + $0x1e8] sm:$0xff]
        %v2340 = vld [vmem:[%s6 + $0x1f0] sm:$0xff]
        %v2341 = vld [vmem:[%s6 + $0x1f8] sm:$0xff]
        %v2342 = vld [vmem:[%s6 + $0x200] sm:$0xff]
        %v2343 = vld [vmem:[%s6 + $0x208] sm:$0xff]
        %v2344 = vld [vmem:[%s6 + $0x210] sm:$0xff]
        %v2345 = vld [vmem:[%s6 + $0x218] sm:$0xff]
        %v2346 = vld [vmem:[%s6 + $0x220] sm:$0xff]
        %v2347 = vld [vmem:[%s6 + $0x228] sm:$0xff]
        %v2348 = vld [vmem:[%s6 + $0x230] sm:$0xff]
        %v2349 = vld [vmem:[%s6 + $0x238] sm:$0xff]
        %v2350 = vld [vmem:[%s6 + $0x240] sm:$0xff]
        %v2351 = vld [vmem:[%s6 + $0x248] sm:$0xff]
        %v2352 = vld [vmem:[%s6 + $0x250] sm:$0xff]
        %v2353 = vld [vmem:[%s6 + $0x258] sm:$0xff]
        %v2354 = vld [vmem:[%s6 + $0x260] sm:$0xff]
        %v2355 = vld [vmem:[%s6 + $0x268] sm:$0xff]
        %v2356 = vld [vmem:[%s6 + $0x270] sm:$0xff]
        %v2357 = vld [vmem:[%s6 + $0x278] sm:$0xff]
        %v2358 = vld [vmem:[%s6 + $0x280] sm:$0xff]
        %v2359 = vld [vmem:[%s6 + $0x288] sm:$0xff]
        %v2360 = vld [vmem:[%s6 + $0x290] sm:$0xff]
        %v2361 = vld [vmem:[%s6 + $0x298] sm:$0xff]
        %v2362 = vld [vmem:[%s6 + $0x2a0] sm:$0xff]
        %v2363 = vld [vmem:[%s6 + $0x2a8] sm:$0xff]
        %v2364 = vld [vmem:[%s6 + $0x2b0] sm:$0xff]
        %v2365 = vld [vmem:[%s6 + $0x2b8] sm:$0xff]
        %v2366 = vld [vmem:[%s6 + $0x2c0] sm:$0xff]
        %v2367 = vld [vmem:[%s6 + $0x2c8] sm:$0xff]
        %v2368 = vld [vmem:[%s6 + $0x2d0] sm:$0xff]
        %v2369 = vld [vmem:[%s6 + $0x2d8] sm:$0xff]
        %v2370 = vld [vmem:[%s6 + $0x2e0] sm:$0xff]
        %v2371 = vld [vmem:[%s6 + $0x2e8] sm:$0xff]
        %v2372 = vld [vmem:[%s6 + $0x2f0] sm:$0xff]
        %v2373 = vld [vmem:[%s6 + $0x2f8] sm:$0xff]
        %v2374 = vld [vmem:[%s6 + $0x300] sm:$0xff]
        %v2375 = vld [vmem:[%s6 + $0x308] sm:$0xff]
        %v2376 = vld [vmem:[%s6 + $0x310] sm:$0xff]
        %v2377 = vld [vmem:[%s6 + $0x318] sm:$0xff]
        %v2378 = vld [vmem:[%s6 + $0x320] sm:$0xff]
        %v2379 = vld [vmem:[%s6 + $0x328] sm:$0xff]
        %v2380 = vld [vmem:[%s6 + $0x330] sm:$0xff]
        %v2381 = vld [vmem:[%s6 + $0x338] sm:$0xff]
        %v2382 = vld [vmem:[%s6 + $0x340] sm:$0xff]
        %v2383 = vld [vmem:[%s6 + $0x348] sm:$0xff]
        %v2384 = vld [vmem:[%s6 + $0x350] sm:$0xff]
        %v2385 = vld [vmem:[%s6 + $0x358] sm:$0xff]
        %v2386 = vld [vmem:[%s6 + $0x360] sm:$0xff]
        %v2387 = vld [vmem:[%s6 + $0x368] sm:$0xff]
        %v2388 = vld [vmem:[%s6 + $0x370] sm:$0xff]
        %v2389 = vld [vmem:[%s6 + $0x378] sm:$0xff]
        %v2390 = vld [vmem:[%s6 + $0x380] sm:$0xff]
        %v2391 = vld [vmem:[%s6 + $0x388] sm:$0xff]
        %v2392 = vld [vmem:[%s6 + $0x390] sm:$0xff]
        %v2393 = vld [vmem:[%s6 + $0x398] sm:$0xff]
        %v2394 = vld [vmem:[%s6 + $0x3a0] sm:$0xff]
        %v2395 = vld [vmem:[%s6 + $0x3a8] sm:$0xff]
        %v2396 = vld [vmem:[%s6 + $0x3b0] sm:$0xff]
        %v2397 = vld [vmem:[%s6 + $0x3b8] sm:$0xff]
        %2398 = vmatprep.subr.mxu0 %v2279
        %2399 = vmatpush1.msra.mxu0 %v2278
        %2400 = vmatprep.subr.mxu0 %v2281
        %2401 = vmatpush1.msra.mxu0 %v2280
        %2402 = vmatprep.subr.mxu0 %v2283
        %2403 = vmatpush1.msra.mxu0 %v2282
        %2404 = vmatprep.subr.mxu0 %v2285
        %2405 = vmatpush1.msra.mxu0 %v2284
        %2406 = vmatprep.subr.mxu0 %v2287
        %2407 = vmatpush1.msra.mxu0 %v2286
        %2408 = vmatprep.subr.mxu0 %v2289
        %2409 = vmatpush1.msra.mxu0 %v2288
        %2410 = vmatprep.subr.mxu0 %v2291
        %2411 = vmatpush1.msra.mxu0 %v2290
        %2412 = vmatprep.subr.mxu0 %v2293
        %2413 = vmatpush1.msra.mxu0 %v2292
        %2414 = vmatprep.subr.mxu0 %v2295
        %2415 = vmatpush1.msra.mxu0 %v2294
        %2416 = vmatprep.subr.mxu0 %v2297
        %2417 = vmatpush1.msra.mxu0 %v2296
        %2418 = vmatprep.subr.mxu0 %v2299
        %2419 = vmatpush1.msra.mxu0 %v2298
        %2420 = vmatprep.subr.mxu0 %v2301
        %2421 = vmatpush1.msra.mxu0 %v2300
        %2422 = vmatprep.subr.mxu0 %v2303
        %2423 = vmatpush1.msra.mxu0 %v2302
        %2424 = vmatprep.subr.mxu0 %v2305
        %2425 = vmatpush1.msra.mxu0 %v2304
        %2426 = vmatprep.subr.mxu0 %v2307
        %2427 = vmatpush1.msra.mxu0 %v2306
        %2428 = vmatprep.subr.mxu0 %v2309
        %2429 = vmatpush1.msra.mxu0 %v2308
        %2430 = vmatprep.subr.mxu0 %v2311
        %2431 = vmatpush1.msra.mxu0 %v2310
        %2432 = vmatprep.subr.mxu0 %v2313
        %2433 = vmatpush1.msra.mxu0 %v2312
        %2434 = vmatprep.subr.mxu0 %v2315
        %2435 = vmatpush1.msra.mxu0 %v2314
        %2436 = vmatprep.subr.mxu0 %v2317
        %2437 = vmatpush1.msra.mxu0 %v2316
        %2438 = vmatprep.subr.mxu0 %v2319
        %2439 = vmatpush1.msra.mxu0 %v2318
        %2440 = vmatprep.subr.mxu0 %v2321
        %2441 = vmatpush1.msra.mxu0 %v2320
        %2442 = vmatprep.subr.mxu0 %v2323
        %2443 = vmatpush1.msra.mxu0 %v2322
        %2444 = vmatprep.subr.mxu0 %v2325
        %2445 = vmatpush1.msra.mxu0 %v2324
        %2446 = vmatprep.subr.mxu0 %v2327
        %2447 = vmatpush1.msra.mxu0 %v2326
        %2448 = vmatprep.subr.mxu0 %v2329
        %2449 = vmatpush1.msra.mxu0 %v2328
        %2450 = vmatprep.subr.mxu0 %v2331
        %2451 = vmatpush1.msra.mxu0 %v2330
        %2452 = vmatprep.subr.mxu0 %v2333
        %2453 = vmatpush1.msra.mxu0 %v2332
        %2454 = vmatprep.subr.mxu0 %v2335
        %2455 = vmatpush1.msra.mxu0 %v2334
        %2456 = vmatprep.subr.mxu0 %v2337
        %2457 = vmatpush1.msra.mxu0 %v2336
        %2458 = vmatprep.subr.mxu0 %v2339
        %2459 = vmatpush1.msra.mxu0 %v2338
        %2460 = vmatprep.subr.mxu0 %v2341
        %2461 = vmatpush1.msra.mxu0 %v2340
        %2462 = vmatprep.mubr.f32.mxu0 %v1990
        %2463 = vmatmul.mubr.f32.gmra.mrb[0].mxu0 %v1989
        %v2464 = vpop.f32.mrb[0].mxu0
        %v2465 = vadd.f32 0.0, %v2464
        %v2466 = vpop.f32.mrb[0].mxu0
        %v2467 = vadd.f32 0.0, %v2466
        %2468 = vmatprep.mubr.f32.mxu0 %v1994
        %2469 = vmatmul.mubr.f32.gmra.mrb[0].mxu0 %v1993
        %v2470 = vpop.f32.mrb[0].mxu0
        %v2471 = vadd.f32 0.0, %v2470
        %v2472 = vpop.f32.mrb[0].mxu0
        %v2473 = vadd.f32 0.0, %v2472
        %2474 = vdwg.mxu0
        %2475 = vmatprep.subr.mxu0 %v2343
        %2476 = vmatpush1.msra.mxu0 %v2342
        %2477 = vmatprep.subr.mxu0 %v2345
        %2478 = vmatpush1.msra.mxu0 %v2344
        %2479 = vmatprep.subr.mxu0 %v2347
        %2480 = vmatpush1.msra.mxu0 %v2346
        %2481 = vmatprep.subr.mxu0 %v2349
        %2482 = vmatpush1.msra.mxu0 %v2348
        %2483 = vmatprep.subr.mxu0 %v2351
        %2484 = vmatpush1.msra.mxu0 %v2350
        %2485 = vmatprep.subr.mxu0 %v2353
        %2486 = vmatpush1.msra.mxu0 %v2352
        %2487 = vmatprep.subr.mxu0 %v2355
        %2488 = vmatpush1.msra.mxu0 %v2354
        %2489 = vmatprep.subr.mxu0 %v2357
        %2490 = vmatpush1.msra.mxu0 %v2356
        %2491 = vmatprep.subr.mxu0 %v2359
        %2492 = vmatpush1.msra.mxu0 %v2358
        %2493 = vmatprep.subr.mxu0 %v2361
        %2494 = vmatpush1.msra.mxu0 %v2360
        %2495 = vmatprep.subr.mxu0 %v2363
        %2496 = vmatpush1.msra.mxu0 %v2362
        %2497 = vmatprep.subr.mxu0 %v2365
        %2498 = vmatpush1.msra.mxu0 %v2364
        %2499 = vmatprep.subr.mxu0 %v2367
        %2500 = vmatpush1.msra.mxu0 %v2366
        %2501 = vmatprep.subr.mxu0 %v2369
        %2502 = vmatpush1.msra.mxu0 %v2368
        %2503 = vmatprep.subr.mxu0 %v2371
        %2504 = vmatpush1.msra.mxu0 %v2370
        %2505 = vmatprep.subr.mxu0 %v2373
        %2506 = vmatpush1.msra.mxu0 %v2372
        %2507 = vmatprep.subr.mxu0 %v2375
        %2508 = vmatpush1.msra.mxu0 %v2374
        %2509 = vmatprep.subr.mxu0 %v2377
        %2510 = vmatpush1.msra.mxu0 %v2376
        %2511 = vmatprep.subr.mxu0 %v2379
        %2512 = vmatpush1.msra.mxu0 %v2378
        %2513 = vmatprep.subr.mxu0 %v2381
        %2514 = vmatpush1.msra.mxu0 %v2380
        %2515 = vmatprep.subr.mxu0 %v2383
        %2516 = vmatpush1.msra.mxu0 %v2382
        %2517 = vmatprep.subr.mxu0 %v2385
        %2518 = vmatpush1.msra.mxu0 %v2384
        %2519 = vmatprep.subr.mxu0 %v2387
        %2520 = vmatpush1.msra.mxu0 %v2386
        %2521 = vmatprep.subr.mxu0 %v2389
        %2522 = vmatpush1.msra.mxu0 %v2388
        %2523 = vmatprep.subr.mxu0 %v2391
        %2524 = vmatpush1.msra.mxu0 %v2390
        %2525 = vmatprep.subr.mxu0 %v2393
        %2526 = vmatpush1.msra.mxu0 %v2392
        %2527 = vmatprep.subr.mxu0 %v2395
        %2528 = vmatpush1.msra.mxu0 %v2394
        %2529 = vmatprep.subr.mxu0 %v2397
        %2530 = vmatpush1.msra.mxu0 %v2396
        %2531 = vmatprep.subr.mxu0 0.0
        %2532 = vmatpush1.msra.mxu0 0.0
        %2533 = vmatprep.subr.mxu0 0.0
        %2534 = vmatpush1.msra.mxu0 0.0
        %2535 = vmatprep.subr.mxu0 0.0
        %2536 = vmatpush1.msra.mxu0 0.0
        %2537 = vmatprep.subr.mxu0 0.0
        %2538 = vmatpush1.msra.mxu0 0.0
        %2539 = vmatprep.mubr.f32.mxu0 %v2119
        %2540 = vmatmul.mubr.f32.gmra.mrb[0].mxu0 %v1991
        %v2541 = vpop.f32.mrb[0].mxu0
        %v2542 = vadd.f32 %v2465, %v2541
        %v2543 = vpop.f32.mrb[0].mxu0
        %v2544 = vadd.f32 %v2467, %v2543
        %2545 = vmatprep.mubr.f32.mxu0 %v2122
        %2546 = vmatmul.mubr.f32.gmra.mrb[0].mxu0 %v1995
        %v2547 = vpop.f32.mrb[0].mxu0
        %v2548 = vadd.f32 %v2471, %v2547
        %v2549 = vpop.f32.mrb[0].mxu0
        %v2550 = vadd.f32 %v2473, %v2549
        %2551 = vdwg.mxu0
        %v2552 = vmax.f32 %v2268, %v2542
        %v2553 = vmax.f32 %v2270, %v2544
        %v2554 = vmax.f32 %v2274, %v2548
        %v2555 = vmax.f32 %v2276, %v2550
        %2556 = vst [vmem:[#allocation2] sm:$0xff] %v2552
        %vm2557 = vcmask 916480
        %2558 = vst.msk [vmem:[#allocation2 + $0x8] sm:$0xff] %vm2557, %v2553
        %2559 = vst [vmem:[#allocation2 + $0x10] sm:$0xf] %v2554
        %vm2560 = vcmask 912384
        %2561 = vst.msk [vmem:[#allocation2 + $0x18] sm:$0xf] %vm2560, %v2555
        %v2562 = vld [vmem:[#allocation2] sm:$0xff]
        %v2563 = vld [vmem:[#allocation2 + $0x8] sm:$0xff]
        %v2564 = vld [vmem:[%s7] sm:$0xff]
        %v2565 = vld [vmem:[%s7 + $0x8] sm:$0xff]
        %v2566 = vld [vmem:[%s7 + $0x10] sm:$0xff]
        %v2567 = vld [vmem:[%s7 + $0x18] sm:$0xff]
        %v2568 = vld [vmem:[%s7 + $0x20] sm:$0xff]
        %v2569 = vld [vmem:[%s7 + $0x28] sm:$0xff]
        %v2570 = vld [vmem:[%s7 + $0x30] sm:$0xff]
        %v2571 = vld [vmem:[%s7 + $0x38] sm:$0xff]
        %v2572 = vld [vmem:[%s7 + $0x40] sm:$0xff]
        %v2573 = vld [vmem:[%s7 + $0x48] sm:$0xff]
        %v2574 = vld [vmem:[%s7 + $0x50] sm:$0xff]
        %v2575 = vld [vmem:[%s7 + $0x58] sm:$0xff]
        %v2576 = vld [vmem:[%s7 + $0x60] sm:$0xff]
        %v2577 = vld [vmem:[%s7 + $0x68] sm:$0xff]
        %v2578 = vld [vmem:[%s7 + $0x70] sm:$0xff]
        %v2579 = vld [vmem:[%s7 + $0x78] sm:$0xff]
        %v2580 = vld [vmem:[%s7 + $0x80] sm:$0xff]
        %v2581 = vld [vmem:[%s7 + $0x88] sm:$0xff]
        %v2582 = vld [vmem:[%s7 + $0x90] sm:$0xff]
        %v2583 = vld [vmem:[%s7 + $0x98] sm:$0xff]
        %v2584 = vld [vmem:[%s7 + $0xa0] sm:$0xff]
        %v2585 = vld [vmem:[%s7 + $0xa8] sm:$0xff]
        %v2586 = vld [vmem:[%s7 + $0xb0] sm:$0xff]
        %v2587 = vld [vmem:[%s7 + $0xb8] sm:$0xff]
        %v2588 = vld [vmem:[%s7 + $0xc0] sm:$0xff]
        %v2589 = vld [vmem:[%s7 + $0xc8] sm:$0xff]
        %v2590 = vld [vmem:[%s7 + $0xd0] sm:$0xff]
        %v2591 = vld [vmem:[%s7 + $0xd8] sm:$0xff]
        %v2592 = vld [vmem:[%s7 + $0xe0] sm:$0xff]
        %v2593 = vld [vmem:[%s7 + $0xe8] sm:$0xff]
        %v2594 = vld [vmem:[%s7 + $0xf0] sm:$0xff]
        %v2595 = vld [vmem:[%s7 + $0xf8] sm:$0xff]
        %v2596 = vld [vmem:[%s7 + $0x100] sm:$0xff]
        %v2597 = vld [vmem:[%s7 + $0x108] sm:$0xff]
        %v2598 = vld [vmem:[%s7 + $0x110] sm:$0xff]
        %v2599 = vld [vmem:[%s7 + $0x118] sm:$0xff]
        %v2600 = vld [vmem:[%s7 + $0x120] sm:$0xff]
        %v2601 = vld [vmem:[%s7 + $0x128] sm:$0xff]
        %v2602 = vld [vmem:[%s7 + $0x130] sm:$0xff]
        %v2603 = vld [vmem:[%s7 + $0x138] sm:$0xff]
        %v2604 = vld [vmem:[%s7 + $0x140] sm:$0xff]
        %v2605 = vld [vmem:[%s7 + $0x148] sm:$0xff]
        %v2606 = vld [vmem:[%s7 + $0x150] sm:$0xff]
        %v2607 = vld [vmem:[%s7 + $0x158] sm:$0xff]
        %v2608 = vld [vmem:[%s7 + $0x160] sm:$0xff]
        %v2609 = vld [vmem:[%s7 + $0x168] sm:$0xff]
        %v2610 = vld [vmem:[%s7 + $0x170] sm:$0xff]
        %v2611 = vld [vmem:[%s7 + $0x178] sm:$0xff]
        %v2612 = vld [vmem:[%s7 + $0x180] sm:$0xff]
        %v2613 = vld [vmem:[%s7 + $0x188] sm:$0xff]
        %v2614 = vld [vmem:[%s7 + $0x190] sm:$0xff]
        %v2615 = vld [vmem:[%s7 + $0x198] sm:$0xff]
        %v2616 = vld [vmem:[%s7 + $0x1a0] sm:$0xff]
        %v2617 = vld [vmem:[%s7 + $0x1a8] sm:$0xff]
        %v2618 = vld [vmem:[%s7 + $0x1b0] sm:$0xff]
        %v2619 = vld [vmem:[%s7 + $0x1b8] sm:$0xff]
        %v2620 = vld [vmem:[%s7 + $0x1c0] sm:$0xff]
        %v2621 = vld [vmem:[%s7 + $0x1c8] sm:$0xff]
        %v2622 = vld [vmem:[%s7 + $0x1d0] sm:$0xff]
        %v2623 = vld [vmem:[%s7 + $0x1d8] sm:$0xff]
        %v2624 = vld [vmem:[%s7 + $0x1e0] sm:$0xff]
        %v2625 = vld [vmem:[%s7 + $0x1e8] sm:$0xff]
        %v2626 = vld [vmem:[%s7 + $0x1f0] sm:$0xff]
        %v2627 = vld [vmem:[%s7 + $0x1f8] sm:$0xff]
        %v2628 = vld [vmem:[%s7 + $0x200] sm:$0xff]
        %v2629 = vld [vmem:[%s7 + $0x208] sm:$0xff]
        %v2630 = vld [vmem:[%s7 + $0x210] sm:$0xff]
        %v2631 = vld [vmem:[%s7 + $0x218] sm:$0xff]
        %v2632 = vld [vmem:[%s7 + $0x220] sm:$0xff]
        %v2633 = vld [vmem:[%s7 + $0x228] sm:$0xff]
        %v2634 = vld [vmem:[%s7 + $0x230] sm:$0xff]
        %v2635 = vld [vmem:[%s7 + $0x238] sm:$0xff]
        %v2636 = vld [vmem:[%s7 + $0x240] sm:$0xff]
        %v2637 = vld [vmem:[%s7 + $0x248] sm:$0xff]
        %v2638 = vld [vmem:[%s7 + $0x250] sm:$0xff]
        %v2639 = vld [vmem:[%s7 + $0x258] sm:$0xff]
        %v2640 = vld [vmem:[%s7 + $0x260] sm:$0xff]
        %v2641 = vld [vmem:[%s7 + $0x268] sm:$0xff]
        %v2642 = vld [vmem:[%s7 + $0x270] sm:$0xff]
        %v2643 = vld [vmem:[%s7 + $0x278] sm:$0xff]
        %v2644 = vld [vmem:[%s7 + $0x280] sm:$0xff]
        %v2645 = vld [vmem:[%s7 + $0x288] sm:$0xff]
        %v2646 = vld [vmem:[%s7 + $0x290] sm:$0xff]
        %v2647 = vld [vmem:[%s7 + $0x298] sm:$0xff]
        %v2648 = vld [vmem:[%s7 + $0x2a0] sm:$0xff]
        %v2649 = vld [vmem:[%s7 + $0x2a8] sm:$0xff]
        %v2650 = vld [vmem:[%s7 + $0x2b0] sm:$0xff]
        %v2651 = vld [vmem:[%s7 + $0x2b8] sm:$0xff]
        %v2652 = vld [vmem:[%s7 + $0x2c0] sm:$0xff]
        %v2653 = vld [vmem:[%s7 + $0x2c8] sm:$0xff]
        %v2654 = vld [vmem:[%s7 + $0x2d0] sm:$0xff]
        %v2655 = vld [vmem:[%s7 + $0x2d8] sm:$0xff]
        %v2656 = vld [vmem:[%s7 + $0x2e0] sm:$0xff]
        %v2657 = vld [vmem:[%s7 + $0x2e8] sm:$0xff]
        %v2658 = vld [vmem:[%s7 + $0x2f0] sm:$0xff]
        %v2659 = vld [vmem:[%s7 + $0x2f8] sm:$0xff]
        %v2660 = vld [vmem:[%s7 + $0x300] sm:$0xff]
        %v2661 = vld [vmem:[%s7 + $0x308] sm:$0xff]
        %v2662 = vld [vmem:[%s7 + $0x310] sm:$0xff]
        %v2663 = vld [vmem:[%s7 + $0x318] sm:$0xff]
        %v2664 = vld [vmem:[%s7 + $0x320] sm:$0xff]
        %v2665 = vld [vmem:[%s7 + $0x328] sm:$0xff]
        %v2666 = vld [vmem:[%s7 + $0x330] sm:$0xff]
        %v2667 = vld [vmem:[%s7 + $0x338] sm:$0xff]
        %v2668 = vld [vmem:[%s7 + $0x340] sm:$0xff]
        %v2669 = vld [vmem:[%s7 + $0x348] sm:$0xff]
        %v2670 = vld [vmem:[%s7 + $0x350] sm:$0xff]
        %v2671 = vld [vmem:[%s7 + $0x358] sm:$0xff]
        %v2672 = vld [vmem:[%s7 + $0x360] sm:$0xff]
        %v2673 = vld [vmem:[%s7 + $0x368] sm:$0xff]
        %v2674 = vld [vmem:[%s7 + $0x370] sm:$0xff]
        %v2675 = vld [vmem:[%s7 + $0x378] sm:$0xff]
        %v2676 = vld [vmem:[%s7 + $0x380] sm:$0xff]
        %v2677 = vld [vmem:[%s7 + $0x388] sm:$0xff]
        %v2678 = vld [vmem:[%s7 + $0x390] sm:$0xff]
        %v2679 = vld [vmem:[%s7 + $0x398] sm:$0xff]
        %v2680 = vld [vmem:[%s7 + $0x3a0] sm:$0xff]
        %v2681 = vld [vmem:[%s7 + $0x3a8] sm:$0xff]
        %v2682 = vld [vmem:[%s7 + $0x3b0] sm:$0xff]
        %v2683 = vld [vmem:[%s7 + $0x3b8] sm:$0xff]
        %v2684 = vld [vmem:[#allocation2] sm:$0xfe]
        %v2685 = vld [vmem:[#allocation2 + $0x8] sm:$0xfe]
        %v2686 = vld [vmem:[#allocation2 + $0x10] sm:$0x1]
        %v2687 = vld [vmem:[#allocation2 + $0x18] sm:$0x1]
        %s2688 = scalar_lea.vmem %s7, 960
        %v2689 = vld [vmem:[%s2688] sm:$0xff]
        %v2690 = vld [vmem:[%s2688 + $0x8] sm:$0xff]
        %v2691 = vld [vmem:[%s2688 + $0x10] sm:$0xff]
        %v2692 = vld [vmem:[%s2688 + $0x18] sm:$0xff]
        %v2693 = vld [vmem:[%s2688 + $0x20] sm:$0xff]
        %v2694 = vld [vmem:[%s2688 + $0x28] sm:$0xff]
        %v2695 = vld [vmem:[%s2688 + $0x30] sm:$0xff]
        %v2696 = vld [vmem:[%s2688 + $0x38] sm:$0xff]
        %v2697 = vld [vmem:[%s2688 + $0x40] sm:$0xff]
        %v2698 = vld [vmem:[%s2688 + $0x48] sm:$0xff]
        %v2699 = vld [vmem:[%s2688 + $0x50] sm:$0xff]
        %v2700 = vld [vmem:[%s2688 + $0x58] sm:$0xff]
        %v2701 = vld [vmem:[%s2688 + $0x60] sm:$0xff]
        %v2702 = vld [vmem:[%s2688 + $0x68] sm:$0xff]
        %v2703 = vld [vmem:[%s2688 + $0x70] sm:$0xff]
        %v2704 = vld [vmem:[%s2688 + $0x78] sm:$0xff]
        %v2705 = vld [vmem:[%s2688 + $0x80] sm:$0xff]
        %v2706 = vld [vmem:[%s2688 + $0x88] sm:$0xff]
        %v2707 = vld [vmem:[%s2688 + $0x90] sm:$0xff]
        %v2708 = vld [vmem:[%s2688 + $0x98] sm:$0xff]
        %v2709 = vld [vmem:[%s2688 + $0xa0] sm:$0xff]
        %v2710 = vld [vmem:[%s2688 + $0xa8] sm:$0xff]
        %v2711 = vld [vmem:[%s2688 + $0xb0] sm:$0xff]
        %v2712 = vld [vmem:[%s2688 + $0xb8] sm:$0xff]
        %v2713 = vld [vmem:[%s2688 + $0xc0] sm:$0xff]
        %v2714 = vld [vmem:[%s2688 + $0xc8] sm:$0xff]
        %v2715 = vld [vmem:[%s2688 + $0xd0] sm:$0xff]
        %v2716 = vld [vmem:[%s2688 + $0xd8] sm:$0xff]
        %v2717 = vld [vmem:[%s2688 + $0xe0] sm:$0xff]
        %v2718 = vld [vmem:[%s2688 + $0xe8] sm:$0xff]
        %v2719 = vld [vmem:[%s2688 + $0xf0] sm:$0xff]
        %v2720 = vld [vmem:[%s2688 + $0xf8] sm:$0xff]
        %v2721 = vld [vmem:[%s2688 + $0x100] sm:$0xff]
        %v2722 = vld [vmem:[%s2688 + $0x108] sm:$0xff]
        %v2723 = vld [vmem:[%s2688 + $0x110] sm:$0xff]
        %v2724 = vld [vmem:[%s2688 + $0x118] sm:$0xff]
        %v2725 = vld [vmem:[%s2688 + $0x120] sm:$0xff]
        %v2726 = vld [vmem:[%s2688 + $0x128] sm:$0xff]
        %v2727 = vld [vmem:[%s2688 + $0x130] sm:$0xff]
        %v2728 = vld [vmem:[%s2688 + $0x138] sm:$0xff]
        %v2729 = vld [vmem:[%s2688 + $0x140] sm:$0xff]
        %v2730 = vld [vmem:[%s2688 + $0x148] sm:$0xff]
        %v2731 = vld [vmem:[%s2688 + $0x150] sm:$0xff]
        %v2732 = vld [vmem:[%s2688 + $0x158] sm:$0xff]
        %v2733 = vld [vmem:[%s2688 + $0x160] sm:$0xff]
        %v2734 = vld [vmem:[%s2688 + $0x168] sm:$0xff]
        %v2735 = vld [vmem:[%s2688 + $0x170] sm:$0xff]
        %v2736 = vld [vmem:[%s2688 + $0x178] sm:$0xff]
        %v2737 = vld [vmem:[%s2688 + $0x180] sm:$0xff]
        %v2738 = vld [vmem:[%s2688 + $0x188] sm:$0xff]
        %v2739 = vld [vmem:[%s2688 + $0x190] sm:$0xff]
        %v2740 = vld [vmem:[%s2688 + $0x198] sm:$0xff]
        %v2741 = vld [vmem:[%s2688 + $0x1a0] sm:$0xff]
        %v2742 = vld [vmem:[%s2688 + $0x1a8] sm:$0xff]
        %v2743 = vld [vmem:[%s2688 + $0x1b0] sm:$0xff]
        %v2744 = vld [vmem:[%s2688 + $0x1b8] sm:$0xff]
        %v2745 = vld [vmem:[%s2688 + $0x1c0] sm:$0xff]
        %v2746 = vld [vmem:[%s2688 + $0x1c8] sm:$0xff]
        %v2747 = vld [vmem:[%s2688 + $0x1d0] sm:$0xff]
        %v2748 = vld [vmem:[%s2688 + $0x1d8] sm:$0xff]
        %v2749 = vld [vmem:[%s2688 + $0x1e0] sm:$0xff]
        %v2750 = vld [vmem:[%s2688 + $0x1e8] sm:$0xff]
        %v2751 = vld [vmem:[%s2688 + $0x1f0] sm:$0xff]
        %v2752 = vld [vmem:[%s2688 + $0x1f8] sm:$0xff]
        %v2753 = vld [vmem:[%s2688 + $0x200] sm:$0xff]
        %v2754 = vld [vmem:[%s2688 + $0x208] sm:$0xff]
        %v2755 = vld [vmem:[%s2688 + $0x210] sm:$0xff]
        %v2756 = vld [vmem:[%s2688 + $0x218] sm:$0xff]
        %v2757 = vld [vmem:[%s2688 + $0x220] sm:$0xff]
        %v2758 = vld [vmem:[%s2688 + $0x228] sm:$0xff]
        %v2759 = vld [vmem:[%s2688 + $0x230] sm:$0xff]
        %v2760 = vld [vmem:[%s2688 + $0x238] sm:$0xff]
        %v2761 = vld [vmem:[%s2688 + $0x240] sm:$0xff]
        %v2762 = vld [vmem:[%s2688 + $0x248] sm:$0xff]
        %v2763 = vld [vmem:[%s2688 + $0x250] sm:$0xff]
        %v2764 = vld [vmem:[%s2688 + $0x258] sm:$0xff]
        %v2765 = vld [vmem:[%s2688 + $0x260] sm:$0xff]
        %v2766 = vld [vmem:[%s2688 + $0x268] sm:$0xff]
        %v2767 = vld [vmem:[%s2688 + $0x270] sm:$0xff]
        %v2768 = vld [vmem:[%s2688 + $0x278] sm:$0xff]
        %v2769 = vld [vmem:[%s2688 + $0x280] sm:$0xff]
        %v2770 = vld [vmem:[%s2688 + $0x288] sm:$0xff]
        %v2771 = vld [vmem:[%s2688 + $0x290] sm:$0xff]
        %v2772 = vld [vmem:[%s2688 + $0x298] sm:$0xff]
        %v2773 = vld [vmem:[%s2688 + $0x2a0] sm:$0xff]
        %v2774 = vld [vmem:[%s2688 + $0x2a8] sm:$0xff]
        %v2775 = vld [vmem:[%s2688 + $0x2b0] sm:$0xff]
        %v2776 = vld [vmem:[%s2688 + $0x2b8] sm:$0xff]
        %v2777 = vld [vmem:[%s2688 + $0x2c0] sm:$0xff]
        %v2778 = vld [vmem:[%s2688 + $0x2c8] sm:$0xff]
        %v2779 = vld [vmem:[%s2688 + $0x2d0] sm:$0xff]
        %v2780 = vld [vmem:[%s2688 + $0x2d8] sm:$0xff]
        %v2781 = vld [vmem:[%s2688 + $0x2e0] sm:$0xff]
        %v2782 = vld [vmem:[%s2688 + $0x2e8] sm:$0xff]
        %v2783 = vld [vmem:[%s2688 + $0x2f0] sm:$0xff]
        %v2784 = vld [vmem:[%s2688 + $0x2f8] sm:$0xff]
        %v2785 = vld [vmem:[%s2688 + $0x300] sm:$0xff]
        %v2786 = vld [vmem:[%s2688 + $0x308] sm:$0xff]
        %v2787 = vld [vmem:[%s2688 + $0x310] sm:$0xff]
        %v2788 = vld [vmem:[%s2688 + $0x318] sm:$0xff]
        %v2789 = vld [vmem:[%s2688 + $0x320] sm:$0xff]
        %v2790 = vld [vmem:[%s2688 + $0x328] sm:$0xff]
        %v2791 = vld [vmem:[%s2688 + $0x330] sm:$0xff]
        %v2792 = vld [vmem:[%s2688 + $0x338] sm:$0xff]
        %v2793 = vld [vmem:[%s2688 + $0x340] sm:$0xff]
        %v2794 = vld [vmem:[%s2688 + $0x348] sm:$0xff]
        %v2795 = vld [vmem:[%s2688 + $0x350] sm:$0xff]
        %v2796 = vld [vmem:[%s2688 + $0x358] sm:$0xff]
        %v2797 = vld [vmem:[%s2688 + $0x360] sm:$0xff]
        %v2798 = vld [vmem:[%s2688 + $0x368] sm:$0xff]
        %v2799 = vld [vmem:[%s2688 + $0x370] sm:$0xff]
        %v2800 = vld [vmem:[%s2688 + $0x378] sm:$0xff]
        %v2801 = vld [vmem:[%s2688 + $0x380] sm:$0xff]
        %v2802 = vld [vmem:[%s2688 + $0x388] sm:$0xff]
        %v2803 = vld [vmem:[%s2688 + $0x390] sm:$0xff]
        %v2804 = vld [vmem:[%s2688 + $0x398] sm:$0xff]
        %v2805 = vld [vmem:[%s2688 + $0x3a0] sm:$0xff]
        %v2806 = vld [vmem:[%s2688 + $0x3a8] sm:$0xff]
        %v2807 = vld [vmem:[%s2688 + $0x3b0] sm:$0xff]
        %v2808 = vld [vmem:[%s2688 + $0x3b8] sm:$0xff]
        %vm2813 = vcmask 1046528
        %v2814 = vrot.slane %v2684, 1
        %v2815 = vrot.slane %v2686, 1
        %v2816 = vsel %vm2813, %v2814, %v2815
        %v2817 = vrot.slane %v2685, 1
        %v2818 = vrot.slane %v2687, 1
        %v2819 = vsel %vm2813, %v2817, %v2818
        %v2821 = vsel %vm2557, %v2819, 0
        %2823 = vmatprep.subr.mxu0 %v2690
        %2824 = vmatpush1.msra.mxu0 %v2689
        %2825 = vmatprep.subr.mxu0 %v2694
        %2826 = vmatpush1.msra.mxu0 %v2693
        %2827 = vmatprep.subr.mxu0 %v2698
        %2828 = vmatpush1.msra.mxu0 %v2697
        %2829 = vmatprep.subr.mxu0 %v2702
        %2830 = vmatpush1.msra.mxu0 %v2701
        %2831 = vmatprep.subr.mxu0 %v2706
        %2832 = vmatpush1.msra.mxu0 %v2705
        %2833 = vmatprep.subr.mxu0 %v2710
        %2834 = vmatpush1.msra.mxu0 %v2709
        %2835 = vmatprep.subr.mxu0 %v2714
        %2836 = vmatpush1.msra.mxu0 %v2713
        %2837 = vmatprep.subr.mxu0 %v2718
        %2838 = vmatpush1.msra.mxu0 %v2717
        %2839 = vmatprep.subr.mxu0 %v2722
        %2840 = vmatpush1.msra.mxu0 %v2721
        %2841 = vmatprep.subr.mxu0 %v2726
        %2842 = vmatpush1.msra.mxu0 %v2725
        %2843 = vmatprep.subr.mxu0 %v2730
        %2844 = vmatpush1.msra.mxu0 %v2729
        %2845 = vmatprep.subr.mxu0 %v2734
        %2846 = vmatpush1.msra.mxu0 %v2733
        %2847 = vmatprep.subr.mxu0 %v2738
        %2848 = vmatpush1.msra.mxu0 %v2737
        %2849 = vmatprep.subr.mxu0 %v2742
        %2850 = vmatpush1.msra.mxu0 %v2741
        %2851 = vmatprep.subr.mxu0 %v2746
        %2852 = vmatpush1.msra.mxu0 %v2745
        %2853 = vmatprep.subr.mxu0 %v2750
        %2854 = vmatpush1.msra.mxu0 %v2749
        %2855 = vmatprep.subr.mxu0 %v2754
        %2856 = vmatpush1.msra.mxu0 %v2753
        %2857 = vmatprep.subr.mxu0 %v2758
        %2858 = vmatpush1.msra.mxu0 %v2757
        %2859 = vmatprep.subr.mxu0 %v2762
        %2860 = vmatpush1.msra.mxu0 %v2761
        %2861 = vmatprep.subr.mxu0 %v2766
        %2862 = vmatpush1.msra.mxu0 %v2765
        %2863 = vmatprep.subr.mxu0 %v2770
        %2864 = vmatpush1.msra.mxu0 %v2769
        %2865 = vmatprep.subr.mxu0 %v2774
        %2866 = vmatpush1.msra.mxu0 %v2773
        %2867 = vmatprep.subr.mxu0 %v2778
        %2868 = vmatpush1.msra.mxu0 %v2777
        %2869 = vmatprep.subr.mxu0 %v2782
        %2870 = vmatpush1.msra.mxu0 %v2781
        %2871 = vmatprep.subr.mxu0 %v2786
        %2872 = vmatpush1.msra.mxu0 %v2785
        %2873 = vmatprep.subr.mxu0 %v2790
        %2874 = vmatpush1.msra.mxu0 %v2789
        %2875 = vmatprep.subr.mxu0 %v2794
        %2876 = vmatpush1.msra.mxu0 %v2793
        %2877 = vmatprep.subr.mxu0 %v2798
        %2878 = vmatpush1.msra.mxu0 %v2797
        %2879 = vmatprep.subr.mxu0 %v2802
        %2880 = vmatpush1.msra.mxu0 %v2801
        %2881 = vmatprep.subr.mxu0 %v2806
        %2882 = vmatpush1.msra.mxu0 %v2805
        %2883 = vmatprep.subr.mxu0 0.0
        %2884 = vmatpush1.msra.mxu0 0.0
        %2885 = vmatprep.subr.mxu0 0.0
        %2886 = vmatpush1.msra.mxu0 0.0
        %2887 = vmatprep.mubr.f32.mxu0 %v2821
        %2888 = vmatmul.mubr.f32.gmra.mrb[0].mxu0 %v2816
        %v2889 = vpop.f32.mrb[0].mxu0
        %v2890 = vadd.f32 0.0, %v2889
        %v2891 = vpop.f32.mrb[0].mxu0
        %v2892 = vadd.f32 0.0, %v2891
        %2893 = vdwg.mxu0
        %2894 = vmatprep.subr.mxu0 %v2692
        %2895 = vmatpush1.msra.mxu0 %v2691
        %2896 = vmatprep.subr.mxu0 %v2696
        %2897 = vmatpush1.msra.mxu0 %v2695
        %2898 = vmatprep.subr.mxu0 %v2700
        %2899 = vmatpush1.msra.mxu0 %v2699
        %2900 = vmatprep.subr.mxu0 %v2704
        %2901 = vmatpush1.msra.mxu0 %v2703
        %2902 = vmatprep.subr.mxu0 %v2708
        %2903 = vmatpush1.msra.mxu0 %v2707
        %2904 = vmatprep.subr.mxu0 %v2712
        %2905 = vmatpush1.msra.mxu0 %v2711
        %2906 = vmatprep.subr.mxu0 %v2716
        %2907 = vmatpush1.msra.mxu0 %v2715
        %2908 = vmatprep.subr.mxu0 %v2720
        %2909 = vmatpush1.msra.mxu0 %v2719
        %2910 = vmatprep.subr.mxu0 %v2724
        %2911 = vmatpush1.msra.mxu0 %v2723
        %2912 = vmatprep.subr.mxu0 %v2728
        %2913 = vmatpush1.msra.mxu0 %v2727
        %2914 = vmatprep.subr.mxu0 %v2732
        %2915 = vmatpush1.msra.mxu0 %v2731
        %2916 = vmatprep.subr.mxu0 %v2736
        %2917 = vmatpush1.msra.mxu0 %v2735
        %2918 = vmatprep.subr.mxu0 %v2740
        %2919 = vmatpush1.msra.mxu0 %v2739
        %2920 = vmatprep.subr.mxu0 %v2744
        %2921 = vmatpush1.msra.mxu0 %v2743
        %2922 = vmatprep.subr.mxu0 %v2748
        %2923 = vmatpush1.msra.mxu0 %v2747
        %2924 = vmatprep.subr.mxu0 %v2752
        %2925 = vmatpush1.msra.mxu0 %v2751
        %2926 = vmatprep.subr.mxu0 %v2756
        %2927 = vmatpush1.msra.mxu0 %v2755
        %2928 = vmatprep.subr.mxu0 %v2760
        %2929 = vmatpush1.msra.mxu0 %v2759
        %2930 = vmatprep.subr.mxu0 %v2764
        %2931 = vmatpush1.msra.mxu0 %v2763
        %2932 = vmatprep.subr.mxu0 %v2768
        %2933 = vmatpush1.msra.mxu0 %v2767
        %2934 = vmatprep.subr.mxu0 %v2772
        %2935 = vmatpush1.msra.mxu0 %v2771
        %2936 = vmatprep.subr.mxu0 %v2776
        %2937 = vmatpush1.msra.mxu0 %v2775
        %2938 = vmatprep.subr.mxu0 %v2780
        %2939 = vmatpush1.msra.mxu0 %v2779
        %2940 = vmatprep.subr.mxu0 %v2784
        %2941 = vmatpush1.msra.mxu0 %v2783
        %2942 = vmatprep.subr.mxu0 %v2788
        %2943 = vmatpush1.msra.mxu0 %v2787
        %2944 = vmatprep.subr.mxu0 %v2792
        %2945 = vmatpush1.msra.mxu0 %v2791
        %2946 = vmatprep.subr.mxu0 %v2796
        %2947 = vmatpush1.msra.mxu0 %v2795
        %2948 = vmatprep.subr.mxu0 %v2800
        %2949 = vmatpush1.msra.mxu0 %v2799
        %2950 = vmatprep.subr.mxu0 %v2804
        %2951 = vmatpush1.msra.mxu0 %v2803
        %2952 = vmatprep.subr.mxu0 %v2808
        %2953 = vmatpush1.msra.mxu0 %v2807
        %2954 = vmatprep.subr.mxu0 0.0
        %2955 = vmatpush1.msra.mxu0 0.0
        %2956 = vmatprep.subr.mxu0 0.0
        %2957 = vmatpush1.msra.mxu0 0.0
        %2958 = vmatprep.mubr.f32.mxu0 %v2821
        %2959 = vmatmul.mubr.f32.gmra.mrb[0].mxu0 %v2816
        %v2960 = vpop.f32.mrb[0].mxu0
        %v2961 = vadd.f32 0.0, %v2960
        %v2962 = vpop.f32.mrb[0].mxu0
        %v2963 = vadd.f32 0.0, %v2962
        %2964 = vdwg.mxu0
        %v2966 = vsel %vm2557, %v2563, 0
        %2968 = vmatprep.subr.mxu0 %v2565
        %2969 = vmatpush1.msra.mxu0 %v2564
        %2970 = vmatprep.subr.mxu0 %v2569
        %2971 = vmatpush1.msra.mxu0 %v2568
        %2972 = vmatprep.subr.mxu0 %v2573
        %2973 = vmatpush1.msra.mxu0 %v2572
        %2974 = vmatprep.subr.mxu0 %v2577
        %2975 = vmatpush1.msra.mxu0 %v2576
        %2976 = vmatprep.subr.mxu0 %v2581
        %2977 = vmatpush1.msra.mxu0 %v2580
        %2978 = vmatprep.subr.mxu0 %v2585
        %2979 = vmatpush1.msra.mxu0 %v2584
        %2980 = vmatprep.subr.mxu0 %v2589
        %2981 = vmatpush1.msra.mxu0 %v2588
        %2982 = vmatprep.subr.mxu0 %v2593
        %2983 = vmatpush1.msra.mxu0 %v2592
        %2984 = vmatprep.subr.mxu0 %v2597
        %2985 = vmatpush1.msra.mxu0 %v2596
        %2986 = vmatprep.subr.mxu0 %v2601
        %2987 = vmatpush1.msra.mxu0 %v2600
        %2988 = vmatprep.subr.mxu0 %v2605
        %2989 = vmatpush1.msra.mxu0 %v2604
        %2990 = vmatprep.subr.mxu0 %v2609
        %2991 = vmatpush1.msra.mxu0 %v2608
        %2992 = vmatprep.subr.mxu0 %v2613
        %2993 = vmatpush1.msra.mxu0 %v2612
        %2994 = vmatprep.subr.mxu0 %v2617
        %2995 = vmatpush1.msra.mxu0 %v2616
        %2996 = vmatprep.subr.mxu0 %v2621
        %2997 = vmatpush1.msra.mxu0 %v2620
        %2998 = vmatprep.subr.mxu0 %v2625
        %2999 = vmatpush1.msra.mxu0 %v2624
        %3000 = vmatprep.subr.mxu0 %v2629
        %3001 = vmatpush1.msra.mxu0 %v2628
        %3002 = vmatprep.subr.mxu0 %v2633
        %3003 = vmatpush1.msra.mxu0 %v2632
        %3004 = vmatprep.subr.mxu0 %v2637
        %3005 = vmatpush1.msra.mxu0 %v2636
        %3006 = vmatprep.subr.mxu0 %v2641
        %3007 = vmatpush1.msra.mxu0 %v2640
        %3008 = vmatprep.subr.mxu0 %v2645
        %3009 = vmatpush1.msra.mxu0 %v2644
        %3010 = vmatprep.subr.mxu0 %v2649
        %3011 = vmatpush1.msra.mxu0 %v2648
        %3012 = vmatprep.subr.mxu0 %v2653
        %3013 = vmatpush1.msra.mxu0 %v2652
        %3014 = vmatprep.subr.mxu0 %v2657
        %3015 = vmatpush1.msra.mxu0 %v2656
        %3016 = vmatprep.subr.mxu0 %v2661
        %3017 = vmatpush1.msra.mxu0 %v2660
        %3018 = vmatprep.subr.mxu0 %v2665
        %3019 = vmatpush1.msra.mxu0 %v2664
        %3020 = vmatprep.subr.mxu0 %v2669
        %3021 = vmatpush1.msra.mxu0 %v2668
        %3022 = vmatprep.subr.mxu0 %v2673
        %3023 = vmatpush1.msra.mxu0 %v2672
        %3024 = vmatprep.subr.mxu0 %v2677
        %3025 = vmatpush1.msra.mxu0 %v2676
        %3026 = vmatprep.subr.mxu0 %v2681
        %3027 = vmatpush1.msra.mxu0 %v2680
        %3028 = vmatprep.subr.mxu0 0.0
        %3029 = vmatpush1.msra.mxu0 0.0
        %3030 = vmatprep.subr.mxu0 0.0
        %3031 = vmatpush1.msra.mxu0 0.0
        %3032 = vmatprep.mubr.f32.mxu0 %v2966
        %3033 = vmatmul.mubr.f32.gmra.mrb[0].mxu0 %v2562
        %v3034 = vpop.f32.mrb[0].mxu0
        %v3035 = vadd.f32 %v2890, %v3034
        %v3036 = vpop.f32.mrb[0].mxu0
        %v3037 = vadd.f32 %v2892, %v3036
        %3038 = vdwg.mxu0
        %3039 = vmatprep.subr.mxu0 %v2567
        %3040 = vmatpush1.msra.mxu0 %v2566
        %3041 = vmatprep.subr.mxu0 %v2571
        %3042 = vmatpush1.msra.mxu0 %v2570
        %3043 = vmatprep.subr.mxu0 %v2575
        %3044 = vmatpush1.msra.mxu0 %v2574
        %3045 = vmatprep.subr.mxu0 %v2579
        %3046 = vmatpush1.msra.mxu0 %v2578
        %3047 = vmatprep.subr.mxu0 %v2583
        %3048 = vmatpush1.msra.mxu0 %v2582
        %3049 = vmatprep.subr.mxu0 %v2587
        %3050 = vmatpush1.msra.mxu0 %v2586
        %3051 = vmatprep.subr.mxu0 %v2591
        %3052 = vmatpush1.msra.mxu0 %v2590
        %3053 = vmatprep.subr.mxu0 %v2595
        %3054 = vmatpush1.msra.mxu0 %v2594
        %3055 = vmatprep.subr.mxu0 %v2599
        %3056 = vmatpush1.msra.mxu0 %v2598
        %3057 = vmatprep.subr.mxu0 %v2603
        %3058 = vmatpush1.msra.mxu0 %v2602
        %3059 = vmatprep.subr.mxu0 %v2607
        %3060 = vmatpush1.msra.mxu0 %v2606
        %3061 = vmatprep.subr.mxu0 %v2611
        %3062 = vmatpush1.msra.mxu0 %v2610
        %3063 = vmatprep.subr.mxu0 %v2615
        %3064 = vmatpush1.msra.mxu0 %v2614
        %3065 = vmatprep.subr.mxu0 %v2619
        %3066 = vmatpush1.msra.mxu0 %v2618
        %3067 = vmatprep.subr.mxu0 %v2623
        %3068 = vmatpush1.msra.mxu0 %v2622
        %3069 = vmatprep.subr.mxu0 %v2627
        %3070 = vmatpush1.msra.mxu0 %v2626
        %3071 = vmatprep.subr.mxu0 %v2631
        %3072 = vmatpush1.msra.mxu0 %v2630
        %3073 = vmatprep.subr.mxu0 %v2635
        %3074 = vmatpush1.msra.mxu0 %v2634
        %3075 = vmatprep.subr.mxu0 %v2639
        %3076 = vmatpush1.msra.mxu0 %v2638
        %3077 = vmatprep.subr.mxu0 %v2643
        %3078 = vmatpush1.msra.mxu0 %v2642
        %3079 = vmatprep.subr.mxu0 %v2647
        %3080 = vmatpush1.msra.mxu0 %v2646
        %3081 = vmatprep.subr.mxu0 %v2651
        %3082 = vmatpush1.msra.mxu0 %v2650
        %3083 = vmatprep.subr.mxu0 %v2655
        %3084 = vmatpush1.msra.mxu0 %v2654
        %3085 = vmatprep.subr.mxu0 %v2659
        %3086 = vmatpush1.msra.mxu0 %v2658
        %3087 = vmatprep.subr.mxu0 %v2663
        %3088 = vmatpush1.msra.mxu0 %v2662
        %3089 = vmatprep.subr.mxu0 %v2667
        %3090 = vmatpush1.msra.mxu0 %v2666
        %3091 = vmatprep.subr.mxu0 %v2671
        %3092 = vmatpush1.msra.mxu0 %v2670
        %3093 = vmatprep.subr.mxu0 %v2675
        %3094 = vmatpush1.msra.mxu0 %v2674
        %3095 = vmatprep.subr.mxu0 %v2679
        %3096 = vmatpush1.msra.mxu0 %v2678
        %3097 = vmatprep.subr.mxu0 %v2683
        %3098 = vmatpush1.msra.mxu0 %v2682
        %3099 = vmatprep.subr.mxu0 0.0
        %3100 = vmatpush1.msra.mxu0 0.0
        %3101 = vmatprep.subr.mxu0 0.0
        %3102 = vmatpush1.msra.mxu0 0.0
        %3103 = vmatprep.mubr.f32.mxu0 %v2966
        %3104 = vmatmul.mubr.f32.gmra.mrb[0].mxu0 %v2562
        %v3105 = vpop.f32.mrb[0].mxu0
        %v3106 = vadd.f32 %v2961, %v3105
        %v3107 = vpop.f32.mrb[0].mxu0
        %v3108 = vadd.f32 %v2963, %v3107
        %3109 = vdwg.mxu0
        %v3110 = vld [vmem:[#allocation2] sm:$0xfc]
        %v3111 = vld [vmem:[#allocation2 + $0x8] sm:$0xfc]
        %v3112 = vld [vmem:[#allocation2 + $0x10] sm:$0x3]
        %v3113 = vld [vmem:[#allocation2 + $0x18] sm:$0x3]
        %s3114 = scalar_lea.vmem %s7, 1920
        %v3115 = vld [vmem:[%s3114] sm:$0xff]
        %v3116 = vld [vmem:[%s3114 + $0x8] sm:$0xff]
        %v3117 = vld [vmem:[%s3114 + $0x10] sm:$0xff]
        %v3118 = vld [vmem:[%s3114 + $0x18] sm:$0xff]
        %v3119 = vld [vmem:[%s3114 + $0x20] sm:$0xff]
        %v3120 = vld [vmem:[%s3114 + $0x28] sm:$0xff]
        %v3121 = vld [vmem:[%s3114 + $0x30] sm:$0xff]
        %v3122 = vld [vmem:[%s3114 + $0x38] sm:$0xff]
        %v3123 = vld [vmem:[%s3114 + $0x40] sm:$0xff]
        %v3124 = vld [vmem:[%s3114 + $0x48] sm:$0xff]
        %v3125 = vld [vmem:[%s3114 + $0x50] sm:$0xff]
        %v3126 = vld [vmem:[%s3114 + $0x58] sm:$0xff]
        %v3127 = vld [vmem:[%s3114 + $0x60] sm:$0xff]
        %v3128 = vld [vmem:[%s3114 + $0x68] sm:$0xff]
        %v3129 = vld [vmem:[%s3114 + $0x70] sm:$0xff]
        %v3130 = vld [vmem:[%s3114 + $0x78] sm:$0xff]
        %v3131 = vld [vmem:[%s3114 + $0x80] sm:$0xff]
        %v3132 = vld [vmem:[%s3114 + $0x88] sm:$0xff]
        %v3133 = vld [vmem:[%s3114 + $0x90] sm:$0xff]
        %v3134 = vld [vmem:[%s3114 + $0x98] sm:$0xff]
        %v3135 = vld [vmem:[%s3114 + $0xa0] sm:$0xff]
        %v3136 = vld [vmem:[%s3114 + $0xa8] sm:$0xff]
        %v3137 = vld [vmem:[%s3114 + $0xb0] sm:$0xff]
        %v3138 = vld [vmem:[%s3114 + $0xb8] sm:$0xff]
        %v3139 = vld [vmem:[%s3114 + $0xc0] sm:$0xff]
        %v3140 = vld [vmem:[%s3114 + $0xc8] sm:$0xff]
        %v3141 = vld [vmem:[%s3114 + $0xd0] sm:$0xff]
        %v3142 = vld [vmem:[%s3114 + $0xd8] sm:$0xff]
        %v3143 = vld [vmem:[%s3114 + $0xe0] sm:$0xff]
        %v3144 = vld [vmem:[%s3114 + $0xe8] sm:$0xff]
        %v3145 = vld [vmem:[%s3114 + $0xf0] sm:$0xff]
        %v3146 = vld [vmem:[%s3114 + $0xf8] sm:$0xff]
        %v3147 = vld [vmem:[%s3114 + $0x100] sm:$0xff]
        %v3148 = vld [vmem:[%s3114 + $0x108] sm:$0xff]
        %v3149 = vld [vmem:[%s3114 + $0x110] sm:$0xff]
        %v3150 = vld [vmem:[%s3114 + $0x118] sm:$0xff]
        %v3151 = vld [vmem:[%s3114 + $0x120] sm:$0xff]
        %v3152 = vld [vmem:[%s3114 + $0x128] sm:$0xff]
        %v3153 = vld [vmem:[%s3114 + $0x130] sm:$0xff]
        %v3154 = vld [vmem:[%s3114 + $0x138] sm:$0xff]
        %v3155 = vld [vmem:[%s3114 + $0x140] sm:$0xff]
        %v3156 = vld [vmem:[%s3114 + $0x148] sm:$0xff]
        %v3157 = vld [vmem:[%s3114 + $0x150] sm:$0xff]
        %v3158 = vld [vmem:[%s3114 + $0x158] sm:$0xff]
        %v3159 = vld [vmem:[%s3114 + $0x160] sm:$0xff]
        %v3160 = vld [vmem:[%s3114 + $0x168] sm:$0xff]
        %v3161 = vld [vmem:[%s3114 + $0x170] sm:$0xff]
        %v3162 = vld [vmem:[%s3114 + $0x178] sm:$0xff]
        %v3163 = vld [vmem:[%s3114 + $0x180] sm:$0xff]
        %v3164 = vld [vmem:[%s3114 + $0x188] sm:$0xff]
        %v3165 = vld [vmem:[%s3114 + $0x190] sm:$0xff]
        %v3166 = vld [vmem:[%s3114 + $0x198] sm:$0xff]
        %v3167 = vld [vmem:[%s3114 + $0x1a0] sm:$0xff]
        %v3168 = vld [vmem:[%s3114 + $0x1a8] sm:$0xff]
        %v3169 = vld [vmem:[%s3114 + $0x1b0] sm:$0xff]
        %v3170 = vld [vmem:[%s3114 + $0x1b8] sm:$0xff]
        %v3171 = vld [vmem:[%s3114 + $0x1c0] sm:$0xff]
        %v3172 = vld [vmem:[%s3114 + $0x1c8] sm:$0xff]
        %v3173 = vld [vmem:[%s3114 + $0x1d0] sm:$0xff]
        %v3174 = vld [vmem:[%s3114 + $0x1d8] sm:$0xff]
        %v3175 = vld [vmem:[%s3114 + $0x1e0] sm:$0xff]
        %v3176 = vld [vmem:[%s3114 + $0x1e8] sm:$0xff]
        %v3177 = vld [vmem:[%s3114 + $0x1f0] sm:$0xff]
        %v3178 = vld [vmem:[%s3114 + $0x1f8] sm:$0xff]
        %v3179 = vld [vmem:[%s3114 + $0x200] sm:$0xff]
        %v3180 = vld [vmem:[%s3114 + $0x208] sm:$0xff]
        %v3181 = vld [vmem:[%s3114 + $0x210] sm:$0xff]
        %v3182 = vld [vmem:[%s3114 + $0x218] sm:$0xff]
        %v3183 = vld [vmem:[%s3114 + $0x220] sm:$0xff]
        %v3184 = vld [vmem:[%s3114 + $0x228] sm:$0xff]
        %v3185 = vld [vmem:[%s3114 + $0x230] sm:$0xff]
        %v3186 = vld [vmem:[%s3114 + $0x238] sm:$0xff]
        %v3187 = vld [vmem:[%s3114 + $0x240] sm:$0xff]
        %v3188 = vld [vmem:[%s3114 + $0x248] sm:$0xff]
        %v3189 = vld [vmem:[%s3114 + $0x250] sm:$0xff]
        %v3190 = vld [vmem:[%s3114 + $0x258] sm:$0xff]
        %v3191 = vld [vmem:[%s3114 + $0x260] sm:$0xff]
        %v3192 = vld [vmem:[%s3114 + $0x268] sm:$0xff]
        %v3193 = vld [vmem:[%s3114 + $0x270] sm:$0xff]
        %v3194 = vld [vmem:[%s3114 + $0x278] sm:$0xff]
        %v3195 = vld [vmem:[%s3114 + $0x280] sm:$0xff]
        %v3196 = vld [vmem:[%s3114 + $0x288] sm:$0xff]
        %v3197 = vld [vmem:[%s3114 + $0x290] sm:$0xff]
        %v3198 = vld [vmem:[%s3114 + $0x298] sm:$0xff]
        %v3199 = vld [vmem:[%s3114 + $0x2a0] sm:$0xff]
        %v3200 = vld [vmem:[%s3114 + $0x2a8] sm:$0xff]
        %v3201 = vld [vmem:[%s3114 + $0x2b0] sm:$0xff]
        %v3202 = vld [vmem:[%s3114 + $0x2b8] sm:$0xff]
        %v3203 = vld [vmem:[%s3114 + $0x2c0] sm:$0xff]
        %v3204 = vld [vmem:[%s3114 + $0x2c8] sm:$0xff]
        %v3205 = vld [vmem:[%s3114 + $0x2d0] sm:$0xff]
        %v3206 = vld [vmem:[%s3114 + $0x2d8] sm:$0xff]
        %v3207 = vld [vmem:[%s3114 + $0x2e0] sm:$0xff]
        %v3208 = vld [vmem:[%s3114 + $0x2e8] sm:$0xff]
        %v3209 = vld [vmem:[%s3114 + $0x2f0] sm:$0xff]
        %v3210 = vld [vmem:[%s3114 + $0x2f8] sm:$0xff]
        %v3211 = vld [vmem:[%s3114 + $0x300] sm:$0xff]
        %v3212 = vld [vmem:[%s3114 + $0x308] sm:$0xff]
        %v3213 = vld [vmem:[%s3114 + $0x310] sm:$0xff]
        %v3214 = vld [vmem:[%s3114 + $0x318] sm:$0xff]
        %v3215 = vld [vmem:[%s3114 + $0x320] sm:$0xff]
        %v3216 = vld [vmem:[%s3114 + $0x328] sm:$0xff]
        %v3217 = vld [vmem:[%s3114 + $0x330] sm:$0xff]
        %v3218 = vld [vmem:[%s3114 + $0x338] sm:$0xff]
        %v3219 = vld [vmem:[%s3114 + $0x340] sm:$0xff]
        %v3220 = vld [vmem:[%s3114 + $0x348] sm:$0xff]
        %v3221 = vld [vmem:[%s3114 + $0x350] sm:$0xff]
        %v3222 = vld [vmem:[%s3114 + $0x358] sm:$0xff]
        %v3223 = vld [vmem:[%s3114 + $0x360] sm:$0xff]
        %v3224 = vld [vmem:[%s3114 + $0x368] sm:$0xff]
        %v3225 = vld [vmem:[%s3114 + $0x370] sm:$0xff]
        %v3226 = vld [vmem:[%s3114 + $0x378] sm:$0xff]
        %v3227 = vld [vmem:[%s3114 + $0x380] sm:$0xff]
        %v3228 = vld [vmem:[%s3114 + $0x388] sm:$0xff]
        %v3229 = vld [vmem:[%s3114 + $0x390] sm:$0xff]
        %v3230 = vld [vmem:[%s3114 + $0x398] sm:$0xff]
        %v3231 = vld [vmem:[%s3114 + $0x3a0] sm:$0xff]
        %v3232 = vld [vmem:[%s3114 + $0x3a8] sm:$0xff]
        %v3233 = vld [vmem:[%s3114 + $0x3b0] sm:$0xff]
        %v3234 = vld [vmem:[%s3114 + $0x3b8] sm:$0xff]
        %vm3239 = vcmask 1045504
        %v3240 = vrot.slane %v3110, 2
        %v3241 = vrot.slane %v3112, 2
        %v3242 = vsel %vm3239, %v3240, %v3241
        %v3243 = vrot.slane %v3111, 2
        %v3244 = vrot.slane %v3113, 2
        %v3245 = vsel %vm3239, %v3243, %v3244
        %v3247 = vsel %vm2557, %v3245, 0
        %3249 = vmatprep.subr.mxu0 %v3116
        %3250 = vmatpush1.msra.mxu0 %v3115
        %3251 = vmatprep.subr.mxu0 %v3120
        %3252 = vmatpush1.msra.mxu0 %v3119
        %3253 = vmatprep.subr.mxu0 %v3124
        %3254 = vmatpush1.msra.mxu0 %v3123
        %3255 = vmatprep.subr.mxu0 %v3128
        %3256 = vmatpush1.msra.mxu0 %v3127
        %3257 = vmatprep.subr.mxu0 %v3132
        %3258 = vmatpush1.msra.mxu0 %v3131
        %3259 = vmatprep.subr.mxu0 %v3136
        %3260 = vmatpush1.msra.mxu0 %v3135
        %3261 = vmatprep.subr.mxu0 %v3140
        %3262 = vmatpush1.msra.mxu0 %v3139
        %3263 = vmatprep.subr.mxu0 %v3144
        %3264 = vmatpush1.msra.mxu0 %v3143
        %3265 = vmatprep.subr.mxu0 %v3148
        %3266 = vmatpush1.msra.mxu0 %v3147
        %3267 = vmatprep.subr.mxu0 %v3152
        %3268 = vmatpush1.msra.mxu0 %v3151
        %3269 = vmatprep.subr.mxu0 %v3156
        %3270 = vmatpush1.msra.mxu0 %v3155
        %3271 = vmatprep.subr.mxu0 %v3160
        %3272 = vmatpush1.msra.mxu0 %v3159
        %3273 = vmatprep.subr.mxu0 %v3164
        %3274 = vmatpush1.msra.mxu0 %v3163
        %3275 = vmatprep.subr.mxu0 %v3168
        %3276 = vmatpush1.msra.mxu0 %v3167
        %3277 = vmatprep.subr.mxu0 %v3172
        %3278 = vmatpush1.msra.mxu0 %v3171
        %3279 = vmatprep.subr.mxu0 %v3176
        %3280 = vmatpush1.msra.mxu0 %v3175
        %3281 = vmatprep.subr.mxu0 %v3180
        %3282 = vmatpush1.msra.mxu0 %v3179
        %3283 = vmatprep.subr.mxu0 %v3184
        %3284 = vmatpush1.msra.mxu0 %v3183
        %3285 = vmatprep.subr.mxu0 %v3188
        %3286 = vmatpush1.msra.mxu0 %v3187
        %3287 = vmatprep.subr.mxu0 %v3192
        %3288 = vmatpush1.msra.mxu0 %v3191
        %3289 = vmatprep.subr.mxu0 %v3196
        %3290 = vmatpush1.msra.mxu0 %v3195
        %3291 = vmatprep.subr.mxu0 %v3200
        %3292 = vmatpush1.msra.mxu0 %v3199
        %3293 = vmatprep.subr.mxu0 %v3204
        %3294 = vmatpush1.msra.mxu0 %v3203
        %3295 = vmatprep.subr.mxu0 %v3208
        %3296 = vmatpush1.msra.mxu0 %v3207
        %3297 = vmatprep.subr.mxu0 %v3212
        %3298 = vmatpush1.msra.mxu0 %v3211
        %3299 = vmatprep.subr.mxu0 %v3216
        %3300 = vmatpush1.msra.mxu0 %v3215
        %3301 = vmatprep.subr.mxu0 %v3220
        %3302 = vmatpush1.msra.mxu0 %v3219
        %3303 = vmatprep.subr.mxu0 %v3224
        %3304 = vmatpush1.msra.mxu0 %v3223
        %3305 = vmatprep.subr.mxu0 %v3228
        %3306 = vmatpush1.msra.mxu0 %v3227
        %3307 = vmatprep.subr.mxu0 %v3232
        %3308 = vmatpush1.msra.mxu0 %v3231
        %3309 = vmatprep.subr.mxu0 0.0
        %3310 = vmatpush1.msra.mxu0 0.0
        %3311 = vmatprep.subr.mxu0 0.0
        %3312 = vmatpush1.msra.mxu0 0.0
        %3313 = vmatprep.mubr.f32.mxu0 %v3247
        %3314 = vmatmul.mubr.f32.gmra.mrb[0].mxu0 %v3242
        %v3315 = vpop.f32.mrb[0].mxu0
        %v3316 = vadd.f32 0.0, %v3315
        %v3317 = vpop.f32.mrb[0].mxu0
        %v3318 = vadd.f32 0.0, %v3317
        %3319 = vdwg.mxu0
        %3320 = vmatprep.subr.mxu0 %v3118
        %3321 = vmatpush1.msra.mxu0 %v3117
        %3322 = vmatprep.subr.mxu0 %v3122
        %3323 = vmatpush1.msra.mxu0 %v3121
        %3324 = vmatprep.subr.mxu0 %v3126
        %3325 = vmatpush1.msra.mxu0 %v3125
        %3326 = vmatprep.subr.mxu0 %v3130
        %3327 = vmatpush1.msra.mxu0 %v3129
        %3328 = vmatprep.subr.mxu0 %v3134
        %3329 = vmatpush1.msra.mxu0 %v3133
        %3330 = vmatprep.subr.mxu0 %v3138
        %3331 = vmatpush1.msra.mxu0 %v3137
        %3332 = vmatprep.subr.mxu0 %v3142
        %3333 = vmatpush1.msra.mxu0 %v3141
        %3334 = vmatprep.subr.mxu0 %v3146
        %3335 = vmatpush1.msra.mxu0 %v3145
        %3336 = vmatprep.subr.mxu0 %v3150
        %3337 = vmatpush1.msra.mxu0 %v3149
        %3338 = vmatprep.subr.mxu0 %v3154
        %3339 = vmatpush1.msra.mxu0 %v3153
        %3340 = vmatprep.subr.mxu0 %v3158
        %3341 = vmatpush1.msra.mxu0 %v3157
        %3342 = vmatprep.subr.mxu0 %v3162
        %3343 = vmatpush1.msra.mxu0 %v3161
        %3344 = vmatprep.subr.mxu0 %v3166
        %3345 = vmatpush1.msra.mxu0 %v3165
        %3346 = vmatprep.subr.mxu0 %v3170
        %3347 = vmatpush1.msra.mxu0 %v3169
        %3348 = vmatprep.subr.mxu0 %v3174
        %3349 = vmatpush1.msra.mxu0 %v3173
        %3350 = vmatprep.subr.mxu0 %v3178
        %3351 = vmatpush1.msra.mxu0 %v3177
        %3352 = vmatprep.subr.mxu0 %v3182
        %3353 = vmatpush1.msra.mxu0 %v3181
        %3354 = vmatprep.subr.mxu0 %v3186
        %3355 = vmatpush1.msra.mxu0 %v3185
        %3356 = vmatprep.subr.mxu0 %v3190
        %3357 = vmatpush1.msra.mxu0 %v3189
        %3358 = vmatprep.subr.mxu0 %v3194
        %3359 = vmatpush1.msra.mxu0 %v3193
        %3360 = vmatprep.subr.mxu0 %v3198
        %3361 = vmatpush1.msra.mxu0 %v3197
        %3362 = vmatprep.subr.mxu0 %v3202
        %3363 = vmatpush1.msra.mxu0 %v3201
        %3364 = vmatprep.subr.mxu0 %v3206
        %3365 = vmatpush1.msra.mxu0 %v3205
        %3366 = vmatprep.subr.mxu0 %v3210
        %3367 = vmatpush1.msra.mxu0 %v3209
        %3368 = vmatprep.subr.mxu0 %v3214
        %3369 = vmatpush1.msra.mxu0 %v3213
        %3370 = vmatprep.subr.mxu0 %v3218
        %3371 = vmatpush1.msra.mxu0 %v3217
        %3372 = vmatprep.subr.mxu0 %v3222
        %3373 = vmatpush1.msra.mxu0 %v3221
        %3374 = vmatprep.subr.mxu0 %v3226
        %3375 = vmatpush1.msra.mxu0 %v3225
        %3376 = vmatprep.subr.mxu0 %v3230
        %3377 = vmatpush1.msra.mxu0 %v3229
        %3378 = vmatprep.subr.mxu0 %v3234
        %3379 = vmatpush1.msra.mxu0 %v3233
        %3380 = vmatprep.subr.mxu0 0.0
        %3381 = vmatpush1.msra.mxu0 0.0
        %3382 = vmatprep.subr.mxu0 0.0
        %3383 = vmatpush1.msra.mxu0 0.0
        %3384 = vmatprep.mubr.f32.mxu0 %v3247
        %3385 = vmatmul.mubr.f32.gmra.mrb[0].mxu0 %v3242
        %v3386 = vpop.f32.mrb[0].mxu0
        %v3387 = vadd.f32 0.0, %v3386
        %v3388 = vpop.f32.mrb[0].mxu0
        %v3389 = vadd.f32 0.0, %v3388
        %3390 = vdwg.mxu0
        %v3391 = vadd.f32 %v3035, %v3316
        %v3392 = vadd.f32 %v3037, %v3318
        %v3393 = vadd.f32 %v3106, %v3387
        %v3394 = vadd.f32 %v3108, %v3389
        %v3395 = vld [vmem:[#allocation2] sm:$0xf8]
        %v3396 = vld [vmem:[#allocation2 + $0x8] sm:$0xf8]
        %v3397 = vld [vmem:[#allocation2 + $0x10] sm:$0x7]
        %v3398 = vld [vmem:[#allocation2 + $0x18] sm:$0x7]
        %s3399 = scalar_lea.vmem %s7, 2880
        %v3400 = vld [vmem:[%s3399] sm:$0xff]
        %v3401 = vld [vmem:[%s3399 + $0x8] sm:$0xff]
        %v3402 = vld [vmem:[%s3399 + $0x10] sm:$0xff]
        %v3403 = vld [vmem:[%s3399 + $0x18] sm:$0xff]
        %v3404 = vld [vmem:[%s3399 + $0x20] sm:$0xff]
        %v3405 = vld [vmem:[%s3399 + $0x28] sm:$0xff]
        %v3406 = vld [vmem:[%s3399 + $0x30] sm:$0xff]
        %v3407 = vld [vmem:[%s3399 + $0x38] sm:$0xff]
        %v3408 = vld [vmem:[%s3399 + $0x40] sm:$0xff]
        %v3409 = vld [vmem:[%s3399 + $0x48] sm:$0xff]
        %v3410 = vld [vmem:[%s3399 + $0x50] sm:$0xff]
        %v3411 = vld [vmem:[%s3399 + $0x58] sm:$0xff]
        %v3412 = vld [vmem:[%s3399 + $0x60] sm:$0xff]
        %v3413 = vld [vmem:[%s3399 + $0x68] sm:$0xff]
        %v3414 = vld [vmem:[%s3399 + $0x70] sm:$0xff]
        %v3415 = vld [vmem:[%s3399 + $0x78] sm:$0xff]
        %v3416 = vld [vmem:[%s3399 + $0x80] sm:$0xff]
        %v3417 = vld [vmem:[%s3399 + $0x88] sm:$0xff]
        %v3418 = vld [vmem:[%s3399 + $0x90] sm:$0xff]
        %v3419 = vld [vmem:[%s3399 + $0x98] sm:$0xff]
        %v3420 = vld [vmem:[%s3399 + $0xa0] sm:$0xff]
        %v3421 = vld [vmem:[%s3399 + $0xa8] sm:$0xff]
        %v3422 = vld [vmem:[%s3399 + $0xb0] sm:$0xff]
        %v3423 = vld [vmem:[%s3399 + $0xb8] sm:$0xff]
        %v3424 = vld [vmem:[%s3399 + $0xc0] sm:$0xff]
        %v3425 = vld [vmem:[%s3399 + $0xc8] sm:$0xff]
        %v3426 = vld [vmem:[%s3399 + $0xd0] sm:$0xff]
        %v3427 = vld [vmem:[%s3399 + $0xd8] sm:$0xff]
        %v3428 = vld [vmem:[%s3399 + $0xe0] sm:$0xff]
        %v3429 = vld [vmem:[%s3399 + $0xe8] sm:$0xff]
        %v3430 = vld [vmem:[%s3399 + $0xf0] sm:$0xff]
        %v3431 = vld [vmem:[%s3399 + $0xf8] sm:$0xff]
        %v3432 = vld [vmem:[%s3399 + $0x100] sm:$0xff]
        %v3433 = vld [vmem:[%s3399 + $0x108] sm:$0xff]
        %v3434 = vld [vmem:[%s3399 + $0x110] sm:$0xff]
        %v3435 = vld [vmem:[%s3399 + $0x118] sm:$0xff]
        %v3436 = vld [vmem:[%s3399 + $0x120] sm:$0xff]
        %v3437 = vld [vmem:[%s3399 + $0x128] sm:$0xff]
        %v3438 = vld [vmem:[%s3399 + $0x130] sm:$0xff]
        %v3439 = vld [vmem:[%s3399 + $0x138] sm:$0xff]
        %v3440 = vld [vmem:[%s3399 + $0x140] sm:$0xff]
        %v3441 = vld [vmem:[%s3399 + $0x148] sm:$0xff]
        %v3442 = vld [vmem:[%s3399 + $0x150] sm:$0xff]
        %v3443 = vld [vmem:[%s3399 + $0x158] sm:$0xff]
        %v3444 = vld [vmem:[%s3399 + $0x160] sm:$0xff]
        %v3445 = vld [vmem:[%s3399 + $0x168] sm:$0xff]
        %v3446 = vld [vmem:[%s3399 + $0x170] sm:$0xff]
        %v3447 = vld [vmem:[%s3399 + $0x178] sm:$0xff]
        %v3448 = vld [vmem:[%s3399 + $0x180] sm:$0xff]
        %v3449 = vld [vmem:[%s3399 + $0x188] sm:$0xff]
        %v3450 = vld [vmem:[%s3399 + $0x190] sm:$0xff]
        %v3451 = vld [vmem:[%s3399 + $0x198] sm:$0xff]
        %v3452 = vld [vmem:[%s3399 + $0x1a0] sm:$0xff]
        %v3453 = vld [vmem:[%s3399 + $0x1a8] sm:$0xff]
        %v3454 = vld [vmem:[%s3399 + $0x1b0] sm:$0xff]
        %v3455 = vld [vmem:[%s3399 + $0x1b8] sm:$0xff]
        %v3456 = vld [vmem:[%s3399 + $0x1c0] sm:$0xff]
        %v3457 = vld [vmem:[%s3399 + $0x1c8] sm:$0xff]
        %v3458 = vld [vmem:[%s3399 + $0x1d0] sm:$0xff]
        %v3459 = vld [vmem:[%s3399 + $0x1d8] sm:$0xff]
        %v3460 = vld [vmem:[%s3399 + $0x1e0] sm:$0xff]
        %v3461 = vld [vmem:[%s3399 + $0x1e8] sm:$0xff]
        %v3462 = vld [vmem:[%s3399 + $0x1f0] sm:$0xff]
        %v3463 = vld [vmem:[%s3399 + $0x1f8] sm:$0xff]
        %v3464 = vld [vmem:[%s3399 + $0x200] sm:$0xff]
        %v3465 = vld [vmem:[%s3399 + $0x208] sm:$0xff]
        %v3466 = vld [vmem:[%s3399 + $0x210] sm:$0xff]
        %v3467 = vld [vmem:[%s3399 + $0x218] sm:$0xff]
        %v3468 = vld [vmem:[%s3399 + $0x220] sm:$0xff]
        %v3469 = vld [vmem:[%s3399 + $0x228] sm:$0xff]
        %v3470 = vld [vmem:[%s3399 + $0x230] sm:$0xff]
        %v3471 = vld [vmem:[%s3399 + $0x238] sm:$0xff]
        %v3472 = vld [vmem:[%s3399 + $0x240] sm:$0xff]
        %v3473 = vld [vmem:[%s3399 + $0x248] sm:$0xff]
        %v3474 = vld [vmem:[%s3399 + $0x250] sm:$0xff]
        %v3475 = vld [vmem:[%s3399 + $0x258] sm:$0xff]
        %v3476 = vld [vmem:[%s3399 + $0x260] sm:$0xff]
        %v3477 = vld [vmem:[%s3399 + $0x268] sm:$0xff]
        %v3478 = vld [vmem:[%s3399 + $0x270] sm:$0xff]
        %v3479 = vld [vmem:[%s3399 + $0x278] sm:$0xff]
        %v3480 = vld [vmem:[%s3399 + $0x280] sm:$0xff]
        %v3481 = vld [vmem:[%s3399 + $0x288] sm:$0xff]
        %v3482 = vld [vmem:[%s3399 + $0x290] sm:$0xff]
        %v3483 = vld [vmem:[%s3399 + $0x298] sm:$0xff]
        %v3484 = vld [vmem:[%s3399 + $0x2a0] sm:$0xff]
        %v3485 = vld [vmem:[%s3399 + $0x2a8] sm:$0xff]
        %v3486 = vld [vmem:[%s3399 + $0x2b0] sm:$0xff]
        %v3487 = vld [vmem:[%s3399 + $0x2b8] sm:$0xff]
        %v3488 = vld [vmem:[%s3399 + $0x2c0] sm:$0xff]
        %v3489 = vld [vmem:[%s3399 + $0x2c8] sm:$0xff]
        %v3490 = vld [vmem:[%s3399 + $0x2d0] sm:$0xff]
        %v3491 = vld [vmem:[%s3399 + $0x2d8] sm:$0xff]
        %v3492 = vld [vmem:[%s3399 + $0x2e0] sm:$0xff]
        %v3493 = vld [vmem:[%s3399 + $0x2e8] sm:$0xff]
        %v3494 = vld [vmem:[%s3399 + $0x2f0] sm:$0xff]
        %v3495 = vld [vmem:[%s3399 + $0x2f8] sm:$0xff]
        %v3496 = vld [vmem:[%s3399 + $0x300] sm:$0xff]
        %v3497 = vld [vmem:[%s3399 + $0x308] sm:$0xff]
        %v3498 = vld [vmem:[%s3399 + $0x310] sm:$0xff]
        %v3499 = vld [vmem:[%s3399 + $0x318] sm:$0xff]
        %v3500 = vld [vmem:[%s3399 + $0x320] sm:$0xff]
        %v3501 = vld [vmem:[%s3399 + $0x328] sm:$0xff]
        %v3502 = vld [vmem:[%s3399 + $0x330] sm:$0xff]
        %v3503 = vld [vmem:[%s3399 + $0x338] sm:$0xff]
        %v3504 = vld [vmem:[%s3399 + $0x340] sm:$0xff]
        %v3505 = vld [vmem:[%s3399 + $0x348] sm:$0xff]
        %v3506 = vld [vmem:[%s3399 + $0x350] sm:$0xff]
        %v3507 = vld [vmem:[%s3399 + $0x358] sm:$0xff]
        %v3508 = vld [vmem:[%s3399 + $0x360] sm:$0xff]
        %v3509 = vld [vmem:[%s3399 + $0x368] sm:$0xff]
        %v3510 = vld [vmem:[%s3399 + $0x370] sm:$0xff]
        %v3511 = vld [vmem:[%s3399 + $0x378] sm:$0xff]
        %v3512 = vld [vmem:[%s3399 + $0x380] sm:$0xff]
        %v3513 = vld [vmem:[%s3399 + $0x388] sm:$0xff]
        %v3514 = vld [vmem:[%s3399 + $0x390] sm:$0xff]
        %v3515 = vld [vmem:[%s3399 + $0x398] sm:$0xff]
        %v3516 = vld [vmem:[%s3399 + $0x3a0] sm:$0xff]
        %v3517 = vld [vmem:[%s3399 + $0x3a8] sm:$0xff]
        %v3518 = vld [vmem:[%s3399 + $0x3b0] sm:$0xff]
        %v3519 = vld [vmem:[%s3399 + $0x3b8] sm:$0xff]
        %vm3524 = vcmask 1044480
        %v3525 = vrot.slane %v3395, 3
        %v3526 = vrot.slane %v3397, 3
        %v3527 = vsel %vm3524, %v3525, %v3526
        %v3528 = vrot.slane %v3396, 3
        %v3529 = vrot.slane %v3398, 3
        %v3530 = vsel %vm3524, %v3528, %v3529
        %v3532 = vsel %vm2557, %v3530, 0
        %3534 = vmatprep.subr.mxu0 %v3401
        %3535 = vmatpush1.msra.mxu0 %v3400
        %3536 = vmatprep.subr.mxu0 %v3405
        %3537 = vmatpush1.msra.mxu0 %v3404
        %3538 = vmatprep.subr.mxu0 %v3409
        %3539 = vmatpush1.msra.mxu0 %v3408
        %3540 = vmatprep.subr.mxu0 %v3413
        %3541 = vmatpush1.msra.mxu0 %v3412
        %3542 = vmatprep.subr.mxu0 %v3417
        %3543 = vmatpush1.msra.mxu0 %v3416
        %3544 = vmatprep.subr.mxu0 %v3421
        %3545 = vmatpush1.msra.mxu0 %v3420
        %3546 = vmatprep.subr.mxu0 %v3425
        %3547 = vmatpush1.msra.mxu0 %v3424
        %3548 = vmatprep.subr.mxu0 %v3429
        %3549 = vmatpush1.msra.mxu0 %v3428
        %3550 = vmatprep.subr.mxu0 %v3433
        %3551 = vmatpush1.msra.mxu0 %v3432
        %3552 = vmatprep.subr.mxu0 %v3437
        %3553 = vmatpush1.msra.mxu0 %v3436
        %3554 = vmatprep.subr.mxu0 %v3441
        %3555 = vmatpush1.msra.mxu0 %v3440
        %3556 = vmatprep.subr.mxu0 %v3445
        %3557 = vmatpush1.msra.mxu0 %v3444
        %3558 = vmatprep.subr.mxu0 %v3449
        %3559 = vmatpush1.msra.mxu0 %v3448
        %3560 = vmatprep.subr.mxu0 %v3453
        %3561 = vmatpush1.msra.mxu0 %v3452
        %3562 = vmatprep.subr.mxu0 %v3457
        %3563 = vmatpush1.msra.mxu0 %v3456
        %3564 = vmatprep.subr.mxu0 %v3461
        %3565 = vmatpush1.msra.mxu0 %v3460
        %3566 = vmatprep.subr.mxu0 %v3465
        %3567 = vmatpush1.msra.mxu0 %v3464
        %3568 = vmatprep.subr.mxu0 %v3469
        %3569 = vmatpush1.msra.mxu0 %v3468
        %3570 = vmatprep.subr.mxu0 %v3473
        %3571 = vmatpush1.msra.mxu0 %v3472
        %3572 = vmatprep.subr.mxu0 %v3477
        %3573 = vmatpush1.msra.mxu0 %v3476
        %3574 = vmatprep.subr.mxu0 %v3481
        %3575 = vmatpush1.msra.mxu0 %v3480
        %3576 = vmatprep.subr.mxu0 %v3485
        %3577 = vmatpush1.msra.mxu0 %v3484
        %3578 = vmatprep.subr.mxu0 %v3489
        %3579 = vmatpush1.msra.mxu0 %v3488
        %3580 = vmatprep.subr.mxu0 %v3493
        %3581 = vmatpush1.msra.mxu0 %v3492
        %3582 = vmatprep.subr.mxu0 %v3497
        %3583 = vmatpush1.msra.mxu0 %v3496
        %3584 = vmatprep.subr.mxu0 %v3501
        %3585 = vmatpush1.msra.mxu0 %v3500
        %3586 = vmatprep.subr.mxu0 %v3505
        %3587 = vmatpush1.msra.mxu0 %v3504
        %3588 = vmatprep.subr.mxu0 %v3509
        %3589 = vmatpush1.msra.mxu0 %v3508
        %3590 = vmatprep.subr.mxu0 %v3513
        %3591 = vmatpush1.msra.mxu0 %v3512
        %3592 = vmatprep.subr.mxu0 %v3517
        %3593 = vmatpush1.msra.mxu0 %v3516
        %3594 = vmatprep.subr.mxu0 0.0
        %3595 = vmatpush1.msra.mxu0 0.0
        %3596 = vmatprep.subr.mxu0 0.0
        %3597 = vmatpush1.msra.mxu0 0.0
        %3598 = vmatprep.mubr.f32.mxu0 %v3532
        %3599 = vmatmul.mubr.f32.gmra.mrb[0].mxu0 %v3527
        %v3600 = vpop.f32.mrb[0].mxu0
        %v3601 = vadd.f32 0.0, %v3600
        %v3602 = vpop.f32.mrb[0].mxu0
        %v3603 = vadd.f32 0.0, %v3602
        %3604 = vdwg.mxu0
        %3605 = vmatprep.subr.mxu0 %v3403
        %3606 = vmatpush1.msra.mxu0 %v3402
        %3607 = vmatprep.subr.mxu0 %v3407
        %3608 = vmatpush1.msra.mxu0 %v3406
        %3609 = vmatprep.subr.mxu0 %v3411
        %3610 = vmatpush1.msra.mxu0 %v3410
        %3611 = vmatprep.subr.mxu0 %v3415
        %3612 = vmatpush1.msra.mxu0 %v3414
        %3613 = vmatprep.subr.mxu0 %v3419
        %3614 = vmatpush1.msra.mxu0 %v3418
        %3615 = vmatprep.subr.mxu0 %v3423
        %3616 = vmatpush1.msra.mxu0 %v3422
        %3617 = vmatprep.subr.mxu0 %v3427
        %3618 = vmatpush1.msra.mxu0 %v3426
        %3619 = vmatprep.subr.mxu0 %v3431
        %3620 = vmatpush1.msra.mxu0 %v3430
        %3621 = vmatprep.subr.mxu0 %v3435
        %3622 = vmatpush1.msra.mxu0 %v3434
        %3623 = vmatprep.subr.mxu0 %v3439
        %3624 = vmatpush1.msra.mxu0 %v3438
        %3625 = vmatprep.subr.mxu0 %v3443
        %3626 = vmatpush1.msra.mxu0 %v3442
        %3627 = vmatprep.subr.mxu0 %v3447
        %3628 = vmatpush1.msra.mxu0 %v3446
        %3629 = vmatprep.subr.mxu0 %v3451
        %3630 = vmatpush1.msra.mxu0 %v3450
        %3631 = vmatprep.subr.mxu0 %v3455
        %3632 = vmatpush1.msra.mxu0 %v3454
        %3633 = vmatprep.subr.mxu0 %v3459
        %3634 = vmatpush1.msra.mxu0 %v3458
        %3635 = vmatprep.subr.mxu0 %v3463
        %3636 = vmatpush1.msra.mxu0 %v3462
        %3637 = vmatprep.subr.mxu0 %v3467
        %3638 = vmatpush1.msra.mxu0 %v3466
        %3639 = vmatprep.subr.mxu0 %v3471
        %3640 = vmatpush1.msra.mxu0 %v3470
        %3641 = vmatprep.subr.mxu0 %v3475
        %3642 = vmatpush1.msra.mxu0 %v3474
        %3643 = vmatprep.subr.mxu0 %v3479
        %3644 = vmatpush1.msra.mxu0 %v3478
        %3645 = vmatprep.subr.mxu0 %v3483
        %3646 = vmatpush1.msra.mxu0 %v3482
        %3647 = vmatprep.subr.mxu0 %v3487
        %3648 = vmatpush1.msra.mxu0 %v3486
        %3649 = vmatprep.subr.mxu0 %v3491
        %3650 = vmatpush1.msra.mxu0 %v3490
        %3651 = vmatprep.subr.mxu0 %v3495
        %3652 = vmatpush1.msra.mxu0 %v3494
        %3653 = vmatprep.subr.mxu0 %v3499
        %3654 = vmatpush1.msra.mxu0 %v3498
        %3655 = vmatprep.subr.mxu0 %v3503
        %3656 = vmatpush1.msra.mxu0 %v3502
        %3657 = vmatprep.subr.mxu0 %v3507
        %3658 = vmatpush1.msra.mxu0 %v3506
        %3659 = vmatprep.subr.mxu0 %v3511
        %3660 = vmatpush1.msra.mxu0 %v3510
        %3661 = vmatprep.subr.mxu0 %v3515
        %3662 = vmatpush1.msra.mxu0 %v3514
        %3663 = vmatprep.subr.mxu0 %v3519
        %3664 = vmatpush1.msra.mxu0 %v3518
        %3665 = vmatprep.subr.mxu0 0.0
        %3666 = vmatpush1.msra.mxu0 0.0
        %3667 = vmatprep.subr.mxu0 0.0
        %3668 = vmatpush1.msra.mxu0 0.0
        %3669 = vmatprep.mubr.f32.mxu0 %v3532
        %3670 = vmatmul.mubr.f32.gmra.mrb[0].mxu0 %v3527
        %v3671 = vpop.f32.mrb[0].mxu0
        %v3672 = vadd.f32 0.0, %v3671
        %v3673 = vpop.f32.mrb[0].mxu0
        %v3674 = vadd.f32 0.0, %v3673
        %3675 = vdwg.mxu0
        %v3676 = vadd.f32 %v3391, %v3601
        %v3677 = vadd.f32 %v3392, %v3603
        %v3678 = vadd.f32 %v3393, %v3672
        %v3679 = vadd.f32 %v3394, %v3674
        %v3680 = vld [vmem:[#allocation2] sm:$0xf0]
        %v3681 = vld [vmem:[#allocation2 + $0x8] sm:$0xf0]
        %v3682 = vld [vmem:[#allocation2 + $0x10] sm:$0xf]
        %v3683 = vld [vmem:[#allocation2 + $0x18] sm:$0xf]
        %s3684 = scalar_lea.vmem %s7, 3840
        %v3685 = vld [vmem:[%s3684] sm:$0xff]
        %v3686 = vld [vmem:[%s3684 + $0x8] sm:$0xff]
        %v3687 = vld [vmem:[%s3684 + $0x10] sm:$0xff]
        %v3688 = vld [vmem:[%s3684 + $0x18] sm:$0xff]
        %v3689 = vld [vmem:[%s3684 + $0x20] sm:$0xff]
        %v3690 = vld [vmem:[%s3684 + $0x28] sm:$0xff]
        %v3691 = vld [vmem:[%s3684 + $0x30] sm:$0xff]
        %v3692 = vld [vmem:[%s3684 + $0x38] sm:$0xff]
        %v3693 = vld [vmem:[%s3684 + $0x40] sm:$0xff]
        %v3694 = vld [vmem:[%s3684 + $0x48] sm:$0xff]
        %v3695 = vld [vmem:[%s3684 + $0x50] sm:$0xff]
        %v3696 = vld [vmem:[%s3684 + $0x58] sm:$0xff]
        %v3697 = vld [vmem:[%s3684 + $0x60] sm:$0xff]
        %v3698 = vld [vmem:[%s3684 + $0x68] sm:$0xff]
        %v3699 = vld [vmem:[%s3684 + $0x70] sm:$0xff]
        %v3700 = vld [vmem:[%s3684 + $0x78] sm:$0xff]
        %v3701 = vld [vmem:[%s3684 + $0x80] sm:$0xff]
        %v3702 = vld [vmem:[%s3684 + $0x88] sm:$0xff]
        %v3703 = vld [vmem:[%s3684 + $0x90] sm:$0xff]
        %v3704 = vld [vmem:[%s3684 + $0x98] sm:$0xff]
        %v3705 = vld [vmem:[%s3684 + $0xa0] sm:$0xff]
        %v3706 = vld [vmem:[%s3684 + $0xa8] sm:$0xff]
        %v3707 = vld [vmem:[%s3684 + $0xb0] sm:$0xff]
        %v3708 = vld [vmem:[%s3684 + $0xb8] sm:$0xff]
        %v3709 = vld [vmem:[%s3684 + $0xc0] sm:$0xff]
        %v3710 = vld [vmem:[%s3684 + $0xc8] sm:$0xff]
        %v3711 = vld [vmem:[%s3684 + $0xd0] sm:$0xff]
        %v3712 = vld [vmem:[%s3684 + $0xd8] sm:$0xff]
        %v3713 = vld [vmem:[%s3684 + $0xe0] sm:$0xff]
        %v3714 = vld [vmem:[%s3684 + $0xe8] sm:$0xff]
        %v3715 = vld [vmem:[%s3684 + $0xf0] sm:$0xff]
        %v3716 = vld [vmem:[%s3684 + $0xf8] sm:$0xff]
        %v3717 = vld [vmem:[%s3684 + $0x100] sm:$0xff]
        %v3718 = vld [vmem:[%s3684 + $0x108] sm:$0xff]
        %v3719 = vld [vmem:[%s3684 + $0x110] sm:$0xff]
        %v3720 = vld [vmem:[%s3684 + $0x118] sm:$0xff]
        %v3721 = vld [vmem:[%s3684 + $0x120] sm:$0xff]
        %v3722 = vld [vmem:[%s3684 + $0x128] sm:$0xff]
        %v3723 = vld [vmem:[%s3684 + $0x130] sm:$0xff]
        %v3724 = vld [vmem:[%s3684 + $0x138] sm:$0xff]
        %v3725 = vld [vmem:[%s3684 + $0x140] sm:$0xff]
        %v3726 = vld [vmem:[%s3684 + $0x148] sm:$0xff]
        %v3727 = vld [vmem:[%s3684 + $0x150] sm:$0xff]
        %v3728 = vld [vmem:[%s3684 + $0x158] sm:$0xff]
        %v3729 = vld [vmem:[%s3684 + $0x160] sm:$0xff]
        %v3730 = vld [vmem:[%s3684 + $0x168] sm:$0xff]
        %v3731 = vld [vmem:[%s3684 + $0x170] sm:$0xff]
        %v3732 = vld [vmem:[%s3684 + $0x178] sm:$0xff]
        %v3733 = vld [vmem:[%s3684 + $0x180] sm:$0xff]
        %v3734 = vld [vmem:[%s3684 + $0x188] sm:$0xff]
        %v3735 = vld [vmem:[%s3684 + $0x190] sm:$0xff]
        %v3736 = vld [vmem:[%s3684 + $0x198] sm:$0xff]
        %v3737 = vld [vmem:[%s3684 + $0x1a0] sm:$0xff]
        %v3738 = vld [vmem:[%s3684 + $0x1a8] sm:$0xff]
        %v3739 = vld [vmem:[%s3684 + $0x1b0] sm:$0xff]
        %v3740 = vld [vmem:[%s3684 + $0x1b8] sm:$0xff]
        %v3741 = vld [vmem:[%s3684 + $0x1c0] sm:$0xff]
        %v3742 = vld [vmem:[%s3684 + $0x1c8] sm:$0xff]
        %v3743 = vld [vmem:[%s3684 + $0x1d0] sm:$0xff]
        %v3744 = vld [vmem:[%s3684 + $0x1d8] sm:$0xff]
        %v3745 = vld [vmem:[%s3684 + $0x1e0] sm:$0xff]
        %v3746 = vld [vmem:[%s3684 + $0x1e8] sm:$0xff]
        %v3747 = vld [vmem:[%s3684 + $0x1f0] sm:$0xff]
        %v3748 = vld [vmem:[%s3684 + $0x1f8] sm:$0xff]
        %v3749 = vld [vmem:[%s3684 + $0x200] sm:$0xff]
        %v3750 = vld [vmem:[%s3684 + $0x208] sm:$0xff]
        %v3751 = vld [vmem:[%s3684 + $0x210] sm:$0xff]
        %v3752 = vld [vmem:[%s3684 + $0x218] sm:$0xff]
        %v3753 = vld [vmem:[%s3684 + $0x220] sm:$0xff]
        %v3754 = vld [vmem:[%s3684 + $0x228] sm:$0xff]
        %v3755 = vld [vmem:[%s3684 + $0x230] sm:$0xff]
        %v3756 = vld [vmem:[%s3684 + $0x238] sm:$0xff]
        %v3757 = vld [vmem:[%s3684 + $0x240] sm:$0xff]
        %v3758 = vld [vmem:[%s3684 + $0x248] sm:$0xff]
        %v3759 = vld [vmem:[%s3684 + $0x250] sm:$0xff]
        %v3760 = vld [vmem:[%s3684 + $0x258] sm:$0xff]
        %v3761 = vld [vmem:[%s3684 + $0x260] sm:$0xff]
        %v3762 = vld [vmem:[%s3684 + $0x268] sm:$0xff]
        %v3763 = vld [vmem:[%s3684 + $0x270] sm:$0xff]
        %v3764 = vld [vmem:[%s3684 + $0x278] sm:$0xff]
        %v3765 = vld [vmem:[%s3684 + $0x280] sm:$0xff]
        %v3766 = vld [vmem:[%s3684 + $0x288] sm:$0xff]
        %v3767 = vld [vmem:[%s3684 + $0x290] sm:$0xff]
        %v3768 = vld [vmem:[%s3684 + $0x298] sm:$0xff]
        %v3769 = vld [vmem:[%s3684 + $0x2a0] sm:$0xff]
        %v3770 = vld [vmem:[%s3684 + $0x2a8] sm:$0xff]
        %v3771 = vld [vmem:[%s3684 + $0x2b0] sm:$0xff]
        %v3772 = vld [vmem:[%s3684 + $0x2b8] sm:$0xff]
        %v3773 = vld [vmem:[%s3684 + $0x2c0] sm:$0xff]
        %v3774 = vld [vmem:[%s3684 + $0x2c8] sm:$0xff]
        %v3775 = vld [vmem:[%s3684 + $0x2d0] sm:$0xff]
        %v3776 = vld [vmem:[%s3684 + $0x2d8] sm:$0xff]
        %v3777 = vld [vmem:[%s3684 + $0x2e0] sm:$0xff]
        %v3778 = vld [vmem:[%s3684 + $0x2e8] sm:$0xff]
        %v3779 = vld [vmem:[%s3684 + $0x2f0] sm:$0xff]
        %v3780 = vld [vmem:[%s3684 + $0x2f8] sm:$0xff]
        %v3781 = vld [vmem:[%s3684 + $0x300] sm:$0xff]
        %v3782 = vld [vmem:[%s3684 + $0x308] sm:$0xff]
        %v3783 = vld [vmem:[%s3684 + $0x310] sm:$0xff]
        %v3784 = vld [vmem:[%s3684 + $0x318] sm:$0xff]
        %v3785 = vld [vmem:[%s3684 + $0x320] sm:$0xff]
        %v3786 = vld [vmem:[%s3684 + $0x328] sm:$0xff]
        %v3787 = vld [vmem:[%s3684 + $0x330] sm:$0xff]
        %v3788 = vld [vmem:[%s3684 + $0x338] sm:$0xff]
        %v3789 = vld [vmem:[%s3684 + $0x340] sm:$0xff]
        %v3790 = vld [vmem:[%s3684 + $0x348] sm:$0xff]
        %v3791 = vld [vmem:[%s3684 + $0x350] sm:$0xff]
        %v3792 = vld [vmem:[%s3684 + $0x358] sm:$0xff]
        %v3793 = vld [vmem:[%s3684 + $0x360] sm:$0xff]
        %v3794 = vld [vmem:[%s3684 + $0x368] sm:$0xff]
        %v3795 = vld [vmem:[%s3684 + $0x370] sm:$0xff]
        %v3796 = vld [vmem:[%s3684 + $0x378] sm:$0xff]
        %v3797 = vld [vmem:[%s3684 + $0x380] sm:$0xff]
        %v3798 = vld [vmem:[%s3684 + $0x388] sm:$0xff]
        %v3799 = vld [vmem:[%s3684 + $0x390] sm:$0xff]
        %v3800 = vld [vmem:[%s3684 + $0x398] sm:$0xff]
        %v3801 = vld [vmem:[%s3684 + $0x3a0] sm:$0xff]
        %v3802 = vld [vmem:[%s3684 + $0x3a8] sm:$0xff]
        %v3803 = vld [vmem:[%s3684 + $0x3b0] sm:$0xff]
        %v3804 = vld [vmem:[%s3684 + $0x3b8] sm:$0xff]
        %v3809 = vrot.slane %v3680, 4
        %v3810 = vrot.slane %v3682, 4
        %v3811 = vsel %vm595, %v3809, %v3810
        %v3812 = vrot.slane %v3681, 4
        %v3813 = vrot.slane %v3683, 4
        %v3814 = vsel %vm595, %v3812, %v3813
        %v3816 = vsel %vm2557, %v3814, 0
        %3818 = vmatprep.subr.mxu0 %v3686
        %3819 = vmatpush1.msra.mxu0 %v3685
        %3820 = vmatprep.subr.mxu0 %v3690
        %3821 = vmatpush1.msra.mxu0 %v3689
        %3822 = vmatprep.subr.mxu0 %v3694
        %3823 = vmatpush1.msra.mxu0 %v3693
        %3824 = vmatprep.subr.mxu0 %v3698
        %3825 = vmatpush1.msra.mxu0 %v3697
        %3826 = vmatprep.subr.mxu0 %v3702
        %3827 = vmatpush1.msra.mxu0 %v3701
        %3828 = vmatprep.subr.mxu0 %v3706
        %3829 = vmatpush1.msra.mxu0 %v3705
        %3830 = vmatprep.subr.mxu0 %v3710
        %3831 = vmatpush1.msra.mxu0 %v3709
        %3832 = vmatprep.subr.mxu0 %v3714
        %3833 = vmatpush1.msra.mxu0 %v3713
        %3834 = vmatprep.subr.mxu0 %v3718
        %3835 = vmatpush1.msra.mxu0 %v3717
        %3836 = vmatprep.subr.mxu0 %v3722
        %3837 = vmatpush1.msra.mxu0 %v3721
        %3838 = vmatprep.subr.mxu0 %v3726
        %3839 = vmatpush1.msra.mxu0 %v3725
        %3840 = vmatprep.subr.mxu0 %v3730
        %3841 = vmatpush1.msra.mxu0 %v3729
        %3842 = vmatprep.subr.mxu0 %v3734
        %3843 = vmatpush1.msra.mxu0 %v3733
        %3844 = vmatprep.subr.mxu0 %v3738
        %3845 = vmatpush1.msra.mxu0 %v3737
        %3846 = vmatprep.subr.mxu0 %v3742
        %3847 = vmatpush1.msra.mxu0 %v3741
        %3848 = vmatprep.subr.mxu0 %v3746
        %3849 = vmatpush1.msra.mxu0 %v3745
        %3850 = vmatprep.subr.mxu0 %v3750
        %3851 = vmatpush1.msra.mxu0 %v3749
        %3852 = vmatprep.subr.mxu0 %v3754
        %3853 = vmatpush1.msra.mxu0 %v3753
        %3854 = vmatprep.subr.mxu0 %v3758
        %3855 = vmatpush1.msra.mxu0 %v3757
        %3856 = vmatprep.subr.mxu0 %v3762
        %3857 = vmatpush1.msra.mxu0 %v3761
        %3858 = vmatprep.subr.mxu0 %v3766
        %3859 = vmatpush1.msra.mxu0 %v3765
        %3860 = vmatprep.subr.mxu0 %v3770
        %3861 = vmatpush1.msra.mxu0 %v3769
        %3862 = vmatprep.subr.mxu0 %v3774
        %3863 = vmatpush1.msra.mxu0 %v3773
        %3864 = vmatprep.subr.mxu0 %v3778
        %3865 = vmatpush1.msra.mxu0 %v3777
        %3866 = vmatprep.subr.mxu0 %v3782
        %3867 = vmatpush1.msra.mxu0 %v3781
        %3868 = vmatprep.subr.mxu0 %v3786
        %3869 = vmatpush1.msra.mxu0 %v3785
        %3870 = vmatprep.subr.mxu0 %v3790
        %3871 = vmatpush1.msra.mxu0 %v3789
        %3872 = vmatprep.subr.mxu0 %v3794
        %3873 = vmatpush1.msra.mxu0 %v3793
        %3874 = vmatprep.subr.mxu0 %v3798
        %3875 = vmatpush1.msra.mxu0 %v3797
        %3876 = vmatprep.subr.mxu0 %v3802
        %3877 = vmatpush1.msra.mxu0 %v3801
        %3878 = vmatprep.subr.mxu0 0.0
        %3879 = vmatpush1.msra.mxu0 0.0
        %3880 = vmatprep.subr.mxu0 0.0
        %3881 = vmatpush1.msra.mxu0 0.0
        %3882 = vmatprep.mubr.f32.mxu0 %v3816
        %3883 = vmatmul.mubr.f32.gmra.mrb[0].mxu0 %v3811
        %v3884 = vpop.f32.mrb[0].mxu0
        %v3885 = vadd.f32 0.0, %v3884
        %v3886 = vpop.f32.mrb[0].mxu0
        %v3887 = vadd.f32 0.0, %v3886
        %3888 = vdwg.mxu0
        %3889 = vmatprep.subr.mxu0 %v3688
        %3890 = vmatpush1.msra.mxu0 %v3687
        %3891 = vmatprep.subr.mxu0 %v3692
        %3892 = vmatpush1.msra.mxu0 %v3691
        %3893 = vmatprep.subr.mxu0 %v3696
        %3894 = vmatpush1.msra.mxu0 %v3695
        %3895 = vmatprep.subr.mxu0 %v3700
        %3896 = vmatpush1.msra.mxu0 %v3699
        %3897 = vmatprep.subr.mxu0 %v3704
        %3898 = vmatpush1.msra.mxu0 %v3703
        %3899 = vmatprep.subr.mxu0 %v3708
        %3900 = vmatpush1.msra.mxu0 %v3707
        %3901 = vmatprep.subr.mxu0 %v3712
        %3902 = vmatpush1.msra.mxu0 %v3711
        %3903 = vmatprep.subr.mxu0 %v3716
        %3904 = vmatpush1.msra.mxu0 %v3715
        %3905 = vmatprep.subr.mxu0 %v3720
        %3906 = vmatpush1.msra.mxu0 %v3719
        %3907 = vmatprep.subr.mxu0 %v3724
        %3908 = vmatpush1.msra.mxu0 %v3723
        %3909 = vmatprep.subr.mxu0 %v3728
        %3910 = vmatpush1.msra.mxu0 %v3727
        %3911 = vmatprep.subr.mxu0 %v3732
        %3912 = vmatpush1.msra.mxu0 %v3731
        %3913 = vmatprep.subr.mxu0 %v3736
        %3914 = vmatpush1.msra.mxu0 %v3735
        %3915 = vmatprep.subr.mxu0 %v3740
        %3916 = vmatpush1.msra.mxu0 %v3739
        %3917 = vmatprep.subr.mxu0 %v3744
        %3918 = vmatpush1.msra.mxu0 %v3743
        %3919 = vmatprep.subr.mxu0 %v3748
        %3920 = vmatpush1.msra.mxu0 %v3747
        %3921 = vmatprep.subr.mxu0 %v3752
        %3922 = vmatpush1.msra.mxu0 %v3751
        %3923 = vmatprep.subr.mxu0 %v3756
        %3924 = vmatpush1.msra.mxu0 %v3755
        %3925 = vmatprep.subr.mxu0 %v3760
        %3926 = vmatpush1.msra.mxu0 %v3759
        %3927 = vmatprep.subr.mxu0 %v3764
        %3928 = vmatpush1.msra.mxu0 %v3763
        %3929 = vmatprep.subr.mxu0 %v3768
        %3930 = vmatpush1.msra.mxu0 %v3767
        %3931 = vmatprep.subr.mxu0 %v3772
        %3932 = vmatpush1.msra.mxu0 %v3771
        %3933 = vmatprep.subr.mxu0 %v3776
        %3934 = vmatpush1.msra.mxu0 %v3775
        %3935 = vmatprep.subr.mxu0 %v3780
        %3936 = vmatpush1.msra.mxu0 %v3779
        %3937 = vmatprep.subr.mxu0 %v3784
        %3938 = vmatpush1.msra.mxu0 %v3783
        %3939 = vmatprep.subr.mxu0 %v3788
        %3940 = vmatpush1.msra.mxu0 %v3787
        %3941 = vmatprep.subr.mxu0 %v3792
        %3942 = vmatpush1.msra.mxu0 %v3791
        %3943 = vmatprep.subr.mxu0 %v3796
        %3944 = vmatpush1.msra.mxu0 %v3795
        %3945 = vmatprep.subr.mxu0 %v3800
        %3946 = vmatpush1.msra.mxu0 %v3799
        %3947 = vmatprep.subr.mxu0 %v3804
        %3948 = vmatpush1.msra.mxu0 %v3803
        %3949 = vmatprep.subr.mxu0 0.0
        %3950 = vmatpush1.msra.mxu0 0.0
        %3951 = vmatprep.subr.mxu0 0.0
        %3952 = vmatpush1.msra.mxu0 0.0
        %3953 = vmatprep.mubr.f32.mxu0 %v3816
        %3954 = vmatmul.mubr.f32.gmra.mrb[0].mxu0 %v3811
        %v3955 = vpop.f32.mrb[0].mxu0
        %v3956 = vadd.f32 0.0, %v3955
        %v3957 = vpop.f32.mrb[0].mxu0
        %v3958 = vadd.f32 0.0, %v3957
        %3959 = vdwg.mxu0
        %v3960 = vadd.f32 %v3676, %v3885
        %v3961 = vadd.f32 %v3677, %v3887
        %v3962 = vadd.f32 %v3678, %v3956
        %v3963 = vadd.f32 %v3679, %v3958
        %v3964 = vld [vmem:[%s8] sm:$0xf]
        %v3966 = vlaneseq
        %v3967 = vshrl.u32 %v3966, 7
        %v3968 = vsub.s32 0, %v3967
        %v3969 = vrot.slane %v3964, %v3968
        %v3970 = vlaneseq
        %v3971 = vshrl.u32 %v3970, 7
        %v3972 = vsub.s32 1, %v3971
        %v3973 = vrot.slane %v3964, %v3972
        %v3974 = vlaneseq
        %v3975 = vshrl.u32 %v3974, 7
        %v3976 = vsub.s32 2, %v3975
        %v3977 = vrot.slane %v3964, %v3976
        %v3978 = vlaneseq
        %v3979 = vshrl.u32 %v3978, 7
        %v3980 = vsub.s32 3, %v3979
        %v3981 = vrot.slane %v3964, %v3980
        %v3986 = vadd.f32 %v3960, %v3969
        %v3987 = vadd.f32 %v3961, %v3973
        %v3988 = vadd.f32 %v3962, %v3977
        %v3989 = vadd.f32 %v3963, %v3981
        %v3990 = vmax.f32 %v3986, 0.0
        %v3991 = vmax.f32 %v3987, 0.0
        %v3992 = vmax.f32 %v3988, 0.0
        %v3993 = vmax.f32 %v3989, 0.0
        %v3994 = vld [vmem:[%s9] sm:$0xf]
        %vm3995 = vcmask 64512
        %v3997 = vsel %vm3995, %v3994, 0
        %3999 = vmatprep.subr.mxu0 %v3991
        %4000 = vmatpush1.msra.mxu0 %v3990
        %4001 = vmatprep.subr.mxu0 0.0
        %4002 = vmatpush1.msra.mxu0 0.0
        %4003 = vmatprep.subr.mxu0 0.0
        %4004 = vmatpush1.msra.mxu0 0.0
        %4005 = vmatprep.subr.mxu0 0.0
        %4006 = vmatpush1.msra.mxu0 0.0
        %4007 = vmatprep.subr.mxu0 0.0
        %4008 = vmatpush1.msra.mxu0 0.0
        %4009 = vmatprep.subr.mxu0 0.0
        %4010 = vmatpush1.msra.mxu0 0.0
        %4011 = vmatprep.subr.mxu0 0.0
        %4012 = vmatpush1.msra.mxu0 0.0
        %4013 = vmatprep.subr.mxu0 0.0
        %4014 = vmatpush1.msra.mxu0 0.0
        %4015 = vmatprep.subr.mxu0 0.0
        %4016 = vmatpush1.msra.mxu0 0.0
        %4017 = vmatprep.subr.mxu0 0.0
        %4018 = vmatpush1.msra.mxu0 0.0
        %4019 = vmatprep.subr.mxu0 0.0
        %4020 = vmatpush1.msra.mxu0 0.0
        %4021 = vmatprep.subr.mxu0 0.0
        %4022 = vmatpush1.msra.mxu0 0.0
        %4023 = vmatprep.subr.mxu0 0.0
        %4024 = vmatpush1.msra.mxu0 0.0
        %4025 = vmatprep.subr.mxu0 0.0
        %4026 = vmatpush1.msra.mxu0 0.0
        %4027 = vmatprep.subr.mxu0 0.0
        %4028 = vmatpush1.msra.mxu0 0.0
        %4029 = vmatprep.subr.mxu0 0.0
        %4030 = vmatpush1.msra.mxu0 0.0
        %4031 = vmatprep.subr.mxu0 0.0
        %4032 = vmatpush1.msra.mxu0 0.0
        %4033 = vmatprep.subr.mxu0 0.0
        %4034 = vmatpush1.msra.mxu0 0.0
        %4035 = vmatprep.subr.mxu0 0.0
        %4036 = vmatpush1.msra.mxu0 0.0
        %4037 = vmatprep.subr.mxu0 0.0
        %4038 = vmatpush1.msra.mxu0 0.0
        %4039 = vmatprep.subr.mxu0 0.0
        %4040 = vmatpush1.msra.mxu0 0.0
        %4041 = vmatprep.subr.mxu0 0.0
        %4042 = vmatpush1.msra.mxu0 0.0
        %4043 = vmatprep.subr.mxu0 0.0
        %4044 = vmatpush1.msra.mxu0 0.0
        %4045 = vmatprep.subr.mxu0 0.0
        %4046 = vmatpush1.msra.mxu0 0.0
        %4047 = vmatprep.subr.mxu0 0.0
        %4048 = vmatpush1.msra.mxu0 0.0
        %4049 = vmatprep.subr.mxu0 0.0
        %4050 = vmatpush1.msra.mxu0 0.0
        %4051 = vmatprep.subr.mxu0 0.0
        %4052 = vmatpush1.msra.mxu0 0.0
        %4053 = vmatprep.subr.mxu0 0.0
        %4054 = vmatpush1.msra.mxu0 0.0
        %4055 = vmatprep.subr.mxu0 0.0
        %4056 = vmatpush1.msra.mxu0 0.0
        %4057 = vmatprep.subr.mxu0 0.0
        %4058 = vmatpush1.msra.mxu0 0.0
        %4059 = vmatprep.subr.mxu0 0.0
        %4060 = vmatpush1.msra.mxu0 0.0
        %4061 = vmatprep.subr.mxu0 0.0
        %4062 = vmatpush1.msra.mxu0 0.0
        %4063 = vmatprep.mubr.f32.mxu0 0.0
        %4064 = vmatmul.mubr.f32.gmra.mrb[0].mxu0 %v3997
        %v4065 = vpop.f32.mrb[0].mxu0
        %v4066 = vadd.f32 0.0, %v4065
        %v4067 = vpop.f32.mrb[0].mxu0
        %v4068 = vadd.f32 0.0, %v4067
        %4069 = vdwg.mxu0
        %4070 = vmatprep.subr.mxu0 %v3993
        %4071 = vmatpush1.msra.mxu0 %v3992
        %4072 = vmatprep.subr.mxu0 0.0
        %4073 = vmatpush1.msra.mxu0 0.0
        %4074 = vmatprep.subr.mxu0 0.0
        %4075 = vmatpush1.msra.mxu0 0.0
        %4076 = vmatprep.subr.mxu0 0.0
        %4077 = vmatpush1.msra.mxu0 0.0
        %4078 = vmatprep.subr.mxu0 0.0
        %4079 = vmatpush1.msra.mxu0 0.0
        %4080 = vmatprep.subr.mxu0 0.0
        %4081 = vmatpush1.msra.mxu0 0.0
        %4082 = vmatprep.subr.mxu0 0.0
        %4083 = vmatpush1.msra.mxu0 0.0
        %4084 = vmatprep.subr.mxu0 0.0
        %4085 = vmatpush1.msra.mxu0 0.0
        %4086 = vmatprep.subr.mxu0 0.0
        %4087 = vmatpush1.msra.mxu0 0.0
        %4088 = vmatprep.subr.mxu0 0.0
        %4089 = vmatpush1.msra.mxu0 0.0
        %4090 = vmatprep.subr.mxu0 0.0
        %4091 = vmatpush1.msra.mxu0 0.0
        %4092 = vmatprep.subr.mxu0 0.0
        %4093 = vmatpush1.msra.mxu0 0.0
        %4094 = vmatprep.subr.mxu0 0.0
        %4095 = vmatpush1.msra.mxu0 0.0
        %4096 = vmatprep.subr.mxu0 0.0
        %4097 = vmatpush1.msra.mxu0 0.0
        %4098 = vmatprep.subr.mxu0 0.0
        %4099 = vmatpush1.msra.mxu0 0.0
        %4100 = vmatprep.subr.mxu0 0.0
        %4101 = vmatpush1.msra.mxu0 0.0
        %4102 = vmatprep.subr.mxu0 0.0
        %4103 = vmatpush1.msra.mxu0 0.0
        %4104 = vmatprep.subr.mxu0 0.0
        %4105 = vmatpush1.msra.mxu0 0.0
        %4106 = vmatprep.subr.mxu0 0.0
        %4107 = vmatpush1.msra.mxu0 0.0
        %4108 = vmatprep.subr.mxu0 0.0
        %4109 = vmatpush1.msra.mxu0 0.0
        %4110 = vmatprep.subr.mxu0 0.0
        %4111 = vmatpush1.msra.mxu0 0.0
        %4112 = vmatprep.subr.mxu0 0.0
        %4113 = vmatpush1.msra.mxu0 0.0
        %4114 = vmatprep.subr.mxu0 0.0
        %4115 = vmatpush1.msra.mxu0 0.0
        %4116 = vmatprep.subr.mxu0 0.0
        %4117 = vmatpush1.msra.mxu0 0.0
        %4118 = vmatprep.subr.mxu0 0.0
        %4119 = vmatpush1.msra.mxu0 0.0
        %4120 = vmatprep.subr.mxu0 0.0
        %4121 = vmatpush1.msra.mxu0 0.0
        %4122 = vmatprep.subr.mxu0 0.0
        %4123 = vmatpush1.msra.mxu0 0.0
        %4124 = vmatprep.subr.mxu0 0.0
        %4125 = vmatpush1.msra.mxu0 0.0
        %4126 = vmatprep.subr.mxu0 0.0
        %4127 = vmatpush1.msra.mxu0 0.0
        %4128 = vmatprep.subr.mxu0 0.0
        %4129 = vmatpush1.msra.mxu0 0.0
        %4130 = vmatprep.subr.mxu0 0.0
        %4131 = vmatpush1.msra.mxu0 0.0
        %4132 = vmatprep.subr.mxu0 0.0
        %4133 = vmatpush1.msra.mxu0 0.0
        %4134 = vmatprep.mubr.f32.mxu0 0.0
        %4135 = vmatmul.mubr.f32.gmra.mrb[0].mxu0 %v3997
        %v4136 = vpop.f32.mrb[0].mxu0
        %v4137 = vadd.f32 0.0, %v4136
        %v4138 = vpop.f32.mrb[0].mxu0
        %v4139 = vadd.f32 0.0, %v4138
        %4140 = vdwg.mxu0
        %v4141 = vld [vmem:[%s10] sm:$0xf]
        %v4143 = vsel %vm3995, %v4141, 0
        %4145 = vmatprep.subr.mxu0 %v3991
        %4146 = vmatpush1.msra.mxu0 %v3990
        %4147 = vmatprep.subr.mxu0 0.0
        %4148 = vmatpush1.msra.mxu0 0.0
        %4149 = vmatprep.subr.mxu0 0.0
        %4150 = vmatpush1.msra.mxu0 0.0
        %4151 = vmatprep.subr.mxu0 0.0
        %4152 = vmatpush1.msra.mxu0 0.0
        %4153 = vmatprep.subr.mxu0 0.0
        %4154 = vmatpush1.msra.mxu0 0.0
        %4155 = vmatprep.subr.mxu0 0.0
        %4156 = vmatpush1.msra.mxu0 0.0
        %4157 = vmatprep.subr.mxu0 0.0
        %4158 = vmatpush1.msra.mxu0 0.0
        %4159 = vmatprep.subr.mxu0 0.0
        %4160 = vmatpush1.msra.mxu0 0.0
        %4161 = vmatprep.subr.mxu0 0.0
        %4162 = vmatpush1.msra.mxu0 0.0
        %4163 = vmatprep.subr.mxu0 0.0
        %4164 = vmatpush1.msra.mxu0 0.0
        %4165 = vmatprep.subr.mxu0 0.0
        %4166 = vmatpush1.msra.mxu0 0.0
        %4167 = vmatprep.subr.mxu0 0.0
        %4168 = vmatpush1.msra.mxu0 0.0
        %4169 = vmatprep.subr.mxu0 0.0
        %4170 = vmatpush1.msra.mxu0 0.0
        %4171 = vmatprep.subr.mxu0 0.0
        %4172 = vmatpush1.msra.mxu0 0.0
        %4173 = vmatprep.subr.mxu0 0.0
        %4174 = vmatpush1.msra.mxu0 0.0
        %4175 = vmatprep.subr.mxu0 0.0
        %4176 = vmatpush1.msra.mxu0 0.0
        %4177 = vmatprep.subr.mxu0 0.0
        %4178 = vmatpush1.msra.mxu0 0.0
        %4179 = vmatprep.subr.mxu0 0.0
        %4180 = vmatpush1.msra.mxu0 0.0
        %4181 = vmatprep.subr.mxu0 0.0
        %4182 = vmatpush1.msra.mxu0 0.0
        %4183 = vmatprep.subr.mxu0 0.0
        %4184 = vmatpush1.msra.mxu0 0.0
        %4185 = vmatprep.subr.mxu0 0.0
        %4186 = vmatpush1.msra.mxu0 0.0
        %4187 = vmatprep.subr.mxu0 0.0
        %4188 = vmatpush1.msra.mxu0 0.0
        %4189 = vmatprep.subr.mxu0 0.0
        %4190 = vmatpush1.msra.mxu0 0.0
        %4191 = vmatprep.subr.mxu0 0.0
        %4192 = vmatpush1.msra.mxu0 0.0
        %4193 = vmatprep.subr.mxu0 0.0
        %4194 = vmatpush1.msra.mxu0 0.0
        %4195 = vmatprep.subr.mxu0 0.0
        %4196 = vmatpush1.msra.mxu0 0.0
        %4197 = vmatprep.subr.mxu0 0.0
        %4198 = vmatpush1.msra.mxu0 0.0
        %4199 = vmatprep.subr.mxu0 0.0
        %4200 = vmatpush1.msra.mxu0 0.0
        %4201 = vmatprep.subr.mxu0 0.0
        %4202 = vmatpush1.msra.mxu0 0.0
        %4203 = vmatprep.subr.mxu0 0.0
        %4204 = vmatpush1.msra.mxu0 0.0
        %4205 = vmatprep.subr.mxu0 0.0
        %4206 = vmatpush1.msra.mxu0 0.0
        %4207 = vmatprep.subr.mxu0 0.0
        %4208 = vmatpush1.msra.mxu0 0.0
        %4209 = vmatprep.mubr.f32.mxu0 0.0
        %4210 = vmatmul.mubr.f32.gmra.mrb[0].mxu0 %v4143
        %v4211 = vpop.f32.mrb[0].mxu0
        %v4212 = vadd.f32 0.0, %v4211
        %v4213 = vpop.f32.mrb[0].mxu0
        %v4214 = vadd.f32 0.0, %v4213
        %4215 = vdwg.mxu0
        %4216 = vmatprep.subr.mxu0 %v3993
        %4217 = vmatpush1.msra.mxu0 %v3992
        %4218 = vmatprep.subr.mxu0 0.0
        %4219 = vmatpush1.msra.mxu0 0.0
        %4220 = vmatprep.subr.mxu0 0.0
        %4221 = vmatpush1.msra.mxu0 0.0
        %4222 = vmatprep.subr.mxu0 0.0
        %4223 = vmatpush1.msra.mxu0 0.0
        %4224 = vmatprep.subr.mxu0 0.0
        %4225 = vmatpush1.msra.mxu0 0.0
        %4226 = vmatprep.subr.mxu0 0.0
        %4227 = vmatpush1.msra.mxu0 0.0
        %4228 = vmatprep.subr.mxu0 0.0
        %4229 = vmatpush1.msra.mxu0 0.0
        %4230 = vmatprep.subr.mxu0 0.0
        %4231 = vmatpush1.msra.mxu0 0.0
        %4232 = vmatprep.subr.mxu0 0.0
        %4233 = vmatpush1.msra.mxu0 0.0
        %4234 = vmatprep.subr.mxu0 0.0
        %4235 = vmatpush1.msra.mxu0 0.0
        %4236 = vmatprep.subr.mxu0 0.0
        %4237 = vmatpush1.msra.mxu0 0.0
        %4238 = vmatprep.subr.mxu0 0.0
        %4239 = vmatpush1.msra.mxu0 0.0
        %4240 = vmatprep.subr.mxu0 0.0
        %4241 = vmatpush1.msra.mxu0 0.0
        %4242 = vmatprep.subr.mxu0 0.0
        %4243 = vmatpush1.msra.mxu0 0.0
        %4244 = vmatprep.subr.mxu0 0.0
        %4245 = vmatpush1.msra.mxu0 0.0
        %4246 = vmatprep.subr.mxu0 0.0
        %4247 = vmatpush1.msra.mxu0 0.0
        %4248 = vmatprep.subr.mxu0 0.0
        %4249 = vmatpush1.msra.mxu0 0.0
        %4250 = vmatprep.subr.mxu0 0.0
        %4251 = vmatpush1.msra.mxu0 0.0
        %4252 = vmatprep.subr.mxu0 0.0
        %4253 = vmatpush1.msra.mxu0 0.0
        %4254 = vmatprep.subr.mxu0 0.0
        %4255 = vmatpush1.msra.mxu0 0.0
        %4256 = vmatprep.subr.mxu0 0.0
        %4257 = vmatpush1.msra.mxu0 0.0
        %4258 = vmatprep.subr.mxu0 0.0
        %4259 = vmatpush1.msra.mxu0 0.0
        %4260 = vmatprep.subr.mxu0 0.0
        %4261 = vmatpush1.msra.mxu0 0.0
        %4262 = vmatprep.subr.mxu0 0.0
        %4263 = vmatpush1.msra.mxu0 0.0
        %4264 = vmatprep.subr.mxu0 0.0
        %4265 = vmatpush1.msra.mxu0 0.0
        %4266 = vmatprep.subr.mxu0 0.0
        %4267 = vmatpush1.msra.mxu0 0.0
        %4268 = vmatprep.subr.mxu0 0.0
        %4269 = vmatpush1.msra.mxu0 0.0
        %4270 = vmatprep.subr.mxu0 0.0
        %4271 = vmatpush1.msra.mxu0 0.0
        %4272 = vmatprep.subr.mxu0 0.0
        %4273 = vmatpush1.msra.mxu0 0.0
        %4274 = vmatprep.subr.mxu0 0.0
        %4275 = vmatpush1.msra.mxu0 0.0
        %4276 = vmatprep.subr.mxu0 0.0
        %4277 = vmatpush1.msra.mxu0 0.0
        %4278 = vmatprep.subr.mxu0 0.0
        %4279 = vmatpush1.msra.mxu0 0.0
        %4280 = vmatprep.mubr.f32.mxu0 0.0
        %4281 = vmatmul.mubr.f32.gmra.mrb[0].mxu0 %v4143
        %v4282 = vpop.f32.mrb[0].mxu0
        %v4283 = vadd.f32 0.0, %v4282
        %v4284 = vpop.f32.mrb[0].mxu0
        %v4285 = vadd.f32 0.0, %v4284
        %4286 = vdwg.mxu0
        %v4287 = vmax.f32 %v4066, %v4212
        %v4288 = vmax.f32 %v4068, %v4214
        %v4289 = vmax.f32 %v4137, %v4283
        %v4290 = vmax.f32 %v4139, %v4285
        %v4291 = vld [vmem:[%s11] sm:$0xff]
        %v4292 = vld [vmem:[%s11 + $0x8] sm:$0xff]
        %v4293 = vld [vmem:[%s11 + $0x10] sm:$0xff]
        %v4294 = vld [vmem:[%s11 + $0x18] sm:$0xff]
        %v4295 = vld [vmem:[%s11 + $0x20] sm:$0xff]
        %v4296 = vld [vmem:[%s11 + $0x28] sm:$0xff]
        %v4297 = vld [vmem:[%s11 + $0x30] sm:$0xff]
        %v4298 = vld [vmem:[%s11 + $0x38] sm:$0xff]
        %v4299 = vld [vmem:[%s11 + $0x40] sm:$0xff]
        %v4300 = vld [vmem:[%s11 + $0x48] sm:$0xff]
        %v4301 = vld [vmem:[%s11 + $0x50] sm:$0xff]
        %v4302 = vld [vmem:[%s11 + $0x58] sm:$0xff]
        %v4303 = vld [vmem:[%s11 + $0x60] sm:$0xff]
        %v4304 = vld [vmem:[%s11 + $0x68] sm:$0xff]
        %v4305 = vld [vmem:[%s11 + $0x70] sm:$0xff]
        %v4306 = vld [vmem:[%s11 + $0x78] sm:$0xff]
        %v4307 = vld [vmem:[%s11 + $0x80] sm:$0xff]
        %v4308 = vld [vmem:[%s11 + $0x88] sm:$0xff]
        %v4309 = vld [vmem:[%s11 + $0x90] sm:$0xff]
        %v4310 = vld [vmem:[%s11 + $0x98] sm:$0xff]
        %v4311 = vld [vmem:[%s11 + $0xa0] sm:$0xff]
        %v4312 = vld [vmem:[%s11 + $0xa8] sm:$0xff]
        %v4313 = vld [vmem:[%s11 + $0xb0] sm:$0xff]
        %v4314 = vld [vmem:[%s11 + $0xb8] sm:$0xff]
        %v4315 = vld [vmem:[%s11 + $0xc0] sm:$0xff]
        %v4316 = vld [vmem:[%s11 + $0xc8] sm:$0xff]
        %v4317 = vld [vmem:[%s11 + $0xd0] sm:$0xff]
        %v4318 = vld [vmem:[%s11 + $0xd8] sm:$0xff]
        %v4319 = vld [vmem:[%s11 + $0xe0] sm:$0xff]
        %v4320 = vld [vmem:[%s11 + $0xe8] sm:$0xff]
        %v4321 = vld [vmem:[%s11 + $0xf0] sm:$0xff]
        %v4322 = vld [vmem:[%s11 + $0xf8] sm:$0xff]
        %v4323 = vld [vmem:[%s11 + $0x100] sm:$0xff]
        %v4324 = vld [vmem:[%s11 + $0x108] sm:$0xff]
        %v4325 = vld [vmem:[%s11 + $0x110] sm:$0xff]
        %v4326 = vld [vmem:[%s11 + $0x118] sm:$0xff]
        %v4327 = vld [vmem:[%s11 + $0x120] sm:$0xff]
        %v4328 = vld [vmem:[%s11 + $0x128] sm:$0xff]
        %v4329 = vld [vmem:[%s11 + $0x130] sm:$0xff]
        %v4330 = vld [vmem:[%s11 + $0x138] sm:$0xff]
        %v4331 = vld [vmem:[%s11 + $0x140] sm:$0xff]
        %v4332 = vld [vmem:[%s11 + $0x148] sm:$0xff]
        %v4333 = vld [vmem:[%s11 + $0x150] sm:$0xff]
        %v4334 = vld [vmem:[%s11 + $0x158] sm:$0xff]
        %v4335 = vld [vmem:[%s11 + $0x160] sm:$0xff]
        %v4336 = vld [vmem:[%s11 + $0x168] sm:$0xff]
        %v4337 = vld [vmem:[%s11 + $0x170] sm:$0xff]
        %v4338 = vld [vmem:[%s11 + $0x178] sm:$0xff]
        %v4339 = vld [vmem:[%s11 + $0x180] sm:$0xff]
        %v4340 = vld [vmem:[%s11 + $0x188] sm:$0xff]
        %v4341 = vld [vmem:[%s11 + $0x190] sm:$0xff]
        %v4342 = vld [vmem:[%s11 + $0x198] sm:$0xff]
        %v4343 = vld [vmem:[%s11 + $0x1a0] sm:$0xff]
        %v4344 = vld [vmem:[%s11 + $0x1a8] sm:$0xff]
        %v4345 = vld [vmem:[%s11 + $0x1b0] sm:$0xff]
        %v4346 = vld [vmem:[%s11 + $0x1b8] sm:$0xff]
        %v4347 = vld [vmem:[%s11 + $0x1c0] sm:$0xff]
        %v4348 = vld [vmem:[%s11 + $0x1c8] sm:$0xff]
        %v4349 = vld [vmem:[%s11 + $0x1d0] sm:$0xff]
        %v4350 = vld [vmem:[%s11 + $0x1d8] sm:$0xff]
        %v4351 = vld [vmem:[%s11 + $0x1e0] sm:$0xff]
        %v4352 = vld [vmem:[%s11 + $0x1e8] sm:$0xff]
        %v4353 = vld [vmem:[%s11 + $0x1f0] sm:$0xff]
        %v4354 = vld [vmem:[%s11 + $0x1f8] sm:$0xff]
        %v4355 = vld [vmem:[%s11 + $0x200] sm:$0xff]
        %v4356 = vld [vmem:[%s11 + $0x208] sm:$0xff]
        %v4357 = vld [vmem:[%s11 + $0x210] sm:$0xff]
        %v4358 = vld [vmem:[%s11 + $0x218] sm:$0xff]
        %v4359 = vld [vmem:[%s11 + $0x220] sm:$0xff]
        %v4360 = vld [vmem:[%s11 + $0x228] sm:$0xff]
        %v4361 = vld [vmem:[%s11 + $0x230] sm:$0xff]
        %v4362 = vld [vmem:[%s11 + $0x238] sm:$0xff]
        %v4363 = vld [vmem:[%s11 + $0x240] sm:$0xff]
        %v4364 = vld [vmem:[%s11 + $0x248] sm:$0xff]
        %v4365 = vld [vmem:[%s11 + $0x250] sm:$0xff]
        %v4366 = vld [vmem:[%s11 + $0x258] sm:$0xff]
        %v4367 = vld [vmem:[%s11 + $0x260] sm:$0xff]
        %v4368 = vld [vmem:[%s11 + $0x268] sm:$0xff]
        %v4369 = vld [vmem:[%s11 + $0x270] sm:$0xff]
        %v4370 = vld [vmem:[%s11 + $0x278] sm:$0xff]
        %v4371 = vld [vmem:[%s11 + $0x280] sm:$0xff]
        %v4372 = vld [vmem:[%s11 + $0x288] sm:$0xff]
        %v4373 = vld [vmem:[%s11 + $0x290] sm:$0xff]
        %v4374 = vld [vmem:[%s11 + $0x298] sm:$0xff]
        %v4375 = vld [vmem:[%s11 + $0x2a0] sm:$0xff]
        %v4376 = vld [vmem:[%s11 + $0x2a8] sm:$0xff]
        %v4377 = vld [vmem:[%s11 + $0x2b0] sm:$0xff]
        %v4378 = vld [vmem:[%s11 + $0x2b8] sm:$0xff]
        %v4379 = vld [vmem:[%s11 + $0x2c0] sm:$0xff]
        %v4380 = vld [vmem:[%s11 + $0x2c8] sm:$0xff]
        %v4381 = vld [vmem:[%s11 + $0x2d0] sm:$0xff]
        %v4382 = vld [vmem:[%s11 + $0x2d8] sm:$0xff]
        %v4383 = vld [vmem:[%s11 + $0x2e0] sm:$0xff]
        %v4384 = vld [vmem:[%s11 + $0x2e8] sm:$0xff]
        %v4385 = vld [vmem:[%s11 + $0x2f0] sm:$0xff]
        %v4386 = vld [vmem:[%s11 + $0x2f8] sm:$0xff]
        %v4387 = vld [vmem:[%s11 + $0x300] sm:$0xff]
        %v4388 = vld [vmem:[%s11 + $0x308] sm:$0xff]
        %v4389 = vld [vmem:[%s11 + $0x310] sm:$0xff]
        %v4390 = vld [vmem:[%s11 + $0x318] sm:$0xff]
        %vm4391 = vcmask 130048
        %v4393 = vsel %vm4391, %v4290, 0
        %4395 = vmatprep.subr.mxu0 %v4292
        %4396 = vmatpush1.msra.mxu0 %v4291
        %4397 = vmatprep.subr.mxu0 %v4294
        %4398 = vmatpush1.msra.mxu0 %v4293
        %4399 = vmatprep.subr.mxu0 %v4296
        %4400 = vmatpush1.msra.mxu0 %v4295
        %4401 = vmatprep.subr.mxu0 %v4298
        %4402 = vmatpush1.msra.mxu0 %v4297
        %4403 = vmatprep.subr.mxu0 %v4300
        %4404 = vmatpush1.msra.mxu0 %v4299
        %4405 = vmatprep.subr.mxu0 %v4302
        %4406 = vmatpush1.msra.mxu0 %v4301
        %4407 = vmatprep.subr.mxu0 %v4304
        %4408 = vmatpush1.msra.mxu0 %v4303
        %4409 = vmatprep.subr.mxu0 %v4306
        %4410 = vmatpush1.msra.mxu0 %v4305
        %4411 = vmatprep.subr.mxu0 %v4308
        %4412 = vmatpush1.msra.mxu0 %v4307
        %4413 = vmatprep.subr.mxu0 %v4310
        %4414 = vmatpush1.msra.mxu0 %v4309
        %4415 = vmatprep.subr.mxu0 %v4312
        %4416 = vmatpush1.msra.mxu0 %v4311
        %4417 = vmatprep.subr.mxu0 %v4314
        %4418 = vmatpush1.msra.mxu0 %v4313
        %4419 = vmatprep.subr.mxu0 %v4316
        %4420 = vmatpush1.msra.mxu0 %v4315
        %4421 = vmatprep.subr.mxu0 %v4318
        %4422 = vmatpush1.msra.mxu0 %v4317
        %4423 = vmatprep.subr.mxu0 %v4320
        %4424 = vmatpush1.msra.mxu0 %v4319
        %4425 = vmatprep.subr.mxu0 %v4322
        %4426 = vmatpush1.msra.mxu0 %v4321
        %4427 = vmatprep.subr.mxu0 %v4324
        %4428 = vmatpush1.msra.mxu0 %v4323
        %4429 = vmatprep.subr.mxu0 %v4326
        %4430 = vmatpush1.msra.mxu0 %v4325
        %4431 = vmatprep.subr.mxu0 %v4328
        %4432 = vmatpush1.msra.mxu0 %v4327
        %4433 = vmatprep.subr.mxu0 %v4330
        %4434 = vmatpush1.msra.mxu0 %v4329
        %4435 = vmatprep.subr.mxu0 %v4332
        %4436 = vmatpush1.msra.mxu0 %v4331
        %4437 = vmatprep.subr.mxu0 %v4334
        %4438 = vmatpush1.msra.mxu0 %v4333
        %4439 = vmatprep.subr.mxu0 %v4336
        %4440 = vmatpush1.msra.mxu0 %v4335
        %4441 = vmatprep.subr.mxu0 %v4338
        %4442 = vmatpush1.msra.mxu0 %v4337
        %4443 = vmatprep.subr.mxu0 %v4340
        %4444 = vmatpush1.msra.mxu0 %v4339
        %4445 = vmatprep.subr.mxu0 %v4342
        %4446 = vmatpush1.msra.mxu0 %v4341
        %4447 = vmatprep.subr.mxu0 %v4344
        %4448 = vmatpush1.msra.mxu0 %v4343
        %4449 = vmatprep.subr.mxu0 %v4346
        %4450 = vmatpush1.msra.mxu0 %v4345
        %4451 = vmatprep.subr.mxu0 %v4348
        %4452 = vmatpush1.msra.mxu0 %v4347
        %4453 = vmatprep.subr.mxu0 %v4350
        %4454 = vmatpush1.msra.mxu0 %v4349
        %4455 = vmatprep.subr.mxu0 %v4352
        %4456 = vmatpush1.msra.mxu0 %v4351
        %4457 = vmatprep.subr.mxu0 %v4354
        %4458 = vmatpush1.msra.mxu0 %v4353
        %4459 = vmatprep.mubr.f32.mxu0 %v4288
        %4460 = vmatmul.mubr.f32.gmra.mrb[0].mxu0 %v4287
        %v4461 = vpop.f32.mrb[0].mxu0
        %v4462 = vadd.f32 0.0, %v4461
        %v4463 = vpop.f32.mrb[0].mxu0
        %v4464 = vadd.f32 0.0, %v4463
        %4465 = vdwg.mxu0
        %4466 = vmatprep.subr.mxu0 %v4356
        %4467 = vmatpush1.msra.mxu0 %v4355
        %4468 = vmatprep.subr.mxu0 %v4358
        %4469 = vmatpush1.msra.mxu0 %v4357
        %4470 = vmatprep.subr.mxu0 %v4360
        %4471 = vmatpush1.msra.mxu0 %v4359
        %4472 = vmatprep.subr.mxu0 %v4362
        %4473 = vmatpush1.msra.mxu0 %v4361
        %4474 = vmatprep.subr.mxu0 %v4364
        %4475 = vmatpush1.msra.mxu0 %v4363
        %4476 = vmatprep.subr.mxu0 %v4366
        %4477 = vmatpush1.msra.mxu0 %v4365
        %4478 = vmatprep.subr.mxu0 %v4368
        %4479 = vmatpush1.msra.mxu0 %v4367
        %4480 = vmatprep.subr.mxu0 %v4370
        %4481 = vmatpush1.msra.mxu0 %v4369
        %4482 = vmatprep.subr.mxu0 %v4372
        %4483 = vmatpush1.msra.mxu0 %v4371
        %4484 = vmatprep.subr.mxu0 %v4374
        %4485 = vmatpush1.msra.mxu0 %v4373
        %4486 = vmatprep.subr.mxu0 %v4376
        %4487 = vmatpush1.msra.mxu0 %v4375
        %4488 = vmatprep.subr.mxu0 %v4378
        %4489 = vmatpush1.msra.mxu0 %v4377
        %4490 = vmatprep.subr.mxu0 %v4380
        %4491 = vmatpush1.msra.mxu0 %v4379
        %4492 = vmatprep.subr.mxu0 %v4382
        %4493 = vmatpush1.msra.mxu0 %v4381
        %4494 = vmatprep.subr.mxu0 %v4384
        %4495 = vmatpush1.msra.mxu0 %v4383
        %4496 = vmatprep.subr.mxu0 %v4386
        %4497 = vmatpush1.msra.mxu0 %v4385
        %4498 = vmatprep.subr.mxu0 %v4388
        %4499 = vmatpush1.msra.mxu0 %v4387
        %4500 = vmatprep.subr.mxu0 %v4390
        %4501 = vmatpush1.msra.mxu0 %v4389
        %4502 = vmatprep.subr.mxu0 0.0
        %4503 = vmatpush1.msra.mxu0 0.0
        %4504 = vmatprep.subr.mxu0 0.0
        %4505 = vmatpush1.msra.mxu0 0.0
        %4506 = vmatprep.subr.mxu0 0.0
        %4507 = vmatpush1.msra.mxu0 0.0
        %4508 = vmatprep.subr.mxu0 0.0
        %4509 = vmatpush1.msra.mxu0 0.0
        %4510 = vmatprep.subr.mxu0 0.0
        %4511 = vmatpush1.msra.mxu0 0.0
        %4512 = vmatprep.subr.mxu0 0.0
        %4513 = vmatpush1.msra.mxu0 0.0
        %4514 = vmatprep.subr.mxu0 0.0
        %4515 = vmatpush1.msra.mxu0 0.0
        %4516 = vmatprep.subr.mxu0 0.0
        %4517 = vmatpush1.msra.mxu0 0.0
        %4518 = vmatprep.subr.mxu0 0.0
        %4519 = vmatpush1.msra.mxu0 0.0
        %4520 = vmatprep.subr.mxu0 0.0
        %4521 = vmatpush1.msra.mxu0 0.0
        %4522 = vmatprep.subr.mxu0 0.0
        %4523 = vmatpush1.msra.mxu0 0.0
        %4524 = vmatprep.subr.mxu0 0.0
        %4525 = vmatpush1.msra.mxu0 0.0
        %4526 = vmatprep.subr.mxu0 0.0
        %4527 = vmatpush1.msra.mxu0 0.0
        %4528 = vmatprep.subr.mxu0 0.0
        %4529 = vmatpush1.msra.mxu0 0.0
        %4530 = vmatprep.mubr.f32.mxu0 %v4393
        %4531 = vmatmul.mubr.f32.gmra.mrb[0].mxu0 %v4289
        %v4532 = vpop.f32.mrb[0].mxu0
        %v4533 = vadd.f32 %v4462, %v4532
        %v4534 = vpop.f32.mrb[0].mxu0
        %v4535 = vadd.f32 %v4464, %v4534
        %4536 = vdwg.mxu0
        %v4537 = vld [vmem:[%s12] sm:$0xff]
        %v4538 = vld [vmem:[%s12 + $0x8] sm:$0xff]
        %v4539 = vld [vmem:[%s12 + $0x10] sm:$0xff]
        %v4540 = vld [vmem:[%s12 + $0x18] sm:$0xff]
        %v4541 = vld [vmem:[%s12 + $0x20] sm:$0xff]
        %v4542 = vld [vmem:[%s12 + $0x28] sm:$0xff]
        %v4543 = vld [vmem:[%s12 + $0x30] sm:$0xff]
        %v4544 = vld [vmem:[%s12 + $0x38] sm:$0xff]
        %v4545 = vld [vmem:[%s12 + $0x40] sm:$0xff]
        %v4546 = vld [vmem:[%s12 + $0x48] sm:$0xff]
        %v4547 = vld [vmem:[%s12 + $0x50] sm:$0xff]
        %v4548 = vld [vmem:[%s12 + $0x58] sm:$0xff]
        %v4549 = vld [vmem:[%s12 + $0x60] sm:$0xff]
        %v4550 = vld [vmem:[%s12 + $0x68] sm:$0xff]
        %v4551 = vld [vmem:[%s12 + $0x70] sm:$0xff]
        %v4552 = vld [vmem:[%s12 + $0x78] sm:$0xff]
        %v4553 = vld [vmem:[%s12 + $0x80] sm:$0xff]
        %v4554 = vld [vmem:[%s12 + $0x88] sm:$0xff]
        %v4555 = vld [vmem:[%s12 + $0x90] sm:$0xff]
        %v4556 = vld [vmem:[%s12 + $0x98] sm:$0xff]
        %v4557 = vld [vmem:[%s12 + $0xa0] sm:$0xff]
        %v4558 = vld [vmem:[%s12 + $0xa8] sm:$0xff]
        %v4559 = vld [vmem:[%s12 + $0xb0] sm:$0xff]
        %v4560 = vld [vmem:[%s12 + $0xb8] sm:$0xff]
        %v4561 = vld [vmem:[%s12 + $0xc0] sm:$0xff]
        %v4562 = vld [vmem:[%s12 + $0xc8] sm:$0xff]
        %v4563 = vld [vmem:[%s12 + $0xd0] sm:$0xff]
        %v4564 = vld [vmem:[%s12 + $0xd8] sm:$0xff]
        %v4565 = vld [vmem:[%s12 + $0xe0] sm:$0xff]
        %v4566 = vld [vmem:[%s12 + $0xe8] sm:$0xff]
        %v4567 = vld [vmem:[%s12 + $0xf0] sm:$0xff]
        %v4568 = vld [vmem:[%s12 + $0xf8] sm:$0xff]
        %v4569 = vld [vmem:[%s12 + $0x100] sm:$0xff]
        %v4570 = vld [vmem:[%s12 + $0x108] sm:$0xff]
        %v4571 = vld [vmem:[%s12 + $0x110] sm:$0xff]
        %v4572 = vld [vmem:[%s12 + $0x118] sm:$0xff]
        %v4573 = vld [vmem:[%s12 + $0x120] sm:$0xff]
        %v4574 = vld [vmem:[%s12 + $0x128] sm:$0xff]
        %v4575 = vld [vmem:[%s12 + $0x130] sm:$0xff]
        %v4576 = vld [vmem:[%s12 + $0x138] sm:$0xff]
        %v4577 = vld [vmem:[%s12 + $0x140] sm:$0xff]
        %v4578 = vld [vmem:[%s12 + $0x148] sm:$0xff]
        %v4579 = vld [vmem:[%s12 + $0x150] sm:$0xff]
        %v4580 = vld [vmem:[%s12 + $0x158] sm:$0xff]
        %v4581 = vld [vmem:[%s12 + $0x160] sm:$0xff]
        %v4582 = vld [vmem:[%s12 + $0x168] sm:$0xff]
        %v4583 = vld [vmem:[%s12 + $0x170] sm:$0xff]
        %v4584 = vld [vmem:[%s12 + $0x178] sm:$0xff]
        %v4585 = vld [vmem:[%s12 + $0x180] sm:$0xff]
        %v4586 = vld [vmem:[%s12 + $0x188] sm:$0xff]
        %v4587 = vld [vmem:[%s12 + $0x190] sm:$0xff]
        %v4588 = vld [vmem:[%s12 + $0x198] sm:$0xff]
        %v4589 = vld [vmem:[%s12 + $0x1a0] sm:$0xff]
        %v4590 = vld [vmem:[%s12 + $0x1a8] sm:$0xff]
        %v4591 = vld [vmem:[%s12 + $0x1b0] sm:$0xff]
        %v4592 = vld [vmem:[%s12 + $0x1b8] sm:$0xff]
        %v4593 = vld [vmem:[%s12 + $0x1c0] sm:$0xff]
        %v4594 = vld [vmem:[%s12 + $0x1c8] sm:$0xff]
        %v4595 = vld [vmem:[%s12 + $0x1d0] sm:$0xff]
        %v4596 = vld [vmem:[%s12 + $0x1d8] sm:$0xff]
        %v4597 = vld [vmem:[%s12 + $0x1e0] sm:$0xff]
        %v4598 = vld [vmem:[%s12 + $0x1e8] sm:$0xff]
        %v4599 = vld [vmem:[%s12 + $0x1f0] sm:$0xff]
        %v4600 = vld [vmem:[%s12 + $0x1f8] sm:$0xff]
        %v4601 = vld [vmem:[%s12 + $0x200] sm:$0xff]
        %v4602 = vld [vmem:[%s12 + $0x208] sm:$0xff]
        %v4603 = vld [vmem:[%s12 + $0x210] sm:$0xff]
        %v4604 = vld [vmem:[%s12 + $0x218] sm:$0xff]
        %v4605 = vld [vmem:[%s12 + $0x220] sm:$0xff]
        %v4606 = vld [vmem:[%s12 + $0x228] sm:$0xff]
        %v4607 = vld [vmem:[%s12 + $0x230] sm:$0xff]
        %v4608 = vld [vmem:[%s12 + $0x238] sm:$0xff]
        %v4609 = vld [vmem:[%s12 + $0x240] sm:$0xff]
        %v4610 = vld [vmem:[%s12 + $0x248] sm:$0xff]
        %v4611 = vld [vmem:[%s12 + $0x250] sm:$0xff]
        %v4612 = vld [vmem:[%s12 + $0x258] sm:$0xff]
        %v4613 = vld [vmem:[%s12 + $0x260] sm:$0xff]
        %v4614 = vld [vmem:[%s12 + $0x268] sm:$0xff]
        %v4615 = vld [vmem:[%s12 + $0x270] sm:$0xff]
        %v4616 = vld [vmem:[%s12 + $0x278] sm:$0xff]
        %v4617 = vld [vmem:[%s12 + $0x280] sm:$0xff]
        %v4618 = vld [vmem:[%s12 + $0x288] sm:$0xff]
        %v4619 = vld [vmem:[%s12 + $0x290] sm:$0xff]
        %v4620 = vld [vmem:[%s12 + $0x298] sm:$0xff]
        %v4621 = vld [vmem:[%s12 + $0x2a0] sm:$0xff]
        %v4622 = vld [vmem:[%s12 + $0x2a8] sm:$0xff]
        %v4623 = vld [vmem:[%s12 + $0x2b0] sm:$0xff]
        %v4624 = vld [vmem:[%s12 + $0x2b8] sm:$0xff]
        %v4625 = vld [vmem:[%s12 + $0x2c0] sm:$0xff]
        %v4626 = vld [vmem:[%s12 + $0x2c8] sm:$0xff]
        %v4627 = vld [vmem:[%s12 + $0x2d0] sm:$0xff]
        %v4628 = vld [vmem:[%s12 + $0x2d8] sm:$0xff]
        %v4629 = vld [vmem:[%s12 + $0x2e0] sm:$0xff]
        %v4630 = vld [vmem:[%s12 + $0x2e8] sm:$0xff]
        %v4631 = vld [vmem:[%s12 + $0x2f0] sm:$0xff]
        %v4632 = vld [vmem:[%s12 + $0x2f8] sm:$0xff]
        %v4633 = vld [vmem:[%s12 + $0x300] sm:$0xff]
        %v4634 = vld [vmem:[%s12 + $0x308] sm:$0xff]
        %v4635 = vld [vmem:[%s12 + $0x310] sm:$0xff]
        %v4636 = vld [vmem:[%s12 + $0x318] sm:$0xff]
        %4637 = vmatprep.subr.mxu0 %v4538
        %4638 = vmatpush1.msra.mxu0 %v4537
        %4639 = vmatprep.subr.mxu0 %v4540
        %4640 = vmatpush1.msra.mxu0 %v4539
        %4641 = vmatprep.subr.mxu0 %v4542
        %4642 = vmatpush1.msra.mxu0 %v4541
        %4643 = vmatprep.subr.mxu0 %v4544
        %4644 = vmatpush1.msra.mxu0 %v4543
        %4645 = vmatprep.subr.mxu0 %v4546
        %4646 = vmatpush1.msra.mxu0 %v4545
        %4647 = vmatprep.subr.mxu0 %v4548
        %4648 = vmatpush1.msra.mxu0 %v4547
        %4649 = vmatprep.subr.mxu0 %v4550
        %4650 = vmatpush1.msra.mxu0 %v4549
        %4651 = vmatprep.subr.mxu0 %v4552
        %4652 = vmatpush1.msra.mxu0 %v4551
        %4653 = vmatprep.subr.mxu0 %v4554
        %4654 = vmatpush1.msra.mxu0 %v4553
        %4655 = vmatprep.subr.mxu0 %v4556
        %4656 = vmatpush1.msra.mxu0 %v4555
        %4657 = vmatprep.subr.mxu0 %v4558
        %4658 = vmatpush1.msra.mxu0 %v4557
        %4659 = vmatprep.subr.mxu0 %v4560
        %4660 = vmatpush1.msra.mxu0 %v4559
        %4661 = vmatprep.subr.mxu0 %v4562
        %4662 = vmatpush1.msra.mxu0 %v4561
        %4663 = vmatprep.subr.mxu0 %v4564
        %4664 = vmatpush1.msra.mxu0 %v4563
        %4665 = vmatprep.subr.mxu0 %v4566
        %4666 = vmatpush1.msra.mxu0 %v4565
        %4667 = vmatprep.subr.mxu0 %v4568
        %4668 = vmatpush1.msra.mxu0 %v4567
        %4669 = vmatprep.subr.mxu0 %v4570
        %4670 = vmatpush1.msra.mxu0 %v4569
        %4671 = vmatprep.subr.mxu0 %v4572
        %4672 = vmatpush1.msra.mxu0 %v4571
        %4673 = vmatprep.subr.mxu0 %v4574
        %4674 = vmatpush1.msra.mxu0 %v4573
        %4675 = vmatprep.subr.mxu0 %v4576
        %4676 = vmatpush1.msra.mxu0 %v4575
        %4677 = vmatprep.subr.mxu0 %v4578
        %4678 = vmatpush1.msra.mxu0 %v4577
        %4679 = vmatprep.subr.mxu0 %v4580
        %4680 = vmatpush1.msra.mxu0 %v4579
        %4681 = vmatprep.subr.mxu0 %v4582
        %4682 = vmatpush1.msra.mxu0 %v4581
        %4683 = vmatprep.subr.mxu0 %v4584
        %4684 = vmatpush1.msra.mxu0 %v4583
        %4685 = vmatprep.subr.mxu0 %v4586
        %4686 = vmatpush1.msra.mxu0 %v4585
        %4687 = vmatprep.subr.mxu0 %v4588
        %4688 = vmatpush1.msra.mxu0 %v4587
        %4689 = vmatprep.subr.mxu0 %v4590
        %4690 = vmatpush1.msra.mxu0 %v4589
        %4691 = vmatprep.subr.mxu0 %v4592
        %4692 = vmatpush1.msra.mxu0 %v4591
        %4693 = vmatprep.subr.mxu0 %v4594
        %4694 = vmatpush1.msra.mxu0 %v4593
        %4695 = vmatprep.subr.mxu0 %v4596
        %4696 = vmatpush1.msra.mxu0 %v4595
        %4697 = vmatprep.subr.mxu0 %v4598
        %4698 = vmatpush1.msra.mxu0 %v4597
        %4699 = vmatprep.subr.mxu0 %v4600
        %4700 = vmatpush1.msra.mxu0 %v4599
        %4701 = vmatprep.mubr.f32.mxu0 %v4288
        %4702 = vmatmul.mubr.f32.gmra.mrb[0].mxu0 %v4287
        %v4703 = vpop.f32.mrb[0].mxu0
        %v4704 = vadd.f32 0.0, %v4703
        %v4705 = vpop.f32.mrb[0].mxu0
        %v4706 = vadd.f32 0.0, %v4705
        %4707 = vdwg.mxu0
        %4708 = vmatprep.subr.mxu0 %v4602
        %4709 = vmatpush1.msra.mxu0 %v4601
        %4710 = vmatprep.subr.mxu0 %v4604
        %4711 = vmatpush1.msra.mxu0 %v4603
        %4712 = vmatprep.subr.mxu0 %v4606
        %4713 = vmatpush1.msra.mxu0 %v4605
        %4714 = vmatprep.subr.mxu0 %v4608
        %4715 = vmatpush1.msra.mxu0 %v4607
        %4716 = vmatprep.subr.mxu0 %v4610
        %4717 = vmatpush1.msra.mxu0 %v4609
        %4718 = vmatprep.subr.mxu0 %v4612
        %4719 = vmatpush1.msra.mxu0 %v4611
        %4720 = vmatprep.subr.mxu0 %v4614
        %4721 = vmatpush1.msra.mxu0 %v4613
        %4722 = vmatprep.subr.mxu0 %v4616
        %4723 = vmatpush1.msra.mxu0 %v4615
        %4724 = vmatprep.subr.mxu0 %v4618
        %4725 = vmatpush1.msra.mxu0 %v4617
        %4726 = vmatprep.subr.mxu0 %v4620
        %4727 = vmatpush1.msra.mxu0 %v4619
        %4728 = vmatprep.subr.mxu0 %v4622
        %4729 = vmatpush1.msra.mxu0 %v4621
        %4730 = vmatprep.subr.mxu0 %v4624
        %4731 = vmatpush1.msra.mxu0 %v4623
        %4732 = vmatprep.subr.mxu0 %v4626
        %4733 = vmatpush1.msra.mxu0 %v4625
        %4734 = vmatprep.subr.mxu0 %v4628
        %4735 = vmatpush1.msra.mxu0 %v4627
        %4736 = vmatprep.subr.mxu0 %v4630
        %4737 = vmatpush1.msra.mxu0 %v4629
        %4738 = vmatprep.subr.mxu0 %v4632
        %4739 = vmatpush1.msra.mxu0 %v4631
        %4740 = vmatprep.subr.mxu0 %v4634
        %4741 = vmatpush1.msra.mxu0 %v4633
        %4742 = vmatprep.subr.mxu0 %v4636
        %4743 = vmatpush1.msra.mxu0 %v4635
        %4744 = vmatprep.subr.mxu0 0.0
        %4745 = vmatpush1.msra.mxu0 0.0
        %4746 = vmatprep.subr.mxu0 0.0
        %4747 = vmatpush1.msra.mxu0 0.0
        %4748 = vmatprep.subr.mxu0 0.0
        %4749 = vmatpush1.msra.mxu0 0.0
        %4750 = vmatprep.subr.mxu0 0.0
        %4751 = vmatpush1.msra.mxu0 0.0
        %4752 = vmatprep.subr.mxu0 0.0
        %4753 = vmatpush1.msra.mxu0 0.0
        %4754 = vmatprep.subr.mxu0 0.0
        %4755 = vmatpush1.msra.mxu0 0.0
        %4756 = vmatprep.subr.mxu0 0.0
        %4757 = vmatpush1.msra.mxu0 0.0
        %4758 = vmatprep.subr.mxu0 0.0
        %4759 = vmatpush1.msra.mxu0 0.0
        %4760 = vmatprep.subr.mxu0 0.0
        %4761 = vmatpush1.msra.mxu0 0.0
        %4762 = vmatprep.subr.mxu0 0.0
        %4763 = vmatpush1.msra.mxu0 0.0
        %4764 = vmatprep.subr.mxu0 0.0
        %4765 = vmatpush1.msra.mxu0 0.0
        %4766 = vmatprep.subr.mxu0 0.0
        %4767 = vmatpush1.msra.mxu0 0.0
        %4768 = vmatprep.subr.mxu0 0.0
        %4769 = vmatpush1.msra.mxu0 0.0
        %4770 = vmatprep.subr.mxu0 0.0
        %4771 = vmatpush1.msra.mxu0 0.0
        %4772 = vmatprep.mubr.f32.mxu0 %v4393
        %4773 = vmatmul.mubr.f32.gmra.mrb[0].mxu0 %v4289
        %v4774 = vpop.f32.mrb[0].mxu0
        %v4775 = vadd.f32 %v4704, %v4774
        %v4776 = vpop.f32.mrb[0].mxu0
        %v4777 = vadd.f32 %v4706, %v4776
        %4778 = vdwg.mxu0
        %v4779 = vmax.f32 %v4533, %v4775
        %v4780 = vmax.f32 %v4535, %v4777
        %v4783 = vcombine.low %v4779, %v4780
        %vm4785 = vcmask 588804
        %vm4786 = vmor %vm4785, %vm595
        %4787 = vst.msk [vmem:[#allocation3] sm:$0xff] %vm4786, %v4783
        %v4788 = vld [vmem:[%s14] sm:$0xf]
        %v4789 = vld [vmem:[#allocation3] ss:$4 sm:$0x3]
        %v4790 = vld [vmem:[%s13] sm:$0xff]
        %v4791 = vld [vmem:[%s13 + $0x8] sm:$0xff]
        %v4792 = vld [vmem:[%s13 + $0x10] sm:$0xff]
        %v4793 = vld [vmem:[%s13 + $0x18] sm:$0xff]
        %v4794 = vld [vmem:[%s13 + $0x20] sm:$0xff]
        %v4795 = vld [vmem:[%s13 + $0x28] sm:$0xff]
        %v4796 = vld [vmem:[%s13 + $0x30] sm:$0xff]
        %v4797 = vld [vmem:[%s13 + $0x38] sm:$0xff]
        %v4798 = vld [vmem:[%s13 + $0x40] sm:$0xff]
        %v4799 = vld [vmem:[%s13 + $0x48] sm:$0xff]
        %v4800 = vld [vmem:[%s13 + $0x50] sm:$0xff]
        %v4801 = vld [vmem:[%s13 + $0x58] sm:$0xff]
        %v4802 = vld [vmem:[%s13 + $0x60] sm:$0xff]
        %v4803 = vld [vmem:[%s13 + $0x68] sm:$0xff]
        %v4804 = vld [vmem:[%s13 + $0x70] sm:$0xff]
        %v4805 = vld [vmem:[%s13 + $0x78] sm:$0xff]
        %v4806 = vld [vmem:[%s13 + $0x80] sm:$0xff]
        %v4807 = vld [vmem:[%s13 + $0x88] sm:$0xff]
        %v4808 = vld [vmem:[%s13 + $0x90] sm:$0xff]
        %v4809 = vld [vmem:[%s13 + $0x98] sm:$0xff]
        %v4810 = vld [vmem:[%s13 + $0xa0] sm:$0xff]
        %v4811 = vld [vmem:[%s13 + $0xa8] sm:$0xff]
        %v4812 = vld [vmem:[%s13 + $0xb0] sm:$0xff]
        %v4813 = vld [vmem:[%s13 + $0xb8] sm:$0xff]
        %v4814 = vld [vmem:[%s13 + $0xc0] sm:$0xff]
        %v4815 = vld [vmem:[%s13 + $0xc8] sm:$0xff]
        %v4816 = vld [vmem:[%s13 + $0xd0] sm:$0xff]
        %v4817 = vld [vmem:[%s13 + $0xd8] sm:$0xff]
        %v4818 = vld [vmem:[%s13 + $0xe0] sm:$0xff]
        %v4819 = vld [vmem:[%s13 + $0xe8] sm:$0xff]
        %v4820 = vld [vmem:[%s13 + $0xf0] sm:$0xff]
        %v4821 = vld [vmem:[%s13 + $0xf8] sm:$0xff]
        %v4822 = vld [vmem:[%s13 + $0x100] sm:$0xff]
        %v4823 = vld [vmem:[%s13 + $0x108] sm:$0xff]
        %v4824 = vld [vmem:[%s13 + $0x110] sm:$0xff]
        %v4825 = vld [vmem:[%s13 + $0x118] sm:$0xff]
        %v4826 = vld [vmem:[%s13 + $0x120] sm:$0xff]
        %v4827 = vld [vmem:[%s13 + $0x128] sm:$0xff]
        %v4828 = vld [vmem:[%s13 + $0x130] sm:$0xff]
        %v4829 = vld [vmem:[%s13 + $0x138] sm:$0xff]
        %v4830 = vld [vmem:[%s13 + $0x140] sm:$0xff]
        %v4831 = vld [vmem:[%s13 + $0x148] sm:$0xff]
        %v4832 = vld [vmem:[%s13 + $0x150] sm:$0xff]
        %v4833 = vld [vmem:[%s13 + $0x158] sm:$0xff]
        %v4834 = vld [vmem:[%s13 + $0x160] sm:$0xff]
        %v4835 = vld [vmem:[%s13 + $0x168] sm:$0xff]
        %v4836 = vld [vmem:[%s13 + $0x170] sm:$0xff]
        %v4837 = vld [vmem:[%s13 + $0x178] sm:$0xff]
        %v4838 = vld [vmem:[%s13 + $0x180] sm:$0xff]
        %v4839 = vld [vmem:[%s13 + $0x188] sm:$0xff]
        %v4840 = vld [vmem:[%s13 + $0x190] sm:$0xff]
        %v4841 = vld [vmem:[%s13 + $0x198] sm:$0xff]
        %v4842 = vld [vmem:[%s13 + $0x1a0] sm:$0xff]
        %v4843 = vld [vmem:[%s13 + $0x1a8] sm:$0xff]
        %v4844 = vld [vmem:[%s13 + $0x1b0] sm:$0xff]
        %v4845 = vld [vmem:[%s13 + $0x1b8] sm:$0xff]
        %v4846 = vld [vmem:[%s13 + $0x1c0] sm:$0xff]
        %v4847 = vld [vmem:[%s13 + $0x1c8] sm:$0xff]
        %v4848 = vld [vmem:[%s13 + $0x1d0] sm:$0xff]
        %v4849 = vld [vmem:[%s13 + $0x1d8] sm:$0xff]
        %v4850 = vld [vmem:[%s13 + $0x1e0] sm:$0xff]
        %v4851 = vld [vmem:[%s13 + $0x1e8] sm:$0xff]
        %v4852 = vld [vmem:[%s13 + $0x1f0] sm:$0xff]
        %v4853 = vld [vmem:[%s13 + $0x1f8] sm:$0xff]
        %v4854 = vld [vmem:[%s13 + $0x200] sm:$0xff]
        %v4855 = vld [vmem:[%s13 + $0x208] sm:$0xff]
        %v4856 = vld [vmem:[%s13 + $0x210] sm:$0xff]
        %v4857 = vld [vmem:[%s13 + $0x218] sm:$0xff]
        %v4858 = vld [vmem:[%s13 + $0x220] sm:$0xff]
        %v4859 = vld [vmem:[%s13 + $0x228] sm:$0xff]
        %v4860 = vld [vmem:[%s13 + $0x230] sm:$0xff]
        %v4861 = vld [vmem:[%s13 + $0x238] sm:$0xff]
        %v4862 = vld [vmem:[%s13 + $0x240] sm:$0xff]
        %v4863 = vld [vmem:[%s13 + $0x248] sm:$0xff]
        %v4864 = vld [vmem:[%s13 + $0x250] sm:$0xff]
        %v4865 = vld [vmem:[%s13 + $0x258] sm:$0xff]
        %v4866 = vld [vmem:[%s13 + $0x260] sm:$0xff]
        %v4867 = vld [vmem:[%s13 + $0x268] sm:$0xff]
        %v4868 = vld [vmem:[%s13 + $0x270] sm:$0xff]
        %v4869 = vld [vmem:[%s13 + $0x278] sm:$0xff]
        %v4870 = vld [vmem:[%s13 + $0x280] sm:$0xff]
        %v4871 = vld [vmem:[%s13 + $0x288] sm:$0xff]
        %v4872 = vld [vmem:[%s13 + $0x290] sm:$0xff]
        %v4873 = vld [vmem:[%s13 + $0x298] sm:$0xff]
        %v4874 = vld [vmem:[%s13 + $0x2a0] sm:$0xff]
        %v4875 = vld [vmem:[%s13 + $0x2a8] sm:$0xff]
        %v4876 = vld [vmem:[%s13 + $0x2b0] sm:$0xff]
        %v4877 = vld [vmem:[%s13 + $0x2b8] sm:$0xff]
        %v4878 = vld [vmem:[%s13 + $0x2c0] sm:$0xff]
        %v4879 = vld [vmem:[%s13 + $0x2c8] sm:$0xff]
        %v4880 = vld [vmem:[%s13 + $0x2d0] sm:$0xff]
        %v4881 = vld [vmem:[%s13 + $0x2d8] sm:$0xff]
        %v4882 = vld [vmem:[%s13 + $0x2e0] sm:$0xff]
        %v4883 = vld [vmem:[%s13 + $0x2e8] sm:$0xff]
        %v4884 = vld [vmem:[%s13 + $0x2f0] sm:$0xff]
        %v4885 = vld [vmem:[%s13 + $0x2f8] sm:$0xff]
        %v4886 = vld [vmem:[%s13 + $0x300] sm:$0xff]
        %v4887 = vld [vmem:[%s13 + $0x308] sm:$0xff]
        %v4888 = vld [vmem:[%s13 + $0x310] sm:$0xff]
        %v4889 = vld [vmem:[%s13 + $0x318] sm:$0xff]
        %v4891 = vlaneseq
        %v4892 = vshrl.u32 %v4891, 7
        %v4893 = vsub.s32 0, %v4892
        %v4894 = vrot.slane %v4789, %v4893
        %v4895 = vlaneseq
        %v4896 = vshrl.u32 %v4895, 7
        %v4897 = vsub.s32 1, %v4896
        %v4898 = vrot.slane %v4789, %v4897
        %vm4900 = vcmask 588800
        %v4901 = vsel %vm4900, %v4898, 0
        %4903 = vmatprep.subr.mxu0 %v4791
        %4904 = vmatpush1.msra.mxu0 %v4790
        %4905 = vmatprep.subr.mxu0 %v4795
        %4906 = vmatpush1.msra.mxu0 %v4794
        %4907 = vmatprep.subr.mxu0 %v4799
        %4908 = vmatpush1.msra.mxu0 %v4798
        %4909 = vmatprep.subr.mxu0 %v4803
        %4910 = vmatpush1.msra.mxu0 %v4802
        %4911 = vmatprep.subr.mxu0 %v4807
        %4912 = vmatpush1.msra.mxu0 %v4806
        %4913 = vmatprep.subr.mxu0 %v4811
        %4914 = vmatpush1.msra.mxu0 %v4810
        %4915 = vmatprep.subr.mxu0 %v4815
        %4916 = vmatpush1.msra.mxu0 %v4814
        %4917 = vmatprep.subr.mxu0 %v4819
        %4918 = vmatpush1.msra.mxu0 %v4818
        %4919 = vmatprep.subr.mxu0 %v4823
        %4920 = vmatpush1.msra.mxu0 %v4822
        %4921 = vmatprep.subr.mxu0 %v4827
        %4922 = vmatpush1.msra.mxu0 %v4826
        %4923 = vmatprep.subr.mxu0 %v4831
        %4924 = vmatpush1.msra.mxu0 %v4830
        %4925 = vmatprep.subr.mxu0 %v4835
        %4926 = vmatpush1.msra.mxu0 %v4834
        %4927 = vmatprep.subr.mxu0 %v4839
        %4928 = vmatpush1.msra.mxu0 %v4838
        %4929 = vmatprep.subr.mxu0 %v4843
        %4930 = vmatpush1.msra.mxu0 %v4842
        %4931 = vmatprep.subr.mxu0 %v4847
        %4932 = vmatpush1.msra.mxu0 %v4846
        %4933 = vmatprep.subr.mxu0 %v4851
        %4934 = vmatpush1.msra.mxu0 %v4850
        %4935 = vmatprep.subr.mxu0 %v4855
        %4936 = vmatpush1.msra.mxu0 %v4854
        %4937 = vmatprep.subr.mxu0 %v4859
        %4938 = vmatpush1.msra.mxu0 %v4858
        %4939 = vmatprep.subr.mxu0 %v4863
        %4940 = vmatpush1.msra.mxu0 %v4862
        %4941 = vmatprep.subr.mxu0 %v4867
        %4942 = vmatpush1.msra.mxu0 %v4866
        %4943 = vmatprep.subr.mxu0 %v4871
        %4944 = vmatpush1.msra.mxu0 %v4870
        %4945 = vmatprep.subr.mxu0 %v4875
        %4946 = vmatpush1.msra.mxu0 %v4874
        %4947 = vmatprep.subr.mxu0 %v4879
        %4948 = vmatpush1.msra.mxu0 %v4878
        %4949 = vmatprep.subr.mxu0 %v4883
        %4950 = vmatpush1.msra.mxu0 %v4882
        %4951 = vmatprep.subr.mxu0 %v4887
        %4952 = vmatpush1.msra.mxu0 %v4886
        %4953 = vmatprep.subr.mxu0 0.0
        %4954 = vmatpush1.msra.mxu0 0.0
        %4955 = vmatprep.subr.mxu0 0.0
        %4956 = vmatpush1.msra.mxu0 0.0
        %4957 = vmatprep.subr.mxu0 0.0
        %4958 = vmatpush1.msra.mxu0 0.0
        %4959 = vmatprep.subr.mxu0 0.0
        %4960 = vmatpush1.msra.mxu0 0.0
        %4961 = vmatprep.subr.mxu0 0.0
        %4962 = vmatpush1.msra.mxu0 0.0
        %4963 = vmatprep.subr.mxu0 0.0
        %4964 = vmatpush1.msra.mxu0 0.0
        %4965 = vmatprep.subr.mxu0 0.0
        %4966 = vmatpush1.msra.mxu0 0.0
        %4967 = vmatprep.mubr.f32.mxu0 %v4901
        %4968 = vmatmul.mubr.f32.gmra.mrb[0].mxu0 %v4894
        %v4969 = vpop.f32.mrb[0].mxu0
        %v4970 = vadd.f32 0.0, %v4969
        %v4971 = vpop.f32.mrb[0].mxu0
        %v4972 = vadd.f32 0.0, %v4971
        %4973 = vdwg.mxu0
        %4974 = vmatprep.subr.mxu0 %v4793
        %4975 = vmatpush1.msra.mxu0 %v4792
        %4976 = vmatprep.subr.mxu0 %v4797
        %4977 = vmatpush1.msra.mxu0 %v4796
        %4978 = vmatprep.subr.mxu0 %v4801
        %4979 = vmatpush1.msra.mxu0 %v4800
        %4980 = vmatprep.subr.mxu0 %v4805
        %4981 = vmatpush1.msra.mxu0 %v4804
        %4982 = vmatprep.subr.mxu0 %v4809
        %4983 = vmatpush1.msra.mxu0 %v4808
        %4984 = vmatprep.subr.mxu0 %v4813
        %4985 = vmatpush1.msra.mxu0 %v4812
        %4986 = vmatprep.subr.mxu0 %v4817
        %4987 = vmatpush1.msra.mxu0 %v4816
        %4988 = vmatprep.subr.mxu0 %v4821
        %4989 = vmatpush1.msra.mxu0 %v4820
        %4990 = vmatprep.subr.mxu0 %v4825
        %4991 = vmatpush1.msra.mxu0 %v4824
        %4992 = vmatprep.subr.mxu0 %v4829
        %4993 = vmatpush1.msra.mxu0 %v4828
        %4994 = vmatprep.subr.mxu0 %v4833
        %4995 = vmatpush1.msra.mxu0 %v4832
        %4996 = vmatprep.subr.mxu0 %v4837
        %4997 = vmatpush1.msra.mxu0 %v4836
        %4998 = vmatprep.subr.mxu0 %v4841
        %4999 = vmatpush1.msra.mxu0 %v4840
        %5000 = vmatprep.subr.mxu0 %v4845
        %5001 = vmatpush1.msra.mxu0 %v4844
        %5002 = vmatprep.subr.mxu0 %v4849
        %5003 = vmatpush1.msra.mxu0 %v4848
        %5004 = vmatprep.subr.mxu0 %v4853
        %5005 = vmatpush1.msra.mxu0 %v4852
        %5006 = vmatprep.subr.mxu0 %v4857
        %5007 = vmatpush1.msra.mxu0 %v4856
        %5008 = vmatprep.subr.mxu0 %v4861
        %5009 = vmatpush1.msra.mxu0 %v4860
        %5010 = vmatprep.subr.mxu0 %v4865
        %5011 = vmatpush1.msra.mxu0 %v4864
        %5012 = vmatprep.subr.mxu0 %v4869
        %5013 = vmatpush1.msra.mxu0 %v4868
        %5014 = vmatprep.subr.mxu0 %v4873
        %5015 = vmatpush1.msra.mxu0 %v4872
        %5016 = vmatprep.subr.mxu0 %v4877
        %5017 = vmatpush1.msra.mxu0 %v4876
        %5018 = vmatprep.subr.mxu0 %v4881
        %5019 = vmatpush1.msra.mxu0 %v4880
        %5020 = vmatprep.subr.mxu0 %v4885
        %5021 = vmatpush1.msra.mxu0 %v4884
        %5022 = vmatprep.subr.mxu0 %v4889
        %5023 = vmatpush1.msra.mxu0 %v4888
        %5024 = vmatprep.subr.mxu0 0.0
        %5025 = vmatpush1.msra.mxu0 0.0
        %5026 = vmatprep.subr.mxu0 0.0
        %5027 = vmatpush1.msra.mxu0 0.0
        %5028 = vmatprep.subr.mxu0 0.0
        %5029 = vmatpush1.msra.mxu0 0.0
        %5030 = vmatprep.subr.mxu0 0.0
        %5031 = vmatpush1.msra.mxu0 0.0
        %5032 = vmatprep.subr.mxu0 0.0
        %5033 = vmatpush1.msra.mxu0 0.0
        %5034 = vmatprep.subr.mxu0 0.0
        %5035 = vmatpush1.msra.mxu0 0.0
        %5036 = vmatprep.subr.mxu0 0.0
        %5037 = vmatpush1.msra.mxu0 0.0
        %5038 = vmatprep.mubr.f32.mxu0 %v4901
        %5039 = vmatmul.mubr.f32.gmra.mrb[0].mxu0 %v4894
        %v5040 = vpop.f32.mrb[0].mxu0
        %v5041 = vadd.f32 0.0, %v5040
        %v5042 = vpop.f32.mrb[0].mxu0
        %v5043 = vadd.f32 0.0, %v5042
        %5044 = vdwg.mxu0
        %v5049 = vcombine.low %v4970, %v4972
        %v5050 = vcombine.low %v5041, %v5043
        %v5052 = vunpack.c.l.s4 1966171168
        %v5053 = vunpack.c.0.s8 %v5052
        %v5054 = vlaneseq
        %v5055 = vshrl.u32 %v5054, 7
        %v5056 = vsub.s32 %v5053, %v5055
        %v5057 = vrot.slane %v5049, %v5056
        %v5059 = vunpack.c.l.s4 1966171168
        %v5060 = vunpack.c.0.s8 %v5059
        %v5061 = vlaneseq
        %v5062 = vshrl.u32 %v5061, 7
        %v5063 = vsub.s32 %v5060, %v5062
        %v5064 = vrot.slane %v5050, %v5063
        %v5065 = vcombine.low %v5057, %v5064
        %v5067 = vunpack.c.l.s4 1966171168
        %v5068 = vunpack.c.0.s8 %v5067
        %v5069 = vlaneseq
        %v5070 = vshrl.u32 %v5069, 7
        %v5071 = vsub.s32 %v5068, %v5070
        %v5072 = vrot.slane %v5065, %v5071
        %v5074 = vadd.f32 %v4788, %v5072
        %s5075 = scalar_lea.vmem [#allocation3], 1
        %v5076 = vld [vmem:[%s5075] ss:$4 sm:$0x3]
        %s5077 = scalar_lea.vmem %s13, 800
        %v5078 = vld [vmem:[%s5077] sm:$0xff]
        %v5079 = vld [vmem:[%s5077 + $0x8] sm:$0xff]
        %v5080 = vld [vmem:[%s5077 + $0x10] sm:$0xff]
        %v5081 = vld [vmem:[%s5077 + $0x18] sm:$0xff]
        %v5082 = vld [vmem:[%s5077 + $0x20] sm:$0xff]
        %v5083 = vld [vmem:[%s5077 + $0x28] sm:$0xff]
        %v5084 = vld [vmem:[%s5077 + $0x30] sm:$0xff]
        %v5085 = vld [vmem:[%s5077 + $0x38] sm:$0xff]
        %v5086 = vld [vmem:[%s5077 + $0x40] sm:$0xff]
        %v5087 = vld [vmem:[%s5077 + $0x48] sm:$0xff]
        %v5088 = vld [vmem:[%s5077 + $0x50] sm:$0xff]
        %v5089 = vld [vmem:[%s5077 + $0x58] sm:$0xff]
        %v5090 = vld [vmem:[%s5077 + $0x60] sm:$0xff]
        %v5091 = vld [vmem:[%s5077 + $0x68] sm:$0xff]
        %v5092 = vld [vmem:[%s5077 + $0x70] sm:$0xff]
        %v5093 = vld [vmem:[%s5077 + $0x78] sm:$0xff]
        %v5094 = vld [vmem:[%s5077 + $0x80] sm:$0xff]
        %v5095 = vld [vmem:[%s5077 + $0x88] sm:$0xff]
        %v5096 = vld [vmem:[%s5077 + $0x90] sm:$0xff]
        %v5097 = vld [vmem:[%s5077 + $0x98] sm:$0xff]
        %v5098 = vld [vmem:[%s5077 + $0xa0] sm:$0xff]
        %v5099 = vld [vmem:[%s5077 + $0xa8] sm:$0xff]
        %v5100 = vld [vmem:[%s5077 + $0xb0] sm:$0xff]
        %v5101 = vld [vmem:[%s5077 + $0xb8] sm:$0xff]
        %v5102 = vld [vmem:[%s5077 + $0xc0] sm:$0xff]
        %v5103 = vld [vmem:[%s5077 + $0xc8] sm:$0xff]
        %v5104 = vld [vmem:[%s5077 + $0xd0] sm:$0xff]
        %v5105 = vld [vmem:[%s5077 + $0xd8] sm:$0xff]
        %v5106 = vld [vmem:[%s5077 + $0xe0] sm:$0xff]
        %v5107 = vld [vmem:[%s5077 + $0xe8] sm:$0xff]
        %v5108 = vld [vmem:[%s5077 + $0xf0] sm:$0xff]
        %v5109 = vld [vmem:[%s5077 + $0xf8] sm:$0xff]
        %v5110 = vld [vmem:[%s5077 + $0x100] sm:$0xff]
        %v5111 = vld [vmem:[%s5077 + $0x108] sm:$0xff]
        %v5112 = vld [vmem:[%s5077 + $0x110] sm:$0xff]
        %v5113 = vld [vmem:[%s5077 + $0x118] sm:$0xff]
        %v5114 = vld [vmem:[%s5077 + $0x120] sm:$0xff]
        %v5115 = vld [vmem:[%s5077 + $0x128] sm:$0xff]
        %v5116 = vld [vmem:[%s5077 + $0x130] sm:$0xff]
        %v5117 = vld [vmem:[%s5077 + $0x138] sm:$0xff]
        %v5118 = vld [vmem:[%s5077 + $0x140] sm:$0xff]
        %v5119 = vld [vmem:[%s5077 + $0x148] sm:$0xff]
        %v5120 = vld [vmem:[%s5077 + $0x150] sm:$0xff]
        %v5121 = vld [vmem:[%s5077 + $0x158] sm:$0xff]
        %v5122 = vld [vmem:[%s5077 + $0x160] sm:$0xff]
        %v5123 = vld [vmem:[%s5077 + $0x168] sm:$0xff]
        %v5124 = vld [vmem:[%s5077 + $0x170] sm:$0xff]
        %v5125 = vld [vmem:[%s5077 + $0x178] sm:$0xff]
        %v5126 = vld [vmem:[%s5077 + $0x180] sm:$0xff]
        %v5127 = vld [vmem:[%s5077 + $0x188] sm:$0xff]
        %v5128 = vld [vmem:[%s5077 + $0x190] sm:$0xff]
        %v5129 = vld [vmem:[%s5077 + $0x198] sm:$0xff]
        %v5130 = vld [vmem:[%s5077 + $0x1a0] sm:$0xff]
        %v5131 = vld [vmem:[%s5077 + $0x1a8] sm:$0xff]
        %v5132 = vld [vmem:[%s5077 + $0x1b0] sm:$0xff]
        %v5133 = vld [vmem:[%s5077 + $0x1b8] sm:$0xff]
        %v5134 = vld [vmem:[%s5077 + $0x1c0] sm:$0xff]
        %v5135 = vld [vmem:[%s5077 + $0x1c8] sm:$0xff]
        %v5136 = vld [vmem:[%s5077 + $0x1d0] sm:$0xff]
        %v5137 = vld [vmem:[%s5077 + $0x1d8] sm:$0xff]
        %v5138 = vld [vmem:[%s5077 + $0x1e0] sm:$0xff]
        %v5139 = vld [vmem:[%s5077 + $0x1e8] sm:$0xff]
        %v5140 = vld [vmem:[%s5077 + $0x1f0] sm:$0xff]
        %v5141 = vld [vmem:[%s5077 + $0x1f8] sm:$0xff]
        %v5142 = vld [vmem:[%s5077 + $0x200] sm:$0xff]
        %v5143 = vld [vmem:[%s5077 + $0x208] sm:$0xff]
        %v5144 = vld [vmem:[%s5077 + $0x210] sm:$0xff]
        %v5145 = vld [vmem:[%s5077 + $0x218] sm:$0xff]
        %v5146 = vld [vmem:[%s5077 + $0x220] sm:$0xff]
        %v5147 = vld [vmem:[%s5077 + $0x228] sm:$0xff]
        %v5148 = vld [vmem:[%s5077 + $0x230] sm:$0xff]
        %v5149 = vld [vmem:[%s5077 + $0x238] sm:$0xff]
        %v5150 = vld [vmem:[%s5077 + $0x240] sm:$0xff]
        %v5151 = vld [vmem:[%s5077 + $0x248] sm:$0xff]
        %v5152 = vld [vmem:[%s5077 + $0x250] sm:$0xff]
        %v5153 = vld [vmem:[%s5077 + $0x258] sm:$0xff]
        %v5154 = vld [vmem:[%s5077 + $0x260] sm:$0xff]
        %v5155 = vld [vmem:[%s5077 + $0x268] sm:$0xff]
        %v5156 = vld [vmem:[%s5077 + $0x270] sm:$0xff]
        %v5157 = vld [vmem:[%s5077 + $0x278] sm:$0xff]
        %v5158 = vld [vmem:[%s5077 + $0x280] sm:$0xff]
        %v5159 = vld [vmem:[%s5077 + $0x288] sm:$0xff]
        %v5160 = vld [vmem:[%s5077 + $0x290] sm:$0xff]
        %v5161 = vld [vmem:[%s5077 + $0x298] sm:$0xff]
        %v5162 = vld [vmem:[%s5077 + $0x2a0] sm:$0xff]
        %v5163 = vld [vmem:[%s5077 + $0x2a8] sm:$0xff]
        %v5164 = vld [vmem:[%s5077 + $0x2b0] sm:$0xff]
        %v5165 = vld [vmem:[%s5077 + $0x2b8] sm:$0xff]
        %v5166 = vld [vmem:[%s5077 + $0x2c0] sm:$0xff]
        %v5167 = vld [vmem:[%s5077 + $0x2c8] sm:$0xff]
        %v5168 = vld [vmem:[%s5077 + $0x2d0] sm:$0xff]
        %v5169 = vld [vmem:[%s5077 + $0x2d8] sm:$0xff]
        %v5170 = vld [vmem:[%s5077 + $0x2e0] sm:$0xff]
        %v5171 = vld [vmem:[%s5077 + $0x2e8] sm:$0xff]
        %v5172 = vld [vmem:[%s5077 + $0x2f0] sm:$0xff]
        %v5173 = vld [vmem:[%s5077 + $0x2f8] sm:$0xff]
        %v5174 = vld [vmem:[%s5077 + $0x300] sm:$0xff]
        %v5175 = vld [vmem:[%s5077 + $0x308] sm:$0xff]
        %v5176 = vld [vmem:[%s5077 + $0x310] sm:$0xff]
        %v5177 = vld [vmem:[%s5077 + $0x318] sm:$0xff]
        %v5179 = vlaneseq
        %v5180 = vshrl.u32 %v5179, 7
        %v5181 = vsub.s32 0, %v5180
        %v5182 = vrot.slane %v5076, %v5181
        %v5183 = vlaneseq
        %v5184 = vshrl.u32 %v5183, 7
        %v5185 = vsub.s32 1, %v5184
        %v5186 = vrot.slane %v5076, %v5185
        %v5188 = vsel %vm4900, %v5186, 0
        %5190 = vmatprep.subr.mxu0 %v5079
        %5191 = vmatpush1.msra.mxu0 %v5078
        %5192 = vmatprep.subr.mxu0 %v5083
        %5193 = vmatpush1.msra.mxu0 %v5082
        %5194 = vmatprep.subr.mxu0 %v5087
        %5195 = vmatpush1.msra.mxu0 %v5086
        %5196 = vmatprep.subr.mxu0 %v5091
        %5197 = vmatpush1.msra.mxu0 %v5090
        %5198 = vmatprep.subr.mxu0 %v5095
        %5199 = vmatpush1.msra.mxu0 %v5094
        %5200 = vmatprep.subr.mxu0 %v5099
        %5201 = vmatpush1.msra.mxu0 %v5098
        %5202 = vmatprep.subr.mxu0 %v5103
        %5203 = vmatpush1.msra.mxu0 %v5102
        %5204 = vmatprep.subr.mxu0 %v5107
        %5205 = vmatpush1.msra.mxu0 %v5106
        %5206 = vmatprep.subr.mxu0 %v5111
        %5207 = vmatpush1.msra.mxu0 %v5110
        %5208 = vmatprep.subr.mxu0 %v5115
        %5209 = vmatpush1.msra.mxu0 %v5114
        %5210 = vmatprep.subr.mxu0 %v5119
        %5211 = vmatpush1.msra.mxu0 %v5118
        %5212 = vmatprep.subr.mxu0 %v5123
        %5213 = vmatpush1.msra.mxu0 %v5122
        %5214 = vmatprep.subr.mxu0 %v5127
        %5215 = vmatpush1.msra.mxu0 %v5126
        %5216 = vmatprep.subr.mxu0 %v5131
        %5217 = vmatpush1.msra.mxu0 %v5130
        %5218 = vmatprep.subr.mxu0 %v5135
        %5219 = vmatpush1.msra.mxu0 %v5134
        %5220 = vmatprep.subr.mxu0 %v5139
        %5221 = vmatpush1.msra.mxu0 %v5138
        %5222 = vmatprep.subr.mxu0 %v5143
        %5223 = vmatpush1.msra.mxu0 %v5142
        %5224 = vmatprep.subr.mxu0 %v5147
        %5225 = vmatpush1.msra.mxu0 %v5146
        %5226 = vmatprep.subr.mxu0 %v5151
        %5227 = vmatpush1.msra.mxu0 %v5150
        %5228 = vmatprep.subr.mxu0 %v5155
        %5229 = vmatpush1.msra.mxu0 %v5154
        %5230 = vmatprep.subr.mxu0 %v5159
        %5231 = vmatpush1.msra.mxu0 %v5158
        %5232 = vmatprep.subr.mxu0 %v5163
        %5233 = vmatpush1.msra.mxu0 %v5162
        %5234 = vmatprep.subr.mxu0 %v5167
        %5235 = vmatpush1.msra.mxu0 %v5166
        %5236 = vmatprep.subr.mxu0 %v5171
        %5237 = vmatpush1.msra.mxu0 %v5170
        %5238 = vmatprep.subr.mxu0 %v5175
        %5239 = vmatpush1.msra.mxu0 %v5174
        %5240 = vmatprep.subr.mxu0 0.0
        %5241 = vmatpush1.msra.mxu0 0.0
        %5242 = vmatprep.subr.mxu0 0.0
        %5243 = vmatpush1.msra.mxu0 0.0
        %5244 = vmatprep.subr.mxu0 0.0
        %5245 = vmatpush1.msra.mxu0 0.0
        %5246 = vmatprep.subr.mxu0 0.0
        %5247 = vmatpush1.msra.mxu0 0.0
        %5248 = vmatprep.subr.mxu0 0.0
        %5249 = vmatpush1.msra.mxu0 0.0
        %5250 = vmatprep.subr.mxu0 0.0
        %5251 = vmatpush1.msra.mxu0 0.0
        %5252 = vmatprep.subr.mxu0 0.0
        %5253 = vmatpush1.msra.mxu0 0.0
        %5254 = vmatprep.mubr.f32.mxu0 %v5188
        %5255 = vmatmul.mubr.f32.gmra.mrb[0].mxu0 %v5182
        %v5256 = vpop.f32.mrb[0].mxu0
        %v5257 = vadd.f32 0.0, %v5256
        %v5258 = vpop.f32.mrb[0].mxu0
        %v5259 = vadd.f32 0.0, %v5258
        %5260 = vdwg.mxu0
        %5261 = vmatprep.subr.mxu0 %v5081
        %5262 = vmatpush1.msra.mxu0 %v5080
        %5263 = vmatprep.subr.mxu0 %v5085
        %5264 = vmatpush1.msra.mxu0 %v5084
        %5265 = vmatprep.subr.mxu0 %v5089
        %5266 = vmatpush1.msra.mxu0 %v5088
        %5267 = vmatprep.subr.mxu0 %v5093
        %5268 = vmatpush1.msra.mxu0 %v5092
        %5269 = vmatprep.subr.mxu0 %v5097
        %5270 = vmatpush1.msra.mxu0 %v5096
        %5271 = vmatprep.subr.mxu0 %v5101
        %5272 = vmatpush1.msra.mxu0 %v5100
        %5273 = vmatprep.subr.mxu0 %v5105
        %5274 = vmatpush1.msra.mxu0 %v5104
        %5275 = vmatprep.subr.mxu0 %v5109
        %5276 = vmatpush1.msra.mxu0 %v5108
        %5277 = vmatprep.subr.mxu0 %v5113
        %5278 = vmatpush1.msra.mxu0 %v5112
        %5279 = vmatprep.subr.mxu0 %v5117
        %5280 = vmatpush1.msra.mxu0 %v5116
        %5281 = vmatprep.subr.mxu0 %v5121
        %5282 = vmatpush1.msra.mxu0 %v5120
        %5283 = vmatprep.subr.mxu0 %v5125
        %5284 = vmatpush1.msra.mxu0 %v5124
        %5285 = vmatprep.subr.mxu0 %v5129
        %5286 = vmatpush1.msra.mxu0 %v5128
        %5287 = vmatprep.subr.mxu0 %v5133
        %5288 = vmatpush1.msra.mxu0 %v5132
        %5289 = vmatprep.subr.mxu0 %v5137
        %5290 = vmatpush1.msra.mxu0 %v5136
        %5291 = vmatprep.subr.mxu0 %v5141
        %5292 = vmatpush1.msra.mxu0 %v5140
        %5293 = vmatprep.subr.mxu0 %v5145
        %5294 = vmatpush1.msra.mxu0 %v5144
        %5295 = vmatprep.subr.mxu0 %v5149
        %5296 = vmatpush1.msra.mxu0 %v5148
        %5297 = vmatprep.subr.mxu0 %v5153
        %5298 = vmatpush1.msra.mxu0 %v5152
        %5299 = vmatprep.subr.mxu0 %v5157
        %5300 = vmatpush1.msra.mxu0 %v5156
        %5301 = vmatprep.subr.mxu0 %v5161
        %5302 = vmatpush1.msra.mxu0 %v5160
        %5303 = vmatprep.subr.mxu0 %v5165
        %5304 = vmatpush1.msra.mxu0 %v5164
        %5305 = vmatprep.subr.mxu0 %v5169
        %5306 = vmatpush1.msra.mxu0 %v5168
        %5307 = vmatprep.subr.mxu0 %v5173
        %5308 = vmatpush1.msra.mxu0 %v5172
        %5309 = vmatprep.subr.mxu0 %v5177
        %5310 = vmatpush1.msra.mxu0 %v5176
        %5311 = vmatprep.subr.mxu0 0.0
        %5312 = vmatpush1.msra.mxu0 0.0
        %5313 = vmatprep.subr.mxu0 0.0
        %5314 = vmatpush1.msra.mxu0 0.0
        %5315 = vmatprep.subr.mxu0 0.0
        %5316 = vmatpush1.msra.mxu0 0.0
        %5317 = vmatprep.subr.mxu0 0.0
        %5318 = vmatpush1.msra.mxu0 0.0
        %5319 = vmatprep.subr.mxu0 0.0
        %5320 = vmatpush1.msra.mxu0 0.0
        %5321 = vmatprep.subr.mxu0 0.0
        %5322 = vmatpush1.msra.mxu0 0.0
        %5323 = vmatprep.subr.mxu0 0.0
        %5324 = vmatpush1.msra.mxu0 0.0
        %5325 = vmatprep.mubr.f32.mxu0 %v5188
        %5326 = vmatmul.mubr.f32.gmra.mrb[0].mxu0 %v5182
        %v5327 = vpop.f32.mrb[0].mxu0
        %v5328 = vadd.f32 0.0, %v5327
        %v5329 = vpop.f32.mrb[0].mxu0
        %v5330 = vadd.f32 0.0, %v5329
        %5331 = vdwg.mxu0
        %v5336 = vcombine.low %v5257, %v5259
        %v5337 = vcombine.low %v5328, %v5330
        %v5339 = vunpack.c.l.s4 1966171168
        %v5340 = vunpack.c.0.s8 %v5339
        %v5341 = vlaneseq
        %v5342 = vshrl.u32 %v5341, 7
        %v5343 = vsub.s32 %v5340, %v5342
        %v5344 = vrot.slane %v5336, %v5343
        %v5346 = vunpack.c.l.s4 1966171168
        %v5347 = vunpack.c.0.s8 %v5346
        %v5348 = vlaneseq
        %v5349 = vshrl.u32 %v5348, 7
        %v5350 = vsub.s32 %v5347, %v5349
        %v5351 = vrot.slane %v5337, %v5350
        %v5352 = vcombine.low %v5344, %v5351
        %v5354 = vunpack.c.l.s4 1966171168
        %v5355 = vunpack.c.0.s8 %v5354
        %v5356 = vlaneseq
        %v5357 = vshrl.u32 %v5356, 7
        %v5358 = vsub.s32 %v5355, %v5357
        %v5359 = vrot.slane %v5352, %v5358
        %v5361 = vadd.f32 %v5074, %v5359
        %s5362 = scalar_lea.vmem [#allocation3], 2
        %v5363 = vld [vmem:[%s5362] ss:$4 sm:$0x3]
        %s5364 = scalar_lea.vmem %s13, 1600
        %v5365 = vld [vmem:[%s5364] sm:$0xff]
        %v5366 = vld [vmem:[%s5364 + $0x8] sm:$0xff]
        %v5367 = vld [vmem:[%s5364 + $0x10] sm:$0xff]
        %v5368 = vld [vmem:[%s5364 + $0x18] sm:$0xff]
        %v5369 = vld [vmem:[%s5364 + $0x20] sm:$0xff]
        %v5370 = vld [vmem:[%s5364 + $0x28] sm:$0xff]
        %v5371 = vld [vmem:[%s5364 + $0x30] sm:$0xff]
        %v5372 = vld [vmem:[%s5364 + $0x38] sm:$0xff]
        %v5373 = vld [vmem:[%s5364 + $0x40] sm:$0xff]
        %v5374 = vld [vmem:[%s5364 + $0x48] sm:$0xff]
        %v5375 = vld [vmem:[%s5364 + $0x50] sm:$0xff]
        %v5376 = vld [vmem:[%s5364 + $0x58] sm:$0xff]
        %v5377 = vld [vmem:[%s5364 + $0x60] sm:$0xff]
        %v5378 = vld [vmem:[%s5364 + $0x68] sm:$0xff]
        %v5379 = vld [vmem:[%s5364 + $0x70] sm:$0xff]
        %v5380 = vld [vmem:[%s5364 + $0x78] sm:$0xff]
        %v5381 = vld [vmem:[%s5364 + $0x80] sm:$0xff]
        %v5382 = vld [vmem:[%s5364 + $0x88] sm:$0xff]
        %v5383 = vld [vmem:[%s5364 + $0x90] sm:$0xff]
        %v5384 = vld [vmem:[%s5364 + $0x98] sm:$0xff]
        %v5385 = vld [vmem:[%s5364 + $0xa0] sm:$0xff]
        %v5386 = vld [vmem:[%s5364 + $0xa8] sm:$0xff]
        %v5387 = vld [vmem:[%s5364 + $0xb0] sm:$0xff]
        %v5388 = vld [vmem:[%s5364 + $0xb8] sm:$0xff]
        %v5389 = vld [vmem:[%s5364 + $0xc0] sm:$0xff]
        %v5390 = vld [vmem:[%s5364 + $0xc8] sm:$0xff]
        %v5391 = vld [vmem:[%s5364 + $0xd0] sm:$0xff]
        %v5392 = vld [vmem:[%s5364 + $0xd8] sm:$0xff]
        %v5393 = vld [vmem:[%s5364 + $0xe0] sm:$0xff]
        %v5394 = vld [vmem:[%s5364 + $0xe8] sm:$0xff]
        %v5395 = vld [vmem:[%s5364 + $0xf0] sm:$0xff]
        %v5396 = vld [vmem:[%s5364 + $0xf8] sm:$0xff]
        %v5397 = vld [vmem:[%s5364 + $0x100] sm:$0xff]
        %v5398 = vld [vmem:[%s5364 + $0x108] sm:$0xff]
        %v5399 = vld [vmem:[%s5364 + $0x110] sm:$0xff]
        %v5400 = vld [vmem:[%s5364 + $0x118] sm:$0xff]
        %v5401 = vld [vmem:[%s5364 + $0x120] sm:$0xff]
        %v5402 = vld [vmem:[%s5364 + $0x128] sm:$0xff]
        %v5403 = vld [vmem:[%s5364 + $0x130] sm:$0xff]
        %v5404 = vld [vmem:[%s5364 + $0x138] sm:$0xff]
        %v5405 = vld [vmem:[%s5364 + $0x140] sm:$0xff]
        %v5406 = vld [vmem:[%s5364 + $0x148] sm:$0xff]
        %v5407 = vld [vmem:[%s5364 + $0x150] sm:$0xff]
        %v5408 = vld [vmem:[%s5364 + $0x158] sm:$0xff]
        %v5409 = vld [vmem:[%s5364 + $0x160] sm:$0xff]
        %v5410 = vld [vmem:[%s5364 + $0x168] sm:$0xff]
        %v5411 = vld [vmem:[%s5364 + $0x170] sm:$0xff]
        %v5412 = vld [vmem:[%s5364 + $0x178] sm:$0xff]
        %v5413 = vld [vmem:[%s5364 + $0x180] sm:$0xff]
        %v5414 = vld [vmem:[%s5364 + $0x188] sm:$0xff]
        %v5415 = vld [vmem:[%s5364 + $0x190] sm:$0xff]
        %v5416 = vld [vmem:[%s5364 + $0x198] sm:$0xff]
        %v5417 = vld [vmem:[%s5364 + $0x1a0] sm:$0xff]
        %v5418 = vld [vmem:[%s5364 + $0x1a8] sm:$0xff]
        %v5419 = vld [vmem:[%s5364 + $0x1b0] sm:$0xff]
        %v5420 = vld [vmem:[%s5364 + $0x1b8] sm:$0xff]
        %v5421 = vld [vmem:[%s5364 + $0x1c0] sm:$0xff]
        %v5422 = vld [vmem:[%s5364 + $0x1c8] sm:$0xff]
        %v5423 = vld [vmem:[%s5364 + $0x1d0] sm:$0xff]
        %v5424 = vld [vmem:[%s5364 + $0x1d8] sm:$0xff]
        %v5425 = vld [vmem:[%s5364 + $0x1e0] sm:$0xff]
        %v5426 = vld [vmem:[%s5364 + $0x1e8] sm:$0xff]
        %v5427 = vld [vmem:[%s5364 + $0x1f0] sm:$0xff]
        %v5428 = vld [vmem:[%s5364 + $0x1f8] sm:$0xff]
        %v5429 = vld [vmem:[%s5364 + $0x200] sm:$0xff]
        %v5430 = vld [vmem:[%s5364 + $0x208] sm:$0xff]
        %v5431 = vld [vmem:[%s5364 + $0x210] sm:$0xff]
        %v5432 = vld [vmem:[%s5364 + $0x218] sm:$0xff]
        %v5433 = vld [vmem:[%s5364 + $0x220] sm:$0xff]
        %v5434 = vld [vmem:[%s5364 + $0x228] sm:$0xff]
        %v5435 = vld [vmem:[%s5364 + $0x230] sm:$0xff]
        %v5436 = vld [vmem:[%s5364 + $0x238] sm:$0xff]
        %v5437 = vld [vmem:[%s5364 + $0x240] sm:$0xff]
        %v5438 = vld [vmem:[%s5364 + $0x248] sm:$0xff]
        %v5439 = vld [vmem:[%s5364 + $0x250] sm:$0xff]
        %v5440 = vld [vmem:[%s5364 + $0x258] sm:$0xff]
        %v5441 = vld [vmem:[%s5364 + $0x260] sm:$0xff]
        %v5442 = vld [vmem:[%s5364 + $0x268] sm:$0xff]
        %v5443 = vld [vmem:[%s5364 + $0x270] sm:$0xff]
        %v5444 = vld [vmem:[%s5364 + $0x278] sm:$0xff]
        %v5445 = vld [vmem:[%s5364 + $0x280] sm:$0xff]
        %v5446 = vld [vmem:[%s5364 + $0x288] sm:$0xff]
        %v5447 = vld [vmem:[%s5364 + $0x290] sm:$0xff]
        %v5448 = vld [vmem:[%s5364 + $0x298] sm:$0xff]
        %v5449 = vld [vmem:[%s5364 + $0x2a0] sm:$0xff]
        %v5450 = vld [vmem:[%s5364 + $0x2a8] sm:$0xff]
        %v5451 = vld [vmem:[%s5364 + $0x2b0] sm:$0xff]
        %v5452 = vld [vmem:[%s5364 + $0x2b8] sm:$0xff]
        %v5453 = vld [vmem:[%s5364 + $0x2c0] sm:$0xff]
        %v5454 = vld [vmem:[%s5364 + $0x2c8] sm:$0xff]
        %v5455 = vld [vmem:[%s5364 + $0x2d0] sm:$0xff]
        %v5456 = vld [vmem:[%s5364 + $0x2d8] sm:$0xff]
        %v5457 = vld [vmem:[%s5364 + $0x2e0] sm:$0xff]
        %v5458 = vld [vmem:[%s5364 + $0x2e8] sm:$0xff]
        %v5459 = vld [vmem:[%s5364 + $0x2f0] sm:$0xff]
        %v5460 = vld [vmem:[%s5364 + $0x2f8] sm:$0xff]
        %v5461 = vld [vmem:[%s5364 + $0x300] sm:$0xff]
        %v5462 = vld [vmem:[%s5364 + $0x308] sm:$0xff]
        %v5463 = vld [vmem:[%s5364 + $0x310] sm:$0xff]
        %v5464 = vld [vmem:[%s5364 + $0x318] sm:$0xff]
        %v5466 = vlaneseq
        %v5467 = vshrl.u32 %v5466, 7
        %v5468 = vsub.s32 0, %v5467
        %v5469 = vrot.slane %v5363, %v5468
        %v5470 = vlaneseq
        %v5471 = vshrl.u32 %v5470, 7
        %v5472 = vsub.s32 1, %v5471
        %v5473 = vrot.slane %v5363, %v5472
        %v5475 = vsel %vm4900, %v5473, 0
        %5477 = vmatprep.subr.mxu0 %v5366
        %5478 = vmatpush1.msra.mxu0 %v5365
        %5479 = vmatprep.subr.mxu0 %v5370
        %5480 = vmatpush1.msra.mxu0 %v5369
        %5481 = vmatprep.subr.mxu0 %v5374
        %5482 = vmatpush1.msra.mxu0 %v5373
        %5483 = vmatprep.subr.mxu0 %v5378
        %5484 = vmatpush1.msra.mxu0 %v5377
        %5485 = vmatprep.subr.mxu0 %v5382
        %5486 = vmatpush1.msra.mxu0 %v5381
        %5487 = vmatprep.subr.mxu0 %v5386
        %5488 = vmatpush1.msra.mxu0 %v5385
        %5489 = vmatprep.subr.mxu0 %v5390
        %5490 = vmatpush1.msra.mxu0 %v5389
        %5491 = vmatprep.subr.mxu0 %v5394
        %5492 = vmatpush1.msra.mxu0 %v5393
        %5493 = vmatprep.subr.mxu0 %v5398
        %5494 = vmatpush1.msra.mxu0 %v5397
        %5495 = vmatprep.subr.mxu0 %v5402
        %5496 = vmatpush1.msra.mxu0 %v5401
        %5497 = vmatprep.subr.mxu0 %v5406
        %5498 = vmatpush1.msra.mxu0 %v5405
        %5499 = vmatprep.subr.mxu0 %v5410
        %5500 = vmatpush1.msra.mxu0 %v5409
        %5501 = vmatprep.subr.mxu0 %v5414
        %5502 = vmatpush1.msra.mxu0 %v5413
        %5503 = vmatprep.subr.mxu0 %v5418
        %5504 = vmatpush1.msra.mxu0 %v5417
        %5505 = vmatprep.subr.mxu0 %v5422
        %5506 = vmatpush1.msra.mxu0 %v5421
        %5507 = vmatprep.subr.mxu0 %v5426
        %5508 = vmatpush1.msra.mxu0 %v5425
        %5509 = vmatprep.subr.mxu0 %v5430
        %5510 = vmatpush1.msra.mxu0 %v5429
        %5511 = vmatprep.subr.mxu0 %v5434
        %5512 = vmatpush1.msra.mxu0 %v5433
        %5513 = vmatprep.subr.mxu0 %v5438
        %5514 = vmatpush1.msra.mxu0 %v5437
        %5515 = vmatprep.subr.mxu0 %v5442
        %5516 = vmatpush1.msra.mxu0 %v5441
        %5517 = vmatprep.subr.mxu0 %v5446
        %5518 = vmatpush1.msra.mxu0 %v5445
        %5519 = vmatprep.subr.mxu0 %v5450
        %5520 = vmatpush1.msra.mxu0 %v5449
        %5521 = vmatprep.subr.mxu0 %v5454
        %5522 = vmatpush1.msra.mxu0 %v5453
        %5523 = vmatprep.subr.mxu0 %v5458
        %5524 = vmatpush1.msra.mxu0 %v5457
        %5525 = vmatprep.subr.mxu0 %v5462
        %5526 = vmatpush1.msra.mxu0 %v5461
        %5527 = vmatprep.subr.mxu0 0.0
        %5528 = vmatpush1.msra.mxu0 0.0
        %5529 = vmatprep.subr.mxu0 0.0
        %5530 = vmatpush1.msra.mxu0 0.0
        %5531 = vmatprep.subr.mxu0 0.0
        %5532 = vmatpush1.msra.mxu0 0.0
        %5533 = vmatprep.subr.mxu0 0.0
        %5534 = vmatpush1.msra.mxu0 0.0
        %5535 = vmatprep.subr.mxu0 0.0
        %5536 = vmatpush1.msra.mxu0 0.0
        %5537 = vmatprep.subr.mxu0 0.0
        %5538 = vmatpush1.msra.mxu0 0.0
        %5539 = vmatprep.subr.mxu0 0.0
        %5540 = vmatpush1.msra.mxu0 0.0
        %5541 = vmatprep.mubr.f32.mxu0 %v5475
        %5542 = vmatmul.mubr.f32.gmra.mrb[0].mxu0 %v5469
        %v5543 = vpop.f32.mrb[0].mxu0
        %v5544 = vadd.f32 0.0, %v5543
        %v5545 = vpop.f32.mrb[0].mxu0
        %v5546 = vadd.f32 0.0, %v5545
        %5547 = vdwg.mxu0
        %5548 = vmatprep.subr.mxu0 %v5368
        %5549 = vmatpush1.msra.mxu0 %v5367
        %5550 = vmatprep.subr.mxu0 %v5372
        %5551 = vmatpush1.msra.mxu0 %v5371
        %5552 = vmatprep.subr.mxu0 %v5376
        %5553 = vmatpush1.msra.mxu0 %v5375
        %5554 = vmatprep.subr.mxu0 %v5380
        %5555 = vmatpush1.msra.mxu0 %v5379
        %5556 = vmatprep.subr.mxu0 %v5384
        %5557 = vmatpush1.msra.mxu0 %v5383
        %5558 = vmatprep.subr.mxu0 %v5388
        %5559 = vmatpush1.msra.mxu0 %v5387
        %5560 = vmatprep.subr.mxu0 %v5392
        %5561 = vmatpush1.msra.mxu0 %v5391
        %5562 = vmatprep.subr.mxu0 %v5396
        %5563 = vmatpush1.msra.mxu0 %v5395
        %5564 = vmatprep.subr.mxu0 %v5400
        %5565 = vmatpush1.msra.mxu0 %v5399
        %5566 = vmatprep.subr.mxu0 %v5404
        %5567 = vmatpush1.msra.mxu0 %v5403
        %5568 = vmatprep.subr.mxu0 %v5408
        %5569 = vmatpush1.msra.mxu0 %v5407
        %5570 = vmatprep.subr.mxu0 %v5412
        %5571 = vmatpush1.msra.mxu0 %v5411
        %5572 = vmatprep.subr.mxu0 %v5416
        %5573 = vmatpush1.msra.mxu0 %v5415
        %5574 = vmatprep.subr.mxu0 %v5420
        %5575 = vmatpush1.msra.mxu0 %v5419
        %5576 = vmatprep.subr.mxu0 %v5424
        %5577 = vmatpush1.msra.mxu0 %v5423
        %5578 = vmatprep.subr.mxu0 %v5428
        %5579 = vmatpush1.msra.mxu0 %v5427
        %5580 = vmatprep.subr.mxu0 %v5432
        %5581 = vmatpush1.msra.mxu0 %v5431
        %5582 = vmatprep.subr.mxu0 %v5436
        %5583 = vmatpush1.msra.mxu0 %v5435
        %5584 = vmatprep.subr.mxu0 %v5440
        %5585 = vmatpush1.msra.mxu0 %v5439
        %5586 = vmatprep.subr.mxu0 %v5444
        %5587 = vmatpush1.msra.mxu0 %v5443
        %5588 = vmatprep.subr.mxu0 %v5448
        %5589 = vmatpush1.msra.mxu0 %v5447
        %5590 = vmatprep.subr.mxu0 %v5452
        %5591 = vmatpush1.msra.mxu0 %v5451
        %5592 = vmatprep.subr.mxu0 %v5456
        %5593 = vmatpush1.msra.mxu0 %v5455
        %5594 = vmatprep.subr.mxu0 %v5460
        %5595 = vmatpush1.msra.mxu0 %v5459
        %5596 = vmatprep.subr.mxu0 %v5464
        %5597 = vmatpush1.msra.mxu0 %v5463
        %5598 = vmatprep.subr.mxu0 0.0
        %5599 = vmatpush1.msra.mxu0 0.0
        %5600 = vmatprep.subr.mxu0 0.0
        %5601 = vmatpush1.msra.mxu0 0.0
        %5602 = vmatprep.subr.mxu0 0.0
        %5603 = vmatpush1.msra.mxu0 0.0
        %5604 = vmatprep.subr.mxu0 0.0
        %5605 = vmatpush1.msra.mxu0 0.0
        %5606 = vmatprep.subr.mxu0 0.0
        %5607 = vmatpush1.msra.mxu0 0.0
        %5608 = vmatprep.subr.mxu0 0.0
        %5609 = vmatpush1.msra.mxu0 0.0
        %5610 = vmatprep.subr.mxu0 0.0
        %5611 = vmatpush1.msra.mxu0 0.0
        %5612 = vmatprep.mubr.f32.mxu0 %v5475
        %5613 = vmatmul.mubr.f32.gmra.mrb[0].mxu0 %v5469
        %v5614 = vpop.f32.mrb[0].mxu0
        %v5615 = vadd.f32 0.0, %v5614
        %v5616 = vpop.f32.mrb[0].mxu0
        %v5617 = vadd.f32 0.0, %v5616
        %5618 = vdwg.mxu0
        %v5623 = vcombine.low %v5544, %v5546
        %v5624 = vcombine.low %v5615, %v5617
        %v5626 = vunpack.c.l.s4 1966171168
        %v5627 = vunpack.c.0.s8 %v5626
        %v5628 = vlaneseq
        %v5629 = vshrl.u32 %v5628, 7
        %v5630 = vsub.s32 %v5627, %v5629
        %v5631 = vrot.slane %v5623, %v5630
        %v5633 = vunpack.c.l.s4 1966171168
        %v5634 = vunpack.c.0.s8 %v5633
        %v5635 = vlaneseq
        %v5636 = vshrl.u32 %v5635, 7
        %v5637 = vsub.s32 %v5634, %v5636
        %v5638 = vrot.slane %v5624, %v5637
        %v5639 = vcombine.low %v5631, %v5638
        %v5641 = vunpack.c.l.s4 1966171168
        %v5642 = vunpack.c.0.s8 %v5641
        %v5643 = vlaneseq
        %v5644 = vshrl.u32 %v5643, 7
        %v5645 = vsub.s32 %v5642, %v5644
        %v5646 = vrot.slane %v5639, %v5645
        %v5648 = vadd.f32 %v5361, %v5646
        %s5649 = scalar_lea.vmem [#allocation3], 3
        %v5650 = vld [vmem:[%s5649] ss:$4 sm:$0x3]
        %s5651 = scalar_lea.vmem %s13, 2400
        %v5652 = vld [vmem:[%s5651] sm:$0xff]
        %v5653 = vld [vmem:[%s5651 + $0x8] sm:$0xff]
        %v5654 = vld [vmem:[%s5651 + $0x10] sm:$0xff]
        %v5655 = vld [vmem:[%s5651 + $0x18] sm:$0xff]
        %v5656 = vld [vmem:[%s5651 + $0x20] sm:$0xff]
        %v5657 = vld [vmem:[%s5651 + $0x28] sm:$0xff]
        %v5658 = vld [vmem:[%s5651 + $0x30] sm:$0xff]
        %v5659 = vld [vmem:[%s5651 + $0x38] sm:$0xff]
        %v5660 = vld [vmem:[%s5651 + $0x40] sm:$0xff]
        %v5661 = vld [vmem:[%s5651 + $0x48] sm:$0xff]
        %v5662 = vld [vmem:[%s5651 + $0x50] sm:$0xff]
        %v5663 = vld [vmem:[%s5651 + $0x58] sm:$0xff]
        %v5664 = vld [vmem:[%s5651 + $0x60] sm:$0xff]
        %v5665 = vld [vmem:[%s5651 + $0x68] sm:$0xff]
        %v5666 = vld [vmem:[%s5651 + $0x70] sm:$0xff]
        %v5667 = vld [vmem:[%s5651 + $0x78] sm:$0xff]
        %v5668 = vld [vmem:[%s5651 + $0x80] sm:$0xff]
        %v5669 = vld [vmem:[%s5651 + $0x88] sm:$0xff]
        %v5670 = vld [vmem:[%s5651 + $0x90] sm:$0xff]
        %v5671 = vld [vmem:[%s5651 + $0x98] sm:$0xff]
        %v5672 = vld [vmem:[%s5651 + $0xa0] sm:$0xff]
        %v5673 = vld [vmem:[%s5651 + $0xa8] sm:$0xff]
        %v5674 = vld [vmem:[%s5651 + $0xb0] sm:$0xff]
        %v5675 = vld [vmem:[%s5651 + $0xb8] sm:$0xff]
        %v5676 = vld [vmem:[%s5651 + $0xc0] sm:$0xff]
        %v5677 = vld [vmem:[%s5651 + $0xc8] sm:$0xff]
        %v5678 = vld [vmem:[%s5651 + $0xd0] sm:$0xff]
        %v5679 = vld [vmem:[%s5651 + $0xd8] sm:$0xff]
        %v5680 = vld [vmem:[%s5651 + $0xe0] sm:$0xff]
        %v5681 = vld [vmem:[%s5651 + $0xe8] sm:$0xff]
        %v5682 = vld [vmem:[%s5651 + $0xf0] sm:$0xff]
        %v5683 = vld [vmem:[%s5651 + $0xf8] sm:$0xff]
        %v5684 = vld [vmem:[%s5651 + $0x100] sm:$0xff]
        %v5685 = vld [vmem:[%s5651 + $0x108] sm:$0xff]
        %v5686 = vld [vmem:[%s5651 + $0x110] sm:$0xff]
        %v5687 = vld [vmem:[%s5651 + $0x118] sm:$0xff]
        %v5688 = vld [vmem:[%s5651 + $0x120] sm:$0xff]
        %v5689 = vld [vmem:[%s5651 + $0x128] sm:$0xff]
        %v5690 = vld [vmem:[%s5651 + $0x130] sm:$0xff]
        %v5691 = vld [vmem:[%s5651 + $0x138] sm:$0xff]
        %v5692 = vld [vmem:[%s5651 + $0x140] sm:$0xff]
        %v5693 = vld [vmem:[%s5651 + $0x148] sm:$0xff]
        %v5694 = vld [vmem:[%s5651 + $0x150] sm:$0xff]
        %v5695 = vld [vmem:[%s5651 + $0x158] sm:$0xff]
        %v5696 = vld [vmem:[%s5651 + $0x160] sm:$0xff]
        %v5697 = vld [vmem:[%s5651 + $0x168] sm:$0xff]
        %v5698 = vld [vmem:[%s5651 + $0x170] sm:$0xff]
        %v5699 = vld [vmem:[%s5651 + $0x178] sm:$0xff]
        %v5700 = vld [vmem:[%s5651 + $0x180] sm:$0xff]
        %v5701 = vld [vmem:[%s5651 + $0x188] sm:$0xff]
        %v5702 = vld [vmem:[%s5651 + $0x190] sm:$0xff]
        %v5703 = vld [vmem:[%s5651 + $0x198] sm:$0xff]
        %v5704 = vld [vmem:[%s5651 + $0x1a0] sm:$0xff]
        %v5705 = vld [vmem:[%s5651 + $0x1a8] sm:$0xff]
        %v5706 = vld [vmem:[%s5651 + $0x1b0] sm:$0xff]
        %v5707 = vld [vmem:[%s5651 + $0x1b8] sm:$0xff]
        %v5708 = vld [vmem:[%s5651 + $0x1c0] sm:$0xff]
        %v5709 = vld [vmem:[%s5651 + $0x1c8] sm:$0xff]
        %v5710 = vld [vmem:[%s5651 + $0x1d0] sm:$0xff]
        %v5711 = vld [vmem:[%s5651 + $0x1d8] sm:$0xff]
        %v5712 = vld [vmem:[%s5651 + $0x1e0] sm:$0xff]
        %v5713 = vld [vmem:[%s5651 + $0x1e8] sm:$0xff]
        %v5714 = vld [vmem:[%s5651 + $0x1f0] sm:$0xff]
        %v5715 = vld [vmem:[%s5651 + $0x1f8] sm:$0xff]
        %v5716 = vld [vmem:[%s5651 + $0x200] sm:$0xff]
        %v5717 = vld [vmem:[%s5651 + $0x208] sm:$0xff]
        %v5718 = vld [vmem:[%s5651 + $0x210] sm:$0xff]
        %v5719 = vld [vmem:[%s5651 + $0x218] sm:$0xff]
        %v5720 = vld [vmem:[%s5651 + $0x220] sm:$0xff]
        %v5721 = vld [vmem:[%s5651 + $0x228] sm:$0xff]
        %v5722 = vld [vmem:[%s5651 + $0x230] sm:$0xff]
        %v5723 = vld [vmem:[%s5651 + $0x238] sm:$0xff]
        %v5724 = vld [vmem:[%s5651 + $0x240] sm:$0xff]
        %v5725 = vld [vmem:[%s5651 + $0x248] sm:$0xff]
        %v5726 = vld [vmem:[%s5651 + $0x250] sm:$0xff]
        %v5727 = vld [vmem:[%s5651 + $0x258] sm:$0xff]
        %v5728 = vld [vmem:[%s5651 + $0x260] sm:$0xff]
        %v5729 = vld [vmem:[%s5651 + $0x268] sm:$0xff]
        %v5730 = vld [vmem:[%s5651 + $0x270] sm:$0xff]
        %v5731 = vld [vmem:[%s5651 + $0x278] sm:$0xff]
        %v5732 = vld [vmem:[%s5651 + $0x280] sm:$0xff]
        %v5733 = vld [vmem:[%s5651 + $0x288] sm:$0xff]
        %v5734 = vld [vmem:[%s5651 + $0x290] sm:$0xff]
        %v5735 = vld [vmem:[%s5651 + $0x298] sm:$0xff]
        %v5736 = vld [vmem:[%s5651 + $0x2a0] sm:$0xff]
        %v5737 = vld [vmem:[%s5651 + $0x2a8] sm:$0xff]
        %v5738 = vld [vmem:[%s5651 + $0x2b0] sm:$0xff]
        %v5739 = vld [vmem:[%s5651 + $0x2b8] sm:$0xff]
        %v5740 = vld [vmem:[%s5651 + $0x2c0] sm:$0xff]
        %v5741 = vld [vmem:[%s5651 + $0x2c8] sm:$0xff]
        %v5742 = vld [vmem:[%s5651 + $0x2d0] sm:$0xff]
        %v5743 = vld [vmem:[%s5651 + $0x2d8] sm:$0xff]
        %v5744 = vld [vmem:[%s5651 + $0x2e0] sm:$0xff]
        %v5745 = vld [vmem:[%s5651 + $0x2e8] sm:$0xff]
        %v5746 = vld [vmem:[%s5651 + $0x2f0] sm:$0xff]
        %v5747 = vld [vmem:[%s5651 + $0x2f8] sm:$0xff]
        %v5748 = vld [vmem:[%s5651 + $0x300] sm:$0xff]
        %v5749 = vld [vmem:[%s5651 + $0x308] sm:$0xff]
        %v5750 = vld [vmem:[%s5651 + $0x310] sm:$0xff]
        %v5751 = vld [vmem:[%s5651 + $0x318] sm:$0xff]
        %v5753 = vlaneseq
        %v5754 = vshrl.u32 %v5753, 7
        %v5755 = vsub.s32 0, %v5754
        %v5756 = vrot.slane %v5650, %v5755
        %v5757 = vlaneseq
        %v5758 = vshrl.u32 %v5757, 7
        %v5759 = vsub.s32 1, %v5758
        %v5760 = vrot.slane %v5650, %v5759
        %v5762 = vsel %vm4900, %v5760, 0
        %5764 = vmatprep.subr.mxu0 %v5653
        %5765 = vmatpush1.msra.mxu0 %v5652
        %5766 = vmatprep.subr.mxu0 %v5657
        %5767 = vmatpush1.msra.mxu0 %v5656
        %5768 = vmatprep.subr.mxu0 %v5661
        %5769 = vmatpush1.msra.mxu0 %v5660
        %5770 = vmatprep.subr.mxu0 %v5665
        %5771 = vmatpush1.msra.mxu0 %v5664
        %5772 = vmatprep.subr.mxu0 %v5669
        %5773 = vmatpush1.msra.mxu0 %v5668
        %5774 = vmatprep.subr.mxu0 %v5673
        %5775 = vmatpush1.msra.mxu0 %v5672
        %5776 = vmatprep.subr.mxu0 %v5677
        %5777 = vmatpush1.msra.mxu0 %v5676
        %5778 = vmatprep.subr.mxu0 %v5681
        %5779 = vmatpush1.msra.mxu0 %v5680
        %5780 = vmatprep.subr.mxu0 %v5685
        %5781 = vmatpush1.msra.mxu0 %v5684
        %5782 = vmatprep.subr.mxu0 %v5689
        %5783 = vmatpush1.msra.mxu0 %v5688
        %5784 = vmatprep.subr.mxu0 %v5693
        %5785 = vmatpush1.msra.mxu0 %v5692
        %5786 = vmatprep.subr.mxu0 %v5697
        %5787 = vmatpush1.msra.mxu0 %v5696
        %5788 = vmatprep.subr.mxu0 %v5701
        %5789 = vmatpush1.msra.mxu0 %v5700
        %5790 = vmatprep.subr.mxu0 %v5705
        %5791 = vmatpush1.msra.mxu0 %v5704
        %5792 = vmatprep.subr.mxu0 %v5709
        %5793 = vmatpush1.msra.mxu0 %v5708
        %5794 = vmatprep.subr.mxu0 %v5713
        %5795 = vmatpush1.msra.mxu0 %v5712
        %5796 = vmatprep.subr.mxu0 %v5717
        %5797 = vmatpush1.msra.mxu0 %v5716
        %5798 = vmatprep.subr.mxu0 %v5721
        %5799 = vmatpush1.msra.mxu0 %v5720
        %5800 = vmatprep.subr.mxu0 %v5725
        %5801 = vmatpush1.msra.mxu0 %v5724
        %5802 = vmatprep.subr.mxu0 %v5729
        %5803 = vmatpush1.msra.mxu0 %v5728
        %5804 = vmatprep.subr.mxu0 %v5733
        %5805 = vmatpush1.msra.mxu0 %v5732
        %5806 = vmatprep.subr.mxu0 %v5737
        %5807 = vmatpush1.msra.mxu0 %v5736
        %5808 = vmatprep.subr.mxu0 %v5741
        %5809 = vmatpush1.msra.mxu0 %v5740
        %5810 = vmatprep.subr.mxu0 %v5745
        %5811 = vmatpush1.msra.mxu0 %v5744
        %5812 = vmatprep.subr.mxu0 %v5749
        %5813 = vmatpush1.msra.mxu0 %v5748
        %5814 = vmatprep.subr.mxu0 0.0
        %5815 = vmatpush1.msra.mxu0 0.0
        %5816 = vmatprep.subr.mxu0 0.0
        %5817 = vmatpush1.msra.mxu0 0.0
        %5818 = vmatprep.subr.mxu0 0.0
        %5819 = vmatpush1.msra.mxu0 0.0
        %5820 = vmatprep.subr.mxu0 0.0
        %5821 = vmatpush1.msra.mxu0 0.0
        %5822 = vmatprep.subr.mxu0 0.0
        %5823 = vmatpush1.msra.mxu0 0.0
        %5824 = vmatprep.subr.mxu0 0.0
        %5825 = vmatpush1.msra.mxu0 0.0
        %5826 = vmatprep.subr.mxu0 0.0
        %5827 = vmatpush1.msra.mxu0 0.0
        %5828 = vmatprep.mubr.f32.mxu0 %v5762
        %5829 = vmatmul.mubr.f32.gmra.mrb[0].mxu0 %v5756
        %v5830 = vpop.f32.mrb[0].mxu0
        %v5831 = vadd.f32 0.0, %v5830
        %v5832 = vpop.f32.mrb[0].mxu0
        %v5833 = vadd.f32 0.0, %v5832
        %5834 = vdwg.mxu0
        %5835 = vmatprep.subr.mxu0 %v5655
        %5836 = vmatpush1.msra.mxu0 %v5654
        %5837 = vmatprep.subr.mxu0 %v5659
        %5838 = vmatpush1.msra.mxu0 %v5658
        %5839 = vmatprep.subr.mxu0 %v5663
        %5840 = vmatpush1.msra.mxu0 %v5662
        %5841 = vmatprep.subr.mxu0 %v5667
        %5842 = vmatpush1.msra.mxu0 %v5666
        %5843 = vmatprep.subr.mxu0 %v5671
        %5844 = vmatpush1.msra.mxu0 %v5670
        %5845 = vmatprep.subr.mxu0 %v5675
        %5846 = vmatpush1.msra.mxu0 %v5674
        %5847 = vmatprep.subr.mxu0 %v5679
        %5848 = vmatpush1.msra.mxu0 %v5678
        %5849 = vmatprep.subr.mxu0 %v5683
        %5850 = vmatpush1.msra.mxu0 %v5682
        %5851 = vmatprep.subr.mxu0 %v5687
        %5852 = vmatpush1.msra.mxu0 %v5686
        %5853 = vmatprep.subr.mxu0 %v5691
        %5854 = vmatpush1.msra.mxu0 %v5690
        %5855 = vmatprep.subr.mxu0 %v5695
        %5856 = vmatpush1.msra.mxu0 %v5694
        %5857 = vmatprep.subr.mxu0 %v5699
        %5858 = vmatpush1.msra.mxu0 %v5698
        %5859 = vmatprep.subr.mxu0 %v5703
        %5860 = vmatpush1.msra.mxu0 %v5702
        %5861 = vmatprep.subr.mxu0 %v5707
        %5862 = vmatpush1.msra.mxu0 %v5706
        %5863 = vmatprep.subr.mxu0 %v5711
        %5864 = vmatpush1.msra.mxu0 %v5710
        %5865 = vmatprep.subr.mxu0 %v5715
        %5866 = vmatpush1.msra.mxu0 %v5714
        %5867 = vmatprep.subr.mxu0 %v5719
        %5868 = vmatpush1.msra.mxu0 %v5718
        %5869 = vmatprep.subr.mxu0 %v5723
        %5870 = vmatpush1.msra.mxu0 %v5722
        %5871 = vmatprep.subr.mxu0 %v5727
        %5872 = vmatpush1.msra.mxu0 %v5726
        %5873 = vmatprep.subr.mxu0 %v5731
        %5874 = vmatpush1.msra.mxu0 %v5730
        %5875 = vmatprep.subr.mxu0 %v5735
        %5876 = vmatpush1.msra.mxu0 %v5734
        %5877 = vmatprep.subr.mxu0 %v5739
        %5878 = vmatpush1.msra.mxu0 %v5738
        %5879 = vmatprep.subr.mxu0 %v5743
        %5880 = vmatpush1.msra.mxu0 %v5742
        %5881 = vmatprep.subr.mxu0 %v5747
        %5882 = vmatpush1.msra.mxu0 %v5746
        %5883 = vmatprep.subr.mxu0 %v5751
        %5884 = vmatpush1.msra.mxu0 %v5750
        %5885 = vmatprep.subr.mxu0 0.0
        %5886 = vmatpush1.msra.mxu0 0.0
        %5887 = vmatprep.subr.mxu0 0.0
        %5888 = vmatpush1.msra.mxu0 0.0
        %5889 = vmatprep.subr.mxu0 0.0
        %5890 = vmatpush1.msra.mxu0 0.0
        %5891 = vmatprep.subr.mxu0 0.0
        %5892 = vmatpush1.msra.mxu0 0.0
        %5893 = vmatprep.subr.mxu0 0.0
        %5894 = vmatpush1.msra.mxu0 0.0
        %5895 = vmatprep.subr.mxu0 0.0
        %5896 = vmatpush1.msra.mxu0 0.0
        %5897 = vmatprep.subr.mxu0 0.0
        %5898 = vmatpush1.msra.mxu0 0.0
        %5899 = vmatprep.mubr.f32.mxu0 %v5762
        %5900 = vmatmul.mubr.f32.gmra.mrb[0].mxu0 %v5756
        %v5901 = vpop.f32.mrb[0].mxu0
        %v5902 = vadd.f32 0.0, %v5901
        %v5903 = vpop.f32.mrb[0].mxu0
        %v5904 = vadd.f32 0.0, %v5903
        %5905 = vdwg.mxu0
        %v5910 = vcombine.low %v5831, %v5833
        %v5911 = vcombine.low %v5902, %v5904
        %v5913 = vunpack.c.l.s4 1966171168
        %v5914 = vunpack.c.0.s8 %v5913
        %v5915 = vlaneseq
        %v5916 = vshrl.u32 %v5915, 7
        %v5917 = vsub.s32 %v5914, %v5916
        %v5918 = vrot.slane %v5910, %v5917
        %v5920 = vunpack.c.l.s4 1966171168
        %v5921 = vunpack.c.0.s8 %v5920
        %v5922 = vlaneseq
        %v5923 = vshrl.u32 %v5922, 7
        %v5924 = vsub.s32 %v5921, %v5923
        %v5925 = vrot.slane %v5911, %v5924
        %v5926 = vcombine.low %v5918, %v5925
        %v5928 = vunpack.c.l.s4 1966171168
        %v5929 = vunpack.c.0.s8 %v5928
        %v5930 = vlaneseq
        %v5931 = vshrl.u32 %v5930, 7
        %v5932 = vsub.s32 %v5929, %v5931
        %v5933 = vrot.slane %v5926, %v5932
        %v5935 = vadd.f32 %v5648, %v5933
        %v5936 = vmax.f32 %v5935, 0.0
        %v5937 = vld [vmem:[%s15] sm:$0xff]
        %v5938 = vld [vmem:[%s15 + $0x8] sm:$0xff]
        %v5939 = vld [vmem:[%s15 + $0x10] sm:$0xff]
        %v5940 = vld [vmem:[%s15 + $0x18] sm:$0xff]
        %v5941 = vld [vmem:[%s15 + $0x20] sm:$0xff]
        %v5942 = vld [vmem:[%s15 + $0x28] sm:$0xff]
        %v5943 = vld [vmem:[%s15 + $0x30] sm:$0xff]
        %v5944 = vld [vmem:[%s15 + $0x38] sm:$0xff]
        %v5945 = vld [vmem:[%s15 + $0x40] sm:$0xff]
        %v5946 = vld [vmem:[%s15 + $0x48] sm:$0xff]
        %v5947 = vld [vmem:[%s15 + $0x50] sm:$0xff]
        %v5948 = vld [vmem:[%s15 + $0x58] sm:$0xff]
        %v5949 = vld [vmem:[%s15 + $0x60] sm:$0xff]
        %v5950 = vld [vmem:[%s15 + $0x68] sm:$0xff]
        %v5951 = vld [vmem:[%s15 + $0x70] sm:$0xff]
        %v5952 = vld [vmem:[%s15 + $0x78] sm:$0xff]
        %v5953 = vld [vmem:[%s15 + $0x80] sm:$0xff]
        %v5954 = vld [vmem:[%s15 + $0x88] sm:$0xff]
        %v5955 = vld [vmem:[%s15 + $0x90] sm:$0xff]
        %v5956 = vld [vmem:[%s15 + $0x98] sm:$0xff]
        %v5957 = vld [vmem:[%s15 + $0xa0] sm:$0xff]
        %v5958 = vld [vmem:[%s15 + $0xa8] sm:$0xff]
        %v5959 = vld [vmem:[%s15 + $0xb0] sm:$0xff]
        %v5960 = vld [vmem:[%s15 + $0xb8] sm:$0xff]
        %v5961 = vld [vmem:[%s15 + $0xc0] sm:$0xff]
        %v5962 = vld [vmem:[%s15 + $0xc8] sm:$0xff]
        %v5963 = vld [vmem:[%s15 + $0xd0] sm:$0xff]
        %v5964 = vld [vmem:[%s15 + $0xd8] sm:$0xff]
        %v5965 = vld [vmem:[%s15 + $0xe0] sm:$0xff]
        %v5966 = vld [vmem:[%s15 + $0xe8] sm:$0xff]
        %v5967 = vld [vmem:[%s15 + $0xf0] sm:$0xff]
        %v5968 = vld [vmem:[%s15 + $0xf8] sm:$0xff]
        %v5969 = vld [vmem:[%s15 + $0x100] sm:$0xff]
        %v5970 = vld [vmem:[%s15 + $0x108] sm:$0xff]
        %v5971 = vld [vmem:[%s15 + $0x110] sm:$0xff]
        %v5972 = vld [vmem:[%s15 + $0x118] sm:$0xff]
        %v5973 = vld [vmem:[%s15 + $0x120] sm:$0xff]
        %v5974 = vld [vmem:[%s15 + $0x128] sm:$0xff]
        %v5975 = vld [vmem:[%s15 + $0x130] sm:$0xff]
        %v5976 = vld [vmem:[%s15 + $0x138] sm:$0xff]
        %v5977 = vld [vmem:[%s15 + $0x140] sm:$0xff]
        %v5978 = vld [vmem:[%s15 + $0x148] sm:$0xff]
        %v5979 = vld [vmem:[%s15 + $0x150] sm:$0xff]
        %v5980 = vld [vmem:[%s15 + $0x158] sm:$0xff]
        %v5981 = vld [vmem:[%s15 + $0x160] sm:$0xff]
        %v5982 = vld [vmem:[%s15 + $0x168] sm:$0xff]
        %v5983 = vld [vmem:[%s15 + $0x170] sm:$0xff]
        %v5984 = vld [vmem:[%s15 + $0x178] sm:$0xff]
        %v5985 = vld [vmem:[%s15 + $0x180] sm:$0xff]
        %v5986 = vld [vmem:[%s15 + $0x188] sm:$0xff]
        %v5987 = vld [vmem:[%s15 + $0x190] sm:$0xff]
        %v5988 = vld [vmem:[%s15 + $0x198] sm:$0xff]
        %v5989 = vld [vmem:[%s15 + $0x1a0] sm:$0xff]
        %v5990 = vld [vmem:[%s15 + $0x1a8] sm:$0xff]
        %v5991 = vld [vmem:[%s15 + $0x1b0] sm:$0xff]
        %v5992 = vld [vmem:[%s15 + $0x1b8] sm:$0xff]
        %v5993 = vld [vmem:[%s15 + $0x1c0] sm:$0xff]
        %v5994 = vld [vmem:[%s15 + $0x1c8] sm:$0xff]
        %v5995 = vld [vmem:[%s15 + $0x1d0] sm:$0xff]
        %v5996 = vld [vmem:[%s15 + $0x1d8] sm:$0xff]
        %v5997 = vld [vmem:[%s15 + $0x1e0] sm:$0xff]
        %v5998 = vld [vmem:[%s15 + $0x1e8] sm:$0xff]
        %v5999 = vld [vmem:[%s15 + $0x1f0] sm:$0xf]
        %v6000 = vld [vmem:[%s16] sm:$0x1]
        %v6002 = vlaneseq
        %v6003 = vshrl.u32 %v6002, 7
        %v6004 = vsub.s32 0, %v6003
        %v6005 = vrot.slane %v5936, %v6004
        %v6006 = vlaneseq
        %v6007 = vshrl.u32 %v6006, 7
        %v6008 = vsub.s32 1, %v6007
        %v6009 = vrot.slane %v5936, %v6008
        %v6010 = vlaneseq
        %v6011 = vshrl.u32 %v6010, 7
        %v6012 = vsub.s32 2, %v6011
        %v6013 = vrot.slane %v5936, %v6012
        %v6014 = vlaneseq
        %v6015 = vshrl.u32 %v6014, 7
        %v6016 = vsub.s32 3, %v6015
        %v6017 = vrot.slane %v5936, %v6016
        %vm6021 = vcmask 949248
        %v6022 = vsel %vm6021, %v6017, 0
        %v6025 = vsel %vm595, %v5999, 0
        %6027 = vmatprep.subr.mxu0 0.0
        %6028 = vmatpush1.msra.mxu0 %v5937
        %6029 = vmatprep.subr.mxu0 0.0
        %6030 = vmatpush1.msra.mxu0 %v5938
        %6031 = vmatprep.subr.mxu0 0.0
        %6032 = vmatpush1.msra.mxu0 %v5939
        %6033 = vmatprep.subr.mxu0 0.0
        %6034 = vmatpush1.msra.mxu0 %v5940
        %6035 = vmatprep.subr.mxu0 0.0
        %6036 = vmatpush1.msra.mxu0 %v5941
        %6037 = vmatprep.subr.mxu0 0.0
        %6038 = vmatpush1.msra.mxu0 %v5942
        %6039 = vmatprep.subr.mxu0 0.0
        %6040 = vmatpush1.msra.mxu0 %v5943
        %6041 = vmatprep.subr.mxu0 0.0
        %6042 = vmatpush1.msra.mxu0 %v5944
        %6043 = vmatprep.subr.mxu0 0.0
        %6044 = vmatpush1.msra.mxu0 %v5945
        %6045 = vmatprep.subr.mxu0 0.0
        %6046 = vmatpush1.msra.mxu0 %v5946
        %6047 = vmatprep.subr.mxu0 0.0
        %6048 = vmatpush1.msra.mxu0 %v5947
        %6049 = vmatprep.subr.mxu0 0.0
        %6050 = vmatpush1.msra.mxu0 %v5948
        %6051 = vmatprep.subr.mxu0 0.0
        %6052 = vmatpush1.msra.mxu0 %v5949
        %6053 = vmatprep.subr.mxu0 0.0
        %6054 = vmatpush1.msra.mxu0 %v5950
        %6055 = vmatprep.subr.mxu0 0.0
        %6056 = vmatpush1.msra.mxu0 %v5951
        %6057 = vmatprep.subr.mxu0 0.0
        %6058 = vmatpush1.msra.mxu0 %v5952
        %6059 = vmatprep.subr.mxu0 0.0
        %6060 = vmatpush1.msra.mxu0 %v5953
        %6061 = vmatprep.subr.mxu0 0.0
        %6062 = vmatpush1.msra.mxu0 %v5954
        %6063 = vmatprep.subr.mxu0 0.0
        %6064 = vmatpush1.msra.mxu0 %v5955
        %6065 = vmatprep.subr.mxu0 0.0
        %6066 = vmatpush1.msra.mxu0 %v5956
        %6067 = vmatprep.subr.mxu0 0.0
        %6068 = vmatpush1.msra.mxu0 %v5957
        %6069 = vmatprep.subr.mxu0 0.0
        %6070 = vmatpush1.msra.mxu0 %v5958
        %6071 = vmatprep.subr.mxu0 0.0
        %6072 = vmatpush1.msra.mxu0 %v5959
        %6073 = vmatprep.subr.mxu0 0.0
        %6074 = vmatpush1.msra.mxu0 %v5960
        %6075 = vmatprep.subr.mxu0 0.0
        %6076 = vmatpush1.msra.mxu0 %v5961
        %6077 = vmatprep.subr.mxu0 0.0
        %6078 = vmatpush1.msra.mxu0 %v5962
        %6079 = vmatprep.subr.mxu0 0.0
        %6080 = vmatpush1.msra.mxu0 %v5963
        %6081 = vmatprep.subr.mxu0 0.0
        %6082 = vmatpush1.msra.mxu0 %v5964
        %6083 = vmatprep.subr.mxu0 0.0
        %6084 = vmatpush1.msra.mxu0 %v5965
        %6085 = vmatprep.subr.mxu0 0.0
        %6086 = vmatpush1.msra.mxu0 %v5966
        %6087 = vmatprep.subr.mxu0 0.0
        %6088 = vmatpush1.msra.mxu0 %v5967
        %6089 = vmatprep.subr.mxu0 0.0
        %6090 = vmatpush1.msra.mxu0 %v5968
        %6091 = vmatprep.mubr.f32.mxu0 %v6009
        %6092 = vmatmul.mubr.f32.gmra.mrb[0].mxu0 %v6005
        %v6093 = vpop.f32.mrb[0].mxu0
        %v6094 = vadd.f32 %v6000, %v6093
        %v6095 = vpop.f32.mrb[0].mxu0
        %6096 = vdwg.mxu0
        %6097 = vmatprep.subr.mxu0 0.0
        %6098 = vmatpush1.msra.mxu0 %v5969
        %6099 = vmatprep.subr.mxu0 0.0
        %6100 = vmatpush1.msra.mxu0 %v5970
        %6101 = vmatprep.subr.mxu0 0.0
        %6102 = vmatpush1.msra.mxu0 %v5971
        %6103 = vmatprep.subr.mxu0 0.0
        %6104 = vmatpush1.msra.mxu0 %v5972
        %6105 = vmatprep.subr.mxu0 0.0
        %6106 = vmatpush1.msra.mxu0 %v5973
        %6107 = vmatprep.subr.mxu0 0.0
        %6108 = vmatpush1.msra.mxu0 %v5974
        %6109 = vmatprep.subr.mxu0 0.0
        %6110 = vmatpush1.msra.mxu0 %v5975
        %6111 = vmatprep.subr.mxu0 0.0
        %6112 = vmatpush1.msra.mxu0 %v5976
        %6113 = vmatprep.subr.mxu0 0.0
        %6114 = vmatpush1.msra.mxu0 %v5977
        %6115 = vmatprep.subr.mxu0 0.0
        %6116 = vmatpush1.msra.mxu0 %v5978
        %6117 = vmatprep.subr.mxu0 0.0
        %6118 = vmatpush1.msra.mxu0 %v5979
        %6119 = vmatprep.subr.mxu0 0.0
        %6120 = vmatpush1.msra.mxu0 %v5980
        %6121 = vmatprep.subr.mxu0 0.0
        %6122 = vmatpush1.msra.mxu0 %v5981
        %6123 = vmatprep.subr.mxu0 0.0
        %6124 = vmatpush1.msra.mxu0 %v5982
        %6125 = vmatprep.subr.mxu0 0.0
        %6126 = vmatpush1.msra.mxu0 %v5983
        %6127 = vmatprep.subr.mxu0 0.0
        %6128 = vmatpush1.msra.mxu0 %v5984
        %6129 = vmatprep.subr.mxu0 0.0
        %6130 = vmatpush1.msra.mxu0 %v5985
        %6131 = vmatprep.subr.mxu0 0.0
        %6132 = vmatpush1.msra.mxu0 %v5986
        %6133 = vmatprep.subr.mxu0 0.0
        %6134 = vmatpush1.msra.mxu0 %v5987
        %6135 = vmatprep.subr.mxu0 0.0
        %6136 = vmatpush1.msra.mxu0 %v5988
        %6137 = vmatprep.subr.mxu0 0.0
        %6138 = vmatpush1.msra.mxu0 %v5989
        %6139 = vmatprep.subr.mxu0 0.0
        %6140 = vmatpush1.msra.mxu0 %v5990
        %6141 = vmatprep.subr.mxu0 0.0
        %6142 = vmatpush1.msra.mxu0 %v5991
        %6143 = vmatprep.subr.mxu0 0.0
        %6144 = vmatpush1.msra.mxu0 %v5992
        %6145 = vmatprep.subr.mxu0 0.0
        %6146 = vmatpush1.msra.mxu0 %v5993
        %6147 = vmatprep.subr.mxu0 0.0
        %6148 = vmatpush1.msra.mxu0 %v5994
        %6149 = vmatprep.subr.mxu0 0.0
        %6150 = vmatpush1.msra.mxu0 %v5995
        %6151 = vmatprep.subr.mxu0 0.0
        %6152 = vmatpush1.msra.mxu0 %v5996
        %6153 = vmatprep.subr.mxu0 0.0
        %6154 = vmatpush1.msra.mxu0 %v5997
        %6155 = vmatprep.subr.mxu0 0.0
        %6156 = vmatpush1.msra.mxu0 %v5998
        %6157 = vmatprep.subr.mxu0 0.0
        %6158 = vmatpush1.msra.mxu0 %v6025
        %6159 = vmatprep.subr.mxu0 0.0
        %6160 = vmatpush1.msra.mxu0 0.0
        %6161 = vmatprep.mubr.f32.mxu0 %v6022
        %6162 = vmatmul.mubr.f32.gmra.mrb[0].mxu0 %v6013
        %v6163 = vpop.f32.mrb[0].mxu0
        %v6164 = vadd.f32 %v6094, %v6163
        %v6165 = vpop.f32.mrb[0].mxu0
        %6166 = vdwg.mxu0
        %vm6167 = vcmask 73728
        %6168 = vst.msk [vmem:[%s540] sm:$0x1] %vm6167, %v6164
        %s6169 = sand.u32 %s401, 1
        %s6170 = scalar_lea.sflag [#allocation5], %s6169
        %s6171 = sand.u32 %s401, 1
        %s6172 = scalar_lea.vmem [#allocation4], %s6171
        // Predicated region
        $region89: #{forward.1} parent=87 // pred_check
          %p6173 = pneg %p411
        $region90: #{forward.1} parent=87 // pred_check_branch
          %6175 = sbr.rel (%p6173) target = $region92
        $region91: #{forward.1} parent=87 // pred_region
          %s6177 = ssub.s32 16, 16
          %6178 = vsyncadd %s6170, %s6177
          %s6179 = smul.addr %s31, 16
          %s6180 = scalar_lea.hbm %s17, %s6179
          %s6182 = sshll.u32 %s6172, 4
          %s6183 = int_to_ptr.vmem [resolvable:$true] %s6182
          %6185 = dma.vmem_to_hbm [thread:$0]  %s6183, 16, %s6180, %s6170
        $region92: #{forward.1} parent=87 // pred_fallthru
          _
      $region88: #{forward.1} parent=5 // pred_fallthru
        _
      %p6186 = scmp.le.s32.totalorder 2, %s26
      // Predicated region
      $region93: #{forward.1} parent=5 // pred_check
        %p6187 = pneg %p6186
      $region94: #{forward.1} parent=5 // pred_check_branch
        %6189 = sbr.rel (%p6187) target = $region96
      $region95: #{forward.1} parent=5 // pred_region
        %s6190 = ssub.s32 %s26, 2
        // Predicated region
        $region97: #{forward.1} parent=95 // pred_check
          %p6191 = pneg %p417
        $region98: #{forward.1} parent=95 // pred_check_branch
          %6193 = sbr.rel (%p6191) target = $region100
        $region99: #{forward.1} parent=95 // pred_region
          %s6194 = sand.u32 %s402, 1
          %s6195 = scalar_lea.sflag [#allocation5], %s6194
          %s6196 = sand.u32 %s402, 1
          %s6197 = scalar_lea.vmem [#allocation4], %s6196
          %6198 = dma.done %s6195, 16
        $region100: #{forward.1} parent=95 // pred_fallthru
          _
      $region96: #{forward.1} parent=5 // pred_fallthru
        _
    $region6: #{forward.1} parent=1 // loop_footer
      %s30 = sadd.s32 1, %s26
    $region7: #{forward.1} parent=1 // loop_footer_branch
      %25 = sbr.rel target = $region3
    $region8: #{forward.1} parent=1 // loop_exit
      _
    %6199 = vsyncpa [#allocation5], 1
    %s6200 = scalar_lea.sflag [#allocation5], 1
    %6201 = vsyncpa %s6200, 1

</llo_original>
